<compile_context>
chip_gen: v7x
topology: tpu7x:2x2x1
jax: 0.10.0
libtpu: 0.0.40
codegen_flags: <defaults>
</compile_context>

<pallas_src>
import math

import jax
import jax.numpy as jnp
from jax import lax
from jax.experimental import pallas as pl
from jax.experimental.pallas import tpu as pltpu


# Static geometry of the model (H, W) of x1, x2, x11, x12, x21, x22.
_BLOCK_HW = [(4, 3), (3, 4), (4, 2), (3, 3), (3, 3), (2, 4)]
_CHUNK_POS = [h * w for h, w in _BLOCK_HW]                  # [12,12,8,9,9,8]
_CHUNK_OFF = [sum(_CHUNK_POS[:i]) for i in range(len(_CHUNK_POS))]
_N_POS = sum(_CHUNK_POS)                                    # 58 spatial positions
_MAX_CHUNK = max(_CHUNK_POS)                                # 12
_C = 128
_FC_HIDDEN = 256
_N_ACTIONS = 4


# ------------------------------ fused kernel --------------------------------

def _fused_dqn_kernel(a1_ref, a2_ref, wl1_ref, bl1_ref, wl2_ref, bl2_ref,
                      w1p_hbm, bfc1_ref, wfc2_ref, bfc2_ref,
                      out_ref, wbuf, sems):
    nb = a1_ref.shape[0] // 12                   # batch size (static)

    def w1_chunk_copy(c, slot):
        rows = _CHUNK_POS[c] * _C
        return pltpu.make_async_copy(
            w1p_hbm.at[pl.ds(_CHUNK_OFF[c] * _C, rows)],
            wbuf.at[slot, pl.ds(0, rows)],
            sems.at[slot])

    # Kick off the first two fc1-weight chunks right away; they stream from
    # HBM underneath the conv matmuls.
    w1_chunk_copy(0, 0).start()
    w1_chunk_copy(1, 1).start()

    def dot(a, b):
        return jnp.dot(a, b, preferred_element_type=jnp.float32)

    relu = lambda v: jnp.maximum(v, 0.0)

    # ---- level-1 convs: one matmul each (im2col built on host) -------------
    # Rows are ordered (h, w, n); the 128 output channels sit on lanes.
    x1 = relu(dot(a1_ref[...], wl1_ref[0]) + bl1_ref[0])   # (12*nb,128) HxW=4x3
    x2 = relu(dot(a2_ref[...], wl1_ref[1]) + bl1_ref[1])   # (12*nb,128) HxW=3x4

    # ---- level-2 convs: both taps fused into one K=256 matmul --------------
    def tap2(left, right, w, b):
        return relu(dot(jnp.concatenate([left, right], axis=1), w) + b)

    # conv11: 1x2 on x1 (4x3 -> 4x2); per output-row h use taps w and w+1.
    w11, b11 = wl2_ref[0], bl2_ref[0]
    x11_rows = [tap2(x1[h * 3 * nb: h * 3 * nb + 2 * nb, :],
                     x1[h * 3 * nb + nb: h * 3 * nb + 3 * nb, :], w11, b11)
                for h in range(4)]                          # 4 x (2*nb, 128)

    # conv12: 2x1 on x1 (4x3 -> 3x3); both taps are contiguous slices.
    x12 = tap2(x1[0:9 * nb, :], x1[3 * nb:12 * nb, :],
               wl2_ref[1], bl2_ref[1])                      # (9*nb, 128)

    # conv21: 1x2 on x2 (3x4 -> 3x3).
    w21, b21 = wl2_ref[2], bl2_ref[2]
    x21_rows = [tap2(x2[h * 4 * nb: h * 4 * nb + 3 * nb, :],
                     x2[h * 4 * nb + nb: h * 4 * nb + 4 * nb, :], w21, b21)
                for h in range(3)]                          # 3 x (3*nb, 128)

    # conv22: 2x1 on x2 (3x4 -> 2x4); contiguous slices.
    x22 = tap2(x2[0:8 * nb, :], x2[4 * nb:12 * nb, :],
               wl2_ref[3], bl2_ref[3])                      # (8*nb, 128)

    # chunk_groups[c] lists (activation piece, n_positions); the global order
    # of positions matches torch's cat((x1,x2,x11,x12,x21,x22)) flatten order.
    chunk_groups = [
        [(x1, 12)],
        [(x2, 12)],
        [(r, 2) for r in x11_rows],
        [(x12, 9)],
        [(r, 3) for r in x21_rows],
        [(x22, 8)],
    ]

    # ---- FC head: per-block fc1 matmuls overlapped with the weight DMA -----
    acc = jnp.zeros((nb, _FC_HIDDEN), jnp.float32)
    n_chunks = len(chunk_groups)
    for c in range(n_chunks):
        slot = c & 1
        w1_chunk_copy(c, slot).wait()            # this block's weights in VMEM
        lp = 0
        for blk, npos in chunk_groups[c]:
            # rows (pos, n) -> lane-concat to (nb, npos*128); one matmul/piece.
            z = jnp.concatenate(
                [blk[p * nb:(p + 1) * nb, :] for p in range(npos)], axis=1)
            w = wbuf[slot, lp * _C:(lp + npos) * _C, :]
            acc = acc + dot(z, w)
            lp += npos
        @pl.when(jnp.bool_(c + 2 < n_chunks))    # static; folds away
        def _():
            pass
        if c + 2 < n_chunks:                     # prefetch into the freed slot
            w1_chunk_copy(c + 2, slot).start()

    h1 = relu(acc + bfc1_ref[...])
    out_ref[...] = dot(h1, wfc2_ref[...]) + bfc2_ref[...]


# --------------------------- host-side wrappers ------------------------------

def _im2col_level1(x):
    """x: (N,16,4,4) NCHW -> im2col for conv1/conv2 with rows (h, w, n)."""
    nb = x.shape[0]
    # conv1 (1x2): cols ordered (c, kw) to match conv1_w.reshape(128, 32)
    p1 = jnp.stack([x[:, :, :, 0:3], x[:, :, :, 1:4]], axis=-1)   # (n,c,h,w,kw)
    a1 = p1.transpose(2, 3, 0, 1, 4).reshape(12 * nb, 32)
    # conv2 (2x1): cols ordered (c, kh)
    p2 = jnp.stack([x[:, :, 0:3, :], x[:, :, 1:4, :]], axis=-1)   # (n,c,h,w,kh)
    a2 = p2.transpose(2, 3, 0, 1, 4).reshape(12 * nb, 32)
    return a1, a2


def prepare_params(params):
    """ONE-TIME repack of torch-layout params into kernel-friendly layouts."""
    wl1 = jnp.stack([params["conv1_w"].reshape(_C, 32).T,
                     params["conv2_w"].reshape(_C, 32).T])               # (2,32,128)
    bl1 = jnp.stack([params["conv1_b"].reshape(1, _C),
                     params["conv2_b"].reshape(1, _C)])                  # (2,1,128)

    def taps_w(w):
        # (cout, cin, kh, kw) with kh*kw == 2 -> (2*cin, cout):
        # tap-0 rows (cin) then tap-1 rows, matching the kernel's lane-concat.
        t = w.reshape(_C, _C, 2)
        return jnp.concatenate([t[:, :, 0].T, t[:, :, 1].T], axis=0)     # (256,128)

    wl2 = jnp.stack([taps_w(params["conv11_w"]), taps_w(params["conv12_w"]),
                     taps_w(params["conv21_w"]), taps_w(params["conv22_w"])])
    bl2 = jnp.stack([params[f"conv{k}_b"].reshape(1, _C)
                     for k in ("11", "12", "21", "22")])                 # (4,1,128)

    # fc1_w: (256, 7424) -> (7424, 256) with rows reordered from torch's
    # (block, cin, h, w) flatten order into the kernel's (block, h, w, cin).
    w1t = params["fc1_w"].T                                              # (7424,256)
    segs, off = [], 0
    for hh, ww in _BLOCK_HW:
        p = hh * ww
        seg = (w1t[off:off + _C * p]
               .reshape(_C, p, _FC_HIDDEN).transpose(1, 0, 2)
               .reshape(p * _C, _FC_HIDDEN))
        segs.append(seg)
        off += _C * p
    w1p = jnp.concatenate(segs, axis=0)                                  # (7424,256)

    return {
        "wl1": wl1, "bl1": bl1, "wl2": wl2, "bl2": bl2,
        "w1p": w1p,
        "bfc1": params["fc1_b"].reshape(1, _FC_HIDDEN),
        "wfc2": params["fc2_w"].T,                                       # (256, 4)
        "bfc2": params["fc2_b"].reshape(1, _N_ACTIONS),
    }


def dqn_forward(prep, x):
    nb = x.shape[0]
    a1, a2 = _im2col_level1(x)

    def full(shape):
        return pl.BlockSpec(shape, lambda i: (0,) * len(shape))

    return pl.pallas_call(
        _fused_dqn_kernel,
        out_shape=jax.ShapeDtypeStruct((nb, _N_ACTIONS), jnp.float32),
        grid=(1,),
        in_specs=[
            full((12 * nb, 32)),                 # a1 (conv1 im2col)
            full((12 * nb, 32)),                 # a2 (conv2 im2col)
            full((2, 32, _C)),                   # level-1 conv weights
            full((2, 1, _C)),                    # level-1 conv biases
            full((4, 2 * _C, _C)),               # level-2 conv weights (taps stacked)
            full((4, 1, _C)),                    # level-2 conv biases
            pl.BlockSpec(memory_space=pl.ANY),   # permuted fc1 weight (HBM, manual DMA)
            full((1, _FC_HIDDEN)),               # fc1 bias
            full((_FC_HIDDEN, _N_ACTIONS)),      # fc2 weight (pre-transposed)
            full((1, _N_ACTIONS)),               # fc2 bias
        ],
        out_specs=full((nb, _N_ACTIONS)),
        scratch_shapes=[
            pltpu.VMEM((2, _MAX_CHUNK * _C, _FC_HIDDEN), jnp.float32),  # fc1 wt 2-slot buf
            pltpu.SemaphoreType.DMA((2,)),
        ],
        compiler_params=pltpu.CompilerParams(
            dimension_semantics=("arbitrary",),
            vmem_limit_bytes=32 * 1024 * 1024,   # ~5 MiB used; safe on v7x (64 MiB)
        ),
    )(a1, a2, prep["wl1"], prep["bl1"], prep["wl2"], prep["bl2"],
      prep["w1p"], prep["bfc1"], prep["wfc2"], prep["bfc2"])


# --------------------------- deterministic params ---------------------------

def init_params(key):
    def uni(k, shape, fan_in):
        bound = 1.0 / math.sqrt(fan_in)
        return jax.random.uniform(k, shape, jnp.float32, -bound, bound)

    names_shapes = [
        ("conv1", (128, 16, 1, 2)),
        ("conv2", (128, 16, 2, 1)),
        ("conv11", (128, 128, 1, 2)),
        ("conv12", (128, 128, 2, 1)),
        ("conv21", (128, 128, 1, 2)),
        ("conv22", (128, 128, 2, 1)),
    ]
    params = {}
    keys = jax.random.split(key, 2 * len(names_shapes) + 4)
    i = 0
    for name, shp in names_shapes:
        fan_in = shp[1] * shp[2] * shp[3]
        params[f"{name}_w"] = uni(keys[i], shp, fan_in); i += 1
        params[f"{name}_b"] = uni(keys[i], (shp[0],), fan_in); i += 1

    first_layer = 4 * 3 * 128 * 2
    second_layer = 2 * 4 * 128 * 2 + 3 * 3 * 128 * 2
    in_features = first_layer + second_layer     # 7424
    params["fc1_w"] = uni(keys[i], (256, in_features), in_features); i += 1
    params["fc1_b"] = uni(keys[i], (256,), in_features); i += 1
    params["fc2_w"] = uni(keys[i], (4, 256), 256); i += 1
    params["fc2_b"] = uni(keys[i], (4,), 256); i += 1
    return params


# ------------------------------ pure-JAX reference ---------------------------

def dqn_forward_ref(params, x):
    def conv(x, w, b):
        y = lax.conv_general_dilated(
            x, w, window_strides=(1, 1), padding="VALID",
            dimension_numbers=("NCHW", "OIHW", "NCHW"))
        return jnp.maximum(y + b[None, :, None, None], 0.0)

    x1 = conv(x, params["conv1_w"], params["conv1_b"])
    x2 = conv(x, params["conv2_w"], params["conv2_b"])
    x11 = conv(x1, params["conv11_w"], params["conv11_b"])
    x12 = conv(x1, params["conv12_w"], params["conv12_b"])
    x21 = conv(x2, params["conv21_w"], params["conv21_b"])
    x22 = conv(x2, params["conv22_w"], params["conv22_b"])
    N = x.shape[0]
    z = jnp.concatenate([t.reshape(N, -1) for t in (x1, x2, x11, x12, x21, x22)], axis=1)
    h = jnp.maximum(z @ params["fc1_w"].T + params["fc1_b"], 0.0)
    return h @ params["fc2_w"].T + params["fc2_b"]


if __name__ == "__main__":
    key = jax.random.PRNGKey(0)
    k_params, k_x = jax.random.split(key)
    params = init_params(k_params)
    prep = prepare_params(params)            # one-time weight repack (no per-call .T)
    # Input implied by the module: 2048 board one-hot planes, NCHW = (N, 16, 4, 4)
    x = jax.random.uniform(k_x, (2, 16, 4, 4), jnp.float32)

    fwd = jax.jit(dqn_forward)
    out = jax.block_until_ready(fwd(prep, x))
    ref = jax.block_until_ready(dqn_forward_ref(params, x))

    assert out.shape == (2, 4), out.shape
    assert jnp.allclose(out, ref, atol=1e-4, rtol=1e-4), (out, ref)
    print("KERNEL_OK")
</pallas_src>

<mosaic_0001>
module attributes {stable_mosaic.version = 11 : i64} {
  func.func @_fused_dqn_kernel(%arg0: i32, %arg1: memref<24x32xf32, #tpu.memory_space<vmem>>, %arg2: memref<24x32xf32, #tpu.memory_space<vmem>>, %arg3: memref<2x32x128xf32, #tpu.memory_space<vmem>>, %arg4: memref<2x1x128xf32, #tpu.memory_space<vmem>>, %arg5: memref<4x256x128xf32, #tpu.memory_space<vmem>>, %arg6: memref<4x1x128xf32, #tpu.memory_space<vmem>>, %arg7: memref<7424x256xf32, #tpu.memory_space<any>>, %arg8: memref<1x256xf32, #tpu.memory_space<vmem>>, %arg9: memref<256x4xf32, #tpu.memory_space<vmem>>, %arg10: memref<1x4xf32, #tpu.memory_space<vmem>>, %arg11: memref<2x4xf32, #tpu.memory_space<vmem>>, %arg12: memref<2x1536x256xf32, #tpu.memory_space<vmem>>, %arg13: memref<2x!tpu.dma_semaphore, #tpu.memory_space<semaphore_mem>>) attributes {dimension_semantics = [#tpu.dimension_semantics<arbitrary>], iteration_bounds = array<i64: 1>, scalar_prefetch = 0 : i64, scratch_operands = 2 : i64, tpu.core_type = #tpu.core_type<tc>, window_params = [{pipeline_mode = #tpu.pipeline_mode<synchronous>, transform_indices = @transform_0, window_bounds = array<i64: 24, 32>}, {pipeline_mode = #tpu.pipeline_mode<synchronous>, transform_indices = @transform_1, window_bounds = array<i64: 24, 32>}, {pipeline_mode = #tpu.pipeline_mode<synchronous>, transform_indices = @transform_2, window_bounds = array<i64: 2, 32, 128>}, {pipeline_mode = #tpu.pipeline_mode<synchronous>, transform_indices = @transform_3, window_bounds = array<i64: 2, 1, 128>}, {pipeline_mode = #tpu.pipeline_mode<synchronous>, transform_indices = @transform_4, window_bounds = array<i64: 4, 256, 128>}, {pipeline_mode = #tpu.pipeline_mode<synchronous>, transform_indices = @transform_5, window_bounds = array<i64: 4, 1, 128>}, {}, {pipeline_mode = #tpu.pipeline_mode<synchronous>, transform_indices = @transform_7, window_bounds = array<i64: 1, 256>}, {pipeline_mode = #tpu.pipeline_mode<synchronous>, transform_indices = @transform_8, window_bounds = array<i64: 256, 4>}, {pipeline_mode = #tpu.pipeline_mode<synchronous>, transform_indices = @transform_9, window_bounds = array<i64: 1, 4>}, {pipeline_mode = #tpu.pipeline_mode<synchronous>, transform_indices = @transform_10, window_bounds = array<i64: 2, 4>}]} {
    %c0_i32 = arith.constant 0 : i32
    %c0_i32_0 = arith.constant 0 : i32
    %c0_i32_1 = arith.constant 0 : i32
    %c0_i32_2 = arith.constant 0 : i32
    %0 = tpu.memref_slice %arg7[%c0_i32_1, %c0_i32_2] : memref<7424x256xf32, #tpu.memory_space<any>> -> memref<1536x256xf32, #tpu.memory_space<any>>
    %c0_i32_3 = arith.constant 0 : i32
    %c0_i32_4 = arith.constant 0 : i32
    %1 = tpu.memref_slice %arg12[%c0_i32, %c0_i32_3, %c0_i32_4] : memref<2x1536x256xf32, #tpu.memory_space<vmem>> -> memref<1x1536x256xf32, #tpu.memory_space<vmem>>
    %2 = tpu.memref_squeeze %1 : memref<1x1536x256xf32, #tpu.memory_space<vmem>> -> memref<1536x256xf32, #tpu.memory_space<vmem>>
    %3 = tpu.memref_slice %arg13[%c0_i32_0] : memref<2x!tpu.dma_semaphore, #tpu.memory_space<semaphore_mem>> -> memref<1x!tpu.dma_semaphore, #tpu.memory_space<semaphore_mem>>
    %4 = tpu.memref_squeeze %3 : memref<1x!tpu.dma_semaphore, #tpu.memory_space<semaphore_mem>> -> memref<!tpu.dma_semaphore, #tpu.memory_space<semaphore_mem>>
    tpu.enqueue_dma source(%0 : memref<1536x256xf32, #tpu.memory_space<any>>) target(%2 : memref<1536x256xf32, #tpu.memory_space<vmem>>) target_semaphore(%4 : memref<!tpu.dma_semaphore, #tpu.memory_space<semaphore_mem>>)
    %c1_i32 = arith.constant 1 : i32
    %c1_i32_5 = arith.constant 1 : i32
    %c1536_i32 = arith.constant 1536 : i32
    %c0_i32_6 = arith.constant 0 : i32
    %5 = tpu.memref_slice %arg7[%c1536_i32, %c0_i32_6] : memref<7424x256xf32, #tpu.memory_space<any>> -> memref<1536x256xf32, #tpu.memory_space<any>>
    %c0_i32_7 = arith.constant 0 : i32
    %c0_i32_8 = arith.constant 0 : i32
    %6 = tpu.memref_slice %arg12[%c1_i32, %c0_i32_7, %c0_i32_8] : memref<2x1536x256xf32, #tpu.memory_space<vmem>> -> memref<1x1536x256xf32, #tpu.memory_space<vmem>>
    %7 = tpu.memref_squeeze %6 : memref<1x1536x256xf32, #tpu.memory_space<vmem>> -> memref<1536x256xf32, #tpu.memory_space<vmem>>
    %8 = tpu.memref_slice %arg13[%c1_i32_5] : memref<2x!tpu.dma_semaphore, #tpu.memory_space<semaphore_mem>> -> memref<1x!tpu.dma_semaphore, #tpu.memory_space<semaphore_mem>>
    %9 = tpu.memref_squeeze %8 : memref<1x!tpu.dma_semaphore, #tpu.memory_space<semaphore_mem>> -> memref<!tpu.dma_semaphore, #tpu.memory_space<semaphore_mem>>
    tpu.enqueue_dma source(%5 : memref<1536x256xf32, #tpu.memory_space<any>>) target(%7 : memref<1536x256xf32, #tpu.memory_space<vmem>>) target_semaphore(%9 : memref<!tpu.dma_semaphore, #tpu.memory_space<semaphore_mem>>)
    %c0 = arith.constant 0 : index
    %c0_9 = arith.constant 0 : index
    %10 = vector.load %arg1[%c0, %c0_9] : memref<24x32xf32, #tpu.memory_space<vmem>>, vector<24x32xf32>
    %c0_10 = arith.constant 0 : index
    %c0_11 = arith.constant 0 : index
    %c0_12 = arith.constant 0 : index
    %11 = vector.load %arg3[%c0_10, %c0_11, %c0_12] : memref<2x32x128xf32, #tpu.memory_space<vmem>>, vector<1x32x128xf32>
    %12 = vector.shape_cast %11 : vector<1x32x128xf32> to vector<32x128xf32>
    %cst = arith.constant dense<0.000000e+00> : vector<24x128xf32>
    %13 = tpu.matmul %10, %12, %cst {dimension_numbers = #tpu.dot_dimension_numbers<[1], [0], [0], [1], [0, 0, 1, 1], [], []>} : vector<24x32xf32>, vector<32x128xf32>, vector<24x128xf32> -> vector<24x128xf32>
    %c0_13 = arith.constant 0 : index
    %c0_14 = arith.constant 0 : index
    %c0_15 = arith.constant 0 : index
    %14 = vector.load %arg4[%c0_13, %c0_14, %c0_15] : memref<2x1x128xf32, #tpu.memory_space<vmem>>, vector<1x1x128xf32>
    %15 = vector.shape_cast %14 : vector<1x1x128xf32> to vector<1x128xf32>
    %16 = vector.broadcast %15 : vector<1x128xf32> to vector<24x128xf32>
    %17 = arith.addf %13, %16 : vector<24x128xf32>
    %cst_16 = arith.constant 0.000000e+00 : f32
    %18 = vector.broadcast %cst_16 : f32 to vector<24x128xf32>
    %19 = arith.maximumf %17, %18 : vector<24x128xf32>
    %c0_17 = arith.constant 0 : index
    %c0_18 = arith.constant 0 : index
    %20 = vector.load %arg2[%c0_17, %c0_18] : memref<24x32xf32, #tpu.memory_space<vmem>>, vector<24x32xf32>
    %c1 = arith.constant 1 : index
    %c0_19 = arith.constant 0 : index
    %c0_20 = arith.constant 0 : index
    %21 = vector.load %arg3[%c1, %c0_19, %c0_20] : memref<2x32x128xf32, #tpu.memory_space<vmem>>, vector<1x32x128xf32>
    %22 = vector.shape_cast %21 : vector<1x32x128xf32> to vector<32x128xf32>
    %cst_21 = arith.constant dense<0.000000e+00> : vector<24x128xf32>
    %23 = tpu.matmul %20, %22, %cst_21 {dimension_numbers = #tpu.dot_dimension_numbers<[1], [0], [0], [1], [0, 0, 1, 1], [], []>} : vector<24x32xf32>, vector<32x128xf32>, vector<24x128xf32> -> vector<24x128xf32>
    %c1_22 = arith.constant 1 : index
    %c0_23 = arith.constant 0 : index
    %c0_24 = arith.constant 0 : index
    %24 = vector.load %arg4[%c1_22, %c0_23, %c0_24] : memref<2x1x128xf32, #tpu.memory_space<vmem>>, vector<1x1x128xf32>
    %25 = vector.shape_cast %24 : vector<1x1x128xf32> to vector<1x128xf32>
    %26 = vector.broadcast %25 : vector<1x128xf32> to vector<24x128xf32>
    %27 = arith.addf %23, %26 : vector<24x128xf32>
    %cst_25 = arith.constant 0.000000e+00 : f32
    %28 = vector.broadcast %cst_25 : f32 to vector<24x128xf32>
    %29 = arith.maximumf %27, %28 : vector<24x128xf32>
    %c0_26 = arith.constant 0 : index
    %c0_27 = arith.constant 0 : index
    %c0_28 = arith.constant 0 : index
    %30 = vector.load %arg5[%c0_26, %c0_27, %c0_28] : memref<4x256x128xf32, #tpu.memory_space<vmem>>, vector<1x256x128xf32>
    %31 = vector.shape_cast %30 : vector<1x256x128xf32> to vector<256x128xf32>
    %c0_29 = arith.constant 0 : index
    %c0_30 = arith.constant 0 : index
    %c0_31 = arith.constant 0 : index
    %32 = vector.load %arg6[%c0_29, %c0_30, %c0_31] : memref<4x1x128xf32, #tpu.memory_space<vmem>>, vector<1x1x128xf32>
    %33 = vector.shape_cast %32 : vector<1x1x128xf32> to vector<1x128xf32>
    %34 = vector.extract_strided_slice %19 {offsets = [0, 0], sizes = [4, 128], strides = [1, 1]} : vector<24x128xf32> to vector<4x128xf32>
    %35 = vector.extract_strided_slice %19 {offsets = [2, 0], sizes = [4, 128], strides = [1, 1]} : vector<24x128xf32> to vector<4x128xf32>
    %36 = tpu.concatenate %34, %35 in 1 : vector<4x128xf32>, vector<4x128xf32> -> vector<4x256xf32>
    %cst_32 = arith.constant dense<0.000000e+00> : vector<4x128xf32>
    %37 = tpu.matmul %36, %31, %cst_32 {dimension_numbers = #tpu.dot_dimension_numbers<[1], [0], [0], [1], [0, 0, 1, 1], [], []>} : vector<4x256xf32>, vector<256x128xf32>, vector<4x128xf32> -> vector<4x128xf32>
    %38 = vector.broadcast %33 : vector<1x128xf32> to vector<4x128xf32>
    %39 = arith.addf %37, %38 : vector<4x128xf32>
    %cst_33 = arith.constant 0.000000e+00 : f32
    %40 = vector.broadcast %cst_33 : f32 to vector<4x128xf32>
    %41 = arith.maximumf %39, %40 : vector<4x128xf32>
    %42 = vector.extract_strided_slice %19 {offsets = [6, 0], sizes = [4, 128], strides = [1, 1]} : vector<24x128xf32> to vector<4x128xf32>
    %43 = vector.extract_strided_slice %19 {offsets = [8, 0], sizes = [4, 128], strides = [1, 1]} : vector<24x128xf32> to vector<4x128xf32>
    %44 = tpu.concatenate %42, %43 in 1 : vector<4x128xf32>, vector<4x128xf32> -> vector<4x256xf32>
    %cst_34 = arith.constant dense<0.000000e+00> : vector<4x128xf32>
    %45 = tpu.matmul %44, %31, %cst_34 {dimension_numbers = #tpu.dot_dimension_numbers<[1], [0], [0], [1], [0, 0, 1, 1], [], []>} : vector<4x256xf32>, vector<256x128xf32>, vector<4x128xf32> -> vector<4x128xf32>
    %46 = vector.broadcast %33 : vector<1x128xf32> to vector<4x128xf32>
    %47 = arith.addf %45, %46 : vector<4x128xf32>
    %cst_35 = arith.constant 0.000000e+00 : f32
    %48 = vector.broadcast %cst_35 : f32 to vector<4x128xf32>
    %49 = arith.maximumf %47, %48 : vector<4x128xf32>
    %50 = vector.extract_strided_slice %19 {offsets = [12, 0], sizes = [4, 128], strides = [1, 1]} : vector<24x128xf32> to vector<4x128xf32>
    %51 = vector.extract_strided_slice %19 {offsets = [14, 0], sizes = [4, 128], strides = [1, 1]} : vector<24x128xf32> to vector<4x128xf32>
    %52 = tpu.concatenate %50, %51 in 1 : vector<4x128xf32>, vector<4x128xf32> -> vector<4x256xf32>
    %cst_36 = arith.constant dense<0.000000e+00> : vector<4x128xf32>
    %53 = tpu.matmul %52, %31, %cst_36 {dimension_numbers = #tpu.dot_dimension_numbers<[1], [0], [0], [1], [0, 0, 1, 1], [], []>} : vector<4x256xf32>, vector<256x128xf32>, vector<4x128xf32> -> vector<4x128xf32>
    %54 = vector.broadcast %33 : vector<1x128xf32> to vector<4x128xf32>
    %55 = arith.addf %53, %54 : vector<4x128xf32>
    %cst_37 = arith.constant 0.000000e+00 : f32
    %56 = vector.broadcast %cst_37 : f32 to vector<4x128xf32>
    %57 = arith.maximumf %55, %56 : vector<4x128xf32>
    %58 = vector.extract_strided_slice %19 {offsets = [18, 0], sizes = [4, 128], strides = [1, 1]} : vector<24x128xf32> to vector<4x128xf32>
    %59 = vector.extract_strided_slice %19 {offsets = [20, 0], sizes = [4, 128], strides = [1, 1]} : vector<24x128xf32> to vector<4x128xf32>
    %60 = tpu.concatenate %58, %59 in 1 : vector<4x128xf32>, vector<4x128xf32> -> vector<4x256xf32>
    %cst_38 = arith.constant dense<0.000000e+00> : vector<4x128xf32>
    %61 = tpu.matmul %60, %31, %cst_38 {dimension_numbers = #tpu.dot_dimension_numbers<[1], [0], [0], [1], [0, 0, 1, 1], [], []>} : vector<4x256xf32>, vector<256x128xf32>, vector<4x128xf32> -> vector<4x128xf32>
    %62 = vector.broadcast %33 : vector<1x128xf32> to vector<4x128xf32>
    %63 = arith.addf %61, %62 : vector<4x128xf32>
    %cst_39 = arith.constant 0.000000e+00 : f32
    %64 = vector.broadcast %cst_39 : f32 to vector<4x128xf32>
    %65 = arith.maximumf %63, %64 : vector<4x128xf32>
    %66 = vector.extract_strided_slice %19 {offsets = [0, 0], sizes = [18, 128], strides = [1, 1]} : vector<24x128xf32> to vector<18x128xf32>
    %67 = vector.extract_strided_slice %19 {offsets = [6, 0], sizes = [18, 128], strides = [1, 1]} : vector<24x128xf32> to vector<18x128xf32>
    %c1_40 = arith.constant 1 : index
    %c0_41 = arith.constant 0 : index
    %c0_42 = arith.constant 0 : index
    %68 = vector.load %arg5[%c1_40, %c0_41, %c0_42] : memref<4x256x128xf32, #tpu.memory_space<vmem>>, vector<1x256x128xf32>
    %69 = vector.shape_cast %68 : vector<1x256x128xf32> to vector<256x128xf32>
    %c1_43 = arith.constant 1 : index
    %c0_44 = arith.constant 0 : index
    %c0_45 = arith.constant 0 : index
    %70 = vector.load %arg6[%c1_43, %c0_44, %c0_45] : memref<4x1x128xf32, #tpu.memory_space<vmem>>, vector<1x1x128xf32>
    %71 = vector.shape_cast %70 : vector<1x1x128xf32> to vector<1x128xf32>
    %72 = tpu.concatenate %66, %67 in 1 : vector<18x128xf32>, vector<18x128xf32> -> vector<18x256xf32>
    %cst_46 = arith.constant dense<0.000000e+00> : vector<18x128xf32>
    %73 = tpu.matmul %72, %69, %cst_46 {dimension_numbers = #tpu.dot_dimension_numbers<[1], [0], [0], [1], [0, 0, 1, 1], [], []>} : vector<18x256xf32>, vector<256x128xf32>, vector<18x128xf32> -> vector<18x128xf32>
    %74 = vector.broadcast %71 : vector<1x128xf32> to vector<18x128xf32>
    %75 = arith.addf %73, %74 : vector<18x128xf32>
    %cst_47 = arith.constant 0.000000e+00 : f32
    %76 = vector.broadcast %cst_47 : f32 to vector<18x128xf32>
    %77 = arith.maximumf %75, %76 : vector<18x128xf32>
    %c2 = arith.constant 2 : index
    %c0_48 = arith.constant 0 : index
    %c0_49 = arith.constant 0 : index
    %78 = vector.load %arg5[%c2, %c0_48, %c0_49] : memref<4x256x128xf32, #tpu.memory_space<vmem>>, vector<1x256x128xf32>
    %79 = vector.shape_cast %78 : vector<1x256x128xf32> to vector<256x128xf32>
    %c2_50 = arith.constant 2 : index
    %c0_51 = arith.constant 0 : index
    %c0_52 = arith.constant 0 : index
    %80 = vector.load %arg6[%c2_50, %c0_51, %c0_52] : memref<4x1x128xf32, #tpu.memory_space<vmem>>, vector<1x1x128xf32>
    %81 = vector.shape_cast %80 : vector<1x1x128xf32> to vector<1x128xf32>
    %82 = vector.extract_strided_slice %29 {offsets = [0, 0], sizes = [6, 128], strides = [1, 1]} : vector<24x128xf32> to vector<6x128xf32>
    %83 = vector.extract_strided_slice %29 {offsets = [2, 0], sizes = [6, 128], strides = [1, 1]} : vector<24x128xf32> to vector<6x128xf32>
    %84 = tpu.concatenate %82, %83 in 1 : vector<6x128xf32>, vector<6x128xf32> -> vector<6x256xf32>
    %cst_53 = arith.constant dense<0.000000e+00> : vector<6x128xf32>
    %85 = tpu.matmul %84, %79, %cst_53 {dimension_numbers = #tpu.dot_dimension_numbers<[1], [0], [0], [1], [0, 0, 1, 1], [], []>} : vector<6x256xf32>, vector<256x128xf32>, vector<6x128xf32> -> vector<6x128xf32>
    %86 = vector.broadcast %81 : vector<1x128xf32> to vector<6x128xf32>
    %87 = arith.addf %85, %86 : vector<6x128xf32>
    %cst_54 = arith.constant 0.000000e+00 : f32
    %88 = vector.broadcast %cst_54 : f32 to vector<6x128xf32>
    %89 = arith.maximumf %87, %88 : vector<6x128xf32>
    %90 = vector.extract_strided_slice %29 {offsets = [8, 0], sizes = [6, 128], strides = [1, 1]} : vector<24x128xf32> to vector<6x128xf32>
    %91 = vector.extract_strided_slice %29 {offsets = [10, 0], sizes = [6, 128], strides = [1, 1]} : vector<24x128xf32> to vector<6x128xf32>
    %92 = tpu.concatenate %90, %91 in 1 : vector<6x128xf32>, vector<6x128xf32> -> vector<6x256xf32>
    %cst_55 = arith.constant dense<0.000000e+00> : vector<6x128xf32>
    %93 = tpu.matmul %92, %79, %cst_55 {dimension_numbers = #tpu.dot_dimension_numbers<[1], [0], [0], [1], [0, 0, 1, 1], [], []>} : vector<6x256xf32>, vector<256x128xf32>, vector<6x128xf32> -> vector<6x128xf32>
    %94 = vector.broadcast %81 : vector<1x128xf32> to vector<6x128xf32>
    %95 = arith.addf %93, %94 : vector<6x128xf32>
    %cst_56 = arith.constant 0.000000e+00 : f32
    %96 = vector.broadcast %cst_56 : f32 to vector<6x128xf32>
    %97 = arith.maximumf %95, %96 : vector<6x128xf32>
    %98 = vector.extract_strided_slice %29 {offsets = [16, 0], sizes = [6, 128], strides = [1, 1]} : vector<24x128xf32> to vector<6x128xf32>
    %99 = vector.extract_strided_slice %29 {offsets = [18, 0], sizes = [6, 128], strides = [1, 1]} : vector<24x128xf32> to vector<6x128xf32>
    %100 = tpu.concatenate %98, %99 in 1 : vector<6x128xf32>, vector<6x128xf32> -> vector<6x256xf32>
    %cst_57 = arith.constant dense<0.000000e+00> : vector<6x128xf32>
    %101 = tpu.matmul %100, %79, %cst_57 {dimension_numbers = #tpu.dot_dimension_numbers<[1], [0], [0], [1], [0, 0, 1, 1], [], []>} : vector<6x256xf32>, vector<256x128xf32>, vector<6x128xf32> -> vector<6x128xf32>
    %102 = vector.broadcast %81 : vector<1x128xf32> to vector<6x128xf32>
    %103 = arith.addf %101, %102 : vector<6x128xf32>
    %cst_58 = arith.constant 0.000000e+00 : f32
    %104 = vector.broadcast %cst_58 : f32 to vector<6x128xf32>
    %105 = arith.maximumf %103, %104 : vector<6x128xf32>
    %106 = vector.extract_strided_slice %29 {offsets = [0, 0], sizes = [16, 128], strides = [1, 1]} : vector<24x128xf32> to vector<16x128xf32>
    %107 = vector.extract_strided_slice %29 {offsets = [8, 0], sizes = [16, 128], strides = [1, 1]} : vector<24x128xf32> to vector<16x128xf32>
    %c3 = arith.constant 3 : index
    %c0_59 = arith.constant 0 : index
    %c0_60 = arith.constant 0 : index
    %108 = vector.load %arg5[%c3, %c0_59, %c0_60] : memref<4x256x128xf32, #tpu.memory_space<vmem>>, vector<1x256x128xf32>
    %109 = vector.shape_cast %108 : vector<1x256x128xf32> to vector<256x128xf32>
    %c3_61 = arith.constant 3 : index
    %c0_62 = arith.constant 0 : index
    %c0_63 = arith.constant 0 : index
    %110 = vector.load %arg6[%c3_61, %c0_62, %c0_63] : memref<4x1x128xf32, #tpu.memory_space<vmem>>, vector<1x1x128xf32>
    %111 = vector.shape_cast %110 : vector<1x1x128xf32> to vector<1x128xf32>
    %112 = tpu.concatenate %106, %107 in 1 : vector<16x128xf32>, vector<16x128xf32> -> vector<16x256xf32>
    %cst_64 = arith.constant dense<0.000000e+00> : vector<16x128xf32>
    %113 = tpu.matmul %112, %109, %cst_64 {dimension_numbers = #tpu.dot_dimension_numbers<[1], [0], [0], [1], [0, 0, 1, 1], [], []>} : vector<16x256xf32>, vector<256x128xf32>, vector<16x128xf32> -> vector<16x128xf32>
    %114 = vector.broadcast %111 : vector<1x128xf32> to vector<16x128xf32>
    %115 = arith.addf %113, %114 : vector<16x128xf32>
    %cst_65 = arith.constant 0.000000e+00 : f32
    %116 = vector.broadcast %cst_65 : f32 to vector<16x128xf32>
    %117 = arith.maximumf %115, %116 : vector<16x128xf32>
    %cst_66 = arith.constant 0.000000e+00 : f32
    %118 = vector.broadcast %cst_66 : f32 to vector<2x256xf32>
    %c0_i32_67 = arith.constant 0 : i32
    %c0_i32_68 = arith.constant 0 : i32
    %c0_i32_69 = arith.constant 0 : i32
    %c0_i32_70 = arith.constant 0 : i32
    %119 = tpu.memref_slice %arg7[%c0_i32_69, %c0_i32_70] : memref<7424x256xf32, #tpu.memory_space<any>> -> memref<1536x256xf32, #tpu.memory_space<any>>
    %c0_i32_71 = arith.constant 0 : i32
    %c0_i32_72 = arith.constant 0 : i32
    %120 = tpu.memref_slice %arg12[%c0_i32_67, %c0_i32_71, %c0_i32_72] : memref<2x1536x256xf32, #tpu.memory_space<vmem>> -> memref<1x1536x256xf32, #tpu.memory_space<vmem>>
    %121 = tpu.memref_squeeze %120 : memref<1x1536x256xf32, #tpu.memory_space<vmem>> -> memref<1536x256xf32, #tpu.memory_space<vmem>>
    %122 = tpu.memref_slice %arg13[%c0_i32_68] : memref<2x!tpu.dma_semaphore, #tpu.memory_space<semaphore_mem>> -> memref<1x!tpu.dma_semaphore, #tpu.memory_space<semaphore_mem>>
    %123 = tpu.memref_squeeze %122 : memref<1x!tpu.dma_semaphore, #tpu.memory_space<semaphore_mem>> -> memref<!tpu.dma_semaphore, #tpu.memory_space<semaphore_mem>>
    tpu.wait_dma2 semaphore(%123 : memref<!tpu.dma_semaphore, #tpu.memory_space<semaphore_mem>>) src(%119 : memref<1536x256xf32, #tpu.memory_space<any>>) dst(%121 : memref<1536x256xf32, #tpu.memory_space<vmem>>)
    %124 = vector.extract_strided_slice %19 {offsets = [0, 0], sizes = [2, 128], strides = [1, 1]} : vector<24x128xf32> to vector<2x128xf32>
    %125 = vector.extract_strided_slice %19 {offsets = [2, 0], sizes = [2, 128], strides = [1, 1]} : vector<24x128xf32> to vector<2x128xf32>
    %126 = vector.extract_strided_slice %19 {offsets = [4, 0], sizes = [2, 128], strides = [1, 1]} : vector<24x128xf32> to vector<2x128xf32>
    %127 = vector.extract_strided_slice %19 {offsets = [6, 0], sizes = [2, 128], strides = [1, 1]} : vector<24x128xf32> to vector<2x128xf32>
    %128 = vector.extract_strided_slice %19 {offsets = [8, 0], sizes = [2, 128], strides = [1, 1]} : vector<24x128xf32> to vector<2x128xf32>
    %129 = vector.extract_strided_slice %19 {offsets = [10, 0], sizes = [2, 128], strides = [1, 1]} : vector<24x128xf32> to vector<2x128xf32>
    %130 = vector.extract_strided_slice %19 {offsets = [12, 0], sizes = [2, 128], strides = [1, 1]} : vector<24x128xf32> to vector<2x128xf32>
    %131 = vector.extract_strided_slice %19 {offsets = [14, 0], sizes = [2, 128], strides = [1, 1]} : vector<24x128xf32> to vector<2x128xf32>
    %132 = vector.extract_strided_slice %19 {offsets = [16, 0], sizes = [2, 128], strides = [1, 1]} : vector<24x128xf32> to vector<2x128xf32>
    %133 = vector.extract_strided_slice %19 {offsets = [18, 0], sizes = [2, 128], strides = [1, 1]} : vector<24x128xf32> to vector<2x128xf32>
    %134 = vector.extract_strided_slice %19 {offsets = [20, 0], sizes = [2, 128], strides = [1, 1]} : vector<24x128xf32> to vector<2x128xf32>
    %135 = vector.extract_strided_slice %19 {offsets = [22, 0], sizes = [2, 128], strides = [1, 1]} : vector<24x128xf32> to vector<2x128xf32>
    %136 = tpu.concatenate %124, %125, %126, %127, %128, %129, %130, %131, %132, %133, %134, %135 in 1 : vector<2x128xf32>, vector<2x128xf32>, vector<2x128xf32>, vector<2x128xf32>, vector<2x128xf32>, vector<2x128xf32>, vector<2x128xf32>, vector<2x128xf32>, vector<2x128xf32>, vector<2x128xf32>, vector<2x128xf32>, vector<2x128xf32> -> vector<2x1536xf32>
    %c0_73 = arith.constant 0 : index
    %c0_74 = arith.constant 0 : index
    %c0_75 = arith.constant 0 : index
    %137 = vector.load %arg12[%c0_73, %c0_74, %c0_75] : memref<2x1536x256xf32, #tpu.memory_space<vmem>>, vector<1x1536x256xf32>
    %138 = vector.shape_cast %137 : vector<1x1536x256xf32> to vector<1536x256xf32>
    %cst_76 = arith.constant dense<0.000000e+00> : vector<2x256xf32>
    %139 = tpu.matmul %136, %138, %cst_76 {dimension_numbers = #tpu.dot_dimension_numbers<[1], [0], [0], [1], [0, 0, 1, 1], [], []>} : vector<2x1536xf32>, vector<1536x256xf32>, vector<2x256xf32> -> vector<2x256xf32>
    %140 = arith.addf %118, %139 : vector<2x256xf32>
    %c0_i32_77 = arith.constant 0 : i32
    %c0_i32_78 = arith.constant 0 : i32
    %c3072_i32 = arith.constant 3072 : i32
    %c0_i32_79 = arith.constant 0 : i32
    %141 = tpu.memref_slice %arg7[%c3072_i32, %c0_i32_79] : memref<7424x256xf32, #tpu.memory_space<any>> -> memref<1024x256xf32, #tpu.memory_space<any>>
    %c0_i32_80 = arith.constant 0 : i32
    %c0_i32_81 = arith.constant 0 : i32
    %142 = tpu.memref_slice %arg12[%c0_i32_77, %c0_i32_80, %c0_i32_81] : memref<2x1536x256xf32, #tpu.memory_space<vmem>> -> memref<1x1024x256xf32, #tpu.memory_space<vmem>>
    %143 = tpu.memref_squeeze %142 : memref<1x1024x256xf32, #tpu.memory_space<vmem>> -> memref<1024x256xf32, #tpu.memory_space<vmem>>
    %144 = tpu.memref_slice %arg13[%c0_i32_78] : memref<2x!tpu.dma_semaphore, #tpu.memory_space<semaphore_mem>> -> memref<1x!tpu.dma_semaphore, #tpu.memory_space<semaphore_mem>>
    %145 = tpu.memref_squeeze %144 : memref<1x!tpu.dma_semaphore, #tpu.memory_space<semaphore_mem>> -> memref<!tpu.dma_semaphore, #tpu.memory_space<semaphore_mem>>
    tpu.enqueue_dma source(%141 : memref<1024x256xf32, #tpu.memory_space<any>>) target(%143 : memref<1024x256xf32, #tpu.memory_space<vmem>>) target_semaphore(%145 : memref<!tpu.dma_semaphore, #tpu.memory_space<semaphore_mem>>)
    %c1_i32_82 = arith.constant 1 : i32
    %c1_i32_83 = arith.constant 1 : i32
    %c1536_i32_84 = arith.constant 1536 : i32
    %c0_i32_85 = arith.constant 0 : i32
    %146 = tpu.memref_slice %arg7[%c1536_i32_84, %c0_i32_85] : memref<7424x256xf32, #tpu.memory_space<any>> -> memref<1536x256xf32, #tpu.memory_space<any>>
    %c0_i32_86 = arith.constant 0 : i32
    %c0_i32_87 = arith.constant 0 : i32
    %147 = tpu.memref_slice %arg12[%c1_i32_82, %c0_i32_86, %c0_i32_87] : memref<2x1536x256xf32, #tpu.memory_space<vmem>> -> memref<1x1536x256xf32, #tpu.memory_space<vmem>>
    %148 = tpu.memref_squeeze %147 : memref<1x1536x256xf32, #tpu.memory_space<vmem>> -> memref<1536x256xf32, #tpu.memory_space<vmem>>
    %149 = tpu.memref_slice %arg13[%c1_i32_83] : memref<2x!tpu.dma_semaphore, #tpu.memory_space<semaphore_mem>> -> memref<1x!tpu.dma_semaphore, #tpu.memory_space<semaphore_mem>>
    %150 = tpu.memref_squeeze %149 : memref<1x!tpu.dma_semaphore, #tpu.memory_space<semaphore_mem>> -> memref<!tpu.dma_semaphore, #tpu.memory_space<semaphore_mem>>
    tpu.wait_dma2 semaphore(%150 : memref<!tpu.dma_semaphore, #tpu.memory_space<semaphore_mem>>) src(%146 : memref<1536x256xf32, #tpu.memory_space<any>>) dst(%148 : memref<1536x256xf32, #tpu.memory_space<vmem>>)
    %151 = vector.extract_strided_slice %29 {offsets = [0, 0], sizes = [2, 128], strides = [1, 1]} : vector<24x128xf32> to vector<2x128xf32>
    %152 = vector.extract_strided_slice %29 {offsets = [2, 0], sizes = [2, 128], strides = [1, 1]} : vector<24x128xf32> to vector<2x128xf32>
    %153 = vector.extract_strided_slice %29 {offsets = [4, 0], sizes = [2, 128], strides = [1, 1]} : vector<24x128xf32> to vector<2x128xf32>
    %154 = vector.extract_strided_slice %29 {offsets = [6, 0], sizes = [2, 128], strides = [1, 1]} : vector<24x128xf32> to vector<2x128xf32>
    %155 = vector.extract_strided_slice %29 {offsets = [8, 0], sizes = [2, 128], strides = [1, 1]} : vector<24x128xf32> to vector<2x128xf32>
    %156 = vector.extract_strided_slice %29 {offsets = [10, 0], sizes = [2, 128], strides = [1, 1]} : vector<24x128xf32> to vector<2x128xf32>
    %157 = vector.extract_strided_slice %29 {offsets = [12, 0], sizes = [2, 128], strides = [1, 1]} : vector<24x128xf32> to vector<2x128xf32>
    %158 = vector.extract_strided_slice %29 {offsets = [14, 0], sizes = [2, 128], strides = [1, 1]} : vector<24x128xf32> to vector<2x128xf32>
    %159 = vector.extract_strided_slice %29 {offsets = [16, 0], sizes = [2, 128], strides = [1, 1]} : vector<24x128xf32> to vector<2x128xf32>
    %160 = vector.extract_strided_slice %29 {offsets = [18, 0], sizes = [2, 128], strides = [1, 1]} : vector<24x128xf32> to vector<2x128xf32>
    %161 = vector.extract_strided_slice %29 {offsets = [20, 0], sizes = [2, 128], strides = [1, 1]} : vector<24x128xf32> to vector<2x128xf32>
    %162 = vector.extract_strided_slice %29 {offsets = [22, 0], sizes = [2, 128], strides = [1, 1]} : vector<24x128xf32> to vector<2x128xf32>
    %163 = tpu.concatenate %151, %152, %153, %154, %155, %156, %157, %158, %159, %160, %161, %162 in 1 : vector<2x128xf32>, vector<2x128xf32>, vector<2x128xf32>, vector<2x128xf32>, vector<2x128xf32>, vector<2x128xf32>, vector<2x128xf32>, vector<2x128xf32>, vector<2x128xf32>, vector<2x128xf32>, vector<2x128xf32>, vector<2x128xf32> -> vector<2x1536xf32>
    %c1_88 = arith.constant 1 : index
    %c0_89 = arith.constant 0 : index
    %c0_90 = arith.constant 0 : index
    %164 = vector.load %arg12[%c1_88, %c0_89, %c0_90] : memref<2x1536x256xf32, #tpu.memory_space<vmem>>, vector<1x1536x256xf32>
    %165 = vector.shape_cast %164 : vector<1x1536x256xf32> to vector<1536x256xf32>
    %cst_91 = arith.constant dense<0.000000e+00> : vector<2x256xf32>
    %166 = tpu.matmul %163, %165, %cst_91 {dimension_numbers = #tpu.dot_dimension_numbers<[1], [0], [0], [1], [0, 0, 1, 1], [], []>} : vector<2x1536xf32>, vector<1536x256xf32>, vector<2x256xf32> -> vector<2x256xf32>
    %167 = arith.addf %140, %166 : vector<2x256xf32>
    %c1_i32_92 = arith.constant 1 : i32
    %c1_i32_93 = arith.constant 1 : i32
    %c4096_i32 = arith.constant 4096 : i32
    %c0_i32_94 = arith.constant 0 : i32
    %168 = tpu.memref_slice %arg7[%c4096_i32, %c0_i32_94] : memref<7424x256xf32, #tpu.memory_space<any>> -> memref<1152x256xf32, #tpu.memory_space<any>>
    %c0_i32_95 = arith.constant 0 : i32
    %c0_i32_96 = arith.constant 0 : i32
    %169 = tpu.memref_slice %arg12[%c1_i32_92, %c0_i32_95, %c0_i32_96] : memref<2x1536x256xf32, #tpu.memory_space<vmem>> -> memref<1x1152x256xf32, #tpu.memory_space<vmem>>
    %170 = tpu.memref_squeeze %169 : memref<1x1152x256xf32, #tpu.memory_space<vmem>> -> memref<1152x256xf32, #tpu.memory_space<vmem>>
    %171 = tpu.memref_slice %arg13[%c1_i32_93] : memref<2x!tpu.dma_semaphore, #tpu.memory_space<semaphore_mem>> -> memref<1x!tpu.dma_semaphore, #tpu.memory_space<semaphore_mem>>
    %172 = tpu.memref_squeeze %171 : memref<1x!tpu.dma_semaphore, #tpu.memory_space<semaphore_mem>> -> memref<!tpu.dma_semaphore, #tpu.memory_space<semaphore_mem>>
    tpu.enqueue_dma source(%168 : memref<1152x256xf32, #tpu.memory_space<any>>) target(%170 : memref<1152x256xf32, #tpu.memory_space<vmem>>) target_semaphore(%172 : memref<!tpu.dma_semaphore, #tpu.memory_space<semaphore_mem>>)
    %c0_i32_97 = arith.constant 0 : i32
    %c0_i32_98 = arith.constant 0 : i32
    %c3072_i32_99 = arith.constant 3072 : i32
    %c0_i32_100 = arith.constant 0 : i32
    %173 = tpu.memref_slice %arg7[%c3072_i32_99, %c0_i32_100] : memref<7424x256xf32, #tpu.memory_space<any>> -> memref<1024x256xf32, #tpu.memory_space<any>>
    %c0_i32_101 = arith.constant 0 : i32
    %c0_i32_102 = arith.constant 0 : i32
    %174 = tpu.memref_slice %arg12[%c0_i32_97, %c0_i32_101, %c0_i32_102] : memref<2x1536x256xf32, #tpu.memory_space<vmem>> -> memref<1x1024x256xf32, #tpu.memory_space<vmem>>
    %175 = tpu.memref_squeeze %174 : memref<1x1024x256xf32, #tpu.memory_space<vmem>> -> memref<1024x256xf32, #tpu.memory_space<vmem>>
    %176 = tpu.memref_slice %arg13[%c0_i32_98] : memref<2x!tpu.dma_semaphore, #tpu.memory_space<semaphore_mem>> -> memref<1x!tpu.dma_semaphore, #tpu.memory_space<semaphore_mem>>
    %177 = tpu.memref_squeeze %176 : memref<1x!tpu.dma_semaphore, #tpu.memory_space<semaphore_mem>> -> memref<!tpu.dma_semaphore, #tpu.memory_space<semaphore_mem>>
    tpu.wait_dma2 semaphore(%177 : memref<!tpu.dma_semaphore, #tpu.memory_space<semaphore_mem>>) src(%173 : memref<1024x256xf32, #tpu.memory_space<any>>) dst(%175 : memref<1024x256xf32, #tpu.memory_space<vmem>>)
    %178 = vector.extract_strided_slice %41 {offsets = [0, 0], sizes = [2, 128], strides = [1, 1]} : vector<4x128xf32> to vector<2x128xf32>
    %179 = vector.extract_strided_slice %41 {offsets = [2, 0], sizes = [2, 128], strides = [1, 1]} : vector<4x128xf32> to vector<2x128xf32>
    %180 = tpu.concatenate %178, %179 in 1 : vector<2x128xf32>, vector<2x128xf32> -> vector<2x256xf32>
    %c0_103 = arith.constant 0 : index
    %c0_104 = arith.constant 0 : index
    %c0_105 = arith.constant 0 : index
    %181 = vector.load %arg12[%c0_103, %c0_104, %c0_105] : memref<2x1536x256xf32, #tpu.memory_space<vmem>>, vector<1x256x256xf32>
    %182 = vector.shape_cast %181 : vector<1x256x256xf32> to vector<256x256xf32>
    %cst_106 = arith.constant dense<0.000000e+00> : vector<2x256xf32>
    %183 = tpu.matmul %180, %182, %cst_106 {dimension_numbers = #tpu.dot_dimension_numbers<[1], [0], [0], [1], [0, 0, 1, 1], [], []>} : vector<2x256xf32>, vector<256x256xf32>, vector<2x256xf32> -> vector<2x256xf32>
    %184 = arith.addf %167, %183 : vector<2x256xf32>
    %185 = vector.extract_strided_slice %49 {offsets = [0, 0], sizes = [2, 128], strides = [1, 1]} : vector<4x128xf32> to vector<2x128xf32>
    %186 = vector.extract_strided_slice %49 {offsets = [2, 0], sizes = [2, 128], strides = [1, 1]} : vector<4x128xf32> to vector<2x128xf32>
    %187 = tpu.concatenate %185, %186 in 1 : vector<2x128xf32>, vector<2x128xf32> -> vector<2x256xf32>
    %c0_107 = arith.constant 0 : index
    %c256 = arith.constant 256 : index
    %c0_108 = arith.constant 0 : index
    %188 = vector.load %arg12[%c0_107, %c256, %c0_108] : memref<2x1536x256xf32, #tpu.memory_space<vmem>>, vector<1x256x256xf32>
    %189 = vector.shape_cast %188 : vector<1x256x256xf32> to vector<256x256xf32>
    %cst_109 = arith.constant dense<0.000000e+00> : vector<2x256xf32>
    %190 = tpu.matmul %187, %189, %cst_109 {dimension_numbers = #tpu.dot_dimension_numbers<[1], [0], [0], [1], [0, 0, 1, 1], [], []>} : vector<2x256xf32>, vector<256x256xf32>, vector<2x256xf32> -> vector<2x256xf32>
    %191 = arith.addf %184, %190 : vector<2x256xf32>
    %192 = vector.extract_strided_slice %57 {offsets = [0, 0], sizes = [2, 128], strides = [1, 1]} : vector<4x128xf32> to vector<2x128xf32>
    %193 = vector.extract_strided_slice %57 {offsets = [2, 0], sizes = [2, 128], strides = [1, 1]} : vector<4x128xf32> to vector<2x128xf32>
    %194 = tpu.concatenate %192, %193 in 1 : vector<2x128xf32>, vector<2x128xf32> -> vector<2x256xf32>
    %c0_110 = arith.constant 0 : index
    %c512 = arith.constant 512 : index
    %c0_111 = arith.constant 0 : index
    %195 = vector.load %arg12[%c0_110, %c512, %c0_111] : memref<2x1536x256xf32, #tpu.memory_space<vmem>>, vector<1x256x256xf32>
    %196 = vector.shape_cast %195 : vector<1x256x256xf32> to vector<256x256xf32>
    %cst_112 = arith.constant dense<0.000000e+00> : vector<2x256xf32>
    %197 = tpu.matmul %194, %196, %cst_112 {dimension_numbers = #tpu.dot_dimension_numbers<[1], [0], [0], [1], [0, 0, 1, 1], [], []>} : vector<2x256xf32>, vector<256x256xf32>, vector<2x256xf32> -> vector<2x256xf32>
    %198 = arith.addf %191, %197 : vector<2x256xf32>
    %199 = vector.extract_strided_slice %65 {offsets = [0, 0], sizes = [2, 128], strides = [1, 1]} : vector<4x128xf32> to vector<2x128xf32>
    %200 = vector.extract_strided_slice %65 {offsets = [2, 0], sizes = [2, 128], strides = [1, 1]} : vector<4x128xf32> to vector<2x128xf32>
    %201 = tpu.concatenate %199, %200 in 1 : vector<2x128xf32>, vector<2x128xf32> -> vector<2x256xf32>
    %c0_113 = arith.constant 0 : index
    %c768 = arith.constant 768 : index
    %c0_114 = arith.constant 0 : index
    %202 = vector.load %arg12[%c0_113, %c768, %c0_114] : memref<2x1536x256xf32, #tpu.memory_space<vmem>>, vector<1x256x256xf32>
    %203 = vector.shape_cast %202 : vector<1x256x256xf32> to vector<256x256xf32>
    %cst_115 = arith.constant dense<0.000000e+00> : vector<2x256xf32>
    %204 = tpu.matmul %201, %203, %cst_115 {dimension_numbers = #tpu.dot_dimension_numbers<[1], [0], [0], [1], [0, 0, 1, 1], [], []>} : vector<2x256xf32>, vector<256x256xf32>, vector<2x256xf32> -> vector<2x256xf32>
    %205 = arith.addf %198, %204 : vector<2x256xf32>
    %c0_i32_116 = arith.constant 0 : i32
    %c0_i32_117 = arith.constant 0 : i32
    %c5248_i32 = arith.constant 5248 : i32
    %c0_i32_118 = arith.constant 0 : i32
    %206 = tpu.memref_slice %arg7[%c5248_i32, %c0_i32_118] : memref<7424x256xf32, #tpu.memory_space<any>> -> memref<1152x256xf32, #tpu.memory_space<any>>
    %c0_i32_119 = arith.constant 0 : i32
    %c0_i32_120 = arith.constant 0 : i32
    %207 = tpu.memref_slice %arg12[%c0_i32_116, %c0_i32_119, %c0_i32_120] : memref<2x1536x256xf32, #tpu.memory_space<vmem>> -> memref<1x1152x256xf32, #tpu.memory_space<vmem>>
    %208 = tpu.memref_squeeze %207 : memref<1x1152x256xf32, #tpu.memory_space<vmem>> -> memref<1152x256xf32, #tpu.memory_space<vmem>>
    %209 = tpu.memref_slice %arg13[%c0_i32_117] : memref<2x!tpu.dma_semaphore, #tpu.memory_space<semaphore_mem>> -> memref<1x!tpu.dma_semaphore, #tpu.memory_space<semaphore_mem>>
    %210 = tpu.memref_squeeze %209 : memref<1x!tpu.dma_semaphore, #tpu.memory_space<semaphore_mem>> -> memref<!tpu.dma_semaphore, #tpu.memory_space<semaphore_mem>>
    tpu.enqueue_dma source(%206 : memref<1152x256xf32, #tpu.memory_space<any>>) target(%208 : memref<1152x256xf32, #tpu.memory_space<vmem>>) target_semaphore(%210 : memref<!tpu.dma_semaphore, #tpu.memory_space<semaphore_mem>>)
    %c1_i32_121 = arith.constant 1 : i32
    %c1_i32_122 = arith.constant 1 : i32
    %c4096_i32_123 = arith.constant 4096 : i32
    %c0_i32_124 = arith.constant 0 : i32
    %211 = tpu.memref_slice %arg7[%c4096_i32_123, %c0_i32_124] : memref<7424x256xf32, #tpu.memory_space<any>> -> memref<1152x256xf32, #tpu.memory_space<any>>
    %c0_i32_125 = arith.constant 0 : i32
    %c0_i32_126 = arith.constant 0 : i32
    %212 = tpu.memref_slice %arg12[%c1_i32_121, %c0_i32_125, %c0_i32_126] : memref<2x1536x256xf32, #tpu.memory_space<vmem>> -> memref<1x1152x256xf32, #tpu.memory_space<vmem>>
    %213 = tpu.memref_squeeze %212 : memref<1x1152x256xf32, #tpu.memory_space<vmem>> -> memref<1152x256xf32, #tpu.memory_space<vmem>>
    %214 = tpu.memref_slice %arg13[%c1_i32_122] : memref<2x!tpu.dma_semaphore, #tpu.memory_space<semaphore_mem>> -> memref<1x!tpu.dma_semaphore, #tpu.memory_space<semaphore_mem>>
    %215 = tpu.memref_squeeze %214 : memref<1x!tpu.dma_semaphore, #tpu.memory_space<semaphore_mem>> -> memref<!tpu.dma_semaphore, #tpu.memory_space<semaphore_mem>>
    tpu.wait_dma2 semaphore(%215 : memref<!tpu.dma_semaphore, #tpu.memory_space<semaphore_mem>>) src(%211 : memref<1152x256xf32, #tpu.memory_space<any>>) dst(%213 : memref<1152x256xf32, #tpu.memory_space<vmem>>)
    %216 = vector.extract_strided_slice %77 {offsets = [0, 0], sizes = [2, 128], strides = [1, 1]} : vector<18x128xf32> to vector<2x128xf32>
    %217 = vector.extract_strided_slice %77 {offsets = [2, 0], sizes = [2, 128], strides = [1, 1]} : vector<18x128xf32> to vector<2x128xf32>
    %218 = vector.extract_strided_slice %77 {offsets = [4, 0], sizes = [2, 128], strides = [1, 1]} : vector<18x128xf32> to vector<2x128xf32>
    %219 = vector.extract_strided_slice %77 {offsets = [6, 0], sizes = [2, 128], strides = [1, 1]} : vector<18x128xf32> to vector<2x128xf32>
    %220 = vector.extract_strided_slice %77 {offsets = [8, 0], sizes = [2, 128], strides = [1, 1]} : vector<18x128xf32> to vector<2x128xf32>
    %221 = vector.extract_strided_slice %77 {offsets = [10, 0], sizes = [2, 128], strides = [1, 1]} : vector<18x128xf32> to vector<2x128xf32>
    %222 = vector.extract_strided_slice %77 {offsets = [12, 0], sizes = [2, 128], strides = [1, 1]} : vector<18x128xf32> to vector<2x128xf32>
    %223 = vector.extract_strided_slice %77 {offsets = [14, 0], sizes = [2, 128], strides = [1, 1]} : vector<18x128xf32> to vector<2x128xf32>
    %224 = vector.extract_strided_slice %77 {offsets = [16, 0], sizes = [2, 128], strides = [1, 1]} : vector<18x128xf32> to vector<2x128xf32>
    %225 = tpu.concatenate %216, %217, %218, %219, %220, %221, %222, %223, %224 in 1 : vector<2x128xf32>, vector<2x128xf32>, vector<2x128xf32>, vector<2x128xf32>, vector<2x128xf32>, vector<2x128xf32>, vector<2x128xf32>, vector<2x128xf32>, vector<2x128xf32> -> vector<2x1152xf32>
    %c1_127 = arith.constant 1 : index
    %c0_128 = arith.constant 0 : index
    %c0_129 = arith.constant 0 : index
    %226 = vector.load %arg12[%c1_127, %c0_128, %c0_129] : memref<2x1536x256xf32, #tpu.memory_space<vmem>>, vector<1x1152x256xf32>
    %227 = vector.shape_cast %226 : vector<1x1152x256xf32> to vector<1152x256xf32>
    %cst_130 = arith.constant dense<0.000000e+00> : vector<2x256xf32>
    %228 = tpu.matmul %225, %227, %cst_130 {dimension_numbers = #tpu.dot_dimension_numbers<[1], [0], [0], [1], [0, 0, 1, 1], [], []>} : vector<2x1152xf32>, vector<1152x256xf32>, vector<2x256xf32> -> vector<2x256xf32>
    %229 = arith.addf %205, %228 : vector<2x256xf32>
    %c1_i32_131 = arith.constant 1 : i32
    %c1_i32_132 = arith.constant 1 : i32
    %c6400_i32 = arith.constant 6400 : i32
    %c0_i32_133 = arith.constant 0 : i32
    %230 = tpu.memref_slice %arg7[%c6400_i32, %c0_i32_133] : memref<7424x256xf32, #tpu.memory_space<any>> -> memref<1024x256xf32, #tpu.memory_space<any>>
    %c0_i32_134 = arith.constant 0 : i32
    %c0_i32_135 = arith.constant 0 : i32
    %231 = tpu.memref_slice %arg12[%c1_i32_131, %c0_i32_134, %c0_i32_135] : memref<2x1536x256xf32, #tpu.memory_space<vmem>> -> memref<1x1024x256xf32, #tpu.memory_space<vmem>>
    %232 = tpu.memref_squeeze %231 : memref<1x1024x256xf32, #tpu.memory_space<vmem>> -> memref<1024x256xf32, #tpu.memory_space<vmem>>
    %233 = tpu.memref_slice %arg13[%c1_i32_132] : memref<2x!tpu.dma_semaphore, #tpu.memory_space<semaphore_mem>> -> memref<1x!tpu.dma_semaphore, #tpu.memory_space<semaphore_mem>>
    %234 = tpu.memref_squeeze %233 : memref<1x!tpu.dma_semaphore, #tpu.memory_space<semaphore_mem>> -> memref<!tpu.dma_semaphore, #tpu.memory_space<semaphore_mem>>
    tpu.enqueue_dma source(%230 : memref<1024x256xf32, #tpu.memory_space<any>>) target(%232 : memref<1024x256xf32, #tpu.memory_space<vmem>>) target_semaphore(%234 : memref<!tpu.dma_semaphore, #tpu.memory_space<semaphore_mem>>)
    %c0_i32_136 = arith.constant 0 : i32
    %c0_i32_137 = arith.constant 0 : i32
    %c5248_i32_138 = arith.constant 5248 : i32
    %c0_i32_139 = arith.constant 0 : i32
    %235 = tpu.memref_slice %arg7[%c5248_i32_138, %c0_i32_139] : memref<7424x256xf32, #tpu.memory_space<any>> -> memref<1152x256xf32, #tpu.memory_space<any>>
    %c0_i32_140 = arith.constant 0 : i32
    %c0_i32_141 = arith.constant 0 : i32
    %236 = tpu.memref_slice %arg12[%c0_i32_136, %c0_i32_140, %c0_i32_141] : memref<2x1536x256xf32, #tpu.memory_space<vmem>> -> memref<1x1152x256xf32, #tpu.memory_space<vmem>>
    %237 = tpu.memref_squeeze %236 : memref<1x1152x256xf32, #tpu.memory_space<vmem>> -> memref<1152x256xf32, #tpu.memory_space<vmem>>
    %238 = tpu.memref_slice %arg13[%c0_i32_137] : memref<2x!tpu.dma_semaphore, #tpu.memory_space<semaphore_mem>> -> memref<1x!tpu.dma_semaphore, #tpu.memory_space<semaphore_mem>>
    %239 = tpu.memref_squeeze %238 : memref<1x!tpu.dma_semaphore, #tpu.memory_space<semaphore_mem>> -> memref<!tpu.dma_semaphore, #tpu.memory_space<semaphore_mem>>
    tpu.wait_dma2 semaphore(%239 : memref<!tpu.dma_semaphore, #tpu.memory_space<semaphore_mem>>) src(%235 : memref<1152x256xf32, #tpu.memory_space<any>>) dst(%237 : memref<1152x256xf32, #tpu.memory_space<vmem>>)
    %240 = vector.extract_strided_slice %89 {offsets = [0, 0], sizes = [2, 128], strides = [1, 1]} : vector<6x128xf32> to vector<2x128xf32>
    %241 = vector.extract_strided_slice %89 {offsets = [2, 0], sizes = [2, 128], strides = [1, 1]} : vector<6x128xf32> to vector<2x128xf32>
    %242 = vector.extract_strided_slice %89 {offsets = [4, 0], sizes = [2, 128], strides = [1, 1]} : vector<6x128xf32> to vector<2x128xf32>
    %243 = tpu.concatenate %240, %241, %242 in 1 : vector<2x128xf32>, vector<2x128xf32>, vector<2x128xf32> -> vector<2x384xf32>
    %c0_142 = arith.constant 0 : index
    %c0_143 = arith.constant 0 : index
    %c0_144 = arith.constant 0 : index
    %244 = vector.load %arg12[%c0_142, %c0_143, %c0_144] : memref<2x1536x256xf32, #tpu.memory_space<vmem>>, vector<1x384x256xf32>
    %245 = vector.shape_cast %244 : vector<1x384x256xf32> to vector<384x256xf32>
    %cst_145 = arith.constant dense<0.000000e+00> : vector<2x256xf32>
    %246 = tpu.matmul %243, %245, %cst_145 {dimension_numbers = #tpu.dot_dimension_numbers<[1], [0], [0], [1], [0, 0, 1, 1], [], []>} : vector<2x384xf32>, vector<384x256xf32>, vector<2x256xf32> -> vector<2x256xf32>
    %247 = arith.addf %229, %246 : vector<2x256xf32>
    %248 = vector.extract_strided_slice %97 {offsets = [0, 0], sizes = [2, 128], strides = [1, 1]} : vector<6x128xf32> to vector<2x128xf32>
    %249 = vector.extract_strided_slice %97 {offsets = [2, 0], sizes = [2, 128], strides = [1, 1]} : vector<6x128xf32> to vector<2x128xf32>
    %250 = vector.extract_strided_slice %97 {offsets = [4, 0], sizes = [2, 128], strides = [1, 1]} : vector<6x128xf32> to vector<2x128xf32>
    %251 = tpu.concatenate %248, %249, %250 in 1 : vector<2x128xf32>, vector<2x128xf32>, vector<2x128xf32> -> vector<2x384xf32>
    %c0_146 = arith.constant 0 : index
    %c384 = arith.constant 384 : index
    %c0_147 = arith.constant 0 : index
    %252 = vector.load %arg12[%c0_146, %c384, %c0_147] : memref<2x1536x256xf32, #tpu.memory_space<vmem>>, vector<1x384x256xf32>
    %253 = vector.shape_cast %252 : vector<1x384x256xf32> to vector<384x256xf32>
    %cst_148 = arith.constant dense<0.000000e+00> : vector<2x256xf32>
    %254 = tpu.matmul %251, %253, %cst_148 {dimension_numbers = #tpu.dot_dimension_numbers<[1], [0], [0], [1], [0, 0, 1, 1], [], []>} : vector<2x384xf32>, vector<384x256xf32>, vector<2x256xf32> -> vector<2x256xf32>
    %255 = arith.addf %247, %254 : vector<2x256xf32>
    %256 = vector.extract_strided_slice %105 {offsets = [0, 0], sizes = [2, 128], strides = [1, 1]} : vector<6x128xf32> to vector<2x128xf32>
    %257 = vector.extract_strided_slice %105 {offsets = [2, 0], sizes = [2, 128], strides = [1, 1]} : vector<6x128xf32> to vector<2x128xf32>
    %258 = vector.extract_strided_slice %105 {offsets = [4, 0], sizes = [2, 128], strides = [1, 1]} : vector<6x128xf32> to vector<2x128xf32>
    %259 = tpu.concatenate %256, %257, %258 in 1 : vector<2x128xf32>, vector<2x128xf32>, vector<2x128xf32> -> vector<2x384xf32>
    %c0_149 = arith.constant 0 : index
    %c768_150 = arith.constant 768 : index
    %c0_151 = arith.constant 0 : index
    %260 = vector.load %arg12[%c0_149, %c768_150, %c0_151] : memref<2x1536x256xf32, #tpu.memory_space<vmem>>, vector<1x384x256xf32>
    %261 = vector.shape_cast %260 : vector<1x384x256xf32> to vector<384x256xf32>
    %cst_152 = arith.constant dense<0.000000e+00> : vector<2x256xf32>
    %262 = tpu.matmul %259, %261, %cst_152 {dimension_numbers = #tpu.dot_dimension_numbers<[1], [0], [0], [1], [0, 0, 1, 1], [], []>} : vector<2x384xf32>, vector<384x256xf32>, vector<2x256xf32> -> vector<2x256xf32>
    %263 = arith.addf %255, %262 : vector<2x256xf32>
    %c1_i32_153 = arith.constant 1 : i32
    %c1_i32_154 = arith.constant 1 : i32
    %c6400_i32_155 = arith.constant 6400 : i32
    %c0_i32_156 = arith.constant 0 : i32
    %264 = tpu.memref_slice %arg7[%c6400_i32_155, %c0_i32_156] : memref<7424x256xf32, #tpu.memory_space<any>> -> memref<1024x256xf32, #tpu.memory_space<any>>
    %c0_i32_157 = arith.constant 0 : i32
    %c0_i32_158 = arith.constant 0 : i32
    %265 = tpu.memref_slice %arg12[%c1_i32_153, %c0_i32_157, %c0_i32_158] : memref<2x1536x256xf32, #tpu.memory_space<vmem>> -> memref<1x1024x256xf32, #tpu.memory_space<vmem>>
    %266 = tpu.memref_squeeze %265 : memref<1x1024x256xf32, #tpu.memory_space<vmem>> -> memref<1024x256xf32, #tpu.memory_space<vmem>>
    %267 = tpu.memref_slice %arg13[%c1_i32_154] : memref<2x!tpu.dma_semaphore, #tpu.memory_space<semaphore_mem>> -> memref<1x!tpu.dma_semaphore, #tpu.memory_space<semaphore_mem>>
    %268 = tpu.memref_squeeze %267 : memref<1x!tpu.dma_semaphore, #tpu.memory_space<semaphore_mem>> -> memref<!tpu.dma_semaphore, #tpu.memory_space<semaphore_mem>>
    tpu.wait_dma2 semaphore(%268 : memref<!tpu.dma_semaphore, #tpu.memory_space<semaphore_mem>>) src(%264 : memref<1024x256xf32, #tpu.memory_space<any>>) dst(%266 : memref<1024x256xf32, #tpu.memory_space<vmem>>)
    %269 = vector.extract_strided_slice %117 {offsets = [0, 0], sizes = [2, 128], strides = [1, 1]} : vector<16x128xf32> to vector<2x128xf32>
    %270 = vector.extract_strided_slice %117 {offsets = [2, 0], sizes = [2, 128], strides = [1, 1]} : vector<16x128xf32> to vector<2x128xf32>
    %271 = vector.extract_strided_slice %117 {offsets = [4, 0], sizes = [2, 128], strides = [1, 1]} : vector<16x128xf32> to vector<2x128xf32>
    %272 = vector.extract_strided_slice %117 {offsets = [6, 0], sizes = [2, 128], strides = [1, 1]} : vector<16x128xf32> to vector<2x128xf32>
    %273 = vector.extract_strided_slice %117 {offsets = [8, 0], sizes = [2, 128], strides = [1, 1]} : vector<16x128xf32> to vector<2x128xf32>
    %274 = vector.extract_strided_slice %117 {offsets = [10, 0], sizes = [2, 128], strides = [1, 1]} : vector<16x128xf32> to vector<2x128xf32>
    %275 = vector.extract_strided_slice %117 {offsets = [12, 0], sizes = [2, 128], strides = [1, 1]} : vector<16x128xf32> to vector<2x128xf32>
    %276 = vector.extract_strided_slice %117 {offsets = [14, 0], sizes = [2, 128], strides = [1, 1]} : vector<16x128xf32> to vector<2x128xf32>
    %277 = tpu.concatenate %269, %270, %271, %272, %273, %274, %275, %276 in 1 : vector<2x128xf32>, vector<2x128xf32>, vector<2x128xf32>, vector<2x128xf32>, vector<2x128xf32>, vector<2x128xf32>, vector<2x128xf32>, vector<2x128xf32> -> vector<2x1024xf32>
    %c1_159 = arith.constant 1 : index
    %c0_160 = arith.constant 0 : index
    %c0_161 = arith.constant 0 : index
    %278 = vector.load %arg12[%c1_159, %c0_160, %c0_161] : memref<2x1536x256xf32, #tpu.memory_space<vmem>>, vector<1x1024x256xf32>
    %279 = vector.shape_cast %278 : vector<1x1024x256xf32> to vector<1024x256xf32>
    %cst_162 = arith.constant dense<0.000000e+00> : vector<2x256xf32>
    %280 = tpu.matmul %277, %279, %cst_162 {dimension_numbers = #tpu.dot_dimension_numbers<[1], [0], [0], [1], [0, 0, 1, 1], [], []>} : vector<2x1024xf32>, vector<1024x256xf32>, vector<2x256xf32> -> vector<2x256xf32>
    %281 = arith.addf %263, %280 : vector<2x256xf32>
    %c0_163 = arith.constant 0 : index
    %c0_164 = arith.constant 0 : index
    %282 = vector.load %arg8[%c0_163, %c0_164] : memref<1x256xf32, #tpu.memory_space<vmem>>, vector<1x256xf32>
    %283 = vector.broadcast %282 : vector<1x256xf32> to vector<2x256xf32>
    %284 = arith.addf %281, %283 : vector<2x256xf32>
    %cst_165 = arith.constant 0.000000e+00 : f32
    %285 = vector.broadcast %cst_165 : f32 to vector<2x256xf32>
    %286 = arith.maximumf %284, %285 : vector<2x256xf32>
    %c0_166 = arith.constant 0 : index
    %c0_167 = arith.constant 0 : index
    %287 = vector.load %arg9[%c0_166, %c0_167] : memref<256x4xf32, #tpu.memory_space<vmem>>, vector<256x4xf32>
    %cst_168 = arith.constant dense<0.000000e+00> : vector<2x4xf32>
    %288 = tpu.matmul %286, %287, %cst_168 {dimension_numbers = #tpu.dot_dimension_numbers<[1], [0], [0], [1], [0, 0, 1, 1], [], []>} : vector<2x256xf32>, vector<256x4xf32>, vector<2x4xf32> -> vector<2x4xf32>
    %c0_169 = arith.constant 0 : index
    %c0_170 = arith.constant 0 : index
    %289 = vector.load %arg10[%c0_169, %c0_170] : memref<1x4xf32, #tpu.memory_space<vmem>>, vector<1x4xf32>
    %290 = vector.broadcast %289 : vector<1x4xf32> to vector<2x4xf32>
    %291 = arith.addf %288, %290 : vector<2x4xf32>
    %c0_171 = arith.constant 0 : index
    %c0_172 = arith.constant 0 : index
    %292 = vector.load %arg11[%c0_171, %c0_172] : memref<2x4xf32, #tpu.memory_space<vmem>>, vector<2x4xf32>
    tpu.vector_store %arg11[%c0_171, %c0_172], %291 {strides = array<i32>} : memref<2x4xf32, #tpu.memory_space<vmem>>, vector<2x4xf32>,
    return
  }
  func.func @transform_0(%arg0: i32) -> (i32, i32) {
    %c0_i32 = arith.constant 0 : i32
    %c0_i32_0 = arith.constant 0 : i32
    %c0_i32_1 = arith.constant 0 : i32
    return %c0_i32, %c0_i32_0 : i32, i32
  }
  func.func @transform_1(%arg0: i32) -> (i32, i32) {
    %c0_i32 = arith.constant 0 : i32
    %c0_i32_0 = arith.constant 0 : i32
    %c0_i32_1 = arith.constant 0 : i32
    return %c0_i32, %c0_i32_0 : i32, i32
  }
  func.func @transform_2(%arg0: i32) -> (i32, i32, i32) {
    %c0_i32 = arith.constant 0 : i32
    %c0_i32_0 = arith.constant 0 : i32
    %c0_i32_1 = arith.constant 0 : i32
    %c0_i32_2 = arith.constant 0 : i32
    return %c0_i32, %c0_i32_0, %c0_i32_1 : i32, i32, i32
  }
  func.func @transform_3(%arg0: i32) -> (i32, i32, i32) {
    %c0_i32 = arith.constant 0 : i32
    %c0_i32_0 = arith.constant 0 : i32
    %c0_i32_1 = arith.constant 0 : i32
    %c0_i32_2 = arith.constant 0 : i32
    return %c0_i32, %c0_i32_0, %c0_i32_1 : i32, i32, i32
  }
  func.func @transform_4(%arg0: i32) -> (i32, i32, i32) {
    %c0_i32 = arith.constant 0 : i32
    %c0_i32_0 = arith.constant 0 : i32
    %c0_i32_1 = arith.constant 0 : i32
    %c0_i32_2 = arith.constant 0 : i32
    return %c0_i32, %c0_i32_0, %c0_i32_1 : i32, i32, i32
  }
  func.func @transform_5(%arg0: i32) -> (i32, i32, i32) {
    %c0_i32 = arith.constant 0 : i32
    %c0_i32_0 = arith.constant 0 : i32
    %c0_i32_1 = arith.constant 0 : i32
    %c0_i32_2 = arith.constant 0 : i32
    return %c0_i32, %c0_i32_0, %c0_i32_1 : i32, i32, i32
  }
  func.func @transform_7(%arg0: i32) -> (i32, i32) {
    %c0_i32 = arith.constant 0 : i32
    %c0_i32_0 = arith.constant 0 : i32
    %c0_i32_1 = arith.constant 0 : i32
    return %c0_i32, %c0_i32_0 : i32, i32
  }
  func.func @transform_8(%arg0: i32) -> (i32, i32) {
    %c0_i32 = arith.constant 0 : i32
    %c0_i32_0 = arith.constant 0 : i32
    %c0_i32_1 = arith.constant 0 : i32
    return %c0_i32, %c0_i32_0 : i32, i32
  }
  func.func @transform_9(%arg0: i32) -> (i32, i32) {
    %c0_i32 = arith.constant 0 : i32
    %c0_i32_0 = arith.constant 0 : i32
    %c0_i32_1 = arith.constant 0 : i32
    return %c0_i32, %c0_i32_0 : i32, i32
  }
  func.func @transform_10(%arg0: i32) -> (i32, i32) {
    %c0_i32 = arith.constant 0 : i32
    %c0_i32_0 = arith.constant 0 : i32
    %c0_i32_1 = arith.constant 0 : i32
    return %c0_i32, %c0_i32_0 : i32, i32
  }
}

</mosaic_0001>

<llo_original>
// kernel: dqn_forward.1
$region0: #{dqn_forward.1}
  #allocation0 [shape = 'u32[]', space=smem, size = 0x4, offset = 0x4, fixed_abs, tag = 'smem constant byte address 0x4 - core index']
  #allocation1 [shape = 'u32[144,128]{1,0:T(1,128)}', space=vmem, size = 0x12000, scoped, tag = 'internal scratch']
  #allocation2 [shape = 'f32[2,1536,256]{2,1,0:T(8,128)}', space=vmem, size = 0x300000, scoped, tag = 'scratch operand']
  #allocation3 [shape = 's32[2]{0}', space=sflag, size = 0x8, scoped, tag = 'scratch operand']
  #allocation16 [shape = 's32[]', space=sflag, size = 0x4, offset = 0, fixed_abs, tag = 'sflag constant byte address 0x0 - dummy sync flag']
  #allocation17 [shape = 's32[]', space=sflag, size = 0x4, offset = 0, fixed_abs, tag = 'sflag constant byte address 0x0 - dummy sync flag']
  #allocation18 [shape = 'u32[]', space=smem, size = 0x4, offset = 0x44, fixed_abs, tag = 'smem constant byte address 0x44 - assertion arg 0']
  #allocation19 [shape = 'u32[]', space=smem, size = 0x4, offset = 0x48, fixed_abs, tag = 'smem constant byte address 0x48 - assertion arg 1']
  #allocation20 [shape = 's32[]', space=sflag, size = 0x4, offset = 0, fixed_abs, tag = 'sflag constant byte address 0x0 - dummy sync flag']
  #allocation21 [shape = 's32[]', space=sflag, size = 0x4, offset = 0, fixed_abs, tag = 'sflag constant byte address 0x0 - dummy sync flag']
  #allocation22 [shape = 's32[]', space=sflag, size = 0x4, offset = 0, fixed_abs, tag = 'sflag constant byte address 0x0 - dummy sync flag']
  #allocation23 [shape = 's32[]', space=sflag, size = 0x4, offset = 0, fixed_abs, tag = 'sflag constant byte address 0x0 - dummy sync flag']
  #allocation24 [shape = 's32[]', space=sflag, size = 0x4, offset = 0, fixed_abs, tag = 'sflag constant byte address 0x0 - dummy sync flag']
  #allocation25 [shape = 's32[]', space=sflag, size = 0x4, offset = 0, fixed_abs, tag = 'sflag constant byte address 0x0 - dummy sync flag']
  #allocation26 [shape = 's32[]', space=sflag, size = 0x4, offset = 0, fixed_abs, tag = 'sflag constant byte address 0x0 - dummy sync flag']
  #allocation27 [shape = 's32[]', space=sflag, size = 0x4, offset = 0, fixed_abs, tag = 'sflag constant byte address 0x0 - dummy sync flag']
  #allocation28 [shape = 's32[]', space=sflag, size = 0x4, offset = 0, fixed_abs, tag = 'sflag constant byte address 0x0 - dummy sync flag']
  #allocation29 [shape = 's32[]', space=sflag, size = 0x4, offset = 0, fixed_abs, tag = 'sflag constant byte address 0x0 - dummy sync flag']
  %s0 = inlined_call_operand.vmem [shape: f32[24,32], index: 0, kind: input, shape index: {}]
  %s1 = inlined_call_operand.vmem [shape: f32[24,32], index: 1, kind: input, shape index: {}]
  %s2 = inlined_call_operand.hbm [shape: f32[2,32,128], index: 2, kind: input, shape index: {}]
  %s3 = inlined_call_operand.hbm [shape: f32[2,1,128], index: 3, kind: input, shape index: {}]
  %s4 = inlined_call_operand.hbm [shape: f32[4,256,128], index: 4, kind: input, shape index: {}]
  %s5 = inlined_call_operand.hbm [shape: f32[4,1,128], index: 5, kind: input, shape index: {}]
  %s6 = inlined_call_operand.hbm [shape: f32[7424,256], index: 6, kind: input, shape index: {}]
  %s7 = inlined_call_operand.hbm [shape: f32[1,256], index: 7, kind: input, shape index: {}]
  %s8 = inlined_call_operand.vmem [shape: f32[256,4], index: 8, kind: input, shape index: {}]
  %s9 = inlined_call_operand.hbm [shape: f32[1,4], index: 9, kind: input, shape index: {}]
  %s10 = inlined_call_operand.hbm [shape: f32[2,4], index: 10, kind: output, shape index: {}]
  %s11 = sld [smem:[#allocation0]]
  $region94: #{dqn_forward.1} parent=0
    _
  %s13 = ssub.s32 1, %s11
  %s14 = scalar_select 0, %s13, %s11
  $region1: #{dqn_forward.1} parent=0
    #allocation4 [shape = 'u8[32768]{0}', space=vmem, size = 0x8000, scoped, tag = 'input window, operand 2, single buffered']
    #allocation5 [shape = 's32[1]{0}', space=sflag, size = 0x4, scoped, tag = 'scoped memory for dqn_forward.1']
    #allocation6 [shape = 's32[1]{0}', space=sflag, size = 0x4, scoped, tag = 'scoped memory for dqn_forward.1']
    #allocation7 [shape = 'u8[1024]{0}', space=vmem, size = 0x400, scoped, tag = 'input window, operand 3, single buffered']
    #allocation8 [shape = 's32[1]{0}', space=sflag, size = 0x4, scoped, tag = 'scoped memory for dqn_forward.1']
    #allocation9 [shape = 'u8[524288]{0}', space=vmem, size = 0x80000, scoped, tag = 'input window, operand 4, single buffered']
    #allocation10 [shape = 'u8[2048]{0}', space=vmem, size = 0x800, scoped, tag = 'input window, operand 5, single buffered']
    #allocation11 [shape = 's32[1]{0}', space=sflag, size = 0x4, scoped, tag = 'scoped memory for dqn_forward.1']
    #allocation12 [shape = 'u8[1024]{0}', space=vmem, size = 0x400, scoped, tag = 'input window, operand 7, single buffered']
    #allocation13 [shape = 'u8[512]{0}', space=vmem, size = 0x400, scoped, tag = 'input window, operand 9, single buffered']
    #allocation14 [shape = 's32[1]{0}', space=sflag, size = 0x4, scoped, tag = 'scoped memory for dqn_forward.1']
    #allocation15 [shape = 'u8[1024]{0}', space=vmem, size = 0x400, scoped, tag = 'output window, operand 0, single buffered']
    %15 = vsyncpa [#allocation5], 0
    %16 = vsyncpa [#allocation8], 0
    %17 = vsyncpa [#allocation11], 0
    %18 = vsyncpa [#allocation14], 0
    %19 = vsyncpa [#allocation6], 0
    // Predicated region
    $region2: #{dqn_forward.1} parent=1 // pred_check
      _
    $region3: #{dqn_forward.1} parent=1 // pred_check_branch
      %21 = sbr.rel (0) target = $region5
    $region4: #{dqn_forward.1} parent=1 // pred_region
      _
    $region5: #{dqn_forward.1} parent=1 // pred_fallthru
      _
    // Predicated region
    $region6: #{dqn_forward.1} parent=1 // pred_check
      _
    $region7: #{dqn_forward.1} parent=1 // pred_check_branch
      %23 = sbr.rel (0) target = $region9
    $region8: #{dqn_forward.1} parent=1 // pred_region
      _
    $region9: #{dqn_forward.1} parent=1 // pred_fallthru
      _
    // Predicated region
    $region10: #{dqn_forward.1} parent=1 // pred_check
      _
    $region11: #{dqn_forward.1} parent=1 // pred_check_branch
      %25 = sbr.rel (0) target = $region13
    $region12: #{dqn_forward.1} parent=1 // pred_region
      %s27 = ssub.s32 1024, 1024
      %28 = vsyncadd [#allocation5], %s27
      %s29 = sshll.u32 [#allocation4], 4
      %s30 = int_to_ptr.vmem [resolvable:$true] %s29
      %35 = dma.hbm_to_vmem [thread:$0]  %s2, 1024, %s30, [#allocation5], 128, 128, 8
    $region13: #{dqn_forward.1} parent=1 // pred_fallthru
      _
    // Predicated region
    $region14: #{dqn_forward.1} parent=1 // pred_check
      _
    $region15: #{dqn_forward.1} parent=1 // pred_check_branch
      %37 = sbr.rel (0) target = $region17
    $region16: #{dqn_forward.1} parent=1 // pred_region
      %s39 = ssub.s32 32, 32
      %40 = vsyncadd [#allocation8], %s39
      %s41 = sshll.u32 [#allocation7], 4
      %s42 = int_to_ptr.vmem [resolvable:$true] %s41
      %47 = dma.hbm_to_vmem [thread:$0]  %s3, 32, %s42, [#allocation8], 16, 16, 1
    $region17: #{dqn_forward.1} parent=1 // pred_fallthru
      _
    // Predicated region
    $region18: #{dqn_forward.1} parent=1 // pred_check
      _
    $region19: #{dqn_forward.1} parent=1 // pred_check_branch
      %49 = sbr.rel (0) target = $region21
    $region20: #{dqn_forward.1} parent=1 // pred_region
      %s51 = ssub.s32 16384, 16384
      %52 = vsyncadd [#allocation8], %s51
      %s53 = sshll.u32 [#allocation9], 4
      %s54 = int_to_ptr.vmem [resolvable:$true] %s53
      %59 = dma.hbm_to_vmem [thread:$0]  %s4, 16384, %s54, [#allocation8], 128, 128, 8
    $region21: #{dqn_forward.1} parent=1 // pred_fallthru
      _
    // Predicated region
    $region22: #{dqn_forward.1} parent=1 // pred_check
      _
    $region23: #{dqn_forward.1} parent=1 // pred_check_branch
      %61 = sbr.rel (0) target = $region25
    $region24: #{dqn_forward.1} parent=1 // pred_region
      %s63 = ssub.s32 64, 64
      %64 = vsyncadd [#allocation11], %s63
      %s65 = sshll.u32 [#allocation10], 4
      %s66 = int_to_ptr.vmem [resolvable:$true] %s65
      %71 = dma.hbm_to_vmem [thread:$0]  %s5, 64, %s66, [#allocation11], 16, 16, 1
    $region25: #{dqn_forward.1} parent=1 // pred_fallthru
      _
    // Predicated region
    $region26: #{dqn_forward.1} parent=1 // pred_check
      _
    $region27: #{dqn_forward.1} parent=1 // pred_check_branch
      %73 = sbr.rel (0) target = $region29
    $region28: #{dqn_forward.1} parent=1 // pred_region
      %s75 = ssub.s32 32, 32
      %76 = vsyncadd [#allocation11], %s75
      %s78 = sshll.u32 [#allocation12], 4
      %s79 = int_to_ptr.vmem [resolvable:$true] %s78
      %81 = dma.hbm_to_vmem [thread:$0]  %s7, 32, %s79, [#allocation11]
    $region29: #{dqn_forward.1} parent=1 // pred_fallthru
      _
    // Predicated region
    $region30: #{dqn_forward.1} parent=1 // pred_check
      _
    $region31: #{dqn_forward.1} parent=1 // pred_check_branch
      %83 = sbr.rel (0) target = $region33
    $region32: #{dqn_forward.1} parent=1 // pred_region
      _
    $region33: #{dqn_forward.1} parent=1 // pred_fallthru
      _
    // Predicated region
    $region34: #{dqn_forward.1} parent=1 // pred_check
      _
    $region35: #{dqn_forward.1} parent=1 // pred_check_branch
      %85 = sbr.rel (0) target = $region37
    $region36: #{dqn_forward.1} parent=1 // pred_region
      %s87 = ssub.s32 16, 16
      %88 = vsyncadd [#allocation14], %s87
      %s90 = sshll.u32 [#allocation13], 4
      %s91 = int_to_ptr.vmem [resolvable:$true] %s90
      %93 = dma.hbm_to_vmem [thread:$0]  %s9, 16, %s91, [#allocation14]
    $region37: #{dqn_forward.1} parent=1 // pred_fallthru
      _
    // Predicated region
    $region38: #{dqn_forward.1} parent=1 // pred_check
      _
    $region39: #{dqn_forward.1} parent=1 // pred_check_branch
      %95 = sbr.rel (0) target = $region41
    $region40: #{dqn_forward.1} parent=1 // pred_region
      %96 = dma.done [#allocation5], 1024
    $region41: #{dqn_forward.1} parent=1 // pred_fallthru
      _
    // Predicated region
    $region42: #{dqn_forward.1} parent=1 // pred_check
      _
    $region43: #{dqn_forward.1} parent=1 // pred_check_branch
      %98 = sbr.rel (0) target = $region45
    $region44: #{dqn_forward.1} parent=1 // pred_region
      %99 = dma.done [#allocation8], 32
    $region45: #{dqn_forward.1} parent=1 // pred_fallthru
      _
    // Predicated region
    $region46: #{dqn_forward.1} parent=1 // pred_check
      _
    $region47: #{dqn_forward.1} parent=1 // pred_check_branch
      %101 = sbr.rel (0) target = $region49
    $region48: #{dqn_forward.1} parent=1 // pred_region
      %102 = dma.done [#allocation8], 16384
    $region49: #{dqn_forward.1} parent=1 // pred_fallthru
      _
    // Predicated region
    $region50: #{dqn_forward.1} parent=1 // pred_check
      _
    $region51: #{dqn_forward.1} parent=1 // pred_check_branch
      %104 = sbr.rel (0) target = $region53
    $region52: #{dqn_forward.1} parent=1 // pred_region
      %105 = dma.done [#allocation11], 64
    $region53: #{dqn_forward.1} parent=1 // pred_fallthru
      _
    // Predicated region
    $region54: #{dqn_forward.1} parent=1 // pred_check
      _
    $region55: #{dqn_forward.1} parent=1 // pred_check_branch
      %107 = sbr.rel (0) target = $region57
    $region56: #{dqn_forward.1} parent=1 // pred_region
      %108 = dma.done [#allocation11], 32
    $region57: #{dqn_forward.1} parent=1 // pred_fallthru
      _
    // Predicated region
    $region58: #{dqn_forward.1} parent=1 // pred_check
      _
    $region59: #{dqn_forward.1} parent=1 // pred_check_branch
      %110 = sbr.rel (0) target = $region61
    $region60: #{dqn_forward.1} parent=1 // pred_region
      %111 = dma.done [#allocation14], 16
    $region61: #{dqn_forward.1} parent=1 // pred_fallthru
      _
    // Predicated region
    $region62: #{dqn_forward.1} parent=1 // pred_check
      _
    $region63: #{dqn_forward.1} parent=1 // pred_check_branch
      %113 = sbr.rel target = $region65
    $region64: #{dqn_forward.1} parent=1 // pred_region
      %114 = sst [smem:[#allocation18]] [#allocation17]
      %115 = sst [smem:[#allocation19]] [#allocation16]
    $region65: #{dqn_forward.1} parent=1 // pred_fallthru
      _
    %117 = shalt.err (0)
    %s119 = sshll.u32 [#allocation2], 4
    %s120 = int_to_ptr.vmem [resolvable:$true] %s119
    %122 = dma.hbm_to_vmem [thread:$0]  %s6, 49152, %s120, [#allocation3]
    %s123 = scalar_lea.hbm %s6, 49152
    %s124 = scalar_lea.vmem [#allocation2], 3072
    %s125 = scalar_lea.sflag [#allocation3], 1
    // Predicated region
    $region66: #{dqn_forward.1} parent=1 // pred_check
      _
    $region67: #{dqn_forward.1} parent=1 // pred_check_branch
      %127 = sbr.rel target = $region69
    $region68: #{dqn_forward.1} parent=1 // pred_region
      %128 = sst [smem:[#allocation18]] [#allocation21]
      %129 = sst [smem:[#allocation19]] [#allocation20]
    $region69: #{dqn_forward.1} parent=1 // pred_fallthru
      _
    %131 = shalt.err (0)
    %s133 = sshll.u32 %s124, 4
    %s134 = int_to_ptr.vmem [resolvable:$true] %s133
    %136 = dma.hbm_to_vmem [thread:$0]  %s123, 49152, %s134, %s125
    %v137 = vld [vmem:[%s0] sm:$0xff]
    %v138 = vld [vmem:[%s0 + $0x8] sm:$0xff]
    %v139 = vld [vmem:[%s0 + $0x10] sm:$0xff]
    %v140 = vld [vmem:[#allocation4] sm:$0xff]
    %v141 = vld [vmem:[#allocation4 + $0x8] sm:$0xff]
    %v142 = vld [vmem:[#allocation4 + $0x10] sm:$0xff]
    %v143 = vld [vmem:[#allocation4 + $0x18] sm:$0xff]
    %v144 = vld [vmem:[#allocation7] sm:$0x1]
    %v146 = vlaneseq
    %v147 = vshrl.u32 %v146, 7
    %v148 = vsub.s32 0, %v147
    %v149 = vrot.slane %v144, %v148
    %vm151 = vcmask 261120
    %v153 = vsel %vm151, %v137, 0
    %v156 = vsel %vm151, %v138, 0
    %v159 = vsel %vm151, %v139, 0
    %161 = vmatprep.subr.mxu0 0.0
    %162 = vmatpush1.msra.mxu0 %v140
    %163 = vmatprep.subr.mxu0 0.0
    %164 = vmatpush1.msra.mxu0 %v141
    %165 = vmatprep.subr.mxu0 0.0
    %166 = vmatpush1.msra.mxu0 %v142
    %167 = vmatprep.subr.mxu0 0.0
    %168 = vmatpush1.msra.mxu0 %v143
    %169 = vmatprep.subr.mxu0 0.0
    %170 = vmatpush1.msra.mxu0 0.0
    %171 = vmatprep.subr.mxu0 0.0
    %172 = vmatpush1.msra.mxu0 0.0
    %173 = vmatprep.subr.mxu0 0.0
    %174 = vmatpush1.msra.mxu0 0.0
    %175 = vmatprep.subr.mxu0 0.0
    %176 = vmatpush1.msra.mxu0 0.0
    %177 = vmatprep.subr.mxu0 0.0
    %178 = vmatpush1.msra.mxu0 0.0
    %179 = vmatprep.subr.mxu0 0.0
    %180 = vmatpush1.msra.mxu0 0.0
    %181 = vmatprep.subr.mxu0 0.0
    %182 = vmatpush1.msra.mxu0 0.0
    %183 = vmatprep.subr.mxu0 0.0
    %184 = vmatpush1.msra.mxu0 0.0
    %185 = vmatprep.subr.mxu0 0.0
    %186 = vmatpush1.msra.mxu0 0.0
    %187 = vmatprep.subr.mxu0 0.0
    %188 = vmatpush1.msra.mxu0 0.0
    %189 = vmatprep.subr.mxu0 0.0
    %190 = vmatpush1.msra.mxu0 0.0
    %191 = vmatprep.subr.mxu0 0.0
    %192 = vmatpush1.msra.mxu0 0.0
    %193 = vmatprep.subr.mxu0 0.0
    %194 = vmatpush1.msra.mxu0 0.0
    %195 = vmatprep.subr.mxu0 0.0
    %196 = vmatpush1.msra.mxu0 0.0
    %197 = vmatprep.subr.mxu0 0.0
    %198 = vmatpush1.msra.mxu0 0.0
    %199 = vmatprep.subr.mxu0 0.0
    %200 = vmatpush1.msra.mxu0 0.0
    %201 = vmatprep.subr.mxu0 0.0
    %202 = vmatpush1.msra.mxu0 0.0
    %203 = vmatprep.subr.mxu0 0.0
    %204 = vmatpush1.msra.mxu0 0.0
    %205 = vmatprep.subr.mxu0 0.0
    %206 = vmatpush1.msra.mxu0 0.0
    %207 = vmatprep.subr.mxu0 0.0
    %208 = vmatpush1.msra.mxu0 0.0
    %209 = vmatprep.subr.mxu0 0.0
    %210 = vmatpush1.msra.mxu0 0.0
    %211 = vmatprep.subr.mxu0 0.0
    %212 = vmatpush1.msra.mxu0 0.0
    %213 = vmatprep.subr.mxu0 0.0
    %214 = vmatpush1.msra.mxu0 0.0
    %215 = vmatprep.subr.mxu0 0.0
    %216 = vmatpush1.msra.mxu0 0.0
    %217 = vmatprep.subr.mxu0 0.0
    %218 = vmatpush1.msra.mxu0 0.0
    %219 = vmatprep.subr.mxu0 0.0
    %220 = vmatpush1.msra.mxu0 0.0
    %221 = vmatprep.subr.mxu0 0.0
    %222 = vmatpush1.msra.mxu0 0.0
    %223 = vmatprep.subr.mxu0 0.0
    %224 = vmatpush1.msra.mxu0 0.0
    %225 = vmatprep.mubr.f32.mxu0 0.0
    %226 = vmatmul.mubr.f32.gmra.mrb[0].mxu0 %v153
    %v227 = vpop.f32.mrb[0].mxu0
    %v228 = vadd.f32 %v149, %v227
    %v229 = vpop.f32.mrb[0].mxu0
    %230 = vmatprep.mubr.f32.mxu0 0.0
    %231 = vmatmul.mubr.f32.gmra.mrb[0].mxu0 %v156
    %v232 = vpop.f32.mrb[0].mxu0
    %v233 = vadd.f32 %v149, %v232
    %v234 = vpop.f32.mrb[0].mxu0
    %235 = vmatprep.mubr.f32.mxu0 0.0
    %236 = vmatmul.mubr.f32.gmra.mrb[0].mxu0 %v159
    %v237 = vpop.f32.mrb[0].mxu0
    %v238 = vadd.f32 %v149, %v237
    %v239 = vpop.f32.mrb[0].mxu0
    %240 = vdwg.mxu0
    %v241 = vmax.f32 %v228, 0.0
    %v242 = vmax.f32 %v233, 0.0
    %v243 = vmax.f32 %v238, 0.0
    %v244 = vld [vmem:[%s1] sm:$0xff]
    %v245 = vld [vmem:[%s1 + $0x8] sm:$0xff]
    %v246 = vld [vmem:[%s1 + $0x10] sm:$0xff]
    %s247 = scalar_lea.vmem [#allocation4], 32
    %v248 = vld [vmem:[%s247] sm:$0xff]
    %v249 = vld [vmem:[%s247 + $0x8] sm:$0xff]
    %v250 = vld [vmem:[%s247 + $0x10] sm:$0xff]
    %v251 = vld [vmem:[%s247 + $0x18] sm:$0xff]
    %s252 = scalar_lea.vmem [#allocation7], 1
    %v253 = vld [vmem:[%s252] sm:$0x1]
    %v255 = vlaneseq
    %v256 = vshrl.u32 %v255, 7
    %v257 = vsub.s32 0, %v256
    %v258 = vrot.slane %v253, %v257
    %v261 = vsel %vm151, %v244, 0
    %v264 = vsel %vm151, %v245, 0
    %v267 = vsel %vm151, %v246, 0
    %269 = vmatprep.subr.mxu0 0.0
    %270 = vmatpush1.msra.mxu0 %v248
    %271 = vmatprep.subr.mxu0 0.0
    %272 = vmatpush1.msra.mxu0 %v249
    %273 = vmatprep.subr.mxu0 0.0
    %274 = vmatpush1.msra.mxu0 %v250
    %275 = vmatprep.subr.mxu0 0.0
    %276 = vmatpush1.msra.mxu0 %v251
    %277 = vmatprep.subr.mxu0 0.0
    %278 = vmatpush1.msra.mxu0 0.0
    %279 = vmatprep.subr.mxu0 0.0
    %280 = vmatpush1.msra.mxu0 0.0
    %281 = vmatprep.subr.mxu0 0.0
    %282 = vmatpush1.msra.mxu0 0.0
    %283 = vmatprep.subr.mxu0 0.0
    %284 = vmatpush1.msra.mxu0 0.0
    %285 = vmatprep.subr.mxu0 0.0
    %286 = vmatpush1.msra.mxu0 0.0
    %287 = vmatprep.subr.mxu0 0.0
    %288 = vmatpush1.msra.mxu0 0.0
    %289 = vmatprep.subr.mxu0 0.0
    %290 = vmatpush1.msra.mxu0 0.0
    %291 = vmatprep.subr.mxu0 0.0
    %292 = vmatpush1.msra.mxu0 0.0
    %293 = vmatprep.subr.mxu0 0.0
    %294 = vmatpush1.msra.mxu0 0.0
    %295 = vmatprep.subr.mxu0 0.0
    %296 = vmatpush1.msra.mxu0 0.0
    %297 = vmatprep.subr.mxu0 0.0
    %298 = vmatpush1.msra.mxu0 0.0
    %299 = vmatprep.subr.mxu0 0.0
    %300 = vmatpush1.msra.mxu0 0.0
    %301 = vmatprep.subr.mxu0 0.0
    %302 = vmatpush1.msra.mxu0 0.0
    %303 = vmatprep.subr.mxu0 0.0
    %304 = vmatpush1.msra.mxu0 0.0
    %305 = vmatprep.subr.mxu0 0.0
    %306 = vmatpush1.msra.mxu0 0.0
    %307 = vmatprep.subr.mxu0 0.0
    %308 = vmatpush1.msra.mxu0 0.0
    %309 = vmatprep.subr.mxu0 0.0
    %310 = vmatpush1.msra.mxu0 0.0
    %311 = vmatprep.subr.mxu0 0.0
    %312 = vmatpush1.msra.mxu0 0.0
    %313 = vmatprep.subr.mxu0 0.0
    %314 = vmatpush1.msra.mxu0 0.0
    %315 = vmatprep.subr.mxu0 0.0
    %316 = vmatpush1.msra.mxu0 0.0
    %317 = vmatprep.subr.mxu0 0.0
    %318 = vmatpush1.msra.mxu0 0.0
    %319 = vmatprep.subr.mxu0 0.0
    %320 = vmatpush1.msra.mxu0 0.0
    %321 = vmatprep.subr.mxu0 0.0
    %322 = vmatpush1.msra.mxu0 0.0
    %323 = vmatprep.subr.mxu0 0.0
    %324 = vmatpush1.msra.mxu0 0.0
    %325 = vmatprep.subr.mxu0 0.0
    %326 = vmatpush1.msra.mxu0 0.0
    %327 = vmatprep.subr.mxu0 0.0
    %328 = vmatpush1.msra.mxu0 0.0
    %329 = vmatprep.subr.mxu0 0.0
    %330 = vmatpush1.msra.mxu0 0.0
    %331 = vmatprep.subr.mxu0 0.0
    %332 = vmatpush1.msra.mxu0 0.0
    %333 = vmatprep.mubr.f32.mxu0 0.0
    %334 = vmatmul.mubr.f32.gmra.mrb[0].mxu0 %v261
    %v335 = vpop.f32.mrb[0].mxu0
    %v336 = vadd.f32 %v258, %v335
    %v337 = vpop.f32.mrb[0].mxu0
    %338 = vmatprep.mubr.f32.mxu0 0.0
    %339 = vmatmul.mubr.f32.gmra.mrb[0].mxu0 %v264
    %v340 = vpop.f32.mrb[0].mxu0
    %v341 = vadd.f32 %v258, %v340
    %v342 = vpop.f32.mrb[0].mxu0
    %343 = vmatprep.mubr.f32.mxu0 0.0
    %344 = vmatmul.mubr.f32.gmra.mrb[0].mxu0 %v267
    %v345 = vpop.f32.mrb[0].mxu0
    %v346 = vadd.f32 %v258, %v345
    %v347 = vpop.f32.mrb[0].mxu0
    %348 = vdwg.mxu0
    %v349 = vmax.f32 %v336, 0.0
    %v350 = vmax.f32 %v341, 0.0
    %v351 = vmax.f32 %v346, 0.0
    %v352 = vld [vmem:[#allocation9] sm:$0xff]
    %v353 = vld [vmem:[#allocation9 + $0x8] sm:$0xff]
    %v354 = vld [vmem:[#allocation9 + $0x10] sm:$0xff]
    %v355 = vld [vmem:[#allocation9 + $0x18] sm:$0xff]
    %v356 = vld [vmem:[#allocation9 + $0x20] sm:$0xff]
    %v357 = vld [vmem:[#allocation9 + $0x28] sm:$0xff]
    %v358 = vld [vmem:[#allocation9 + $0x30] sm:$0xff]
    %v359 = vld [vmem:[#allocation9 + $0x38] sm:$0xff]
    %v360 = vld [vmem:[#allocation9 + $0x40] sm:$0xff]
    %v361 = vld [vmem:[#allocation9 + $0x48] sm:$0xff]
    %v362 = vld [vmem:[#allocation9 + $0x50] sm:$0xff]
    %v363 = vld [vmem:[#allocation9 + $0x58] sm:$0xff]
    %v364 = vld [vmem:[#allocation9 + $0x60] sm:$0xff]
    %v365 = vld [vmem:[#allocation9 + $0x68] sm:$0xff]
    %v366 = vld [vmem:[#allocation9 + $0x70] sm:$0xff]
    %v367 = vld [vmem:[#allocation9 + $0x78] sm:$0xff]
    %v368 = vld [vmem:[#allocation9 + $0x80] sm:$0xff]
    %v369 = vld [vmem:[#allocation9 + $0x88] sm:$0xff]
    %v370 = vld [vmem:[#allocation9 + $0x90] sm:$0xff]
    %v371 = vld [vmem:[#allocation9 + $0x98] sm:$0xff]
    %v372 = vld [vmem:[#allocation9 + $0xa0] sm:$0xff]
    %v373 = vld [vmem:[#allocation9 + $0xa8] sm:$0xff]
    %v374 = vld [vmem:[#allocation9 + $0xb0] sm:$0xff]
    %v375 = vld [vmem:[#allocation9 + $0xb8] sm:$0xff]
    %v376 = vld [vmem:[#allocation9 + $0xc0] sm:$0xff]
    %v377 = vld [vmem:[#allocation9 + $0xc8] sm:$0xff]
    %v378 = vld [vmem:[#allocation9 + $0xd0] sm:$0xff]
    %v379 = vld [vmem:[#allocation9 + $0xd8] sm:$0xff]
    %v380 = vld [vmem:[#allocation9 + $0xe0] sm:$0xff]
    %v381 = vld [vmem:[#allocation9 + $0xe8] sm:$0xff]
    %v382 = vld [vmem:[#allocation9 + $0xf0] sm:$0xff]
    %v383 = vld [vmem:[#allocation9 + $0xf8] sm:$0xff]
    %v384 = vld [vmem:[#allocation10] sm:$0x1]
    %v386 = vrot.slane %v241, 2
    %v389 = vlaneseq
    %v390 = vshrl.u32 %v389, 7
    %v391 = vsub.s32 0, %v390
    %v392 = vrot.slane %v384, %v391
    %394 = vmatprep.subr.mxu0 0.0
    %395 = vmatpush1.msra.mxu0 %v352
    %396 = vmatprep.subr.mxu0 0.0
    %397 = vmatpush1.msra.mxu0 %v353
    %398 = vmatprep.subr.mxu0 0.0
    %399 = vmatpush1.msra.mxu0 %v354
    %400 = vmatprep.subr.mxu0 0.0
    %401 = vmatpush1.msra.mxu0 %v355
    %402 = vmatprep.subr.mxu0 0.0
    %403 = vmatpush1.msra.mxu0 %v356
    %404 = vmatprep.subr.mxu0 0.0
    %405 = vmatpush1.msra.mxu0 %v357
    %406 = vmatprep.subr.mxu0 0.0
    %407 = vmatpush1.msra.mxu0 %v358
    %408 = vmatprep.subr.mxu0 0.0
    %409 = vmatpush1.msra.mxu0 %v359
    %410 = vmatprep.subr.mxu0 0.0
    %411 = vmatpush1.msra.mxu0 %v360
    %412 = vmatprep.subr.mxu0 0.0
    %413 = vmatpush1.msra.mxu0 %v361
    %414 = vmatprep.subr.mxu0 0.0
    %415 = vmatpush1.msra.mxu0 %v362
    %416 = vmatprep.subr.mxu0 0.0
    %417 = vmatpush1.msra.mxu0 %v363
    %418 = vmatprep.subr.mxu0 0.0
    %419 = vmatpush1.msra.mxu0 %v364
    %420 = vmatprep.subr.mxu0 0.0
    %421 = vmatpush1.msra.mxu0 %v365
    %422 = vmatprep.subr.mxu0 0.0
    %423 = vmatpush1.msra.mxu0 %v366
    %424 = vmatprep.subr.mxu0 0.0
    %425 = vmatpush1.msra.mxu0 %v367
    %426 = vmatprep.subr.mxu0 0.0
    %427 = vmatpush1.msra.mxu0 %v368
    %428 = vmatprep.subr.mxu0 0.0
    %429 = vmatpush1.msra.mxu0 %v369
    %430 = vmatprep.subr.mxu0 0.0
    %431 = vmatpush1.msra.mxu0 %v370
    %432 = vmatprep.subr.mxu0 0.0
    %433 = vmatpush1.msra.mxu0 %v371
    %434 = vmatprep.subr.mxu0 0.0
    %435 = vmatpush1.msra.mxu0 %v372
    %436 = vmatprep.subr.mxu0 0.0
    %437 = vmatpush1.msra.mxu0 %v373
    %438 = vmatprep.subr.mxu0 0.0
    %439 = vmatpush1.msra.mxu0 %v374
    %440 = vmatprep.subr.mxu0 0.0
    %441 = vmatpush1.msra.mxu0 %v375
    %442 = vmatprep.subr.mxu0 0.0
    %443 = vmatpush1.msra.mxu0 %v376
    %444 = vmatprep.subr.mxu0 0.0
    %445 = vmatpush1.msra.mxu0 %v377
    %446 = vmatprep.subr.mxu0 0.0
    %447 = vmatpush1.msra.mxu0 %v378
    %448 = vmatprep.subr.mxu0 0.0
    %449 = vmatpush1.msra.mxu0 %v379
    %450 = vmatprep.subr.mxu0 0.0
    %451 = vmatpush1.msra.mxu0 %v380
    %452 = vmatprep.subr.mxu0 0.0
    %453 = vmatpush1.msra.mxu0 %v381
    %454 = vmatprep.subr.mxu0 0.0
    %455 = vmatpush1.msra.mxu0 %v382
    %456 = vmatprep.subr.mxu0 0.0
    %457 = vmatpush1.msra.mxu0 %v383
    %458 = vmatprep.mubr.f32.mxu0 %v386
    %459 = vmatmul.mubr.f32.gmra.mrb[0].mxu0 %v241
    %v460 = vpop.f32.mrb[0].mxu0
    %v461 = vadd.f32 %v392, %v460
    %v462 = vpop.f32.mrb[0].mxu0
    %463 = vdwg.mxu0
    %v464 = vmax.f32 %v461, 0.0
    %v466 = vrot.slane %v242, 2
    %vm467 = vcmask 1041408
    %v468 = vrot.slane %v241, 6
    %v469 = vrot.slane %v242, 6
    %v470 = vsel %vm467, %v468, %v469
    %v471 = vrot.slane %v466, 6
    %v472 = vsel %vm467, %v471, %v471
    %475 = vmatprep.subr.mxu0 0.0
    %476 = vmatpush1.msra.mxu0 %v352
    %477 = vmatprep.subr.mxu0 0.0
    %478 = vmatpush1.msra.mxu0 %v353
    %479 = vmatprep.subr.mxu0 0.0
    %480 = vmatpush1.msra.mxu0 %v354
    %481 = vmatprep.subr.mxu0 0.0
    %482 = vmatpush1.msra.mxu0 %v355
    %483 = vmatprep.subr.mxu0 0.0
    %484 = vmatpush1.msra.mxu0 %v356
    %485 = vmatprep.subr.mxu0 0.0
    %486 = vmatpush1.msra.mxu0 %v357
    %487 = vmatprep.subr.mxu0 0.0
    %488 = vmatpush1.msra.mxu0 %v358
    %489 = vmatprep.subr.mxu0 0.0
    %490 = vmatpush1.msra.mxu0 %v359
    %491 = vmatprep.subr.mxu0 0.0
    %492 = vmatpush1.msra.mxu0 %v360
    %493 = vmatprep.subr.mxu0 0.0
    %494 = vmatpush1.msra.mxu0 %v361
    %495 = vmatprep.subr.mxu0 0.0
    %496 = vmatpush1.msra.mxu0 %v362
    %497 = vmatprep.subr.mxu0 0.0
    %498 = vmatpush1.msra.mxu0 %v363
    %499 = vmatprep.subr.mxu0 0.0
    %500 = vmatpush1.msra.mxu0 %v364
    %501 = vmatprep.subr.mxu0 0.0
    %502 = vmatpush1.msra.mxu0 %v365
    %503 = vmatprep.subr.mxu0 0.0
    %504 = vmatpush1.msra.mxu0 %v366
    %505 = vmatprep.subr.mxu0 0.0
    %506 = vmatpush1.msra.mxu0 %v367
    %507 = vmatprep.subr.mxu0 0.0
    %508 = vmatpush1.msra.mxu0 %v368
    %509 = vmatprep.subr.mxu0 0.0
    %510 = vmatpush1.msra.mxu0 %v369
    %511 = vmatprep.subr.mxu0 0.0
    %512 = vmatpush1.msra.mxu0 %v370
    %513 = vmatprep.subr.mxu0 0.0
    %514 = vmatpush1.msra.mxu0 %v371
    %515 = vmatprep.subr.mxu0 0.0
    %516 = vmatpush1.msra.mxu0 %v372
    %517 = vmatprep.subr.mxu0 0.0
    %518 = vmatpush1.msra.mxu0 %v373
    %519 = vmatprep.subr.mxu0 0.0
    %520 = vmatpush1.msra.mxu0 %v374
    %521 = vmatprep.subr.mxu0 0.0
    %522 = vmatpush1.msra.mxu0 %v375
    %523 = vmatprep.subr.mxu0 0.0
    %524 = vmatpush1.msra.mxu0 %v376
    %525 = vmatprep.subr.mxu0 0.0
    %526 = vmatpush1.msra.mxu0 %v377
    %527 = vmatprep.subr.mxu0 0.0
    %528 = vmatpush1.msra.mxu0 %v378
    %529 = vmatprep.subr.mxu0 0.0
    %530 = vmatpush1.msra.mxu0 %v379
    %531 = vmatprep.subr.mxu0 0.0
    %532 = vmatpush1.msra.mxu0 %v380
    %533 = vmatprep.subr.mxu0 0.0
    %534 = vmatpush1.msra.mxu0 %v381
    %535 = vmatprep.subr.mxu0 0.0
    %536 = vmatpush1.msra.mxu0 %v382
    %537 = vmatprep.subr.mxu0 0.0
    %538 = vmatpush1.msra.mxu0 %v383
    %539 = vmatprep.mubr.f32.mxu0 %v472
    %540 = vmatmul.mubr.f32.gmra.mrb[0].mxu0 %v470
    %v541 = vpop.f32.mrb[0].mxu0
    %v542 = vadd.f32 %v392, %v541
    %v543 = vpop.f32.mrb[0].mxu0
    %544 = vdwg.mxu0
    %v545 = vmax.f32 %v542, 0.0
    %vm547 = vcmask 1045504
    %v548 = vrot.slane %v243, 2
    %v549 = vsel %vm547, %v466, %v548
    %v550 = vrot.slane %v242, 4
    %v551 = vrot.slane %v549, 4
    %554 = vmatprep.subr.mxu0 0.0
    %555 = vmatpush1.msra.mxu0 %v352
    %556 = vmatprep.subr.mxu0 0.0
    %557 = vmatpush1.msra.mxu0 %v353
    %558 = vmatprep.subr.mxu0 0.0
    %559 = vmatpush1.msra.mxu0 %v354
    %560 = vmatprep.subr.mxu0 0.0
    %561 = vmatpush1.msra.mxu0 %v355
    %562 = vmatprep.subr.mxu0 0.0
    %563 = vmatpush1.msra.mxu0 %v356
    %564 = vmatprep.subr.mxu0 0.0
    %565 = vmatpush1.msra.mxu0 %v357
    %566 = vmatprep.subr.mxu0 0.0
    %567 = vmatpush1.msra.mxu0 %v358
    %568 = vmatprep.subr.mxu0 0.0
    %569 = vmatpush1.msra.mxu0 %v359
    %570 = vmatprep.subr.mxu0 0.0
    %571 = vmatpush1.msra.mxu0 %v360
    %572 = vmatprep.subr.mxu0 0.0
    %573 = vmatpush1.msra.mxu0 %v361
    %574 = vmatprep.subr.mxu0 0.0
    %575 = vmatpush1.msra.mxu0 %v362
    %576 = vmatprep.subr.mxu0 0.0
    %577 = vmatpush1.msra.mxu0 %v363
    %578 = vmatprep.subr.mxu0 0.0
    %579 = vmatpush1.msra.mxu0 %v364
    %580 = vmatprep.subr.mxu0 0.0
    %581 = vmatpush1.msra.mxu0 %v365
    %582 = vmatprep.subr.mxu0 0.0
    %583 = vmatpush1.msra.mxu0 %v366
    %584 = vmatprep.subr.mxu0 0.0
    %585 = vmatpush1.msra.mxu0 %v367
    %586 = vmatprep.subr.mxu0 0.0
    %587 = vmatpush1.msra.mxu0 %v368
    %588 = vmatprep.subr.mxu0 0.0
    %589 = vmatpush1.msra.mxu0 %v369
    %590 = vmatprep.subr.mxu0 0.0
    %591 = vmatpush1.msra.mxu0 %v370
    %592 = vmatprep.subr.mxu0 0.0
    %593 = vmatpush1.msra.mxu0 %v371
    %594 = vmatprep.subr.mxu0 0.0
    %595 = vmatpush1.msra.mxu0 %v372
    %596 = vmatprep.subr.mxu0 0.0
    %597 = vmatpush1.msra.mxu0 %v373
    %598 = vmatprep.subr.mxu0 0.0
    %599 = vmatpush1.msra.mxu0 %v374
    %600 = vmatprep.subr.mxu0 0.0
    %601 = vmatpush1.msra.mxu0 %v375
    %602 = vmatprep.subr.mxu0 0.0
    %603 = vmatpush1.msra.mxu0 %v376
    %604 = vmatprep.subr.mxu0 0.0
    %605 = vmatpush1.msra.mxu0 %v377
    %606 = vmatprep.subr.mxu0 0.0
    %607 = vmatpush1.msra.mxu0 %v378
    %608 = vmatprep.subr.mxu0 0.0
    %609 = vmatpush1.msra.mxu0 %v379
    %610 = vmatprep.subr.mxu0 0.0
    %611 = vmatpush1.msra.mxu0 %v380
    %612 = vmatprep.subr.mxu0 0.0
    %613 = vmatpush1.msra.mxu0 %v381
    %614 = vmatprep.subr.mxu0 0.0
    %615 = vmatpush1.msra.mxu0 %v382
    %616 = vmatprep.subr.mxu0 0.0
    %617 = vmatpush1.msra.mxu0 %v383
    %618 = vmatprep.mubr.f32.mxu0 %v551
    %619 = vmatmul.mubr.f32.gmra.mrb[0].mxu0 %v550
    %v620 = vpop.f32.mrb[0].mxu0
    %v621 = vadd.f32 %v392, %v620
    %v622 = vpop.f32.mrb[0].mxu0
    %623 = vdwg.mxu0
    %v624 = vmax.f32 %v621, 0.0
    %v625 = vrot.slane %v548, 2
    %628 = vmatprep.subr.mxu0 0.0
    %629 = vmatpush1.msra.mxu0 %v352
    %630 = vmatprep.subr.mxu0 0.0
    %631 = vmatpush1.msra.mxu0 %v353
    %632 = vmatprep.subr.mxu0 0.0
    %633 = vmatpush1.msra.mxu0 %v354
    %634 = vmatprep.subr.mxu0 0.0
    %635 = vmatpush1.msra.mxu0 %v355
    %636 = vmatprep.subr.mxu0 0.0
    %637 = vmatpush1.msra.mxu0 %v356
    %638 = vmatprep.subr.mxu0 0.0
    %639 = vmatpush1.msra.mxu0 %v357
    %640 = vmatprep.subr.mxu0 0.0
    %641 = vmatpush1.msra.mxu0 %v358
    %642 = vmatprep.subr.mxu0 0.0
    %643 = vmatpush1.msra.mxu0 %v359
    %644 = vmatprep.subr.mxu0 0.0
    %645 = vmatpush1.msra.mxu0 %v360
    %646 = vmatprep.subr.mxu0 0.0
    %647 = vmatpush1.msra.mxu0 %v361
    %648 = vmatprep.subr.mxu0 0.0
    %649 = vmatpush1.msra.mxu0 %v362
    %650 = vmatprep.subr.mxu0 0.0
    %651 = vmatpush1.msra.mxu0 %v363
    %652 = vmatprep.subr.mxu0 0.0
    %653 = vmatpush1.msra.mxu0 %v364
    %654 = vmatprep.subr.mxu0 0.0
    %655 = vmatpush1.msra.mxu0 %v365
    %656 = vmatprep.subr.mxu0 0.0
    %657 = vmatpush1.msra.mxu0 %v366
    %658 = vmatprep.subr.mxu0 0.0
    %659 = vmatpush1.msra.mxu0 %v367
    %660 = vmatprep.subr.mxu0 0.0
    %661 = vmatpush1.msra.mxu0 %v368
    %662 = vmatprep.subr.mxu0 0.0
    %663 = vmatpush1.msra.mxu0 %v369
    %664 = vmatprep.subr.mxu0 0.0
    %665 = vmatpush1.msra.mxu0 %v370
    %666 = vmatprep.subr.mxu0 0.0
    %667 = vmatpush1.msra.mxu0 %v371
    %668 = vmatprep.subr.mxu0 0.0
    %669 = vmatpush1.msra.mxu0 %v372
    %670 = vmatprep.subr.mxu0 0.0
    %671 = vmatpush1.msra.mxu0 %v373
    %672 = vmatprep.subr.mxu0 0.0
    %673 = vmatpush1.msra.mxu0 %v374
    %674 = vmatprep.subr.mxu0 0.0
    %675 = vmatpush1.msra.mxu0 %v375
    %676 = vmatprep.subr.mxu0 0.0
    %677 = vmatpush1.msra.mxu0 %v376
    %678 = vmatprep.subr.mxu0 0.0
    %679 = vmatpush1.msra.mxu0 %v377
    %680 = vmatprep.subr.mxu0 0.0
    %681 = vmatpush1.msra.mxu0 %v378
    %682 = vmatprep.subr.mxu0 0.0
    %683 = vmatpush1.msra.mxu0 %v379
    %684 = vmatprep.subr.mxu0 0.0
    %685 = vmatpush1.msra.mxu0 %v380
    %686 = vmatprep.subr.mxu0 0.0
    %687 = vmatpush1.msra.mxu0 %v381
    %688 = vmatprep.subr.mxu0 0.0
    %689 = vmatpush1.msra.mxu0 %v382
    %690 = vmatprep.subr.mxu0 0.0
    %691 = vmatpush1.msra.mxu0 %v383
    %692 = vmatprep.mubr.f32.mxu0 %v625
    %693 = vmatmul.mubr.f32.gmra.mrb[0].mxu0 %v548
    %v694 = vpop.f32.mrb[0].mxu0
    %v695 = vadd.f32 %v392, %v694
    %v696 = vpop.f32.mrb[0].mxu0
    %697 = vdwg.mxu0
    %v698 = vmax.f32 %v695, 0.0
    %s699 = scalar_lea.vmem [#allocation9], 256
    %v700 = vld [vmem:[%s699] sm:$0xff]
    %v701 = vld [vmem:[%s699 + $0x8] sm:$0xff]
    %v702 = vld [vmem:[%s699 + $0x10] sm:$0xff]
    %v703 = vld [vmem:[%s699 + $0x18] sm:$0xff]
    %v704 = vld [vmem:[%s699 + $0x20] sm:$0xff]
    %v705 = vld [vmem:[%s699 + $0x28] sm:$0xff]
    %v706 = vld [vmem:[%s699 + $0x30] sm:$0xff]
    %v707 = vld [vmem:[%s699 + $0x38] sm:$0xff]
    %v708 = vld [vmem:[%s699 + $0x40] sm:$0xff]
    %v709 = vld [vmem:[%s699 + $0x48] sm:$0xff]
    %v710 = vld [vmem:[%s699 + $0x50] sm:$0xff]
    %v711 = vld [vmem:[%s699 + $0x58] sm:$0xff]
    %v712 = vld [vmem:[%s699 + $0x60] sm:$0xff]
    %v713 = vld [vmem:[%s699 + $0x68] sm:$0xff]
    %v714 = vld [vmem:[%s699 + $0x70] sm:$0xff]
    %v715 = vld [vmem:[%s699 + $0x78] sm:$0xff]
    %v716 = vld [vmem:[%s699 + $0x80] sm:$0xff]
    %v717 = vld [vmem:[%s699 + $0x88] sm:$0xff]
    %v718 = vld [vmem:[%s699 + $0x90] sm:$0xff]
    %v719 = vld [vmem:[%s699 + $0x98] sm:$0xff]
    %v720 = vld [vmem:[%s699 + $0xa0] sm:$0xff]
    %v721 = vld [vmem:[%s699 + $0xa8] sm:$0xff]
    %v722 = vld [vmem:[%s699 + $0xb0] sm:$0xff]
    %v723 = vld [vmem:[%s699 + $0xb8] sm:$0xff]
    %v724 = vld [vmem:[%s699 + $0xc0] sm:$0xff]
    %v725 = vld [vmem:[%s699 + $0xc8] sm:$0xff]
    %v726 = vld [vmem:[%s699 + $0xd0] sm:$0xff]
    %v727 = vld [vmem:[%s699 + $0xd8] sm:$0xff]
    %v728 = vld [vmem:[%s699 + $0xe0] sm:$0xff]
    %v729 = vld [vmem:[%s699 + $0xe8] sm:$0xff]
    %v730 = vld [vmem:[%s699 + $0xf0] sm:$0xff]
    %v731 = vld [vmem:[%s699 + $0xf8] sm:$0xff]
    %s732 = scalar_lea.vmem [#allocation10], 1
    %v733 = vld [vmem:[%s732] sm:$0x1]
    %v734 = vrot.slane %v243, 6
    %v735 = vsel %vm467, %v469, %v734
    %v739 = vlaneseq
    %v740 = vshrl.u32 %v739, 7
    %v741 = vsub.s32 0, %v740
    %v742 = vrot.slane %v733, %v741
    %744 = vmatprep.subr.mxu0 0.0
    %745 = vmatpush1.msra.mxu0 %v700
    %746 = vmatprep.subr.mxu0 0.0
    %747 = vmatpush1.msra.mxu0 %v701
    %748 = vmatprep.subr.mxu0 0.0
    %749 = vmatpush1.msra.mxu0 %v702
    %750 = vmatprep.subr.mxu0 0.0
    %751 = vmatpush1.msra.mxu0 %v703
    %752 = vmatprep.subr.mxu0 0.0
    %753 = vmatpush1.msra.mxu0 %v704
    %754 = vmatprep.subr.mxu0 0.0
    %755 = vmatpush1.msra.mxu0 %v705
    %756 = vmatprep.subr.mxu0 0.0
    %757 = vmatpush1.msra.mxu0 %v706
    %758 = vmatprep.subr.mxu0 0.0
    %759 = vmatpush1.msra.mxu0 %v707
    %760 = vmatprep.subr.mxu0 0.0
    %761 = vmatpush1.msra.mxu0 %v708
    %762 = vmatprep.subr.mxu0 0.0
    %763 = vmatpush1.msra.mxu0 %v709
    %764 = vmatprep.subr.mxu0 0.0
    %765 = vmatpush1.msra.mxu0 %v710
    %766 = vmatprep.subr.mxu0 0.0
    %767 = vmatpush1.msra.mxu0 %v711
    %768 = vmatprep.subr.mxu0 0.0
    %769 = vmatpush1.msra.mxu0 %v712
    %770 = vmatprep.subr.mxu0 0.0
    %771 = vmatpush1.msra.mxu0 %v713
    %772 = vmatprep.subr.mxu0 0.0
    %773 = vmatpush1.msra.mxu0 %v714
    %774 = vmatprep.subr.mxu0 0.0
    %775 = vmatpush1.msra.mxu0 %v715
    %776 = vmatprep.subr.mxu0 0.0
    %777 = vmatpush1.msra.mxu0 %v716
    %778 = vmatprep.subr.mxu0 0.0
    %779 = vmatpush1.msra.mxu0 %v717
    %780 = vmatprep.subr.mxu0 0.0
    %781 = vmatpush1.msra.mxu0 %v718
    %782 = vmatprep.subr.mxu0 0.0
    %783 = vmatpush1.msra.mxu0 %v719
    %784 = vmatprep.subr.mxu0 0.0
    %785 = vmatpush1.msra.mxu0 %v720
    %786 = vmatprep.subr.mxu0 0.0
    %787 = vmatpush1.msra.mxu0 %v721
    %788 = vmatprep.subr.mxu0 0.0
    %789 = vmatpush1.msra.mxu0 %v722
    %790 = vmatprep.subr.mxu0 0.0
    %791 = vmatpush1.msra.mxu0 %v723
    %792 = vmatprep.subr.mxu0 0.0
    %793 = vmatpush1.msra.mxu0 %v724
    %794 = vmatprep.subr.mxu0 0.0
    %795 = vmatpush1.msra.mxu0 %v725
    %796 = vmatprep.subr.mxu0 0.0
    %797 = vmatpush1.msra.mxu0 %v726
    %798 = vmatprep.subr.mxu0 0.0
    %799 = vmatpush1.msra.mxu0 %v727
    %800 = vmatprep.subr.mxu0 0.0
    %801 = vmatpush1.msra.mxu0 %v728
    %802 = vmatprep.subr.mxu0 0.0
    %803 = vmatpush1.msra.mxu0 %v729
    %804 = vmatprep.subr.mxu0 0.0
    %805 = vmatpush1.msra.mxu0 %v730
    %806 = vmatprep.subr.mxu0 0.0
    %807 = vmatpush1.msra.mxu0 %v731
    %808 = vmatprep.mubr.f32.mxu0 %v470
    %809 = vmatmul.mubr.f32.gmra.mrb[0].mxu0 %v241
    %v810 = vpop.f32.mrb[0].mxu0
    %v811 = vadd.f32 %v742, %v810
    %v812 = vpop.f32.mrb[0].mxu0
    %813 = vmatprep.mubr.f32.mxu0 %v735
    %814 = vmatmul.mubr.f32.gmra.mrb[0].mxu0 %v242
    %v815 = vpop.f32.mrb[0].mxu0
    %v816 = vadd.f32 %v742, %v815
    %v817 = vpop.f32.mrb[0].mxu0
    %818 = vmatprep.mubr.f32.mxu0 %v734
    %819 = vmatmul.mubr.f32.gmra.mrb[0].mxu0 %v243
    %v820 = vpop.f32.mrb[0].mxu0
    %v821 = vadd.f32 %v742, %v820
    %v822 = vpop.f32.mrb[0].mxu0
    %823 = vdwg.mxu0
    %v824 = vmax.f32 %v811, 0.0
    %v825 = vmax.f32 %v816, 0.0
    %v826 = vmax.f32 %v821, 0.0
    %s827 = scalar_lea.vmem [#allocation9], 512
    %v828 = vld [vmem:[%s827] sm:$0xff]
    %v829 = vld [vmem:[%s827 + $0x8] sm:$0xff]
    %v830 = vld [vmem:[%s827 + $0x10] sm:$0xff]
    %v831 = vld [vmem:[%s827 + $0x18] sm:$0xff]
    %v832 = vld [vmem:[%s827 + $0x20] sm:$0xff]
    %v833 = vld [vmem:[%s827 + $0x28] sm:$0xff]
    %v834 = vld [vmem:[%s827 + $0x30] sm:$0xff]
    %v835 = vld [vmem:[%s827 + $0x38] sm:$0xff]
    %v836 = vld [vmem:[%s827 + $0x40] sm:$0xff]
    %v837 = vld [vmem:[%s827 + $0x48] sm:$0xff]
    %v838 = vld [vmem:[%s827 + $0x50] sm:$0xff]
    %v839 = vld [vmem:[%s827 + $0x58] sm:$0xff]
    %v840 = vld [vmem:[%s827 + $0x60] sm:$0xff]
    %v841 = vld [vmem:[%s827 + $0x68] sm:$0xff]
    %v842 = vld [vmem:[%s827 + $0x70] sm:$0xff]
    %v843 = vld [vmem:[%s827 + $0x78] sm:$0xff]
    %v844 = vld [vmem:[%s827 + $0x80] sm:$0xff]
    %v845 = vld [vmem:[%s827 + $0x88] sm:$0xff]
    %v846 = vld [vmem:[%s827 + $0x90] sm:$0xff]
    %v847 = vld [vmem:[%s827 + $0x98] sm:$0xff]
    %v848 = vld [vmem:[%s827 + $0xa0] sm:$0xff]
    %v849 = vld [vmem:[%s827 + $0xa8] sm:$0xff]
    %v850 = vld [vmem:[%s827 + $0xb0] sm:$0xff]
    %v851 = vld [vmem:[%s827 + $0xb8] sm:$0xff]
    %v852 = vld [vmem:[%s827 + $0xc0] sm:$0xff]
    %v853 = vld [vmem:[%s827 + $0xc8] sm:$0xff]
    %v854 = vld [vmem:[%s827 + $0xd0] sm:$0xff]
    %v855 = vld [vmem:[%s827 + $0xd8] sm:$0xff]
    %v856 = vld [vmem:[%s827 + $0xe0] sm:$0xff]
    %v857 = vld [vmem:[%s827 + $0xe8] sm:$0xff]
    %v858 = vld [vmem:[%s827 + $0xf0] sm:$0xff]
    %v859 = vld [vmem:[%s827 + $0xf8] sm:$0xff]
    %s860 = scalar_lea.vmem [#allocation10], 2
    %v861 = vld [vmem:[%s860] sm:$0x1]
    %v863 = vrot.slane %v349, 2
    %v866 = vlaneseq
    %v867 = vshrl.u32 %v866, 7
    %v868 = vsub.s32 0, %v867
    %v869 = vrot.slane %v861, %v868
    %871 = vmatprep.subr.mxu0 0.0
    %872 = vmatpush1.msra.mxu0 %v828
    %873 = vmatprep.subr.mxu0 0.0
    %874 = vmatpush1.msra.mxu0 %v829
    %875 = vmatprep.subr.mxu0 0.0
    %876 = vmatpush1.msra.mxu0 %v830
    %877 = vmatprep.subr.mxu0 0.0
    %878 = vmatpush1.msra.mxu0 %v831
    %879 = vmatprep.subr.mxu0 0.0
    %880 = vmatpush1.msra.mxu0 %v832
    %881 = vmatprep.subr.mxu0 0.0
    %882 = vmatpush1.msra.mxu0 %v833
    %883 = vmatprep.subr.mxu0 0.0
    %884 = vmatpush1.msra.mxu0 %v834
    %885 = vmatprep.subr.mxu0 0.0
    %886 = vmatpush1.msra.mxu0 %v835
    %887 = vmatprep.subr.mxu0 0.0
    %888 = vmatpush1.msra.mxu0 %v836
    %889 = vmatprep.subr.mxu0 0.0
    %890 = vmatpush1.msra.mxu0 %v837
    %891 = vmatprep.subr.mxu0 0.0
    %892 = vmatpush1.msra.mxu0 %v838
    %893 = vmatprep.subr.mxu0 0.0
    %894 = vmatpush1.msra.mxu0 %v839
    %895 = vmatprep.subr.mxu0 0.0
    %896 = vmatpush1.msra.mxu0 %v840
    %897 = vmatprep.subr.mxu0 0.0
    %898 = vmatpush1.msra.mxu0 %v841
    %899 = vmatprep.subr.mxu0 0.0
    %900 = vmatpush1.msra.mxu0 %v842
    %901 = vmatprep.subr.mxu0 0.0
    %902 = vmatpush1.msra.mxu0 %v843
    %903 = vmatprep.subr.mxu0 0.0
    %904 = vmatpush1.msra.mxu0 %v844
    %905 = vmatprep.subr.mxu0 0.0
    %906 = vmatpush1.msra.mxu0 %v845
    %907 = vmatprep.subr.mxu0 0.0
    %908 = vmatpush1.msra.mxu0 %v846
    %909 = vmatprep.subr.mxu0 0.0
    %910 = vmatpush1.msra.mxu0 %v847
    %911 = vmatprep.subr.mxu0 0.0
    %912 = vmatpush1.msra.mxu0 %v848
    %913 = vmatprep.subr.mxu0 0.0
    %914 = vmatpush1.msra.mxu0 %v849
    %915 = vmatprep.subr.mxu0 0.0
    %916 = vmatpush1.msra.mxu0 %v850
    %917 = vmatprep.subr.mxu0 0.0
    %918 = vmatpush1.msra.mxu0 %v851
    %919 = vmatprep.subr.mxu0 0.0
    %920 = vmatpush1.msra.mxu0 %v852
    %921 = vmatprep.subr.mxu0 0.0
    %922 = vmatpush1.msra.mxu0 %v853
    %923 = vmatprep.subr.mxu0 0.0
    %924 = vmatpush1.msra.mxu0 %v854
    %925 = vmatprep.subr.mxu0 0.0
    %926 = vmatpush1.msra.mxu0 %v855
    %927 = vmatprep.subr.mxu0 0.0
    %928 = vmatpush1.msra.mxu0 %v856
    %929 = vmatprep.subr.mxu0 0.0
    %930 = vmatpush1.msra.mxu0 %v857
    %931 = vmatprep.subr.mxu0 0.0
    %932 = vmatpush1.msra.mxu0 %v858
    %933 = vmatprep.subr.mxu0 0.0
    %934 = vmatpush1.msra.mxu0 %v859
    %935 = vmatprep.mubr.f32.mxu0 %v863
    %936 = vmatmul.mubr.f32.gmra.mrb[0].mxu0 %v349
    %v937 = vpop.f32.mrb[0].mxu0
    %v938 = vadd.f32 %v869, %v937
    %v939 = vpop.f32.mrb[0].mxu0
    %940 = vdwg.mxu0
    %v941 = vmax.f32 %v938, 0.0
    %v943 = vrot.slane %v350, 2
    %945 = vmatprep.subr.mxu0 0.0
    %946 = vmatpush1.msra.mxu0 %v828
    %947 = vmatprep.subr.mxu0 0.0
    %948 = vmatpush1.msra.mxu0 %v829
    %949 = vmatprep.subr.mxu0 0.0
    %950 = vmatpush1.msra.mxu0 %v830
    %951 = vmatprep.subr.mxu0 0.0
    %952 = vmatpush1.msra.mxu0 %v831
    %953 = vmatprep.subr.mxu0 0.0
    %954 = vmatpush1.msra.mxu0 %v832
    %955 = vmatprep.subr.mxu0 0.0
    %956 = vmatpush1.msra.mxu0 %v833
    %957 = vmatprep.subr.mxu0 0.0
    %958 = vmatpush1.msra.mxu0 %v834
    %959 = vmatprep.subr.mxu0 0.0
    %960 = vmatpush1.msra.mxu0 %v835
    %961 = vmatprep.subr.mxu0 0.0
    %962 = vmatpush1.msra.mxu0 %v836
    %963 = vmatprep.subr.mxu0 0.0
    %964 = vmatpush1.msra.mxu0 %v837
    %965 = vmatprep.subr.mxu0 0.0
    %966 = vmatpush1.msra.mxu0 %v838
    %967 = vmatprep.subr.mxu0 0.0
    %968 = vmatpush1.msra.mxu0 %v839
    %969 = vmatprep.subr.mxu0 0.0
    %970 = vmatpush1.msra.mxu0 %v840
    %971 = vmatprep.subr.mxu0 0.0
    %972 = vmatpush1.msra.mxu0 %v841
    %973 = vmatprep.subr.mxu0 0.0
    %974 = vmatpush1.msra.mxu0 %v842
    %975 = vmatprep.subr.mxu0 0.0
    %976 = vmatpush1.msra.mxu0 %v843
    %977 = vmatprep.subr.mxu0 0.0
    %978 = vmatpush1.msra.mxu0 %v844
    %979 = vmatprep.subr.mxu0 0.0
    %980 = vmatpush1.msra.mxu0 %v845
    %981 = vmatprep.subr.mxu0 0.0
    %982 = vmatpush1.msra.mxu0 %v846
    %983 = vmatprep.subr.mxu0 0.0
    %984 = vmatpush1.msra.mxu0 %v847
    %985 = vmatprep.subr.mxu0 0.0
    %986 = vmatpush1.msra.mxu0 %v848
    %987 = vmatprep.subr.mxu0 0.0
    %988 = vmatpush1.msra.mxu0 %v849
    %989 = vmatprep.subr.mxu0 0.0
    %990 = vmatpush1.msra.mxu0 %v850
    %991 = vmatprep.subr.mxu0 0.0
    %992 = vmatpush1.msra.mxu0 %v851
    %993 = vmatprep.subr.mxu0 0.0
    %994 = vmatpush1.msra.mxu0 %v852
    %995 = vmatprep.subr.mxu0 0.0
    %996 = vmatpush1.msra.mxu0 %v853
    %997 = vmatprep.subr.mxu0 0.0
    %998 = vmatpush1.msra.mxu0 %v854
    %999 = vmatprep.subr.mxu0 0.0
    %1000 = vmatpush1.msra.mxu0 %v855
    %1001 = vmatprep.subr.mxu0 0.0
    %1002 = vmatpush1.msra.mxu0 %v856
    %1003 = vmatprep.subr.mxu0 0.0
    %1004 = vmatpush1.msra.mxu0 %v857
    %1005 = vmatprep.subr.mxu0 0.0
    %1006 = vmatpush1.msra.mxu0 %v858
    %1007 = vmatprep.subr.mxu0 0.0
    %1008 = vmatpush1.msra.mxu0 %v859
    %1009 = vmatprep.mubr.f32.mxu0 %v943
    %1010 = vmatmul.mubr.f32.gmra.mrb[0].mxu0 %v350
    %v1011 = vpop.f32.mrb[0].mxu0
    %v1012 = vadd.f32 %v869, %v1011
    %v1013 = vpop.f32.mrb[0].mxu0
    %1014 = vdwg.mxu0
    %v1015 = vmax.f32 %v1012, 0.0
    %v1017 = vrot.slane %v351, 2
    %1019 = vmatprep.subr.mxu0 0.0
    %1020 = vmatpush1.msra.mxu0 %v828
    %1021 = vmatprep.subr.mxu0 0.0
    %1022 = vmatpush1.msra.mxu0 %v829
    %1023 = vmatprep.subr.mxu0 0.0
    %1024 = vmatpush1.msra.mxu0 %v830
    %1025 = vmatprep.subr.mxu0 0.0
    %1026 = vmatpush1.msra.mxu0 %v831
    %1027 = vmatprep.subr.mxu0 0.0
    %1028 = vmatpush1.msra.mxu0 %v832
    %1029 = vmatprep.subr.mxu0 0.0
    %1030 = vmatpush1.msra.mxu0 %v833
    %1031 = vmatprep.subr.mxu0 0.0
    %1032 = vmatpush1.msra.mxu0 %v834
    %1033 = vmatprep.subr.mxu0 0.0
    %1034 = vmatpush1.msra.mxu0 %v835
    %1035 = vmatprep.subr.mxu0 0.0
    %1036 = vmatpush1.msra.mxu0 %v836
    %1037 = vmatprep.subr.mxu0 0.0
    %1038 = vmatpush1.msra.mxu0 %v837
    %1039 = vmatprep.subr.mxu0 0.0
    %1040 = vmatpush1.msra.mxu0 %v838
    %1041 = vmatprep.subr.mxu0 0.0
    %1042 = vmatpush1.msra.mxu0 %v839
    %1043 = vmatprep.subr.mxu0 0.0
    %1044 = vmatpush1.msra.mxu0 %v840
    %1045 = vmatprep.subr.mxu0 0.0
    %1046 = vmatpush1.msra.mxu0 %v841
    %1047 = vmatprep.subr.mxu0 0.0
    %1048 = vmatpush1.msra.mxu0 %v842
    %1049 = vmatprep.subr.mxu0 0.0
    %1050 = vmatpush1.msra.mxu0 %v843
    %1051 = vmatprep.subr.mxu0 0.0
    %1052 = vmatpush1.msra.mxu0 %v844
    %1053 = vmatprep.subr.mxu0 0.0
    %1054 = vmatpush1.msra.mxu0 %v845
    %1055 = vmatprep.subr.mxu0 0.0
    %1056 = vmatpush1.msra.mxu0 %v846
    %1057 = vmatprep.subr.mxu0 0.0
    %1058 = vmatpush1.msra.mxu0 %v847
    %1059 = vmatprep.subr.mxu0 0.0
    %1060 = vmatpush1.msra.mxu0 %v848
    %1061 = vmatprep.subr.mxu0 0.0
    %1062 = vmatpush1.msra.mxu0 %v849
    %1063 = vmatprep.subr.mxu0 0.0
    %1064 = vmatpush1.msra.mxu0 %v850
    %1065 = vmatprep.subr.mxu0 0.0
    %1066 = vmatpush1.msra.mxu0 %v851
    %1067 = vmatprep.subr.mxu0 0.0
    %1068 = vmatpush1.msra.mxu0 %v852
    %1069 = vmatprep.subr.mxu0 0.0
    %1070 = vmatpush1.msra.mxu0 %v853
    %1071 = vmatprep.subr.mxu0 0.0
    %1072 = vmatpush1.msra.mxu0 %v854
    %1073 = vmatprep.subr.mxu0 0.0
    %1074 = vmatpush1.msra.mxu0 %v855
    %1075 = vmatprep.subr.mxu0 0.0
    %1076 = vmatpush1.msra.mxu0 %v856
    %1077 = vmatprep.subr.mxu0 0.0
    %1078 = vmatpush1.msra.mxu0 %v857
    %1079 = vmatprep.subr.mxu0 0.0
    %1080 = vmatpush1.msra.mxu0 %v858
    %1081 = vmatprep.subr.mxu0 0.0
    %1082 = vmatpush1.msra.mxu0 %v859
    %1083 = vmatprep.mubr.f32.mxu0 %v1017
    %1084 = vmatmul.mubr.f32.gmra.mrb[0].mxu0 %v351
    %v1085 = vpop.f32.mrb[0].mxu0
    %v1086 = vadd.f32 %v869, %v1085
    %v1087 = vpop.f32.mrb[0].mxu0
    %1088 = vdwg.mxu0
    %v1089 = vmax.f32 %v1086, 0.0
    %s1090 = scalar_lea.vmem [#allocation9], 768
    %v1091 = vld [vmem:[%s1090] sm:$0xff]
    %v1092 = vld [vmem:[%s1090 + $0x8] sm:$0xff]
    %v1093 = vld [vmem:[%s1090 + $0x10] sm:$0xff]
    %v1094 = vld [vmem:[%s1090 + $0x18] sm:$0xff]
    %v1095 = vld [vmem:[%s1090 + $0x20] sm:$0xff]
    %v1096 = vld [vmem:[%s1090 + $0x28] sm:$0xff]
    %v1097 = vld [vmem:[%s1090 + $0x30] sm:$0xff]
    %v1098 = vld [vmem:[%s1090 + $0x38] sm:$0xff]
    %v1099 = vld [vmem:[%s1090 + $0x40] sm:$0xff]
    %v1100 = vld [vmem:[%s1090 + $0x48] sm:$0xff]
    %v1101 = vld [vmem:[%s1090 + $0x50] sm:$0xff]
    %v1102 = vld [vmem:[%s1090 + $0x58] sm:$0xff]
    %v1103 = vld [vmem:[%s1090 + $0x60] sm:$0xff]
    %v1104 = vld [vmem:[%s1090 + $0x68] sm:$0xff]
    %v1105 = vld [vmem:[%s1090 + $0x70] sm:$0xff]
    %v1106 = vld [vmem:[%s1090 + $0x78] sm:$0xff]
    %v1107 = vld [vmem:[%s1090 + $0x80] sm:$0xff]
    %v1108 = vld [vmem:[%s1090 + $0x88] sm:$0xff]
    %v1109 = vld [vmem:[%s1090 + $0x90] sm:$0xff]
    %v1110 = vld [vmem:[%s1090 + $0x98] sm:$0xff]
    %v1111 = vld [vmem:[%s1090 + $0xa0] sm:$0xff]
    %v1112 = vld [vmem:[%s1090 + $0xa8] sm:$0xff]
    %v1113 = vld [vmem:[%s1090 + $0xb0] sm:$0xff]
    %v1114 = vld [vmem:[%s1090 + $0xb8] sm:$0xff]
    %v1115 = vld [vmem:[%s1090 + $0xc0] sm:$0xff]
    %v1116 = vld [vmem:[%s1090 + $0xc8] sm:$0xff]
    %v1117 = vld [vmem:[%s1090 + $0xd0] sm:$0xff]
    %v1118 = vld [vmem:[%s1090 + $0xd8] sm:$0xff]
    %v1119 = vld [vmem:[%s1090 + $0xe0] sm:$0xff]
    %v1120 = vld [vmem:[%s1090 + $0xe8] sm:$0xff]
    %v1121 = vld [vmem:[%s1090 + $0xf0] sm:$0xff]
    %v1122 = vld [vmem:[%s1090 + $0xf8] sm:$0xff]
    %s1123 = scalar_lea.vmem [#allocation10], 3
    %v1124 = vld [vmem:[%s1123] sm:$0x1]
    %v1126 = vlaneseq
    %v1127 = vshrl.u32 %v1126, 7
    %v1128 = vsub.s32 0, %v1127
    %v1129 = vrot.slane %v1124, %v1128
    %1131 = vmatprep.subr.mxu0 0.0
    %1132 = vmatpush1.msra.mxu0 %v1091
    %1133 = vmatprep.subr.mxu0 0.0
    %1134 = vmatpush1.msra.mxu0 %v1092
    %1135 = vmatprep.subr.mxu0 0.0
    %1136 = vmatpush1.msra.mxu0 %v1093
    %1137 = vmatprep.subr.mxu0 0.0
    %1138 = vmatpush1.msra.mxu0 %v1094
    %1139 = vmatprep.subr.mxu0 0.0
    %1140 = vmatpush1.msra.mxu0 %v1095
    %1141 = vmatprep.subr.mxu0 0.0
    %1142 = vmatpush1.msra.mxu0 %v1096
    %1143 = vmatprep.subr.mxu0 0.0
    %1144 = vmatpush1.msra.mxu0 %v1097
    %1145 = vmatprep.subr.mxu0 0.0
    %1146 = vmatpush1.msra.mxu0 %v1098
    %1147 = vmatprep.subr.mxu0 0.0
    %1148 = vmatpush1.msra.mxu0 %v1099
    %1149 = vmatprep.subr.mxu0 0.0
    %1150 = vmatpush1.msra.mxu0 %v1100
    %1151 = vmatprep.subr.mxu0 0.0
    %1152 = vmatpush1.msra.mxu0 %v1101
    %1153 = vmatprep.subr.mxu0 0.0
    %1154 = vmatpush1.msra.mxu0 %v1102
    %1155 = vmatprep.subr.mxu0 0.0
    %1156 = vmatpush1.msra.mxu0 %v1103
    %1157 = vmatprep.subr.mxu0 0.0
    %1158 = vmatpush1.msra.mxu0 %v1104
    %1159 = vmatprep.subr.mxu0 0.0
    %1160 = vmatpush1.msra.mxu0 %v1105
    %1161 = vmatprep.subr.mxu0 0.0
    %1162 = vmatpush1.msra.mxu0 %v1106
    %1163 = vmatprep.subr.mxu0 0.0
    %1164 = vmatpush1.msra.mxu0 %v1107
    %1165 = vmatprep.subr.mxu0 0.0
    %1166 = vmatpush1.msra.mxu0 %v1108
    %1167 = vmatprep.subr.mxu0 0.0
    %1168 = vmatpush1.msra.mxu0 %v1109
    %1169 = vmatprep.subr.mxu0 0.0
    %1170 = vmatpush1.msra.mxu0 %v1110
    %1171 = vmatprep.subr.mxu0 0.0
    %1172 = vmatpush1.msra.mxu0 %v1111
    %1173 = vmatprep.subr.mxu0 0.0
    %1174 = vmatpush1.msra.mxu0 %v1112
    %1175 = vmatprep.subr.mxu0 0.0
    %1176 = vmatpush1.msra.mxu0 %v1113
    %1177 = vmatprep.subr.mxu0 0.0
    %1178 = vmatpush1.msra.mxu0 %v1114
    %1179 = vmatprep.subr.mxu0 0.0
    %1180 = vmatpush1.msra.mxu0 %v1115
    %1181 = vmatprep.subr.mxu0 0.0
    %1182 = vmatpush1.msra.mxu0 %v1116
    %1183 = vmatprep.subr.mxu0 0.0
    %1184 = vmatpush1.msra.mxu0 %v1117
    %1185 = vmatprep.subr.mxu0 0.0
    %1186 = vmatpush1.msra.mxu0 %v1118
    %1187 = vmatprep.subr.mxu0 0.0
    %1188 = vmatpush1.msra.mxu0 %v1119
    %1189 = vmatprep.subr.mxu0 0.0
    %1190 = vmatpush1.msra.mxu0 %v1120
    %1191 = vmatprep.subr.mxu0 0.0
    %1192 = vmatpush1.msra.mxu0 %v1121
    %1193 = vmatprep.subr.mxu0 0.0
    %1194 = vmatpush1.msra.mxu0 %v1122
    %1195 = vmatprep.mubr.f32.mxu0 %v350
    %1196 = vmatmul.mubr.f32.gmra.mrb[0].mxu0 %v349
    %v1197 = vpop.f32.mrb[0].mxu0
    %v1198 = vadd.f32 %v1129, %v1197
    %v1199 = vpop.f32.mrb[0].mxu0
    %1200 = vmatprep.mubr.f32.mxu0 %v351
    %1201 = vmatmul.mubr.f32.gmra.mrb[0].mxu0 %v350
    %v1202 = vpop.f32.mrb[0].mxu0
    %v1203 = vadd.f32 %v1129, %v1202
    %v1204 = vpop.f32.mrb[0].mxu0
    %1205 = vdwg.mxu0
    %v1206 = vmax.f32 %v1198, 0.0
    %v1207 = vmax.f32 %v1203, 0.0
    %s1208 = smul.u32 8, 192
    %s1209 = smul.u32 %s1208, 2
    %s1210 = sshll.u32 %s1209, 4
    %1211 = dma.done [#allocation3], %s1210
    %v1212 = vrot.slane %v241, 4
    %v1217 = vrot.slane %v243, 4
    %v1219 = vld [vmem:[#allocation2] sm:$0xff]
    %v1220 = vld [vmem:[#allocation2 + $0x8] sm:$0xff]
    %v1221 = vld [vmem:[#allocation2 + $0x10] sm:$0xff]
    %v1222 = vld [vmem:[#allocation2 + $0x18] sm:$0xff]
    %v1223 = vld [vmem:[#allocation2 + $0x20] sm:$0xff]
    %v1224 = vld [vmem:[#allocation2 + $0x28] sm:$0xff]
    %v1225 = vld [vmem:[#allocation2 + $0x30] sm:$0xff]
    %v1226 = vld [vmem:[#allocation2 + $0x38] sm:$0xff]
    %v1227 = vld [vmem:[#allocation2 + $0x40] sm:$0xff]
    %v1228 = vld [vmem:[#allocation2 + $0x48] sm:$0xff]
    %v1229 = vld [vmem:[#allocation2 + $0x50] sm:$0xff]
    %v1230 = vld [vmem:[#allocation2 + $0x58] sm:$0xff]
    %v1231 = vld [vmem:[#allocation2 + $0x60] sm:$0xff]
    %v1232 = vld [vmem:[#allocation2 + $0x68] sm:$0xff]
    %v1233 = vld [vmem:[#allocation2 + $0x70] sm:$0xff]
    %v1234 = vld [vmem:[#allocation2 + $0x78] sm:$0xff]
    %v1235 = vld [vmem:[#allocation2 + $0x80] sm:$0xff]
    %v1236 = vld [vmem:[#allocation2 + $0x88] sm:$0xff]
    %v1237 = vld [vmem:[#allocation2 + $0x90] sm:$0xff]
    %v1238 = vld [vmem:[#allocation2 + $0x98] sm:$0xff]
    %v1239 = vld [vmem:[#allocation2 + $0xa0] sm:$0xff]
    %v1240 = vld [vmem:[#allocation2 + $0xa8] sm:$0xff]
    %v1241 = vld [vmem:[#allocation2 + $0xb0] sm:$0xff]
    %v1242 = vld [vmem:[#allocation2 + $0xb8] sm:$0xff]
    %v1243 = vld [vmem:[#allocation2 + $0xc0] sm:$0xff]
    %v1244 = vld [vmem:[#allocation2 + $0xc8] sm:$0xff]
    %v1245 = vld [vmem:[#allocation2 + $0xd0] sm:$0xff]
    %v1246 = vld [vmem:[#allocation2 + $0xd8] sm:$0xff]
    %v1247 = vld [vmem:[#allocation2 + $0xe0] sm:$0xff]
    %v1248 = vld [vmem:[#allocation2 + $0xe8] sm:$0xff]
    %v1249 = vld [vmem:[#allocation2 + $0xf0] sm:$0xff]
    %v1250 = vld [vmem:[#allocation2 + $0xf8] sm:$0xff]
    %v1251 = vld [vmem:[#allocation2 + $0x100] sm:$0xff]
    %v1252 = vld [vmem:[#allocation2 + $0x108] sm:$0xff]
    %v1253 = vld [vmem:[#allocation2 + $0x110] sm:$0xff]
    %v1254 = vld [vmem:[#allocation2 + $0x118] sm:$0xff]
    %v1255 = vld [vmem:[#allocation2 + $0x120] sm:$0xff]
    %v1256 = vld [vmem:[#allocation2 + $0x128] sm:$0xff]
    %v1257 = vld [vmem:[#allocation2 + $0x130] sm:$0xff]
    %v1258 = vld [vmem:[#allocation2 + $0x138] sm:$0xff]
    %v1259 = vld [vmem:[#allocation2 + $0x140] sm:$0xff]
    %v1260 = vld [vmem:[#allocation2 + $0x148] sm:$0xff]
    %v1261 = vld [vmem:[#allocation2 + $0x150] sm:$0xff]
    %v1262 = vld [vmem:[#allocation2 + $0x158] sm:$0xff]
    %v1263 = vld [vmem:[#allocation2 + $0x160] sm:$0xff]
    %v1264 = vld [vmem:[#allocation2 + $0x168] sm:$0xff]
    %v1265 = vld [vmem:[#allocation2 + $0x170] sm:$0xff]
    %v1266 = vld [vmem:[#allocation2 + $0x178] sm:$0xff]
    %v1267 = vld [vmem:[#allocation2 + $0x180] sm:$0xff]
    %v1268 = vld [vmem:[#allocation2 + $0x188] sm:$0xff]
    %v1269 = vld [vmem:[#allocation2 + $0x190] sm:$0xff]
    %v1270 = vld [vmem:[#allocation2 + $0x198] sm:$0xff]
    %v1271 = vld [vmem:[#allocation2 + $0x1a0] sm:$0xff]
    %v1272 = vld [vmem:[#allocation2 + $0x1a8] sm:$0xff]
    %v1273 = vld [vmem:[#allocation2 + $0x1b0] sm:$0xff]
    %v1274 = vld [vmem:[#allocation2 + $0x1b8] sm:$0xff]
    %v1275 = vld [vmem:[#allocation2 + $0x1c0] sm:$0xff]
    %v1276 = vld [vmem:[#allocation2 + $0x1c8] sm:$0xff]
    %v1277 = vld [vmem:[#allocation2 + $0x1d0] sm:$0xff]
    %v1278 = vld [vmem:[#allocation2 + $0x1d8] sm:$0xff]
    %v1279 = vld [vmem:[#allocation2 + $0x1e0] sm:$0xff]
    %v1280 = vld [vmem:[#allocation2 + $0x1e8] sm:$0xff]
    %v1281 = vld [vmem:[#allocation2 + $0x1f0] sm:$0xff]
    %v1282 = vld [vmem:[#allocation2 + $0x1f8] sm:$0xff]
    %v1283 = vld [vmem:[#allocation2 + $0x200] sm:$0xff]
    %v1284 = vld [vmem:[#allocation2 + $0x208] sm:$0xff]
    %v1285 = vld [vmem:[#allocation2 + $0x210] sm:$0xff]
    %v1286 = vld [vmem:[#allocation2 + $0x218] sm:$0xff]
    %v1287 = vld [vmem:[#allocation2 + $0x220] sm:$0xff]
    %v1288 = vld [vmem:[#allocation2 + $0x228] sm:$0xff]
    %v1289 = vld [vmem:[#allocation2 + $0x230] sm:$0xff]
    %v1290 = vld [vmem:[#allocation2 + $0x238] sm:$0xff]
    %v1291 = vld [vmem:[#allocation2 + $0x240] sm:$0xff]
    %v1292 = vld [vmem:[#allocation2 + $0x248] sm:$0xff]
    %v1293 = vld [vmem:[#allocation2 + $0x250] sm:$0xff]
    %v1294 = vld [vmem:[#allocation2 + $0x258] sm:$0xff]
    %v1295 = vld [vmem:[#allocation2 + $0x260] sm:$0xff]
    %v1296 = vld [vmem:[#allocation2 + $0x268] sm:$0xff]
    %v1297 = vld [vmem:[#allocation2 + $0x270] sm:$0xff]
    %v1298 = vld [vmem:[#allocation2 + $0x278] sm:$0xff]
    %v1299 = vld [vmem:[#allocation2 + $0x280] sm:$0xff]
    %v1300 = vld [vmem:[#allocation2 + $0x288] sm:$0xff]
    %v1301 = vld [vmem:[#allocation2 + $0x290] sm:$0xff]
    %v1302 = vld [vmem:[#allocation2 + $0x298] sm:$0xff]
    %v1303 = vld [vmem:[#allocation2 + $0x2a0] sm:$0xff]
    %v1304 = vld [vmem:[#allocation2 + $0x2a8] sm:$0xff]
    %v1305 = vld [vmem:[#allocation2 + $0x2b0] sm:$0xff]
    %v1306 = vld [vmem:[#allocation2 + $0x2b8] sm:$0xff]
    %v1307 = vld [vmem:[#allocation2 + $0x2c0] sm:$0xff]
    %v1308 = vld [vmem:[#allocation2 + $0x2c8] sm:$0xff]
    %v1309 = vld [vmem:[#allocation2 + $0x2d0] sm:$0xff]
    %v1310 = vld [vmem:[#allocation2 + $0x2d8] sm:$0xff]
    %v1311 = vld [vmem:[#allocation2 + $0x2e0] sm:$0xff]
    %v1312 = vld [vmem:[#allocation2 + $0x2e8] sm:$0xff]
    %v1313 = vld [vmem:[#allocation2 + $0x2f0] sm:$0xff]
    %v1314 = vld [vmem:[#allocation2 + $0x2f8] sm:$0xff]
    %v1315 = vld [vmem:[#allocation2 + $0x300] sm:$0xff]
    %v1316 = vld [vmem:[#allocation2 + $0x308] sm:$0xff]
    %v1317 = vld [vmem:[#allocation2 + $0x310] sm:$0xff]
    %v1318 = vld [vmem:[#allocation2 + $0x318] sm:$0xff]
    %v1319 = vld [vmem:[#allocation2 + $0x320] sm:$0xff]
    %v1320 = vld [vmem:[#allocation2 + $0x328] sm:$0xff]
    %v1321 = vld [vmem:[#allocation2 + $0x330] sm:$0xff]
    %v1322 = vld [vmem:[#allocation2 + $0x338] sm:$0xff]
    %v1323 = vld [vmem:[#allocation2 + $0x340] sm:$0xff]
    %v1324 = vld [vmem:[#allocation2 + $0x348] sm:$0xff]
    %v1325 = vld [vmem:[#allocation2 + $0x350] sm:$0xff]
    %v1326 = vld [vmem:[#allocation2 + $0x358] sm:$0xff]
    %v1327 = vld [vmem:[#allocation2 + $0x360] sm:$0xff]
    %v1328 = vld [vmem:[#allocation2 + $0x368] sm:$0xff]
    %v1329 = vld [vmem:[#allocation2 + $0x370] sm:$0xff]
    %v1330 = vld [vmem:[#allocation2 + $0x378] sm:$0xff]
    %v1331 = vld [vmem:[#allocation2 + $0x380] sm:$0xff]
    %v1332 = vld [vmem:[#allocation2 + $0x388] sm:$0xff]
    %v1333 = vld [vmem:[#allocation2 + $0x390] sm:$0xff]
    %v1334 = vld [vmem:[#allocation2 + $0x398] sm:$0xff]
    %v1335 = vld [vmem:[#allocation2 + $0x3a0] sm:$0xff]
    %v1336 = vld [vmem:[#allocation2 + $0x3a8] sm:$0xff]
    %v1337 = vld [vmem:[#allocation2 + $0x3b0] sm:$0xff]
    %v1338 = vld [vmem:[#allocation2 + $0x3b8] sm:$0xff]
    %v1339 = vld [vmem:[#allocation2 + $0x3c0] sm:$0xff]
    %v1340 = vld [vmem:[#allocation2 + $0x3c8] sm:$0xff]
    %v1341 = vld [vmem:[#allocation2 + $0x3d0] sm:$0xff]
    %v1342 = vld [vmem:[#allocation2 + $0x3d8] sm:$0xff]
    %v1343 = vld [vmem:[#allocation2 + $0x3e0] sm:$0xff]
    %v1344 = vld [vmem:[#allocation2 + $0x3e8] sm:$0xff]
    %v1345 = vld [vmem:[#allocation2 + $0x3f0] sm:$0xff]
    %v1346 = vld [vmem:[#allocation2 + $0x3f8] sm:$0xff]
    %v1347 = vld [vmem:[#allocation2 + $0x400] sm:$0xff]
    %v1348 = vld [vmem:[#allocation2 + $0x408] sm:$0xff]
    %v1349 = vld [vmem:[#allocation2 + $0x410] sm:$0xff]
    %v1350 = vld [vmem:[#allocation2 + $0x418] sm:$0xff]
    %v1351 = vld [vmem:[#allocation2 + $0x420] sm:$0xff]
    %v1352 = vld [vmem:[#allocation2 + $0x428] sm:$0xff]
    %v1353 = vld [vmem:[#allocation2 + $0x430] sm:$0xff]
    %v1354 = vld [vmem:[#allocation2 + $0x438] sm:$0xff]
    %v1355 = vld [vmem:[#allocation2 + $0x440] sm:$0xff]
    %v1356 = vld [vmem:[#allocation2 + $0x448] sm:$0xff]
    %v1357 = vld [vmem:[#allocation2 + $0x450] sm:$0xff]
    %v1358 = vld [vmem:[#allocation2 + $0x458] sm:$0xff]
    %v1359 = vld [vmem:[#allocation2 + $0x460] sm:$0xff]
    %v1360 = vld [vmem:[#allocation2 + $0x468] sm:$0xff]
    %v1361 = vld [vmem:[#allocation2 + $0x470] sm:$0xff]
    %v1362 = vld [vmem:[#allocation2 + $0x478] sm:$0xff]
    %v1363 = vld [vmem:[#allocation2 + $0x480] sm:$0xff]
    %v1364 = vld [vmem:[#allocation2 + $0x488] sm:$0xff]
    %v1365 = vld [vmem:[#allocation2 + $0x490] sm:$0xff]
    %v1366 = vld [vmem:[#allocation2 + $0x498] sm:$0xff]
    %v1367 = vld [vmem:[#allocation2 + $0x4a0] sm:$0xff]
    %v1368 = vld [vmem:[#allocation2 + $0x4a8] sm:$0xff]
    %v1369 = vld [vmem:[#allocation2 + $0x4b0] sm:$0xff]
    %v1370 = vld [vmem:[#allocation2 + $0x4b8] sm:$0xff]
    %v1371 = vld [vmem:[#allocation2 + $0x4c0] sm:$0xff]
    %v1372 = vld [vmem:[#allocation2 + $0x4c8] sm:$0xff]
    %v1373 = vld [vmem:[#allocation2 + $0x4d0] sm:$0xff]
    %v1374 = vld [vmem:[#allocation2 + $0x4d8] sm:$0xff]
    %v1375 = vld [vmem:[#allocation2 + $0x4e0] sm:$0xff]
    %v1376 = vld [vmem:[#allocation2 + $0x4e8] sm:$0xff]
    %v1377 = vld [vmem:[#allocation2 + $0x4f0] sm:$0xff]
    %v1378 = vld [vmem:[#allocation2 + $0x4f8] sm:$0xff]
    %v1379 = vld [vmem:[#allocation2 + $0x500] sm:$0xff]
    %v1380 = vld [vmem:[#allocation2 + $0x508] sm:$0xff]
    %v1381 = vld [vmem:[#allocation2 + $0x510] sm:$0xff]
    %v1382 = vld [vmem:[#allocation2 + $0x518] sm:$0xff]
    %v1383 = vld [vmem:[#allocation2 + $0x520] sm:$0xff]
    %v1384 = vld [vmem:[#allocation2 + $0x528] sm:$0xff]
    %v1385 = vld [vmem:[#allocation2 + $0x530] sm:$0xff]
    %v1386 = vld [vmem:[#allocation2 + $0x538] sm:$0xff]
    %v1387 = vld [vmem:[#allocation2 + $0x540] sm:$0xff]
    %v1388 = vld [vmem:[#allocation2 + $0x548] sm:$0xff]
    %v1389 = vld [vmem:[#allocation2 + $0x550] sm:$0xff]
    %v1390 = vld [vmem:[#allocation2 + $0x558] sm:$0xff]
    %v1391 = vld [vmem:[#allocation2 + $0x560] sm:$0xff]
    %v1392 = vld [vmem:[#allocation2 + $0x568] sm:$0xff]
    %v1393 = vld [vmem:[#allocation2 + $0x570] sm:$0xff]
    %v1394 = vld [vmem:[#allocation2 + $0x578] sm:$0xff]
    %v1395 = vld [vmem:[#allocation2 + $0x580] sm:$0xff]
    %v1396 = vld [vmem:[#allocation2 + $0x588] sm:$0xff]
    %v1397 = vld [vmem:[#allocation2 + $0x590] sm:$0xff]
    %v1398 = vld [vmem:[#allocation2 + $0x598] sm:$0xff]
    %v1399 = vld [vmem:[#allocation2 + $0x5a0] sm:$0xff]
    %v1400 = vld [vmem:[#allocation2 + $0x5a8] sm:$0xff]
    %v1401 = vld [vmem:[#allocation2 + $0x5b0] sm:$0xff]
    %v1402 = vld [vmem:[#allocation2 + $0x5b8] sm:$0xff]
    %v1403 = vld [vmem:[#allocation2 + $0x5c0] sm:$0xff]
    %v1404 = vld [vmem:[#allocation2 + $0x5c8] sm:$0xff]
    %v1405 = vld [vmem:[#allocation2 + $0x5d0] sm:$0xff]
    %v1406 = vld [vmem:[#allocation2 + $0x5d8] sm:$0xff]
    %v1407 = vld [vmem:[#allocation2 + $0x5e0] sm:$0xff]
    %v1408 = vld [vmem:[#allocation2 + $0x5e8] sm:$0xff]
    %v1409 = vld [vmem:[#allocation2 + $0x5f0] sm:$0xff]
    %v1410 = vld [vmem:[#allocation2 + $0x5f8] sm:$0xff]
    %v1411 = vld [vmem:[#allocation2 + $0x600] sm:$0xff]
    %v1412 = vld [vmem:[#allocation2 + $0x608] sm:$0xff]
    %v1413 = vld [vmem:[#allocation2 + $0x610] sm:$0xff]
    %v1414 = vld [vmem:[#allocation2 + $0x618] sm:$0xff]
    %v1415 = vld [vmem:[#allocation2 + $0x620] sm:$0xff]
    %v1416 = vld [vmem:[#allocation2 + $0x628] sm:$0xff]
    %v1417 = vld [vmem:[#allocation2 + $0x630] sm:$0xff]
    %v1418 = vld [vmem:[#allocation2 + $0x638] sm:$0xff]
    %v1419 = vld [vmem:[#allocation2 + $0x640] sm:$0xff]
    %v1420 = vld [vmem:[#allocation2 + $0x648] sm:$0xff]
    %v1421 = vld [vmem:[#allocation2 + $0x650] sm:$0xff]
    %v1422 = vld [vmem:[#allocation2 + $0x658] sm:$0xff]
    %v1423 = vld [vmem:[#allocation2 + $0x660] sm:$0xff]
    %v1424 = vld [vmem:[#allocation2 + $0x668] sm:$0xff]
    %v1425 = vld [vmem:[#allocation2 + $0x670] sm:$0xff]
    %v1426 = vld [vmem:[#allocation2 + $0x678] sm:$0xff]
    %v1427 = vld [vmem:[#allocation2 + $0x680] sm:$0xff]
    %v1428 = vld [vmem:[#allocation2 + $0x688] sm:$0xff]
    %v1429 = vld [vmem:[#allocation2 + $0x690] sm:$0xff]
    %v1430 = vld [vmem:[#allocation2 + $0x698] sm:$0xff]
    %v1431 = vld [vmem:[#allocation2 + $0x6a0] sm:$0xff]
    %v1432 = vld [vmem:[#allocation2 + $0x6a8] sm:$0xff]
    %v1433 = vld [vmem:[#allocation2 + $0x6b0] sm:$0xff]
    %v1434 = vld [vmem:[#allocation2 + $0x6b8] sm:$0xff]
    %v1435 = vld [vmem:[#allocation2 + $0x6c0] sm:$0xff]
    %v1436 = vld [vmem:[#allocation2 + $0x6c8] sm:$0xff]
    %v1437 = vld [vmem:[#allocation2 + $0x6d0] sm:$0xff]
    %v1438 = vld [vmem:[#allocation2 + $0x6d8] sm:$0xff]
    %v1439 = vld [vmem:[#allocation2 + $0x6e0] sm:$0xff]
    %v1440 = vld [vmem:[#allocation2 + $0x6e8] sm:$0xff]
    %v1441 = vld [vmem:[#allocation2 + $0x6f0] sm:$0xff]
    %v1442 = vld [vmem:[#allocation2 + $0x6f8] sm:$0xff]
    %v1443 = vld [vmem:[#allocation2 + $0x700] sm:$0xff]
    %v1444 = vld [vmem:[#allocation2 + $0x708] sm:$0xff]
    %v1445 = vld [vmem:[#allocation2 + $0x710] sm:$0xff]
    %v1446 = vld [vmem:[#allocation2 + $0x718] sm:$0xff]
    %v1447 = vld [vmem:[#allocation2 + $0x720] sm:$0xff]
    %v1448 = vld [vmem:[#allocation2 + $0x728] sm:$0xff]
    %v1449 = vld [vmem:[#allocation2 + $0x730] sm:$0xff]
    %v1450 = vld [vmem:[#allocation2 + $0x738] sm:$0xff]
    %v1451 = vld [vmem:[#allocation2 + $0x740] sm:$0xff]
    %v1452 = vld [vmem:[#allocation2 + $0x748] sm:$0xff]
    %v1453 = vld [vmem:[#allocation2 + $0x750] sm:$0xff]
    %v1454 = vld [vmem:[#allocation2 + $0x758] sm:$0xff]
    %v1455 = vld [vmem:[#allocation2 + $0x760] sm:$0xff]
    %v1456 = vld [vmem:[#allocation2 + $0x768] sm:$0xff]
    %v1457 = vld [vmem:[#allocation2 + $0x770] sm:$0xff]
    %v1458 = vld [vmem:[#allocation2 + $0x778] sm:$0xff]
    %v1459 = vld [vmem:[#allocation2 + $0x780] sm:$0xff]
    %v1460 = vld [vmem:[#allocation2 + $0x788] sm:$0xff]
    %v1461 = vld [vmem:[#allocation2 + $0x790] sm:$0xff]
    %v1462 = vld [vmem:[#allocation2 + $0x798] sm:$0xff]
    %v1463 = vld [vmem:[#allocation2 + $0x7a0] sm:$0xff]
    %v1464 = vld [vmem:[#allocation2 + $0x7a8] sm:$0xff]
    %v1465 = vld [vmem:[#allocation2 + $0x7b0] sm:$0xff]
    %v1466 = vld [vmem:[#allocation2 + $0x7b8] sm:$0xff]
    %v1467 = vld [vmem:[#allocation2 + $0x7c0] sm:$0xff]
    %v1468 = vld [vmem:[#allocation2 + $0x7c8] sm:$0xff]
    %v1469 = vld [vmem:[#allocation2 + $0x7d0] sm:$0xff]
    %v1470 = vld [vmem:[#allocation2 + $0x7d8] sm:$0xff]
    %v1471 = vld [vmem:[#allocation2 + $0x7e0] sm:$0xff]
    %v1472 = vld [vmem:[#allocation2 + $0x7e8] sm:$0xff]
    %v1473 = vld [vmem:[#allocation2 + $0x7f0] sm:$0xff]
    %v1474 = vld [vmem:[#allocation2 + $0x7f8] sm:$0xff]
    %v1475 = vld [vmem:[#allocation2 + $0x800] sm:$0xff]
    %v1476 = vld [vmem:[#allocation2 + $0x808] sm:$0xff]
    %v1477 = vld [vmem:[#allocation2 + $0x810] sm:$0xff]
    %v1478 = vld [vmem:[#allocation2 + $0x818] sm:$0xff]
    %v1479 = vld [vmem:[#allocation2 + $0x820] sm:$0xff]
    %v1480 = vld [vmem:[#allocation2 + $0x828] sm:$0xff]
    %v1481 = vld [vmem:[#allocation2 + $0x830] sm:$0xff]
    %v1482 = vld [vmem:[#allocation2 + $0x838] sm:$0xff]
    %v1483 = vld [vmem:[#allocation2 + $0x840] sm:$0xff]
    %v1484 = vld [vmem:[#allocation2 + $0x848] sm:$0xff]
    %v1485 = vld [vmem:[#allocation2 + $0x850] sm:$0xff]
    %v1486 = vld [vmem:[#allocation2 + $0x858] sm:$0xff]
    %v1487 = vld [vmem:[#allocation2 + $0x860] sm:$0xff]
    %v1488 = vld [vmem:[#allocation2 + $0x868] sm:$0xff]
    %v1489 = vld [vmem:[#allocation2 + $0x870] sm:$0xff]
    %v1490 = vld [vmem:[#allocation2 + $0x878] sm:$0xff]
    %v1491 = vld [vmem:[#allocation2 + $0x880] sm:$0xff]
    %v1492 = vld [vmem:[#allocation2 + $0x888] sm:$0xff]
    %v1493 = vld [vmem:[#allocation2 + $0x890] sm:$0xff]
    %v1494 = vld [vmem:[#allocation2 + $0x898] sm:$0xff]
    %v1495 = vld [vmem:[#allocation2 + $0x8a0] sm:$0xff]
    %v1496 = vld [vmem:[#allocation2 + $0x8a8] sm:$0xff]
    %v1497 = vld [vmem:[#allocation2 + $0x8b0] sm:$0xff]
    %v1498 = vld [vmem:[#allocation2 + $0x8b8] sm:$0xff]
    %v1499 = vld [vmem:[#allocation2 + $0x8c0] sm:$0xff]
    %v1500 = vld [vmem:[#allocation2 + $0x8c8] sm:$0xff]
    %v1501 = vld [vmem:[#allocation2 + $0x8d0] sm:$0xff]
    %v1502 = vld [vmem:[#allocation2 + $0x8d8] sm:$0xff]
    %v1503 = vld [vmem:[#allocation2 + $0x8e0] sm:$0xff]
    %v1504 = vld [vmem:[#allocation2 + $0x8e8] sm:$0xff]
    %v1505 = vld [vmem:[#allocation2 + $0x8f0] sm:$0xff]
    %v1506 = vld [vmem:[#allocation2 + $0x8f8] sm:$0xff]
    %v1507 = vld [vmem:[#allocation2 + $0x900] sm:$0xff]
    %v1508 = vld [vmem:[#allocation2 + $0x908] sm:$0xff]
    %v1509 = vld [vmem:[#allocation2 + $0x910] sm:$0xff]
    %v1510 = vld [vmem:[#allocation2 + $0x918] sm:$0xff]
    %v1511 = vld [vmem:[#allocation2 + $0x920] sm:$0xff]
    %v1512 = vld [vmem:[#allocation2 + $0x928] sm:$0xff]
    %v1513 = vld [vmem:[#allocation2 + $0x930] sm:$0xff]
    %v1514 = vld [vmem:[#allocation2 + $0x938] sm:$0xff]
    %v1515 = vld [vmem:[#allocation2 + $0x940] sm:$0xff]
    %v1516 = vld [vmem:[#allocation2 + $0x948] sm:$0xff]
    %v1517 = vld [vmem:[#allocation2 + $0x950] sm:$0xff]
    %v1518 = vld [vmem:[#allocation2 + $0x958] sm:$0xff]
    %v1519 = vld [vmem:[#allocation2 + $0x960] sm:$0xff]
    %v1520 = vld [vmem:[#allocation2 + $0x968] sm:$0xff]
    %v1521 = vld [vmem:[#allocation2 + $0x970] sm:$0xff]
    %v1522 = vld [vmem:[#allocation2 + $0x978] sm:$0xff]
    %v1523 = vld [vmem:[#allocation2 + $0x980] sm:$0xff]
    %v1524 = vld [vmem:[#allocation2 + $0x988] sm:$0xff]
    %v1525 = vld [vmem:[#allocation2 + $0x990] sm:$0xff]
    %v1526 = vld [vmem:[#allocation2 + $0x998] sm:$0xff]
    %v1527 = vld [vmem:[#allocation2 + $0x9a0] sm:$0xff]
    %v1528 = vld [vmem:[#allocation2 + $0x9a8] sm:$0xff]
    %v1529 = vld [vmem:[#allocation2 + $0x9b0] sm:$0xff]
    %v1530 = vld [vmem:[#allocation2 + $0x9b8] sm:$0xff]
    %v1531 = vld [vmem:[#allocation2 + $0x9c0] sm:$0xff]
    %v1532 = vld [vmem:[#allocation2 + $0x9c8] sm:$0xff]
    %v1533 = vld [vmem:[#allocation2 + $0x9d0] sm:$0xff]
    %v1534 = vld [vmem:[#allocation2 + $0x9d8] sm:$0xff]
    %v1535 = vld [vmem:[#allocation2 + $0x9e0] sm:$0xff]
    %v1536 = vld [vmem:[#allocation2 + $0x9e8] sm:$0xff]
    %v1537 = vld [vmem:[#allocation2 + $0x9f0] sm:$0xff]
    %v1538 = vld [vmem:[#allocation2 + $0x9f8] sm:$0xff]
    %v1539 = vld [vmem:[#allocation2 + $0xa00] sm:$0xff]
    %v1540 = vld [vmem:[#allocation2 + $0xa08] sm:$0xff]
    %v1541 = vld [vmem:[#allocation2 + $0xa10] sm:$0xff]
    %v1542 = vld [vmem:[#allocation2 + $0xa18] sm:$0xff]
    %v1543 = vld [vmem:[#allocation2 + $0xa20] sm:$0xff]
    %v1544 = vld [vmem:[#allocation2 + $0xa28] sm:$0xff]
    %v1545 = vld [vmem:[#allocation2 + $0xa30] sm:$0xff]
    %v1546 = vld [vmem:[#allocation2 + $0xa38] sm:$0xff]
    %v1547 = vld [vmem:[#allocation2 + $0xa40] sm:$0xff]
    %v1548 = vld [vmem:[#allocation2 + $0xa48] sm:$0xff]
    %v1549 = vld [vmem:[#allocation2 + $0xa50] sm:$0xff]
    %v1550 = vld [vmem:[#allocation2 + $0xa58] sm:$0xff]
    %v1551 = vld [vmem:[#allocation2 + $0xa60] sm:$0xff]
    %v1552 = vld [vmem:[#allocation2 + $0xa68] sm:$0xff]
    %v1553 = vld [vmem:[#allocation2 + $0xa70] sm:$0xff]
    %v1554 = vld [vmem:[#allocation2 + $0xa78] sm:$0xff]
    %v1555 = vld [vmem:[#allocation2 + $0xa80] sm:$0xff]
    %v1556 = vld [vmem:[#allocation2 + $0xa88] sm:$0xff]
    %v1557 = vld [vmem:[#allocation2 + $0xa90] sm:$0xff]
    %v1558 = vld [vmem:[#allocation2 + $0xa98] sm:$0xff]
    %v1559 = vld [vmem:[#allocation2 + $0xaa0] sm:$0xff]
    %v1560 = vld [vmem:[#allocation2 + $0xaa8] sm:$0xff]
    %v1561 = vld [vmem:[#allocation2 + $0xab0] sm:$0xff]
    %v1562 = vld [vmem:[#allocation2 + $0xab8] sm:$0xff]
    %v1563 = vld [vmem:[#allocation2 + $0xac0] sm:$0xff]
    %v1564 = vld [vmem:[#allocation2 + $0xac8] sm:$0xff]
    %v1565 = vld [vmem:[#allocation2 + $0xad0] sm:$0xff]
    %v1566 = vld [vmem:[#allocation2 + $0xad8] sm:$0xff]
    %v1567 = vld [vmem:[#allocation2 + $0xae0] sm:$0xff]
    %v1568 = vld [vmem:[#allocation2 + $0xae8] sm:$0xff]
    %v1569 = vld [vmem:[#allocation2 + $0xaf0] sm:$0xff]
    %v1570 = vld [vmem:[#allocation2 + $0xaf8] sm:$0xff]
    %v1571 = vld [vmem:[#allocation2 + $0xb00] sm:$0xff]
    %v1572 = vld [vmem:[#allocation2 + $0xb08] sm:$0xff]
    %v1573 = vld [vmem:[#allocation2 + $0xb10] sm:$0xff]
    %v1574 = vld [vmem:[#allocation2 + $0xb18] sm:$0xff]
    %v1575 = vld [vmem:[#allocation2 + $0xb20] sm:$0xff]
    %v1576 = vld [vmem:[#allocation2 + $0xb28] sm:$0xff]
    %v1577 = vld [vmem:[#allocation2 + $0xb30] sm:$0xff]
    %v1578 = vld [vmem:[#allocation2 + $0xb38] sm:$0xff]
    %v1579 = vld [vmem:[#allocation2 + $0xb40] sm:$0xff]
    %v1580 = vld [vmem:[#allocation2 + $0xb48] sm:$0xff]
    %v1581 = vld [vmem:[#allocation2 + $0xb50] sm:$0xff]
    %v1582 = vld [vmem:[#allocation2 + $0xb58] sm:$0xff]
    %v1583 = vld [vmem:[#allocation2 + $0xb60] sm:$0xff]
    %v1584 = vld [vmem:[#allocation2 + $0xb68] sm:$0xff]
    %v1585 = vld [vmem:[#allocation2 + $0xb70] sm:$0xff]
    %v1586 = vld [vmem:[#allocation2 + $0xb78] sm:$0xff]
    %v1587 = vld [vmem:[#allocation2 + $0xb80] sm:$0xff]
    %v1588 = vld [vmem:[#allocation2 + $0xb88] sm:$0xff]
    %v1589 = vld [vmem:[#allocation2 + $0xb90] sm:$0xff]
    %v1590 = vld [vmem:[#allocation2 + $0xb98] sm:$0xff]
    %v1591 = vld [vmem:[#allocation2 + $0xba0] sm:$0xff]
    %v1592 = vld [vmem:[#allocation2 + $0xba8] sm:$0xff]
    %v1593 = vld [vmem:[#allocation2 + $0xbb0] sm:$0xff]
    %v1594 = vld [vmem:[#allocation2 + $0xbb8] sm:$0xff]
    %v1595 = vld [vmem:[#allocation2 + $0xbc0] sm:$0xff]
    %v1596 = vld [vmem:[#allocation2 + $0xbc8] sm:$0xff]
    %v1597 = vld [vmem:[#allocation2 + $0xbd0] sm:$0xff]
    %v1598 = vld [vmem:[#allocation2 + $0xbd8] sm:$0xff]
    %v1599 = vld [vmem:[#allocation2 + $0xbe0] sm:$0xff]
    %v1600 = vld [vmem:[#allocation2 + $0xbe8] sm:$0xff]
    %v1601 = vld [vmem:[#allocation2 + $0xbf0] sm:$0xff]
    %v1602 = vld [vmem:[#allocation2 + $0xbf8] sm:$0xff]
    %s1603 = scalar_lea.hbm %s6, 98304
    // Predicated region
    $region70: #{dqn_forward.1} parent=1 // pred_check
      _
    $region71: #{dqn_forward.1} parent=1 // pred_check_branch
      %1605 = sbr.rel target = $region73
    $region72: #{dqn_forward.1} parent=1 // pred_region
      %1606 = sst [smem:[#allocation18]] [#allocation23]
      %1607 = sst [smem:[#allocation19]] [#allocation22]
    $region73: #{dqn_forward.1} parent=1 // pred_fallthru
      _
    %1609 = shalt.err (0)
    %s1611 = sshll.u32 [#allocation2], 4
    %s1612 = int_to_ptr.vmem [resolvable:$true] %s1611
    %1614 = dma.hbm_to_vmem [thread:$0]  %s1603, 32768, %s1612, [#allocation3]
    %s1615 = sshll.u32 %s1209, 4
    %1616 = dma.done %s125, %s1615
    %v1617 = vrot.slane %v349, 4
    %v1619 = vrot.slane %v349, 6
    %v1621 = vrot.slane %v350, 4
    %v1623 = vrot.slane %v350, 6
    %v1625 = vrot.slane %v351, 4
    %v1627 = vrot.slane %v351, 6
    %v1629 = vld [vmem:[%s124] sm:$0xff]
    %v1630 = vld [vmem:[%s124 + $0x8] sm:$0xff]
    %v1631 = vld [vmem:[%s124 + $0x10] sm:$0xff]
    %v1632 = vld [vmem:[%s124 + $0x18] sm:$0xff]
    %v1633 = vld [vmem:[%s124 + $0x20] sm:$0xff]
    %v1634 = vld [vmem:[%s124 + $0x28] sm:$0xff]
    %v1635 = vld [vmem:[%s124 + $0x30] sm:$0xff]
    %v1636 = vld [vmem:[%s124 + $0x38] sm:$0xff]
    %v1637 = vld [vmem:[%s124 + $0x40] sm:$0xff]
    %v1638 = vld [vmem:[%s124 + $0x48] sm:$0xff]
    %v1639 = vld [vmem:[%s124 + $0x50] sm:$0xff]
    %v1640 = vld [vmem:[%s124 + $0x58] sm:$0xff]
    %v1641 = vld [vmem:[%s124 + $0x60] sm:$0xff]
    %v1642 = vld [vmem:[%s124 + $0x68] sm:$0xff]
    %v1643 = vld [vmem:[%s124 + $0x70] sm:$0xff]
    %v1644 = vld [vmem:[%s124 + $0x78] sm:$0xff]
    %v1645 = vld [vmem:[%s124 + $0x80] sm:$0xff]
    %v1646 = vld [vmem:[%s124 + $0x88] sm:$0xff]
    %v1647 = vld [vmem:[%s124 + $0x90] sm:$0xff]
    %v1648 = vld [vmem:[%s124 + $0x98] sm:$0xff]
    %v1649 = vld [vmem:[%s124 + $0xa0] sm:$0xff]
    %v1650 = vld [vmem:[%s124 + $0xa8] sm:$0xff]
    %v1651 = vld [vmem:[%s124 + $0xb0] sm:$0xff]
    %v1652 = vld [vmem:[%s124 + $0xb8] sm:$0xff]
    %v1653 = vld [vmem:[%s124 + $0xc0] sm:$0xff]
    %v1654 = vld [vmem:[%s124 + $0xc8] sm:$0xff]
    %v1655 = vld [vmem:[%s124 + $0xd0] sm:$0xff]
    %v1656 = vld [vmem:[%s124 + $0xd8] sm:$0xff]
    %v1657 = vld [vmem:[%s124 + $0xe0] sm:$0xff]
    %v1658 = vld [vmem:[%s124 + $0xe8] sm:$0xff]
    %v1659 = vld [vmem:[%s124 + $0xf0] sm:$0xff]
    %v1660 = vld [vmem:[%s124 + $0xf8] sm:$0xff]
    %v1661 = vld [vmem:[%s124 + $0x100] sm:$0xff]
    %v1662 = vld [vmem:[%s124 + $0x108] sm:$0xff]
    %v1663 = vld [vmem:[%s124 + $0x110] sm:$0xff]
    %v1664 = vld [vmem:[%s124 + $0x118] sm:$0xff]
    %v1665 = vld [vmem:[%s124 + $0x120] sm:$0xff]
    %v1666 = vld [vmem:[%s124 + $0x128] sm:$0xff]
    %v1667 = vld [vmem:[%s124 + $0x130] sm:$0xff]
    %v1668 = vld [vmem:[%s124 + $0x138] sm:$0xff]
    %v1669 = vld [vmem:[%s124 + $0x140] sm:$0xff]
    %v1670 = vld [vmem:[%s124 + $0x148] sm:$0xff]
    %v1671 = vld [vmem:[%s124 + $0x150] sm:$0xff]
    %v1672 = vld [vmem:[%s124 + $0x158] sm:$0xff]
    %v1673 = vld [vmem:[%s124 + $0x160] sm:$0xff]
    %v1674 = vld [vmem:[%s124 + $0x168] sm:$0xff]
    %v1675 = vld [vmem:[%s124 + $0x170] sm:$0xff]
    %v1676 = vld [vmem:[%s124 + $0x178] sm:$0xff]
    %v1677 = vld [vmem:[%s124 + $0x180] sm:$0xff]
    %v1678 = vld [vmem:[%s124 + $0x188] sm:$0xff]
    %v1679 = vld [vmem:[%s124 + $0x190] sm:$0xff]
    %v1680 = vld [vmem:[%s124 + $0x198] sm:$0xff]
    %v1681 = vld [vmem:[%s124 + $0x1a0] sm:$0xff]
    %v1682 = vld [vmem:[%s124 + $0x1a8] sm:$0xff]
    %v1683 = vld [vmem:[%s124 + $0x1b0] sm:$0xff]
    %v1684 = vld [vmem:[%s124 + $0x1b8] sm:$0xff]
    %v1685 = vld [vmem:[%s124 + $0x1c0] sm:$0xff]
    %v1686 = vld [vmem:[%s124 + $0x1c8] sm:$0xff]
    %v1687 = vld [vmem:[%s124 + $0x1d0] sm:$0xff]
    %v1688 = vld [vmem:[%s124 + $0x1d8] sm:$0xff]
    %v1689 = vld [vmem:[%s124 + $0x1e0] sm:$0xff]
    %v1690 = vld [vmem:[%s124 + $0x1e8] sm:$0xff]
    %v1691 = vld [vmem:[%s124 + $0x1f0] sm:$0xff]
    %v1692 = vld [vmem:[%s124 + $0x1f8] sm:$0xff]
    %v1693 = vld [vmem:[%s124 + $0x200] sm:$0xff]
    %v1694 = vld [vmem:[%s124 + $0x208] sm:$0xff]
    %v1695 = vld [vmem:[%s124 + $0x210] sm:$0xff]
    %v1696 = vld [vmem:[%s124 + $0x218] sm:$0xff]
    %v1697 = vld [vmem:[%s124 + $0x220] sm:$0xff]
    %v1698 = vld [vmem:[%s124 + $0x228] sm:$0xff]
    %v1699 = vld [vmem:[%s124 + $0x230] sm:$0xff]
    %v1700 = vld [vmem:[%s124 + $0x238] sm:$0xff]
    %v1701 = vld [vmem:[%s124 + $0x240] sm:$0xff]
    %v1702 = vld [vmem:[%s124 + $0x248] sm:$0xff]
    %v1703 = vld [vmem:[%s124 + $0x250] sm:$0xff]
    %v1704 = vld [vmem:[%s124 + $0x258] sm:$0xff]
    %v1705 = vld [vmem:[%s124 + $0x260] sm:$0xff]
    %v1706 = vld [vmem:[%s124 + $0x268] sm:$0xff]
    %v1707 = vld [vmem:[%s124 + $0x270] sm:$0xff]
    %v1708 = vld [vmem:[%s124 + $0x278] sm:$0xff]
    %v1709 = vld [vmem:[%s124 + $0x280] sm:$0xff]
    %v1710 = vld [vmem:[%s124 + $0x288] sm:$0xff]
    %v1711 = vld [vmem:[%s124 + $0x290] sm:$0xff]
    %v1712 = vld [vmem:[%s124 + $0x298] sm:$0xff]
    %v1713 = vld [vmem:[%s124 + $0x2a0] sm:$0xff]
    %v1714 = vld [vmem:[%s124 + $0x2a8] sm:$0xff]
    %v1715 = vld [vmem:[%s124 + $0x2b0] sm:$0xff]
    %v1716 = vld [vmem:[%s124 + $0x2b8] sm:$0xff]
    %v1717 = vld [vmem:[%s124 + $0x2c0] sm:$0xff]
    %v1718 = vld [vmem:[%s124 + $0x2c8] sm:$0xff]
    %v1719 = vld [vmem:[%s124 + $0x2d0] sm:$0xff]
    %v1720 = vld [vmem:[%s124 + $0x2d8] sm:$0xff]
    %v1721 = vld [vmem:[%s124 + $0x2e0] sm:$0xff]
    %v1722 = vld [vmem:[%s124 + $0x2e8] sm:$0xff]
    %v1723 = vld [vmem:[%s124 + $0x2f0] sm:$0xff]
    %v1724 = vld [vmem:[%s124 + $0x2f8] sm:$0xff]
    %v1725 = vld [vmem:[%s124 + $0x300] sm:$0xff]
    %v1726 = vld [vmem:[%s124 + $0x308] sm:$0xff]
    %v1727 = vld [vmem:[%s124 + $0x310] sm:$0xff]
    %v1728 = vld [vmem:[%s124 + $0x318] sm:$0xff]
    %v1729 = vld [vmem:[%s124 + $0x320] sm:$0xff]
    %v1730 = vld [vmem:[%s124 + $0x328] sm:$0xff]
    %v1731 = vld [vmem:[%s124 + $0x330] sm:$0xff]
    %v1732 = vld [vmem:[%s124 + $0x338] sm:$0xff]
    %v1733 = vld [vmem:[%s124 + $0x340] sm:$0xff]
    %v1734 = vld [vmem:[%s124 + $0x348] sm:$0xff]
    %v1735 = vld [vmem:[%s124 + $0x350] sm:$0xff]
    %v1736 = vld [vmem:[%s124 + $0x358] sm:$0xff]
    %v1737 = vld [vmem:[%s124 + $0x360] sm:$0xff]
    %v1738 = vld [vmem:[%s124 + $0x368] sm:$0xff]
    %v1739 = vld [vmem:[%s124 + $0x370] sm:$0xff]
    %v1740 = vld [vmem:[%s124 + $0x378] sm:$0xff]
    %v1741 = vld [vmem:[%s124 + $0x380] sm:$0xff]
    %v1742 = vld [vmem:[%s124 + $0x388] sm:$0xff]
    %v1743 = vld [vmem:[%s124 + $0x390] sm:$0xff]
    %v1744 = vld [vmem:[%s124 + $0x398] sm:$0xff]
    %v1745 = vld [vmem:[%s124 + $0x3a0] sm:$0xff]
    %v1746 = vld [vmem:[%s124 + $0x3a8] sm:$0xff]
    %v1747 = vld [vmem:[%s124 + $0x3b0] sm:$0xff]
    %v1748 = vld [vmem:[%s124 + $0x3b8] sm:$0xff]
    %v1749 = vld [vmem:[%s124 + $0x3c0] sm:$0xff]
    %v1750 = vld [vmem:[%s124 + $0x3c8] sm:$0xff]
    %v1751 = vld [vmem:[%s124 + $0x3d0] sm:$0xff]
    %v1752 = vld [vmem:[%s124 + $0x3d8] sm:$0xff]
    %v1753 = vld [vmem:[%s124 + $0x3e0] sm:$0xff]
    %v1754 = vld [vmem:[%s124 + $0x3e8] sm:$0xff]
    %v1755 = vld [vmem:[%s124 + $0x3f0] sm:$0xff]
    %v1756 = vld [vmem:[%s124 + $0x3f8] sm:$0xff]
    %v1757 = vld [vmem:[%s124 + $0x400] sm:$0xff]
    %v1758 = vld [vmem:[%s124 + $0x408] sm:$0xff]
    %v1759 = vld [vmem:[%s124 + $0x410] sm:$0xff]
    %v1760 = vld [vmem:[%s124 + $0x418] sm:$0xff]
    %v1761 = vld [vmem:[%s124 + $0x420] sm:$0xff]
    %v1762 = vld [vmem:[%s124 + $0x428] sm:$0xff]
    %v1763 = vld [vmem:[%s124 + $0x430] sm:$0xff]
    %v1764 = vld [vmem:[%s124 + $0x438] sm:$0xff]
    %v1765 = vld [vmem:[%s124 + $0x440] sm:$0xff]
    %v1766 = vld [vmem:[%s124 + $0x448] sm:$0xff]
    %v1767 = vld [vmem:[%s124 + $0x450] sm:$0xff]
    %v1768 = vld [vmem:[%s124 + $0x458] sm:$0xff]
    %v1769 = vld [vmem:[%s124 + $0x460] sm:$0xff]
    %v1770 = vld [vmem:[%s124 + $0x468] sm:$0xff]
    %v1771 = vld [vmem:[%s124 + $0x470] sm:$0xff]
    %v1772 = vld [vmem:[%s124 + $0x478] sm:$0xff]
    %v1773 = vld [vmem:[%s124 + $0x480] sm:$0xff]
    %v1774 = vld [vmem:[%s124 + $0x488] sm:$0xff]
    %v1775 = vld [vmem:[%s124 + $0x490] sm:$0xff]
    %v1776 = vld [vmem:[%s124 + $0x498] sm:$0xff]
    %v1777 = vld [vmem:[%s124 + $0x4a0] sm:$0xff]
    %v1778 = vld [vmem:[%s124 + $0x4a8] sm:$0xff]
    %v1779 = vld [vmem:[%s124 + $0x4b0] sm:$0xff]
    %v1780 = vld [vmem:[%s124 + $0x4b8] sm:$0xff]
    %v1781 = vld [vmem:[%s124 + $0x4c0] sm:$0xff]
    %v1782 = vld [vmem:[%s124 + $0x4c8] sm:$0xff]
    %v1783 = vld [vmem:[%s124 + $0x4d0] sm:$0xff]
    %v1784 = vld [vmem:[%s124 + $0x4d8] sm:$0xff]
    %v1785 = vld [vmem:[%s124 + $0x4e0] sm:$0xff]
    %v1786 = vld [vmem:[%s124 + $0x4e8] sm:$0xff]
    %v1787 = vld [vmem:[%s124 + $0x4f0] sm:$0xff]
    %v1788 = vld [vmem:[%s124 + $0x4f8] sm:$0xff]
    %v1789 = vld [vmem:[%s124 + $0x500] sm:$0xff]
    %v1790 = vld [vmem:[%s124 + $0x508] sm:$0xff]
    %v1791 = vld [vmem:[%s124 + $0x510] sm:$0xff]
    %v1792 = vld [vmem:[%s124 + $0x518] sm:$0xff]
    %v1793 = vld [vmem:[%s124 + $0x520] sm:$0xff]
    %v1794 = vld [vmem:[%s124 + $0x528] sm:$0xff]
    %v1795 = vld [vmem:[%s124 + $0x530] sm:$0xff]
    %v1796 = vld [vmem:[%s124 + $0x538] sm:$0xff]
    %v1797 = vld [vmem:[%s124 + $0x540] sm:$0xff]
    %v1798 = vld [vmem:[%s124 + $0x548] sm:$0xff]
    %v1799 = vld [vmem:[%s124 + $0x550] sm:$0xff]
    %v1800 = vld [vmem:[%s124 + $0x558] sm:$0xff]
    %v1801 = vld [vmem:[%s124 + $0x560] sm:$0xff]
    %v1802 = vld [vmem:[%s124 + $0x568] sm:$0xff]
    %v1803 = vld [vmem:[%s124 + $0x570] sm:$0xff]
    %v1804 = vld [vmem:[%s124 + $0x578] sm:$0xff]
    %v1805 = vld [vmem:[%s124 + $0x580] sm:$0xff]
    %v1806 = vld [vmem:[%s124 + $0x588] sm:$0xff]
    %v1807 = vld [vmem:[%s124 + $0x590] sm:$0xff]
    %v1808 = vld [vmem:[%s124 + $0x598] sm:$0xff]
    %v1809 = vld [vmem:[%s124 + $0x5a0] sm:$0xff]
    %v1810 = vld [vmem:[%s124 + $0x5a8] sm:$0xff]
    %v1811 = vld [vmem:[%s124 + $0x5b0] sm:$0xff]
    %v1812 = vld [vmem:[%s124 + $0x5b8] sm:$0xff]
    %v1813 = vld [vmem:[%s124 + $0x5c0] sm:$0xff]
    %v1814 = vld [vmem:[%s124 + $0x5c8] sm:$0xff]
    %v1815 = vld [vmem:[%s124 + $0x5d0] sm:$0xff]
    %v1816 = vld [vmem:[%s124 + $0x5d8] sm:$0xff]
    %v1817 = vld [vmem:[%s124 + $0x5e0] sm:$0xff]
    %v1818 = vld [vmem:[%s124 + $0x5e8] sm:$0xff]
    %v1819 = vld [vmem:[%s124 + $0x5f0] sm:$0xff]
    %v1820 = vld [vmem:[%s124 + $0x5f8] sm:$0xff]
    %v1821 = vld [vmem:[%s124 + $0x600] sm:$0xff]
    %v1822 = vld [vmem:[%s124 + $0x608] sm:$0xff]
    %v1823 = vld [vmem:[%s124 + $0x610] sm:$0xff]
    %v1824 = vld [vmem:[%s124 + $0x618] sm:$0xff]
    %v1825 = vld [vmem:[%s124 + $0x620] sm:$0xff]
    %v1826 = vld [vmem:[%s124 + $0x628] sm:$0xff]
    %v1827 = vld [vmem:[%s124 + $0x630] sm:$0xff]
    %v1828 = vld [vmem:[%s124 + $0x638] sm:$0xff]
    %v1829 = vld [vmem:[%s124 + $0x640] sm:$0xff]
    %v1830 = vld [vmem:[%s124 + $0x648] sm:$0xff]
    %v1831 = vld [vmem:[%s124 + $0x650] sm:$0xff]
    %v1832 = vld [vmem:[%s124 + $0x658] sm:$0xff]
    %v1833 = vld [vmem:[%s124 + $0x660] sm:$0xff]
    %v1834 = vld [vmem:[%s124 + $0x668] sm:$0xff]
    %v1835 = vld [vmem:[%s124 + $0x670] sm:$0xff]
    %v1836 = vld [vmem:[%s124 + $0x678] sm:$0xff]
    %v1837 = vld [vmem:[%s124 + $0x680] sm:$0xff]
    %v1838 = vld [vmem:[%s124 + $0x688] sm:$0xff]
    %v1839 = vld [vmem:[%s124 + $0x690] sm:$0xff]
    %v1840 = vld [vmem:[%s124 + $0x698] sm:$0xff]
    %v1841 = vld [vmem:[%s124 + $0x6a0] sm:$0xff]
    %v1842 = vld [vmem:[%s124 + $0x6a8] sm:$0xff]
    %v1843 = vld [vmem:[%s124 + $0x6b0] sm:$0xff]
    %v1844 = vld [vmem:[%s124 + $0x6b8] sm:$0xff]
    %v1845 = vld [vmem:[%s124 + $0x6c0] sm:$0xff]
    %v1846 = vld [vmem:[%s124 + $0x6c8] sm:$0xff]
    %v1847 = vld [vmem:[%s124 + $0x6d0] sm:$0xff]
    %v1848 = vld [vmem:[%s124 + $0x6d8] sm:$0xff]
    %v1849 = vld [vmem:[%s124 + $0x6e0] sm:$0xff]
    %v1850 = vld [vmem:[%s124 + $0x6e8] sm:$0xff]
    %v1851 = vld [vmem:[%s124 + $0x6f0] sm:$0xff]
    %v1852 = vld [vmem:[%s124 + $0x6f8] sm:$0xff]
    %v1853 = vld [vmem:[%s124 + $0x700] sm:$0xff]
    %v1854 = vld [vmem:[%s124 + $0x708] sm:$0xff]
    %v1855 = vld [vmem:[%s124 + $0x710] sm:$0xff]
    %v1856 = vld [vmem:[%s124 + $0x718] sm:$0xff]
    %v1857 = vld [vmem:[%s124 + $0x720] sm:$0xff]
    %v1858 = vld [vmem:[%s124 + $0x728] sm:$0xff]
    %v1859 = vld [vmem:[%s124 + $0x730] sm:$0xff]
    %v1860 = vld [vmem:[%s124 + $0x738] sm:$0xff]
    %v1861 = vld [vmem:[%s124 + $0x740] sm:$0xff]
    %v1862 = vld [vmem:[%s124 + $0x748] sm:$0xff]
    %v1863 = vld [vmem:[%s124 + $0x750] sm:$0xff]
    %v1864 = vld [vmem:[%s124 + $0x758] sm:$0xff]
    %v1865 = vld [vmem:[%s124 + $0x760] sm:$0xff]
    %v1866 = vld [vmem:[%s124 + $0x768] sm:$0xff]
    %v1867 = vld [vmem:[%s124 + $0x770] sm:$0xff]
    %v1868 = vld [vmem:[%s124 + $0x778] sm:$0xff]
    %v1869 = vld [vmem:[%s124 + $0x780] sm:$0xff]
    %v1870 = vld [vmem:[%s124 + $0x788] sm:$0xff]
    %v1871 = vld [vmem:[%s124 + $0x790] sm:$0xff]
    %v1872 = vld [vmem:[%s124 + $0x798] sm:$0xff]
    %v1873 = vld [vmem:[%s124 + $0x7a0] sm:$0xff]
    %v1874 = vld [vmem:[%s124 + $0x7a8] sm:$0xff]
    %v1875 = vld [vmem:[%s124 + $0x7b0] sm:$0xff]
    %v1876 = vld [vmem:[%s124 + $0x7b8] sm:$0xff]
    %v1877 = vld [vmem:[%s124 + $0x7c0] sm:$0xff]
    %v1878 = vld [vmem:[%s124 + $0x7c8] sm:$0xff]
    %v1879 = vld [vmem:[%s124 + $0x7d0] sm:$0xff]
    %v1880 = vld [vmem:[%s124 + $0x7d8] sm:$0xff]
    %v1881 = vld [vmem:[%s124 + $0x7e0] sm:$0xff]
    %v1882 = vld [vmem:[%s124 + $0x7e8] sm:$0xff]
    %v1883 = vld [vmem:[%s124 + $0x7f0] sm:$0xff]
    %v1884 = vld [vmem:[%s124 + $0x7f8] sm:$0xff]
    %v1885 = vld [vmem:[%s124 + $0x800] sm:$0xff]
    %v1886 = vld [vmem:[%s124 + $0x808] sm:$0xff]
    %v1887 = vld [vmem:[%s124 + $0x810] sm:$0xff]
    %v1888 = vld [vmem:[%s124 + $0x818] sm:$0xff]
    %v1889 = vld [vmem:[%s124 + $0x820] sm:$0xff]
    %v1890 = vld [vmem:[%s124 + $0x828] sm:$0xff]
    %v1891 = vld [vmem:[%s124 + $0x830] sm:$0xff]
    %v1892 = vld [vmem:[%s124 + $0x838] sm:$0xff]
    %v1893 = vld [vmem:[%s124 + $0x840] sm:$0xff]
    %v1894 = vld [vmem:[%s124 + $0x848] sm:$0xff]
    %v1895 = vld [vmem:[%s124 + $0x850] sm:$0xff]
    %v1896 = vld [vmem:[%s124 + $0x858] sm:$0xff]
    %v1897 = vld [vmem:[%s124 + $0x860] sm:$0xff]
    %v1898 = vld [vmem:[%s124 + $0x868] sm:$0xff]
    %v1899 = vld [vmem:[%s124 + $0x870] sm:$0xff]
    %v1900 = vld [vmem:[%s124 + $0x878] sm:$0xff]
    %v1901 = vld [vmem:[%s124 + $0x880] sm:$0xff]
    %v1902 = vld [vmem:[%s124 + $0x888] sm:$0xff]
    %v1903 = vld [vmem:[%s124 + $0x890] sm:$0xff]
    %v1904 = vld [vmem:[%s124 + $0x898] sm:$0xff]
    %v1905 = vld [vmem:[%s124 + $0x8a0] sm:$0xff]
    %v1906 = vld [vmem:[%s124 + $0x8a8] sm:$0xff]
    %v1907 = vld [vmem:[%s124 + $0x8b0] sm:$0xff]
    %v1908 = vld [vmem:[%s124 + $0x8b8] sm:$0xff]
    %v1909 = vld [vmem:[%s124 + $0x8c0] sm:$0xff]
    %v1910 = vld [vmem:[%s124 + $0x8c8] sm:$0xff]
    %v1911 = vld [vmem:[%s124 + $0x8d0] sm:$0xff]
    %v1912 = vld [vmem:[%s124 + $0x8d8] sm:$0xff]
    %v1913 = vld [vmem:[%s124 + $0x8e0] sm:$0xff]
    %v1914 = vld [vmem:[%s124 + $0x8e8] sm:$0xff]
    %v1915 = vld [vmem:[%s124 + $0x8f0] sm:$0xff]
    %v1916 = vld [vmem:[%s124 + $0x8f8] sm:$0xff]
    %v1917 = vld [vmem:[%s124 + $0x900] sm:$0xff]
    %v1918 = vld [vmem:[%s124 + $0x908] sm:$0xff]
    %v1919 = vld [vmem:[%s124 + $0x910] sm:$0xff]
    %v1920 = vld [vmem:[%s124 + $0x918] sm:$0xff]
    %v1921 = vld [vmem:[%s124 + $0x920] sm:$0xff]
    %v1922 = vld [vmem:[%s124 + $0x928] sm:$0xff]
    %v1923 = vld [vmem:[%s124 + $0x930] sm:$0xff]
    %v1924 = vld [vmem:[%s124 + $0x938] sm:$0xff]
    %v1925 = vld [vmem:[%s124 + $0x940] sm:$0xff]
    %v1926 = vld [vmem:[%s124 + $0x948] sm:$0xff]
    %v1927 = vld [vmem:[%s124 + $0x950] sm:$0xff]
    %v1928 = vld [vmem:[%s124 + $0x958] sm:$0xff]
    %v1929 = vld [vmem:[%s124 + $0x960] sm:$0xff]
    %v1930 = vld [vmem:[%s124 + $0x968] sm:$0xff]
    %v1931 = vld [vmem:[%s124 + $0x970] sm:$0xff]
    %v1932 = vld [vmem:[%s124 + $0x978] sm:$0xff]
    %v1933 = vld [vmem:[%s124 + $0x980] sm:$0xff]
    %v1934 = vld [vmem:[%s124 + $0x988] sm:$0xff]
    %v1935 = vld [vmem:[%s124 + $0x990] sm:$0xff]
    %v1936 = vld [vmem:[%s124 + $0x998] sm:$0xff]
    %v1937 = vld [vmem:[%s124 + $0x9a0] sm:$0xff]
    %v1938 = vld [vmem:[%s124 + $0x9a8] sm:$0xff]
    %v1939 = vld [vmem:[%s124 + $0x9b0] sm:$0xff]
    %v1940 = vld [vmem:[%s124 + $0x9b8] sm:$0xff]
    %v1941 = vld [vmem:[%s124 + $0x9c0] sm:$0xff]
    %v1942 = vld [vmem:[%s124 + $0x9c8] sm:$0xff]
    %v1943 = vld [vmem:[%s124 + $0x9d0] sm:$0xff]
    %v1944 = vld [vmem:[%s124 + $0x9d8] sm:$0xff]
    %v1945 = vld [vmem:[%s124 + $0x9e0] sm:$0xff]
    %v1946 = vld [vmem:[%s124 + $0x9e8] sm:$0xff]
    %v1947 = vld [vmem:[%s124 + $0x9f0] sm:$0xff]
    %v1948 = vld [vmem:[%s124 + $0x9f8] sm:$0xff]
    %v1949 = vld [vmem:[%s124 + $0xa00] sm:$0xff]
    %v1950 = vld [vmem:[%s124 + $0xa08] sm:$0xff]
    %v1951 = vld [vmem:[%s124 + $0xa10] sm:$0xff]
    %v1952 = vld [vmem:[%s124 + $0xa18] sm:$0xff]
    %v1953 = vld [vmem:[%s124 + $0xa20] sm:$0xff]
    %v1954 = vld [vmem:[%s124 + $0xa28] sm:$0xff]
    %v1955 = vld [vmem:[%s124 + $0xa30] sm:$0xff]
    %v1956 = vld [vmem:[%s124 + $0xa38] sm:$0xff]
    %v1957 = vld [vmem:[%s124 + $0xa40] sm:$0xff]
    %v1958 = vld [vmem:[%s124 + $0xa48] sm:$0xff]
    %v1959 = vld [vmem:[%s124 + $0xa50] sm:$0xff]
    %v1960 = vld [vmem:[%s124 + $0xa58] sm:$0xff]
    %v1961 = vld [vmem:[%s124 + $0xa60] sm:$0xff]
    %v1962 = vld [vmem:[%s124 + $0xa68] sm:$0xff]
    %v1963 = vld [vmem:[%s124 + $0xa70] sm:$0xff]
    %v1964 = vld [vmem:[%s124 + $0xa78] sm:$0xff]
    %v1965 = vld [vmem:[%s124 + $0xa80] sm:$0xff]
    %v1966 = vld [vmem:[%s124 + $0xa88] sm:$0xff]
    %v1967 = vld [vmem:[%s124 + $0xa90] sm:$0xff]
    %v1968 = vld [vmem:[%s124 + $0xa98] sm:$0xff]
    %v1969 = vld [vmem:[%s124 + $0xaa0] sm:$0xff]
    %v1970 = vld [vmem:[%s124 + $0xaa8] sm:$0xff]
    %v1971 = vld [vmem:[%s124 + $0xab0] sm:$0xff]
    %v1972 = vld [vmem:[%s124 + $0xab8] sm:$0xff]
    %v1973 = vld [vmem:[%s124 + $0xac0] sm:$0xff]
    %v1974 = vld [vmem:[%s124 + $0xac8] sm:$0xff]
    %v1975 = vld [vmem:[%s124 + $0xad0] sm:$0xff]
    %v1976 = vld [vmem:[%s124 + $0xad8] sm:$0xff]
    %v1977 = vld [vmem:[%s124 + $0xae0] sm:$0xff]
    %v1978 = vld [vmem:[%s124 + $0xae8] sm:$0xff]
    %v1979 = vld [vmem:[%s124 + $0xaf0] sm:$0xff]
    %v1980 = vld [vmem:[%s124 + $0xaf8] sm:$0xff]
    %v1981 = vld [vmem:[%s124 + $0xb00] sm:$0xff]
    %v1982 = vld [vmem:[%s124 + $0xb08] sm:$0xff]
    %v1983 = vld [vmem:[%s124 + $0xb10] sm:$0xff]
    %v1984 = vld [vmem:[%s124 + $0xb18] sm:$0xff]
    %v1985 = vld [vmem:[%s124 + $0xb20] sm:$0xff]
    %v1986 = vld [vmem:[%s124 + $0xb28] sm:$0xff]
    %v1987 = vld [vmem:[%s124 + $0xb30] sm:$0xff]
    %v1988 = vld [vmem:[%s124 + $0xb38] sm:$0xff]
    %v1989 = vld [vmem:[%s124 + $0xb40] sm:$0xff]
    %v1990 = vld [vmem:[%s124 + $0xb48] sm:$0xff]
    %v1991 = vld [vmem:[%s124 + $0xb50] sm:$0xff]
    %v1992 = vld [vmem:[%s124 + $0xb58] sm:$0xff]
    %v1993 = vld [vmem:[%s124 + $0xb60] sm:$0xff]
    %v1994 = vld [vmem:[%s124 + $0xb68] sm:$0xff]
    %v1995 = vld [vmem:[%s124 + $0xb70] sm:$0xff]
    %v1996 = vld [vmem:[%s124 + $0xb78] sm:$0xff]
    %v1997 = vld [vmem:[%s124 + $0xb80] sm:$0xff]
    %v1998 = vld [vmem:[%s124 + $0xb88] sm:$0xff]
    %v1999 = vld [vmem:[%s124 + $0xb90] sm:$0xff]
    %v2000 = vld [vmem:[%s124 + $0xb98] sm:$0xff]
    %v2001 = vld [vmem:[%s124 + $0xba0] sm:$0xff]
    %v2002 = vld [vmem:[%s124 + $0xba8] sm:$0xff]
    %v2003 = vld [vmem:[%s124 + $0xbb0] sm:$0xff]
    %v2004 = vld [vmem:[%s124 + $0xbb8] sm:$0xff]
    %v2005 = vld [vmem:[%s124 + $0xbc0] sm:$0xff]
    %v2006 = vld [vmem:[%s124 + $0xbc8] sm:$0xff]
    %v2007 = vld [vmem:[%s124 + $0xbd0] sm:$0xff]
    %v2008 = vld [vmem:[%s124 + $0xbd8] sm:$0xff]
    %v2009 = vld [vmem:[%s124 + $0xbe0] sm:$0xff]
    %v2010 = vld [vmem:[%s124 + $0xbe8] sm:$0xff]
    %v2011 = vld [vmem:[%s124 + $0xbf0] sm:$0xff]
    %v2012 = vld [vmem:[%s124 + $0xbf8] sm:$0xff]
    %2013 = vmatprep.subr.mxu0 %v1630
    %2014 = vmatpush1.msra.mxu0 %v1629
    %2015 = vmatprep.subr.mxu0 %v1632
    %2016 = vmatpush1.msra.mxu0 %v1631
    %2017 = vmatprep.subr.mxu0 %v1634
    %2018 = vmatpush1.msra.mxu0 %v1633
    %2019 = vmatprep.subr.mxu0 %v1636
    %2020 = vmatpush1.msra.mxu0 %v1635
    %2021 = vmatprep.subr.mxu0 %v1638
    %2022 = vmatpush1.msra.mxu0 %v1637
    %2023 = vmatprep.subr.mxu0 %v1640
    %2024 = vmatpush1.msra.mxu0 %v1639
    %2025 = vmatprep.subr.mxu0 %v1642
    %2026 = vmatpush1.msra.mxu0 %v1641
    %2027 = vmatprep.subr.mxu0 %v1644
    %2028 = vmatpush1.msra.mxu0 %v1643
    %2029 = vmatprep.subr.mxu0 %v1646
    %2030 = vmatpush1.msra.mxu0 %v1645
    %2031 = vmatprep.subr.mxu0 %v1648
    %2032 = vmatpush1.msra.mxu0 %v1647
    %2033 = vmatprep.subr.mxu0 %v1650
    %2034 = vmatpush1.msra.mxu0 %v1649
    %2035 = vmatprep.subr.mxu0 %v1652
    %2036 = vmatpush1.msra.mxu0 %v1651
    %2037 = vmatprep.subr.mxu0 %v1654
    %2038 = vmatpush1.msra.mxu0 %v1653
    %2039 = vmatprep.subr.mxu0 %v1656
    %2040 = vmatpush1.msra.mxu0 %v1655
    %2041 = vmatprep.subr.mxu0 %v1658
    %2042 = vmatpush1.msra.mxu0 %v1657
    %2043 = vmatprep.subr.mxu0 %v1660
    %2044 = vmatpush1.msra.mxu0 %v1659
    %2045 = vmatprep.subr.mxu0 %v1662
    %2046 = vmatpush1.msra.mxu0 %v1661
    %2047 = vmatprep.subr.mxu0 %v1664
    %2048 = vmatpush1.msra.mxu0 %v1663
    %2049 = vmatprep.subr.mxu0 %v1666
    %2050 = vmatpush1.msra.mxu0 %v1665
    %2051 = vmatprep.subr.mxu0 %v1668
    %2052 = vmatpush1.msra.mxu0 %v1667
    %2053 = vmatprep.subr.mxu0 %v1670
    %2054 = vmatpush1.msra.mxu0 %v1669
    %2055 = vmatprep.subr.mxu0 %v1672
    %2056 = vmatpush1.msra.mxu0 %v1671
    %2057 = vmatprep.subr.mxu0 %v1674
    %2058 = vmatpush1.msra.mxu0 %v1673
    %2059 = vmatprep.subr.mxu0 %v1676
    %2060 = vmatpush1.msra.mxu0 %v1675
    %2061 = vmatprep.subr.mxu0 %v1678
    %2062 = vmatpush1.msra.mxu0 %v1677
    %2063 = vmatprep.subr.mxu0 %v1680
    %2064 = vmatpush1.msra.mxu0 %v1679
    %2065 = vmatprep.subr.mxu0 %v1682
    %2066 = vmatpush1.msra.mxu0 %v1681
    %2067 = vmatprep.subr.mxu0 %v1684
    %2068 = vmatpush1.msra.mxu0 %v1683
    %2069 = vmatprep.subr.mxu0 %v1686
    %2070 = vmatpush1.msra.mxu0 %v1685
    %2071 = vmatprep.subr.mxu0 %v1688
    %2072 = vmatpush1.msra.mxu0 %v1687
    %2073 = vmatprep.subr.mxu0 %v1690
    %2074 = vmatpush1.msra.mxu0 %v1689
    %2075 = vmatprep.subr.mxu0 %v1692
    %2076 = vmatpush1.msra.mxu0 %v1691
    %2077 = vmatprep.mubr.f32.mxu0 %v863
    %2078 = vmatmul.mubr.f32.gmra.mrb[0].mxu0 %v349
    %v2079 = vpop.f32.mrb[0].mxu0
    %v2080 = vadd.f32 0.0, %v2079
    %v2081 = vpop.f32.mrb[0].mxu0
    %v2082 = vadd.f32 0.0, %v2081
    %2083 = vdwg.mxu0
    %2084 = vmatprep.subr.mxu0 %v1694
    %2085 = vmatpush1.msra.mxu0 %v1693
    %2086 = vmatprep.subr.mxu0 %v1696
    %2087 = vmatpush1.msra.mxu0 %v1695
    %2088 = vmatprep.subr.mxu0 %v1698
    %2089 = vmatpush1.msra.mxu0 %v1697
    %2090 = vmatprep.subr.mxu0 %v1700
    %2091 = vmatpush1.msra.mxu0 %v1699
    %2092 = vmatprep.subr.mxu0 %v1702
    %2093 = vmatpush1.msra.mxu0 %v1701
    %2094 = vmatprep.subr.mxu0 %v1704
    %2095 = vmatpush1.msra.mxu0 %v1703
    %2096 = vmatprep.subr.mxu0 %v1706
    %2097 = vmatpush1.msra.mxu0 %v1705
    %2098 = vmatprep.subr.mxu0 %v1708
    %2099 = vmatpush1.msra.mxu0 %v1707
    %2100 = vmatprep.subr.mxu0 %v1710
    %2101 = vmatpush1.msra.mxu0 %v1709
    %2102 = vmatprep.subr.mxu0 %v1712
    %2103 = vmatpush1.msra.mxu0 %v1711
    %2104 = vmatprep.subr.mxu0 %v1714
    %2105 = vmatpush1.msra.mxu0 %v1713
    %2106 = vmatprep.subr.mxu0 %v1716
    %2107 = vmatpush1.msra.mxu0 %v1715
    %2108 = vmatprep.subr.mxu0 %v1718
    %2109 = vmatpush1.msra.mxu0 %v1717
    %2110 = vmatprep.subr.mxu0 %v1720
    %2111 = vmatpush1.msra.mxu0 %v1719
    %2112 = vmatprep.subr.mxu0 %v1722
    %2113 = vmatpush1.msra.mxu0 %v1721
    %2114 = vmatprep.subr.mxu0 %v1724
    %2115 = vmatpush1.msra.mxu0 %v1723
    %2116 = vmatprep.subr.mxu0 %v1726
    %2117 = vmatpush1.msra.mxu0 %v1725
    %2118 = vmatprep.subr.mxu0 %v1728
    %2119 = vmatpush1.msra.mxu0 %v1727
    %2120 = vmatprep.subr.mxu0 %v1730
    %2121 = vmatpush1.msra.mxu0 %v1729
    %2122 = vmatprep.subr.mxu0 %v1732
    %2123 = vmatpush1.msra.mxu0 %v1731
    %2124 = vmatprep.subr.mxu0 %v1734
    %2125 = vmatpush1.msra.mxu0 %v1733
    %2126 = vmatprep.subr.mxu0 %v1736
    %2127 = vmatpush1.msra.mxu0 %v1735
    %2128 = vmatprep.subr.mxu0 %v1738
    %2129 = vmatpush1.msra.mxu0 %v1737
    %2130 = vmatprep.subr.mxu0 %v1740
    %2131 = vmatpush1.msra.mxu0 %v1739
    %2132 = vmatprep.subr.mxu0 %v1742
    %2133 = vmatpush1.msra.mxu0 %v1741
    %2134 = vmatprep.subr.mxu0 %v1744
    %2135 = vmatpush1.msra.mxu0 %v1743
    %2136 = vmatprep.subr.mxu0 %v1746
    %2137 = vmatpush1.msra.mxu0 %v1745
    %2138 = vmatprep.subr.mxu0 %v1748
    %2139 = vmatpush1.msra.mxu0 %v1747
    %2140 = vmatprep.subr.mxu0 %v1750
    %2141 = vmatpush1.msra.mxu0 %v1749
    %2142 = vmatprep.subr.mxu0 %v1752
    %2143 = vmatpush1.msra.mxu0 %v1751
    %2144 = vmatprep.subr.mxu0 %v1754
    %2145 = vmatpush1.msra.mxu0 %v1753
    %2146 = vmatprep.subr.mxu0 %v1756
    %2147 = vmatpush1.msra.mxu0 %v1755
    %2148 = vmatprep.mubr.f32.mxu0 %v1619
    %2149 = vmatmul.mubr.f32.gmra.mrb[0].mxu0 %v1617
    %v2150 = vpop.f32.mrb[0].mxu0
    %v2151 = vadd.f32 %v2080, %v2150
    %v2152 = vpop.f32.mrb[0].mxu0
    %v2153 = vadd.f32 %v2082, %v2152
    %2154 = vdwg.mxu0
    %2155 = vmatprep.subr.mxu0 %v1758
    %2156 = vmatpush1.msra.mxu0 %v1757
    %2157 = vmatprep.subr.mxu0 %v1760
    %2158 = vmatpush1.msra.mxu0 %v1759
    %2159 = vmatprep.subr.mxu0 %v1762
    %2160 = vmatpush1.msra.mxu0 %v1761
    %2161 = vmatprep.subr.mxu0 %v1764
    %2162 = vmatpush1.msra.mxu0 %v1763
    %2163 = vmatprep.subr.mxu0 %v1766
    %2164 = vmatpush1.msra.mxu0 %v1765
    %2165 = vmatprep.subr.mxu0 %v1768
    %2166 = vmatpush1.msra.mxu0 %v1767
    %2167 = vmatprep.subr.mxu0 %v1770
    %2168 = vmatpush1.msra.mxu0 %v1769
    %2169 = vmatprep.subr.mxu0 %v1772
    %2170 = vmatpush1.msra.mxu0 %v1771
    %2171 = vmatprep.subr.mxu0 %v1774
    %2172 = vmatpush1.msra.mxu0 %v1773
    %2173 = vmatprep.subr.mxu0 %v1776
    %2174 = vmatpush1.msra.mxu0 %v1775
    %2175 = vmatprep.subr.mxu0 %v1778
    %2176 = vmatpush1.msra.mxu0 %v1777
    %2177 = vmatprep.subr.mxu0 %v1780
    %2178 = vmatpush1.msra.mxu0 %v1779
    %2179 = vmatprep.subr.mxu0 %v1782
    %2180 = vmatpush1.msra.mxu0 %v1781
    %2181 = vmatprep.subr.mxu0 %v1784
    %2182 = vmatpush1.msra.mxu0 %v1783
    %2183 = vmatprep.subr.mxu0 %v1786
    %2184 = vmatpush1.msra.mxu0 %v1785
    %2185 = vmatprep.subr.mxu0 %v1788
    %2186 = vmatpush1.msra.mxu0 %v1787
    %2187 = vmatprep.subr.mxu0 %v1790
    %2188 = vmatpush1.msra.mxu0 %v1789
    %2189 = vmatprep.subr.mxu0 %v1792
    %2190 = vmatpush1.msra.mxu0 %v1791
    %2191 = vmatprep.subr.mxu0 %v1794
    %2192 = vmatpush1.msra.mxu0 %v1793
    %2193 = vmatprep.subr.mxu0 %v1796
    %2194 = vmatpush1.msra.mxu0 %v1795
    %2195 = vmatprep.subr.mxu0 %v1798
    %2196 = vmatpush1.msra.mxu0 %v1797
    %2197 = vmatprep.subr.mxu0 %v1800
    %2198 = vmatpush1.msra.mxu0 %v1799
    %2199 = vmatprep.subr.mxu0 %v1802
    %2200 = vmatpush1.msra.mxu0 %v1801
    %2201 = vmatprep.subr.mxu0 %v1804
    %2202 = vmatpush1.msra.mxu0 %v1803
    %2203 = vmatprep.subr.mxu0 %v1806
    %2204 = vmatpush1.msra.mxu0 %v1805
    %2205 = vmatprep.subr.mxu0 %v1808
    %2206 = vmatpush1.msra.mxu0 %v1807
    %2207 = vmatprep.subr.mxu0 %v1810
    %2208 = vmatpush1.msra.mxu0 %v1809
    %2209 = vmatprep.subr.mxu0 %v1812
    %2210 = vmatpush1.msra.mxu0 %v1811
    %2211 = vmatprep.subr.mxu0 %v1814
    %2212 = vmatpush1.msra.mxu0 %v1813
    %2213 = vmatprep.subr.mxu0 %v1816
    %2214 = vmatpush1.msra.mxu0 %v1815
    %2215 = vmatprep.subr.mxu0 %v1818
    %2216 = vmatpush1.msra.mxu0 %v1817
    %2217 = vmatprep.subr.mxu0 %v1820
    %2218 = vmatpush1.msra.mxu0 %v1819
    %2219 = vmatprep.mubr.f32.mxu0 %v943
    %2220 = vmatmul.mubr.f32.gmra.mrb[0].mxu0 %v350
    %v2221 = vpop.f32.mrb[0].mxu0
    %v2222 = vadd.f32 %v2151, %v2221
    %v2223 = vpop.f32.mrb[0].mxu0
    %v2224 = vadd.f32 %v2153, %v2223
    %2225 = vdwg.mxu0
    %2226 = vmatprep.subr.mxu0 %v1822
    %2227 = vmatpush1.msra.mxu0 %v1821
    %2228 = vmatprep.subr.mxu0 %v1824
    %2229 = vmatpush1.msra.mxu0 %v1823
    %2230 = vmatprep.subr.mxu0 %v1826
    %2231 = vmatpush1.msra.mxu0 %v1825
    %2232 = vmatprep.subr.mxu0 %v1828
    %2233 = vmatpush1.msra.mxu0 %v1827
    %2234 = vmatprep.subr.mxu0 %v1830
    %2235 = vmatpush1.msra.mxu0 %v1829
    %2236 = vmatprep.subr.mxu0 %v1832
    %2237 = vmatpush1.msra.mxu0 %v1831
    %2238 = vmatprep.subr.mxu0 %v1834
    %2239 = vmatpush1.msra.mxu0 %v1833
    %2240 = vmatprep.subr.mxu0 %v1836
    %2241 = vmatpush1.msra.mxu0 %v1835
    %2242 = vmatprep.subr.mxu0 %v1838
    %2243 = vmatpush1.msra.mxu0 %v1837
    %2244 = vmatprep.subr.mxu0 %v1840
    %2245 = vmatpush1.msra.mxu0 %v1839
    %2246 = vmatprep.subr.mxu0 %v1842
    %2247 = vmatpush1.msra.mxu0 %v1841
    %2248 = vmatprep.subr.mxu0 %v1844
    %2249 = vmatpush1.msra.mxu0 %v1843
    %2250 = vmatprep.subr.mxu0 %v1846
    %2251 = vmatpush1.msra.mxu0 %v1845
    %2252 = vmatprep.subr.mxu0 %v1848
    %2253 = vmatpush1.msra.mxu0 %v1847
    %2254 = vmatprep.subr.mxu0 %v1850
    %2255 = vmatpush1.msra.mxu0 %v1849
    %2256 = vmatprep.subr.mxu0 %v1852
    %2257 = vmatpush1.msra.mxu0 %v1851
    %2258 = vmatprep.subr.mxu0 %v1854
    %2259 = vmatpush1.msra.mxu0 %v1853
    %2260 = vmatprep.subr.mxu0 %v1856
    %2261 = vmatpush1.msra.mxu0 %v1855
    %2262 = vmatprep.subr.mxu0 %v1858
    %2263 = vmatpush1.msra.mxu0 %v1857
    %2264 = vmatprep.subr.mxu0 %v1860
    %2265 = vmatpush1.msra.mxu0 %v1859
    %2266 = vmatprep.subr.mxu0 %v1862
    %2267 = vmatpush1.msra.mxu0 %v1861
    %2268 = vmatprep.subr.mxu0 %v1864
    %2269 = vmatpush1.msra.mxu0 %v1863
    %2270 = vmatprep.subr.mxu0 %v1866
    %2271 = vmatpush1.msra.mxu0 %v1865
    %2272 = vmatprep.subr.mxu0 %v1868
    %2273 = vmatpush1.msra.mxu0 %v1867
    %2274 = vmatprep.subr.mxu0 %v1870
    %2275 = vmatpush1.msra.mxu0 %v1869
    %2276 = vmatprep.subr.mxu0 %v1872
    %2277 = vmatpush1.msra.mxu0 %v1871
    %2278 = vmatprep.subr.mxu0 %v1874
    %2279 = vmatpush1.msra.mxu0 %v1873
    %2280 = vmatprep.subr.mxu0 %v1876
    %2281 = vmatpush1.msra.mxu0 %v1875
    %2282 = vmatprep.subr.mxu0 %v1878
    %2283 = vmatpush1.msra.mxu0 %v1877
    %2284 = vmatprep.subr.mxu0 %v1880
    %2285 = vmatpush1.msra.mxu0 %v1879
    %2286 = vmatprep.subr.mxu0 %v1882
    %2287 = vmatpush1.msra.mxu0 %v1881
    %2288 = vmatprep.subr.mxu0 %v1884
    %2289 = vmatpush1.msra.mxu0 %v1883
    %2290 = vmatprep.mubr.f32.mxu0 %v1623
    %2291 = vmatmul.mubr.f32.gmra.mrb[0].mxu0 %v1621
    %v2292 = vpop.f32.mrb[0].mxu0
    %v2293 = vadd.f32 %v2222, %v2292
    %v2294 = vpop.f32.mrb[0].mxu0
    %v2295 = vadd.f32 %v2224, %v2294
    %2296 = vdwg.mxu0
    %2297 = vmatprep.subr.mxu0 %v1886
    %2298 = vmatpush1.msra.mxu0 %v1885
    %2299 = vmatprep.subr.mxu0 %v1888
    %2300 = vmatpush1.msra.mxu0 %v1887
    %2301 = vmatprep.subr.mxu0 %v1890
    %2302 = vmatpush1.msra.mxu0 %v1889
    %2303 = vmatprep.subr.mxu0 %v1892
    %2304 = vmatpush1.msra.mxu0 %v1891
    %2305 = vmatprep.subr.mxu0 %v1894
    %2306 = vmatpush1.msra.mxu0 %v1893
    %2307 = vmatprep.subr.mxu0 %v1896
    %2308 = vmatpush1.msra.mxu0 %v1895
    %2309 = vmatprep.subr.mxu0 %v1898
    %2310 = vmatpush1.msra.mxu0 %v1897
    %2311 = vmatprep.subr.mxu0 %v1900
    %2312 = vmatpush1.msra.mxu0 %v1899
    %2313 = vmatprep.subr.mxu0 %v1902
    %2314 = vmatpush1.msra.mxu0 %v1901
    %2315 = vmatprep.subr.mxu0 %v1904
    %2316 = vmatpush1.msra.mxu0 %v1903
    %2317 = vmatprep.subr.mxu0 %v1906
    %2318 = vmatpush1.msra.mxu0 %v1905
    %2319 = vmatprep.subr.mxu0 %v1908
    %2320 = vmatpush1.msra.mxu0 %v1907
    %2321 = vmatprep.subr.mxu0 %v1910
    %2322 = vmatpush1.msra.mxu0 %v1909
    %2323 = vmatprep.subr.mxu0 %v1912
    %2324 = vmatpush1.msra.mxu0 %v1911
    %2325 = vmatprep.subr.mxu0 %v1914
    %2326 = vmatpush1.msra.mxu0 %v1913
    %2327 = vmatprep.subr.mxu0 %v1916
    %2328 = vmatpush1.msra.mxu0 %v1915
    %2329 = vmatprep.subr.mxu0 %v1918
    %2330 = vmatpush1.msra.mxu0 %v1917
    %2331 = vmatprep.subr.mxu0 %v1920
    %2332 = vmatpush1.msra.mxu0 %v1919
    %2333 = vmatprep.subr.mxu0 %v1922
    %2334 = vmatpush1.msra.mxu0 %v1921
    %2335 = vmatprep.subr.mxu0 %v1924
    %2336 = vmatpush1.msra.mxu0 %v1923
    %2337 = vmatprep.subr.mxu0 %v1926
    %2338 = vmatpush1.msra.mxu0 %v1925
    %2339 = vmatprep.subr.mxu0 %v1928
    %2340 = vmatpush1.msra.mxu0 %v1927
    %2341 = vmatprep.subr.mxu0 %v1930
    %2342 = vmatpush1.msra.mxu0 %v1929
    %2343 = vmatprep.subr.mxu0 %v1932
    %2344 = vmatpush1.msra.mxu0 %v1931
    %2345 = vmatprep.subr.mxu0 %v1934
    %2346 = vmatpush1.msra.mxu0 %v1933
    %2347 = vmatprep.subr.mxu0 %v1936
    %2348 = vmatpush1.msra.mxu0 %v1935
    %2349 = vmatprep.subr.mxu0 %v1938
    %2350 = vmatpush1.msra.mxu0 %v1937
    %2351 = vmatprep.subr.mxu0 %v1940
    %2352 = vmatpush1.msra.mxu0 %v1939
    %2353 = vmatprep.subr.mxu0 %v1942
    %2354 = vmatpush1.msra.mxu0 %v1941
    %2355 = vmatprep.subr.mxu0 %v1944
    %2356 = vmatpush1.msra.mxu0 %v1943
    %2357 = vmatprep.subr.mxu0 %v1946
    %2358 = vmatpush1.msra.mxu0 %v1945
    %2359 = vmatprep.subr.mxu0 %v1948
    %2360 = vmatpush1.msra.mxu0 %v1947
    %2361 = vmatprep.mubr.f32.mxu0 %v1017
    %2362 = vmatmul.mubr.f32.gmra.mrb[0].mxu0 %v351
    %v2363 = vpop.f32.mrb[0].mxu0
    %v2364 = vadd.f32 %v2293, %v2363
    %v2365 = vpop.f32.mrb[0].mxu0
    %v2366 = vadd.f32 %v2295, %v2365
    %2367 = vdwg.mxu0
    %2368 = vmatprep.subr.mxu0 %v1950
    %2369 = vmatpush1.msra.mxu0 %v1949
    %2370 = vmatprep.subr.mxu0 %v1952
    %2371 = vmatpush1.msra.mxu0 %v1951
    %2372 = vmatprep.subr.mxu0 %v1954
    %2373 = vmatpush1.msra.mxu0 %v1953
    %2374 = vmatprep.subr.mxu0 %v1956
    %2375 = vmatpush1.msra.mxu0 %v1955
    %2376 = vmatprep.subr.mxu0 %v1958
    %2377 = vmatpush1.msra.mxu0 %v1957
    %2378 = vmatprep.subr.mxu0 %v1960
    %2379 = vmatpush1.msra.mxu0 %v1959
    %2380 = vmatprep.subr.mxu0 %v1962
    %2381 = vmatpush1.msra.mxu0 %v1961
    %2382 = vmatprep.subr.mxu0 %v1964
    %2383 = vmatpush1.msra.mxu0 %v1963
    %2384 = vmatprep.subr.mxu0 %v1966
    %2385 = vmatpush1.msra.mxu0 %v1965
    %2386 = vmatprep.subr.mxu0 %v1968
    %2387 = vmatpush1.msra.mxu0 %v1967
    %2388 = vmatprep.subr.mxu0 %v1970
    %2389 = vmatpush1.msra.mxu0 %v1969
    %2390 = vmatprep.subr.mxu0 %v1972
    %2391 = vmatpush1.msra.mxu0 %v1971
    %2392 = vmatprep.subr.mxu0 %v1974
    %2393 = vmatpush1.msra.mxu0 %v1973
    %2394 = vmatprep.subr.mxu0 %v1976
    %2395 = vmatpush1.msra.mxu0 %v1975
    %2396 = vmatprep.subr.mxu0 %v1978
    %2397 = vmatpush1.msra.mxu0 %v1977
    %2398 = vmatprep.subr.mxu0 %v1980
    %2399 = vmatpush1.msra.mxu0 %v1979
    %2400 = vmatprep.subr.mxu0 %v1982
    %2401 = vmatpush1.msra.mxu0 %v1981
    %2402 = vmatprep.subr.mxu0 %v1984
    %2403 = vmatpush1.msra.mxu0 %v1983
    %2404 = vmatprep.subr.mxu0 %v1986
    %2405 = vmatpush1.msra.mxu0 %v1985
    %2406 = vmatprep.subr.mxu0 %v1988
    %2407 = vmatpush1.msra.mxu0 %v1987
    %2408 = vmatprep.subr.mxu0 %v1990
    %2409 = vmatpush1.msra.mxu0 %v1989
    %2410 = vmatprep.subr.mxu0 %v1992
    %2411 = vmatpush1.msra.mxu0 %v1991
    %2412 = vmatprep.subr.mxu0 %v1994
    %2413 = vmatpush1.msra.mxu0 %v1993
    %2414 = vmatprep.subr.mxu0 %v1996
    %2415 = vmatpush1.msra.mxu0 %v1995
    %2416 = vmatprep.subr.mxu0 %v1998
    %2417 = vmatpush1.msra.mxu0 %v1997
    %2418 = vmatprep.subr.mxu0 %v2000
    %2419 = vmatpush1.msra.mxu0 %v1999
    %2420 = vmatprep.subr.mxu0 %v2002
    %2421 = vmatpush1.msra.mxu0 %v2001
    %2422 = vmatprep.subr.mxu0 %v2004
    %2423 = vmatpush1.msra.mxu0 %v2003
    %2424 = vmatprep.subr.mxu0 %v2006
    %2425 = vmatpush1.msra.mxu0 %v2005
    %2426 = vmatprep.subr.mxu0 %v2008
    %2427 = vmatpush1.msra.mxu0 %v2007
    %2428 = vmatprep.subr.mxu0 %v2010
    %2429 = vmatpush1.msra.mxu0 %v2009
    %2430 = vmatprep.subr.mxu0 %v2012
    %2431 = vmatpush1.msra.mxu0 %v2011
    %2432 = vmatprep.mubr.f32.mxu0 %v1627
    %2433 = vmatmul.mubr.f32.gmra.mrb[0].mxu0 %v1625
    %v2434 = vpop.f32.mrb[0].mxu0
    %v2435 = vadd.f32 %v2364, %v2434
    %v2436 = vpop.f32.mrb[0].mxu0
    %v2437 = vadd.f32 %v2366, %v2436
    %2438 = vdwg.mxu0
    %2439 = vmatprep.subr.mxu0 %v1220
    %2440 = vmatpush1.msra.mxu0 %v1219
    %2441 = vmatprep.subr.mxu0 %v1222
    %2442 = vmatpush1.msra.mxu0 %v1221
    %2443 = vmatprep.subr.mxu0 %v1224
    %2444 = vmatpush1.msra.mxu0 %v1223
    %2445 = vmatprep.subr.mxu0 %v1226
    %2446 = vmatpush1.msra.mxu0 %v1225
    %2447 = vmatprep.subr.mxu0 %v1228
    %2448 = vmatpush1.msra.mxu0 %v1227
    %2449 = vmatprep.subr.mxu0 %v1230
    %2450 = vmatpush1.msra.mxu0 %v1229
    %2451 = vmatprep.subr.mxu0 %v1232
    %2452 = vmatpush1.msra.mxu0 %v1231
    %2453 = vmatprep.subr.mxu0 %v1234
    %2454 = vmatpush1.msra.mxu0 %v1233
    %2455 = vmatprep.subr.mxu0 %v1236
    %2456 = vmatpush1.msra.mxu0 %v1235
    %2457 = vmatprep.subr.mxu0 %v1238
    %2458 = vmatpush1.msra.mxu0 %v1237
    %2459 = vmatprep.subr.mxu0 %v1240
    %2460 = vmatpush1.msra.mxu0 %v1239
    %2461 = vmatprep.subr.mxu0 %v1242
    %2462 = vmatpush1.msra.mxu0 %v1241
    %2463 = vmatprep.subr.mxu0 %v1244
    %2464 = vmatpush1.msra.mxu0 %v1243
    %2465 = vmatprep.subr.mxu0 %v1246
    %2466 = vmatpush1.msra.mxu0 %v1245
    %2467 = vmatprep.subr.mxu0 %v1248
    %2468 = vmatpush1.msra.mxu0 %v1247
    %2469 = vmatprep.subr.mxu0 %v1250
    %2470 = vmatpush1.msra.mxu0 %v1249
    %2471 = vmatprep.subr.mxu0 %v1252
    %2472 = vmatpush1.msra.mxu0 %v1251
    %2473 = vmatprep.subr.mxu0 %v1254
    %2474 = vmatpush1.msra.mxu0 %v1253
    %2475 = vmatprep.subr.mxu0 %v1256
    %2476 = vmatpush1.msra.mxu0 %v1255
    %2477 = vmatprep.subr.mxu0 %v1258
    %2478 = vmatpush1.msra.mxu0 %v1257
    %2479 = vmatprep.subr.mxu0 %v1260
    %2480 = vmatpush1.msra.mxu0 %v1259
    %2481 = vmatprep.subr.mxu0 %v1262
    %2482 = vmatpush1.msra.mxu0 %v1261
    %2483 = vmatprep.subr.mxu0 %v1264
    %2484 = vmatpush1.msra.mxu0 %v1263
    %2485 = vmatprep.subr.mxu0 %v1266
    %2486 = vmatpush1.msra.mxu0 %v1265
    %2487 = vmatprep.subr.mxu0 %v1268
    %2488 = vmatpush1.msra.mxu0 %v1267
    %2489 = vmatprep.subr.mxu0 %v1270
    %2490 = vmatpush1.msra.mxu0 %v1269
    %2491 = vmatprep.subr.mxu0 %v1272
    %2492 = vmatpush1.msra.mxu0 %v1271
    %2493 = vmatprep.subr.mxu0 %v1274
    %2494 = vmatpush1.msra.mxu0 %v1273
    %2495 = vmatprep.subr.mxu0 %v1276
    %2496 = vmatpush1.msra.mxu0 %v1275
    %2497 = vmatprep.subr.mxu0 %v1278
    %2498 = vmatpush1.msra.mxu0 %v1277
    %2499 = vmatprep.subr.mxu0 %v1280
    %2500 = vmatpush1.msra.mxu0 %v1279
    %2501 = vmatprep.subr.mxu0 %v1282
    %2502 = vmatpush1.msra.mxu0 %v1281
    %2503 = vmatprep.mubr.f32.mxu0 %v386
    %2504 = vmatmul.mubr.f32.gmra.mrb[0].mxu0 %v241
    %v2505 = vpop.f32.mrb[0].mxu0
    %v2506 = vadd.f32 %v2435, %v2505
    %v2507 = vpop.f32.mrb[0].mxu0
    %v2508 = vadd.f32 %v2437, %v2507
    %2509 = vdwg.mxu0
    %2510 = vmatprep.subr.mxu0 %v1284
    %2511 = vmatpush1.msra.mxu0 %v1283
    %2512 = vmatprep.subr.mxu0 %v1286
    %2513 = vmatpush1.msra.mxu0 %v1285
    %2514 = vmatprep.subr.mxu0 %v1288
    %2515 = vmatpush1.msra.mxu0 %v1287
    %2516 = vmatprep.subr.mxu0 %v1290
    %2517 = vmatpush1.msra.mxu0 %v1289
    %2518 = vmatprep.subr.mxu0 %v1292
    %2519 = vmatpush1.msra.mxu0 %v1291
    %2520 = vmatprep.subr.mxu0 %v1294
    %2521 = vmatpush1.msra.mxu0 %v1293
    %2522 = vmatprep.subr.mxu0 %v1296
    %2523 = vmatpush1.msra.mxu0 %v1295
    %2524 = vmatprep.subr.mxu0 %v1298
    %2525 = vmatpush1.msra.mxu0 %v1297
    %2526 = vmatprep.subr.mxu0 %v1300
    %2527 = vmatpush1.msra.mxu0 %v1299
    %2528 = vmatprep.subr.mxu0 %v1302
    %2529 = vmatpush1.msra.mxu0 %v1301
    %2530 = vmatprep.subr.mxu0 %v1304
    %2531 = vmatpush1.msra.mxu0 %v1303
    %2532 = vmatprep.subr.mxu0 %v1306
    %2533 = vmatpush1.msra.mxu0 %v1305
    %2534 = vmatprep.subr.mxu0 %v1308
    %2535 = vmatpush1.msra.mxu0 %v1307
    %2536 = vmatprep.subr.mxu0 %v1310
    %2537 = vmatpush1.msra.mxu0 %v1309
    %2538 = vmatprep.subr.mxu0 %v1312
    %2539 = vmatpush1.msra.mxu0 %v1311
    %2540 = vmatprep.subr.mxu0 %v1314
    %2541 = vmatpush1.msra.mxu0 %v1313
    %2542 = vmatprep.subr.mxu0 %v1316
    %2543 = vmatpush1.msra.mxu0 %v1315
    %2544 = vmatprep.subr.mxu0 %v1318
    %2545 = vmatpush1.msra.mxu0 %v1317
    %2546 = vmatprep.subr.mxu0 %v1320
    %2547 = vmatpush1.msra.mxu0 %v1319
    %2548 = vmatprep.subr.mxu0 %v1322
    %2549 = vmatpush1.msra.mxu0 %v1321
    %2550 = vmatprep.subr.mxu0 %v1324
    %2551 = vmatpush1.msra.mxu0 %v1323
    %2552 = vmatprep.subr.mxu0 %v1326
    %2553 = vmatpush1.msra.mxu0 %v1325
    %2554 = vmatprep.subr.mxu0 %v1328
    %2555 = vmatpush1.msra.mxu0 %v1327
    %2556 = vmatprep.subr.mxu0 %v1330
    %2557 = vmatpush1.msra.mxu0 %v1329
    %2558 = vmatprep.subr.mxu0 %v1332
    %2559 = vmatpush1.msra.mxu0 %v1331
    %2560 = vmatprep.subr.mxu0 %v1334
    %2561 = vmatpush1.msra.mxu0 %v1333
    %2562 = vmatprep.subr.mxu0 %v1336
    %2563 = vmatpush1.msra.mxu0 %v1335
    %2564 = vmatprep.subr.mxu0 %v1338
    %2565 = vmatpush1.msra.mxu0 %v1337
    %2566 = vmatprep.subr.mxu0 %v1340
    %2567 = vmatpush1.msra.mxu0 %v1339
    %2568 = vmatprep.subr.mxu0 %v1342
    %2569 = vmatpush1.msra.mxu0 %v1341
    %2570 = vmatprep.subr.mxu0 %v1344
    %2571 = vmatpush1.msra.mxu0 %v1343
    %2572 = vmatprep.subr.mxu0 %v1346
    %2573 = vmatpush1.msra.mxu0 %v1345
    %2574 = vmatprep.mubr.f32.mxu0 %v468
    %2575 = vmatmul.mubr.f32.gmra.mrb[0].mxu0 %v1212
    %v2576 = vpop.f32.mrb[0].mxu0
    %v2577 = vadd.f32 %v2506, %v2576
    %v2578 = vpop.f32.mrb[0].mxu0
    %v2579 = vadd.f32 %v2508, %v2578
    %2580 = vdwg.mxu0
    %2581 = vmatprep.subr.mxu0 %v1348
    %2582 = vmatpush1.msra.mxu0 %v1347
    %2583 = vmatprep.subr.mxu0 %v1350
    %2584 = vmatpush1.msra.mxu0 %v1349
    %2585 = vmatprep.subr.mxu0 %v1352
    %2586 = vmatpush1.msra.mxu0 %v1351
    %2587 = vmatprep.subr.mxu0 %v1354
    %2588 = vmatpush1.msra.mxu0 %v1353
    %2589 = vmatprep.subr.mxu0 %v1356
    %2590 = vmatpush1.msra.mxu0 %v1355
    %2591 = vmatprep.subr.mxu0 %v1358
    %2592 = vmatpush1.msra.mxu0 %v1357
    %2593 = vmatprep.subr.mxu0 %v1360
    %2594 = vmatpush1.msra.mxu0 %v1359
    %2595 = vmatprep.subr.mxu0 %v1362
    %2596 = vmatpush1.msra.mxu0 %v1361
    %2597 = vmatprep.subr.mxu0 %v1364
    %2598 = vmatpush1.msra.mxu0 %v1363
    %2599 = vmatprep.subr.mxu0 %v1366
    %2600 = vmatpush1.msra.mxu0 %v1365
    %2601 = vmatprep.subr.mxu0 %v1368
    %2602 = vmatpush1.msra.mxu0 %v1367
    %2603 = vmatprep.subr.mxu0 %v1370
    %2604 = vmatpush1.msra.mxu0 %v1369
    %2605 = vmatprep.subr.mxu0 %v1372
    %2606 = vmatpush1.msra.mxu0 %v1371
    %2607 = vmatprep.subr.mxu0 %v1374
    %2608 = vmatpush1.msra.mxu0 %v1373
    %2609 = vmatprep.subr.mxu0 %v1376
    %2610 = vmatpush1.msra.mxu0 %v1375
    %2611 = vmatprep.subr.mxu0 %v1378
    %2612 = vmatpush1.msra.mxu0 %v1377
    %2613 = vmatprep.subr.mxu0 %v1380
    %2614 = vmatpush1.msra.mxu0 %v1379
    %2615 = vmatprep.subr.mxu0 %v1382
    %2616 = vmatpush1.msra.mxu0 %v1381
    %2617 = vmatprep.subr.mxu0 %v1384
    %2618 = vmatpush1.msra.mxu0 %v1383
    %2619 = vmatprep.subr.mxu0 %v1386
    %2620 = vmatpush1.msra.mxu0 %v1385
    %2621 = vmatprep.subr.mxu0 %v1388
    %2622 = vmatpush1.msra.mxu0 %v1387
    %2623 = vmatprep.subr.mxu0 %v1390
    %2624 = vmatpush1.msra.mxu0 %v1389
    %2625 = vmatprep.subr.mxu0 %v1392
    %2626 = vmatpush1.msra.mxu0 %v1391
    %2627 = vmatprep.subr.mxu0 %v1394
    %2628 = vmatpush1.msra.mxu0 %v1393
    %2629 = vmatprep.subr.mxu0 %v1396
    %2630 = vmatpush1.msra.mxu0 %v1395
    %2631 = vmatprep.subr.mxu0 %v1398
    %2632 = vmatpush1.msra.mxu0 %v1397
    %2633 = vmatprep.subr.mxu0 %v1400
    %2634 = vmatpush1.msra.mxu0 %v1399
    %2635 = vmatprep.subr.mxu0 %v1402
    %2636 = vmatpush1.msra.mxu0 %v1401
    %2637 = vmatprep.subr.mxu0 %v1404
    %2638 = vmatpush1.msra.mxu0 %v1403
    %2639 = vmatprep.subr.mxu0 %v1406
    %2640 = vmatpush1.msra.mxu0 %v1405
    %2641 = vmatprep.subr.mxu0 %v1408
    %2642 = vmatpush1.msra.mxu0 %v1407
    %2643 = vmatprep.subr.mxu0 %v1410
    %2644 = vmatpush1.msra.mxu0 %v1409
    %2645 = vmatprep.mubr.f32.mxu0 %v466
    %2646 = vmatmul.mubr.f32.gmra.mrb[0].mxu0 %v242
    %v2647 = vpop.f32.mrb[0].mxu0
    %v2648 = vadd.f32 %v2577, %v2647
    %v2649 = vpop.f32.mrb[0].mxu0
    %v2650 = vadd.f32 %v2579, %v2649
    %2651 = vdwg.mxu0
    %2652 = vmatprep.subr.mxu0 %v1412
    %2653 = vmatpush1.msra.mxu0 %v1411
    %2654 = vmatprep.subr.mxu0 %v1414
    %2655 = vmatpush1.msra.mxu0 %v1413
    %2656 = vmatprep.subr.mxu0 %v1416
    %2657 = vmatpush1.msra.mxu0 %v1415
    %2658 = vmatprep.subr.mxu0 %v1418
    %2659 = vmatpush1.msra.mxu0 %v1417
    %2660 = vmatprep.subr.mxu0 %v1420
    %2661 = vmatpush1.msra.mxu0 %v1419
    %2662 = vmatprep.subr.mxu0 %v1422
    %2663 = vmatpush1.msra.mxu0 %v1421
    %2664 = vmatprep.subr.mxu0 %v1424
    %2665 = vmatpush1.msra.mxu0 %v1423
    %2666 = vmatprep.subr.mxu0 %v1426
    %2667 = vmatpush1.msra.mxu0 %v1425
    %2668 = vmatprep.subr.mxu0 %v1428
    %2669 = vmatpush1.msra.mxu0 %v1427
    %2670 = vmatprep.subr.mxu0 %v1430
    %2671 = vmatpush1.msra.mxu0 %v1429
    %2672 = vmatprep.subr.mxu0 %v1432
    %2673 = vmatpush1.msra.mxu0 %v1431
    %2674 = vmatprep.subr.mxu0 %v1434
    %2675 = vmatpush1.msra.mxu0 %v1433
    %2676 = vmatprep.subr.mxu0 %v1436
    %2677 = vmatpush1.msra.mxu0 %v1435
    %2678 = vmatprep.subr.mxu0 %v1438
    %2679 = vmatpush1.msra.mxu0 %v1437
    %2680 = vmatprep.subr.mxu0 %v1440
    %2681 = vmatpush1.msra.mxu0 %v1439
    %2682 = vmatprep.subr.mxu0 %v1442
    %2683 = vmatpush1.msra.mxu0 %v1441
    %2684 = vmatprep.subr.mxu0 %v1444
    %2685 = vmatpush1.msra.mxu0 %v1443
    %2686 = vmatprep.subr.mxu0 %v1446
    %2687 = vmatpush1.msra.mxu0 %v1445
    %2688 = vmatprep.subr.mxu0 %v1448
    %2689 = vmatpush1.msra.mxu0 %v1447
    %2690 = vmatprep.subr.mxu0 %v1450
    %2691 = vmatpush1.msra.mxu0 %v1449
    %2692 = vmatprep.subr.mxu0 %v1452
    %2693 = vmatpush1.msra.mxu0 %v1451
    %2694 = vmatprep.subr.mxu0 %v1454
    %2695 = vmatpush1.msra.mxu0 %v1453
    %2696 = vmatprep.subr.mxu0 %v1456
    %2697 = vmatpush1.msra.mxu0 %v1455
    %2698 = vmatprep.subr.mxu0 %v1458
    %2699 = vmatpush1.msra.mxu0 %v1457
    %2700 = vmatprep.subr.mxu0 %v1460
    %2701 = vmatpush1.msra.mxu0 %v1459
    %2702 = vmatprep.subr.mxu0 %v1462
    %2703 = vmatpush1.msra.mxu0 %v1461
    %2704 = vmatprep.subr.mxu0 %v1464
    %2705 = vmatpush1.msra.mxu0 %v1463
    %2706 = vmatprep.subr.mxu0 %v1466
    %2707 = vmatpush1.msra.mxu0 %v1465
    %2708 = vmatprep.subr.mxu0 %v1468
    %2709 = vmatpush1.msra.mxu0 %v1467
    %2710 = vmatprep.subr.mxu0 %v1470
    %2711 = vmatpush1.msra.mxu0 %v1469
    %2712 = vmatprep.subr.mxu0 %v1472
    %2713 = vmatpush1.msra.mxu0 %v1471
    %2714 = vmatprep.subr.mxu0 %v1474
    %2715 = vmatpush1.msra.mxu0 %v1473
    %2716 = vmatprep.mubr.f32.mxu0 %v469
    %2717 = vmatmul.mubr.f32.gmra.mrb[0].mxu0 %v550
    %v2718 = vpop.f32.mrb[0].mxu0
    %v2719 = vadd.f32 %v2648, %v2718
    %v2720 = vpop.f32.mrb[0].mxu0
    %v2721 = vadd.f32 %v2650, %v2720
    %2722 = vdwg.mxu0
    %2723 = vmatprep.subr.mxu0 %v1476
    %2724 = vmatpush1.msra.mxu0 %v1475
    %2725 = vmatprep.subr.mxu0 %v1478
    %2726 = vmatpush1.msra.mxu0 %v1477
    %2727 = vmatprep.subr.mxu0 %v1480
    %2728 = vmatpush1.msra.mxu0 %v1479
    %2729 = vmatprep.subr.mxu0 %v1482
    %2730 = vmatpush1.msra.mxu0 %v1481
    %2731 = vmatprep.subr.mxu0 %v1484
    %2732 = vmatpush1.msra.mxu0 %v1483
    %2733 = vmatprep.subr.mxu0 %v1486
    %2734 = vmatpush1.msra.mxu0 %v1485
    %2735 = vmatprep.subr.mxu0 %v1488
    %2736 = vmatpush1.msra.mxu0 %v1487
    %2737 = vmatprep.subr.mxu0 %v1490
    %2738 = vmatpush1.msra.mxu0 %v1489
    %2739 = vmatprep.subr.mxu0 %v1492
    %2740 = vmatpush1.msra.mxu0 %v1491
    %2741 = vmatprep.subr.mxu0 %v1494
    %2742 = vmatpush1.msra.mxu0 %v1493
    %2743 = vmatprep.subr.mxu0 %v1496
    %2744 = vmatpush1.msra.mxu0 %v1495
    %2745 = vmatprep.subr.mxu0 %v1498
    %2746 = vmatpush1.msra.mxu0 %v1497
    %2747 = vmatprep.subr.mxu0 %v1500
    %2748 = vmatpush1.msra.mxu0 %v1499
    %2749 = vmatprep.subr.mxu0 %v1502
    %2750 = vmatpush1.msra.mxu0 %v1501
    %2751 = vmatprep.subr.mxu0 %v1504
    %2752 = vmatpush1.msra.mxu0 %v1503
    %2753 = vmatprep.subr.mxu0 %v1506
    %2754 = vmatpush1.msra.mxu0 %v1505
    %2755 = vmatprep.subr.mxu0 %v1508
    %2756 = vmatpush1.msra.mxu0 %v1507
    %2757 = vmatprep.subr.mxu0 %v1510
    %2758 = vmatpush1.msra.mxu0 %v1509
    %2759 = vmatprep.subr.mxu0 %v1512
    %2760 = vmatpush1.msra.mxu0 %v1511
    %2761 = vmatprep.subr.mxu0 %v1514
    %2762 = vmatpush1.msra.mxu0 %v1513
    %2763 = vmatprep.subr.mxu0 %v1516
    %2764 = vmatpush1.msra.mxu0 %v1515
    %2765 = vmatprep.subr.mxu0 %v1518
    %2766 = vmatpush1.msra.mxu0 %v1517
    %2767 = vmatprep.subr.mxu0 %v1520
    %2768 = vmatpush1.msra.mxu0 %v1519
    %2769 = vmatprep.subr.mxu0 %v1522
    %2770 = vmatpush1.msra.mxu0 %v1521
    %2771 = vmatprep.subr.mxu0 %v1524
    %2772 = vmatpush1.msra.mxu0 %v1523
    %2773 = vmatprep.subr.mxu0 %v1526
    %2774 = vmatpush1.msra.mxu0 %v1525
    %2775 = vmatprep.subr.mxu0 %v1528
    %2776 = vmatpush1.msra.mxu0 %v1527
    %2777 = vmatprep.subr.mxu0 %v1530
    %2778 = vmatpush1.msra.mxu0 %v1529
    %2779 = vmatprep.subr.mxu0 %v1532
    %2780 = vmatpush1.msra.mxu0 %v1531
    %2781 = vmatprep.subr.mxu0 %v1534
    %2782 = vmatpush1.msra.mxu0 %v1533
    %2783 = vmatprep.subr.mxu0 %v1536
    %2784 = vmatpush1.msra.mxu0 %v1535
    %2785 = vmatprep.subr.mxu0 %v1538
    %2786 = vmatpush1.msra.mxu0 %v1537
    %2787 = vmatprep.mubr.f32.mxu0 %v548
    %2788 = vmatmul.mubr.f32.gmra.mrb[0].mxu0 %v243
    %v2789 = vpop.f32.mrb[0].mxu0
    %v2790 = vadd.f32 %v2719, %v2789
    %v2791 = vpop.f32.mrb[0].mxu0
    %v2792 = vadd.f32 %v2721, %v2791
    %2793 = vdwg.mxu0
    %2794 = vmatprep.subr.mxu0 %v1540
    %2795 = vmatpush1.msra.mxu0 %v1539
    %2796 = vmatprep.subr.mxu0 %v1542
    %2797 = vmatpush1.msra.mxu0 %v1541
    %2798 = vmatprep.subr.mxu0 %v1544
    %2799 = vmatpush1.msra.mxu0 %v1543
    %2800 = vmatprep.subr.mxu0 %v1546
    %2801 = vmatpush1.msra.mxu0 %v1545
    %2802 = vmatprep.subr.mxu0 %v1548
    %2803 = vmatpush1.msra.mxu0 %v1547
    %2804 = vmatprep.subr.mxu0 %v1550
    %2805 = vmatpush1.msra.mxu0 %v1549
    %2806 = vmatprep.subr.mxu0 %v1552
    %2807 = vmatpush1.msra.mxu0 %v1551
    %2808 = vmatprep.subr.mxu0 %v1554
    %2809 = vmatpush1.msra.mxu0 %v1553
    %2810 = vmatprep.subr.mxu0 %v1556
    %2811 = vmatpush1.msra.mxu0 %v1555
    %2812 = vmatprep.subr.mxu0 %v1558
    %2813 = vmatpush1.msra.mxu0 %v1557
    %2814 = vmatprep.subr.mxu0 %v1560
    %2815 = vmatpush1.msra.mxu0 %v1559
    %2816 = vmatprep.subr.mxu0 %v1562
    %2817 = vmatpush1.msra.mxu0 %v1561
    %2818 = vmatprep.subr.mxu0 %v1564
    %2819 = vmatpush1.msra.mxu0 %v1563
    %2820 = vmatprep.subr.mxu0 %v1566
    %2821 = vmatpush1.msra.mxu0 %v1565
    %2822 = vmatprep.subr.mxu0 %v1568
    %2823 = vmatpush1.msra.mxu0 %v1567
    %2824 = vmatprep.subr.mxu0 %v1570
    %2825 = vmatpush1.msra.mxu0 %v1569
    %2826 = vmatprep.subr.mxu0 %v1572
    %2827 = vmatpush1.msra.mxu0 %v1571
    %2828 = vmatprep.subr.mxu0 %v1574
    %2829 = vmatpush1.msra.mxu0 %v1573
    %2830 = vmatprep.subr.mxu0 %v1576
    %2831 = vmatpush1.msra.mxu0 %v1575
    %2832 = vmatprep.subr.mxu0 %v1578
    %2833 = vmatpush1.msra.mxu0 %v1577
    %2834 = vmatprep.subr.mxu0 %v1580
    %2835 = vmatpush1.msra.mxu0 %v1579
    %2836 = vmatprep.subr.mxu0 %v1582
    %2837 = vmatpush1.msra.mxu0 %v1581
    %2838 = vmatprep.subr.mxu0 %v1584
    %2839 = vmatpush1.msra.mxu0 %v1583
    %2840 = vmatprep.subr.mxu0 %v1586
    %2841 = vmatpush1.msra.mxu0 %v1585
    %2842 = vmatprep.subr.mxu0 %v1588
    %2843 = vmatpush1.msra.mxu0 %v1587
    %2844 = vmatprep.subr.mxu0 %v1590
    %2845 = vmatpush1.msra.mxu0 %v1589
    %2846 = vmatprep.subr.mxu0 %v1592
    %2847 = vmatpush1.msra.mxu0 %v1591
    %2848 = vmatprep.subr.mxu0 %v1594
    %2849 = vmatpush1.msra.mxu0 %v1593
    %2850 = vmatprep.subr.mxu0 %v1596
    %2851 = vmatpush1.msra.mxu0 %v1595
    %2852 = vmatprep.subr.mxu0 %v1598
    %2853 = vmatpush1.msra.mxu0 %v1597
    %2854 = vmatprep.subr.mxu0 %v1600
    %2855 = vmatpush1.msra.mxu0 %v1599
    %2856 = vmatprep.subr.mxu0 %v1602
    %2857 = vmatpush1.msra.mxu0 %v1601
    %2858 = vmatprep.mubr.f32.mxu0 %v734
    %2859 = vmatmul.mubr.f32.gmra.mrb[0].mxu0 %v1217
    %v2860 = vpop.f32.mrb[0].mxu0
    %v2861 = vadd.f32 %v2790, %v2860
    %v2862 = vpop.f32.mrb[0].mxu0
    %v2863 = vadd.f32 %v2792, %v2862
    %2864 = vdwg.mxu0
    %s2865 = scalar_lea.hbm %s6, 131072
    // Predicated region
    $region74: #{dqn_forward.1} parent=1 // pred_check
      _
    $region75: #{dqn_forward.1} parent=1 // pred_check_branch
      %2867 = sbr.rel target = $region77
    $region76: #{dqn_forward.1} parent=1 // pred_region
      %2868 = sst [smem:[#allocation18]] [#allocation25]
      %2869 = sst [smem:[#allocation19]] [#allocation24]
    $region77: #{dqn_forward.1} parent=1 // pred_fallthru
      _
    %2871 = shalt.err (0)
    %s2873 = sshll.u32 %s124, 4
    %s2874 = int_to_ptr.vmem [resolvable:$true] %s2873
    %2876 = dma.hbm_to_vmem [thread:$0]  %s2865, 36864, %s2874, %s125
    %s2877 = smul.u32 8, 128
    %s2878 = smul.u32 %s2877, 2
    %s2879 = sshll.u32 %s2878, 4
    %2880 = dma.done [#allocation3], %s2879
    %v2882 = vrot.slane %v464, 2
    %v2884 = vld [vmem:[#allocation2] sm:$0xff]
    %v2885 = vld [vmem:[#allocation2 + $0x8] sm:$0xff]
    %v2886 = vld [vmem:[#allocation2 + $0x10] sm:$0xff]
    %v2887 = vld [vmem:[#allocation2 + $0x18] sm:$0xff]
    %v2888 = vld [vmem:[#allocation2 + $0x20] sm:$0xff]
    %v2889 = vld [vmem:[#allocation2 + $0x28] sm:$0xff]
    %v2890 = vld [vmem:[#allocation2 + $0x30] sm:$0xff]
    %v2891 = vld [vmem:[#allocation2 + $0x38] sm:$0xff]
    %v2892 = vld [vmem:[#allocation2 + $0x40] sm:$0xff]
    %v2893 = vld [vmem:[#allocation2 + $0x48] sm:$0xff]
    %v2894 = vld [vmem:[#allocation2 + $0x50] sm:$0xff]
    %v2895 = vld [vmem:[#allocation2 + $0x58] sm:$0xff]
    %v2896 = vld [vmem:[#allocation2 + $0x60] sm:$0xff]
    %v2897 = vld [vmem:[#allocation2 + $0x68] sm:$0xff]
    %v2898 = vld [vmem:[#allocation2 + $0x70] sm:$0xff]
    %v2899 = vld [vmem:[#allocation2 + $0x78] sm:$0xff]
    %v2900 = vld [vmem:[#allocation2 + $0x80] sm:$0xff]
    %v2901 = vld [vmem:[#allocation2 + $0x88] sm:$0xff]
    %v2902 = vld [vmem:[#allocation2 + $0x90] sm:$0xff]
    %v2903 = vld [vmem:[#allocation2 + $0x98] sm:$0xff]
    %v2904 = vld [vmem:[#allocation2 + $0xa0] sm:$0xff]
    %v2905 = vld [vmem:[#allocation2 + $0xa8] sm:$0xff]
    %v2906 = vld [vmem:[#allocation2 + $0xb0] sm:$0xff]
    %v2907 = vld [vmem:[#allocation2 + $0xb8] sm:$0xff]
    %v2908 = vld [vmem:[#allocation2 + $0xc0] sm:$0xff]
    %v2909 = vld [vmem:[#allocation2 + $0xc8] sm:$0xff]
    %v2910 = vld [vmem:[#allocation2 + $0xd0] sm:$0xff]
    %v2911 = vld [vmem:[#allocation2 + $0xd8] sm:$0xff]
    %v2912 = vld [vmem:[#allocation2 + $0xe0] sm:$0xff]
    %v2913 = vld [vmem:[#allocation2 + $0xe8] sm:$0xff]
    %v2914 = vld [vmem:[#allocation2 + $0xf0] sm:$0xff]
    %v2915 = vld [vmem:[#allocation2 + $0xf8] sm:$0xff]
    %v2916 = vld [vmem:[#allocation2 + $0x100] sm:$0xff]
    %v2917 = vld [vmem:[#allocation2 + $0x108] sm:$0xff]
    %v2918 = vld [vmem:[#allocation2 + $0x110] sm:$0xff]
    %v2919 = vld [vmem:[#allocation2 + $0x118] sm:$0xff]
    %v2920 = vld [vmem:[#allocation2 + $0x120] sm:$0xff]
    %v2921 = vld [vmem:[#allocation2 + $0x128] sm:$0xff]
    %v2922 = vld [vmem:[#allocation2 + $0x130] sm:$0xff]
    %v2923 = vld [vmem:[#allocation2 + $0x138] sm:$0xff]
    %v2924 = vld [vmem:[#allocation2 + $0x140] sm:$0xff]
    %v2925 = vld [vmem:[#allocation2 + $0x148] sm:$0xff]
    %v2926 = vld [vmem:[#allocation2 + $0x150] sm:$0xff]
    %v2927 = vld [vmem:[#allocation2 + $0x158] sm:$0xff]
    %v2928 = vld [vmem:[#allocation2 + $0x160] sm:$0xff]
    %v2929 = vld [vmem:[#allocation2 + $0x168] sm:$0xff]
    %v2930 = vld [vmem:[#allocation2 + $0x170] sm:$0xff]
    %v2931 = vld [vmem:[#allocation2 + $0x178] sm:$0xff]
    %v2932 = vld [vmem:[#allocation2 + $0x180] sm:$0xff]
    %v2933 = vld [vmem:[#allocation2 + $0x188] sm:$0xff]
    %v2934 = vld [vmem:[#allocation2 + $0x190] sm:$0xff]
    %v2935 = vld [vmem:[#allocation2 + $0x198] sm:$0xff]
    %v2936 = vld [vmem:[#allocation2 + $0x1a0] sm:$0xff]
    %v2937 = vld [vmem:[#allocation2 + $0x1a8] sm:$0xff]
    %v2938 = vld [vmem:[#allocation2 + $0x1b0] sm:$0xff]
    %v2939 = vld [vmem:[#allocation2 + $0x1b8] sm:$0xff]
    %v2940 = vld [vmem:[#allocation2 + $0x1c0] sm:$0xff]
    %v2941 = vld [vmem:[#allocation2 + $0x1c8] sm:$0xff]
    %v2942 = vld [vmem:[#allocation2 + $0x1d0] sm:$0xff]
    %v2943 = vld [vmem:[#allocation2 + $0x1d8] sm:$0xff]
    %v2944 = vld [vmem:[#allocation2 + $0x1e0] sm:$0xff]
    %v2945 = vld [vmem:[#allocation2 + $0x1e8] sm:$0xff]
    %v2946 = vld [vmem:[#allocation2 + $0x1f0] sm:$0xff]
    %v2947 = vld [vmem:[#allocation2 + $0x1f8] sm:$0xff]
    %2948 = vmatprep.subr.mxu0 %v2885
    %2949 = vmatpush1.msra.mxu0 %v2884
    %2950 = vmatprep.subr.mxu0 %v2887
    %2951 = vmatpush1.msra.mxu0 %v2886
    %2952 = vmatprep.subr.mxu0 %v2889
    %2953 = vmatpush1.msra.mxu0 %v2888
    %2954 = vmatprep.subr.mxu0 %v2891
    %2955 = vmatpush1.msra.mxu0 %v2890
    %2956 = vmatprep.subr.mxu0 %v2893
    %2957 = vmatpush1.msra.mxu0 %v2892
    %2958 = vmatprep.subr.mxu0 %v2895
    %2959 = vmatpush1.msra.mxu0 %v2894
    %2960 = vmatprep.subr.mxu0 %v2897
    %2961 = vmatpush1.msra.mxu0 %v2896
    %2962 = vmatprep.subr.mxu0 %v2899
    %2963 = vmatpush1.msra.mxu0 %v2898
    %2964 = vmatprep.subr.mxu0 %v2901
    %2965 = vmatpush1.msra.mxu0 %v2900
    %2966 = vmatprep.subr.mxu0 %v2903
    %2967 = vmatpush1.msra.mxu0 %v2902
    %2968 = vmatprep.subr.mxu0 %v2905
    %2969 = vmatpush1.msra.mxu0 %v2904
    %2970 = vmatprep.subr.mxu0 %v2907
    %2971 = vmatpush1.msra.mxu0 %v2906
    %2972 = vmatprep.subr.mxu0 %v2909
    %2973 = vmatpush1.msra.mxu0 %v2908
    %2974 = vmatprep.subr.mxu0 %v2911
    %2975 = vmatpush1.msra.mxu0 %v2910
    %2976 = vmatprep.subr.mxu0 %v2913
    %2977 = vmatpush1.msra.mxu0 %v2912
    %2978 = vmatprep.subr.mxu0 %v2915
    %2979 = vmatpush1.msra.mxu0 %v2914
    %2980 = vmatprep.subr.mxu0 %v2917
    %2981 = vmatpush1.msra.mxu0 %v2916
    %2982 = vmatprep.subr.mxu0 %v2919
    %2983 = vmatpush1.msra.mxu0 %v2918
    %2984 = vmatprep.subr.mxu0 %v2921
    %2985 = vmatpush1.msra.mxu0 %v2920
    %2986 = vmatprep.subr.mxu0 %v2923
    %2987 = vmatpush1.msra.mxu0 %v2922
    %2988 = vmatprep.subr.mxu0 %v2925
    %2989 = vmatpush1.msra.mxu0 %v2924
    %2990 = vmatprep.subr.mxu0 %v2927
    %2991 = vmatpush1.msra.mxu0 %v2926
    %2992 = vmatprep.subr.mxu0 %v2929
    %2993 = vmatpush1.msra.mxu0 %v2928
    %2994 = vmatprep.subr.mxu0 %v2931
    %2995 = vmatpush1.msra.mxu0 %v2930
    %2996 = vmatprep.subr.mxu0 %v2933
    %2997 = vmatpush1.msra.mxu0 %v2932
    %2998 = vmatprep.subr.mxu0 %v2935
    %2999 = vmatpush1.msra.mxu0 %v2934
    %3000 = vmatprep.subr.mxu0 %v2937
    %3001 = vmatpush1.msra.mxu0 %v2936
    %3002 = vmatprep.subr.mxu0 %v2939
    %3003 = vmatpush1.msra.mxu0 %v2938
    %3004 = vmatprep.subr.mxu0 %v2941
    %3005 = vmatpush1.msra.mxu0 %v2940
    %3006 = vmatprep.subr.mxu0 %v2943
    %3007 = vmatpush1.msra.mxu0 %v2942
    %3008 = vmatprep.subr.mxu0 %v2945
    %3009 = vmatpush1.msra.mxu0 %v2944
    %3010 = vmatprep.subr.mxu0 %v2947
    %3011 = vmatpush1.msra.mxu0 %v2946
    %3012 = vmatprep.mubr.f32.mxu0 %v2882
    %3013 = vmatmul.mubr.f32.gmra.mrb[0].mxu0 %v464
    %v3014 = vpop.f32.mrb[0].mxu0
    %v3015 = vadd.f32 0.0, %v3014
    %v3016 = vpop.f32.mrb[0].mxu0
    %v3017 = vadd.f32 0.0, %v3016
    %3018 = vdwg.mxu0
    %v3019 = vadd.f32 %v2861, %v3015
    %v3020 = vadd.f32 %v2863, %v3017
    %v3022 = vrot.slane %v545, 2
    %v3024 = vld [vmem:[#allocation2 + $0x200] sm:$0xff]
    %v3025 = vld [vmem:[#allocation2 + $0x208] sm:$0xff]
    %v3026 = vld [vmem:[#allocation2 + $0x210] sm:$0xff]
    %v3027 = vld [vmem:[#allocation2 + $0x218] sm:$0xff]
    %v3028 = vld [vmem:[#allocation2 + $0x220] sm:$0xff]
    %v3029 = vld [vmem:[#allocation2 + $0x228] sm:$0xff]
    %v3030 = vld [vmem:[#allocation2 + $0x230] sm:$0xff]
    %v3031 = vld [vmem:[#allocation2 + $0x238] sm:$0xff]
    %v3032 = vld [vmem:[#allocation2 + $0x240] sm:$0xff]
    %v3033 = vld [vmem:[#allocation2 + $0x248] sm:$0xff]
    %v3034 = vld [vmem:[#allocation2 + $0x250] sm:$0xff]
    %v3035 = vld [vmem:[#allocation2 + $0x258] sm:$0xff]
    %v3036 = vld [vmem:[#allocation2 + $0x260] sm:$0xff]
    %v3037 = vld [vmem:[#allocation2 + $0x268] sm:$0xff]
    %v3038 = vld [vmem:[#allocation2 + $0x270] sm:$0xff]
    %v3039 = vld [vmem:[#allocation2 + $0x278] sm:$0xff]
    %v3040 = vld [vmem:[#allocation2 + $0x280] sm:$0xff]
    %v3041 = vld [vmem:[#allocation2 + $0x288] sm:$0xff]
    %v3042 = vld [vmem:[#allocation2 + $0x290] sm:$0xff]
    %v3043 = vld [vmem:[#allocation2 + $0x298] sm:$0xff]
    %v3044 = vld [vmem:[#allocation2 + $0x2a0] sm:$0xff]
    %v3045 = vld [vmem:[#allocation2 + $0x2a8] sm:$0xff]
    %v3046 = vld [vmem:[#allocation2 + $0x2b0] sm:$0xff]
    %v3047 = vld [vmem:[#allocation2 + $0x2b8] sm:$0xff]
    %v3048 = vld [vmem:[#allocation2 + $0x2c0] sm:$0xff]
    %v3049 = vld [vmem:[#allocation2 + $0x2c8] sm:$0xff]
    %v3050 = vld [vmem:[#allocation2 + $0x2d0] sm:$0xff]
    %v3051 = vld [vmem:[#allocation2 + $0x2d8] sm:$0xff]
    %v3052 = vld [vmem:[#allocation2 + $0x2e0] sm:$0xff]
    %v3053 = vld [vmem:[#allocation2 + $0x2e8] sm:$0xff]
    %v3054 = vld [vmem:[#allocation2 + $0x2f0] sm:$0xff]
    %v3055 = vld [vmem:[#allocation2 + $0x2f8] sm:$0xff]
    %v3056 = vld [vmem:[#allocation2 + $0x300] sm:$0xff]
    %v3057 = vld [vmem:[#allocation2 + $0x308] sm:$0xff]
    %v3058 = vld [vmem:[#allocation2 + $0x310] sm:$0xff]
    %v3059 = vld [vmem:[#allocation2 + $0x318] sm:$0xff]
    %v3060 = vld [vmem:[#allocation2 + $0x320] sm:$0xff]
    %v3061 = vld [vmem:[#allocation2 + $0x328] sm:$0xff]
    %v3062 = vld [vmem:[#allocation2 + $0x330] sm:$0xff]
    %v3063 = vld [vmem:[#allocation2 + $0x338] sm:$0xff]
    %v3064 = vld [vmem:[#allocation2 + $0x340] sm:$0xff]
    %v3065 = vld [vmem:[#allocation2 + $0x348] sm:$0xff]
    %v3066 = vld [vmem:[#allocation2 + $0x350] sm:$0xff]
    %v3067 = vld [vmem:[#allocation2 + $0x358] sm:$0xff]
    %v3068 = vld [vmem:[#allocation2 + $0x360] sm:$0xff]
    %v3069 = vld [vmem:[#allocation2 + $0x368] sm:$0xff]
    %v3070 = vld [vmem:[#allocation2 + $0x370] sm:$0xff]
    %v3071 = vld [vmem:[#allocation2 + $0x378] sm:$0xff]
    %v3072 = vld [vmem:[#allocation2 + $0x380] sm:$0xff]
    %v3073 = vld [vmem:[#allocation2 + $0x388] sm:$0xff]
    %v3074 = vld [vmem:[#allocation2 + $0x390] sm:$0xff]
    %v3075 = vld [vmem:[#allocation2 + $0x398] sm:$0xff]
    %v3076 = vld [vmem:[#allocation2 + $0x3a0] sm:$0xff]
    %v3077 = vld [vmem:[#allocation2 + $0x3a8] sm:$0xff]
    %v3078 = vld [vmem:[#allocation2 + $0x3b0] sm:$0xff]
    %v3079 = vld [vmem:[#allocation2 + $0x3b8] sm:$0xff]
    %v3080 = vld [vmem:[#allocation2 + $0x3c0] sm:$0xff]
    %v3081 = vld [vmem:[#allocation2 + $0x3c8] sm:$0xff]
    %v3082 = vld [vmem:[#allocation2 + $0x3d0] sm:$0xff]
    %v3083 = vld [vmem:[#allocation2 + $0x3d8] sm:$0xff]
    %v3084 = vld [vmem:[#allocation2 + $0x3e0] sm:$0xff]
    %v3085 = vld [vmem:[#allocation2 + $0x3e8] sm:$0xff]
    %v3086 = vld [vmem:[#allocation2 + $0x3f0] sm:$0xff]
    %v3087 = vld [vmem:[#allocation2 + $0x3f8] sm:$0xff]
    %3088 = vmatprep.subr.mxu0 %v3025
    %3089 = vmatpush1.msra.mxu0 %v3024
    %3090 = vmatprep.subr.mxu0 %v3027
    %3091 = vmatpush1.msra.mxu0 %v3026
    %3092 = vmatprep.subr.mxu0 %v3029
    %3093 = vmatpush1.msra.mxu0 %v3028
    %3094 = vmatprep.subr.mxu0 %v3031
    %3095 = vmatpush1.msra.mxu0 %v3030
    %3096 = vmatprep.subr.mxu0 %v3033
    %3097 = vmatpush1.msra.mxu0 %v3032
    %3098 = vmatprep.subr.mxu0 %v3035
    %3099 = vmatpush1.msra.mxu0 %v3034
    %3100 = vmatprep.subr.mxu0 %v3037
    %3101 = vmatpush1.msra.mxu0 %v3036
    %3102 = vmatprep.subr.mxu0 %v3039
    %3103 = vmatpush1.msra.mxu0 %v3038
    %3104 = vmatprep.subr.mxu0 %v3041
    %3105 = vmatpush1.msra.mxu0 %v3040
    %3106 = vmatprep.subr.mxu0 %v3043
    %3107 = vmatpush1.msra.mxu0 %v3042
    %3108 = vmatprep.subr.mxu0 %v3045
    %3109 = vmatpush1.msra.mxu0 %v3044
    %3110 = vmatprep.subr.mxu0 %v3047
    %3111 = vmatpush1.msra.mxu0 %v3046
    %3112 = vmatprep.subr.mxu0 %v3049
    %3113 = vmatpush1.msra.mxu0 %v3048
    %3114 = vmatprep.subr.mxu0 %v3051
    %3115 = vmatpush1.msra.mxu0 %v3050
    %3116 = vmatprep.subr.mxu0 %v3053
    %3117 = vmatpush1.msra.mxu0 %v3052
    %3118 = vmatprep.subr.mxu0 %v3055
    %3119 = vmatpush1.msra.mxu0 %v3054
    %3120 = vmatprep.subr.mxu0 %v3057
    %3121 = vmatpush1.msra.mxu0 %v3056
    %3122 = vmatprep.subr.mxu0 %v3059
    %3123 = vmatpush1.msra.mxu0 %v3058
    %3124 = vmatprep.subr.mxu0 %v3061
    %3125 = vmatpush1.msra.mxu0 %v3060
    %3126 = vmatprep.subr.mxu0 %v3063
    %3127 = vmatpush1.msra.mxu0 %v3062
    %3128 = vmatprep.subr.mxu0 %v3065
    %3129 = vmatpush1.msra.mxu0 %v3064
    %3130 = vmatprep.subr.mxu0 %v3067
    %3131 = vmatpush1.msra.mxu0 %v3066
    %3132 = vmatprep.subr.mxu0 %v3069
    %3133 = vmatpush1.msra.mxu0 %v3068
    %3134 = vmatprep.subr.mxu0 %v3071
    %3135 = vmatpush1.msra.mxu0 %v3070
    %3136 = vmatprep.subr.mxu0 %v3073
    %3137 = vmatpush1.msra.mxu0 %v3072
    %3138 = vmatprep.subr.mxu0 %v3075
    %3139 = vmatpush1.msra.mxu0 %v3074
    %3140 = vmatprep.subr.mxu0 %v3077
    %3141 = vmatpush1.msra.mxu0 %v3076
    %3142 = vmatprep.subr.mxu0 %v3079
    %3143 = vmatpush1.msra.mxu0 %v3078
    %3144 = vmatprep.subr.mxu0 %v3081
    %3145 = vmatpush1.msra.mxu0 %v3080
    %3146 = vmatprep.subr.mxu0 %v3083
    %3147 = vmatpush1.msra.mxu0 %v3082
    %3148 = vmatprep.subr.mxu0 %v3085
    %3149 = vmatpush1.msra.mxu0 %v3084
    %3150 = vmatprep.subr.mxu0 %v3087
    %3151 = vmatpush1.msra.mxu0 %v3086
    %3152 = vmatprep.mubr.f32.mxu0 %v3022
    %3153 = vmatmul.mubr.f32.gmra.mrb[0].mxu0 %v545
    %v3154 = vpop.f32.mrb[0].mxu0
    %v3155 = vadd.f32 0.0, %v3154
    %v3156 = vpop.f32.mrb[0].mxu0
    %v3157 = vadd.f32 0.0, %v3156
    %3158 = vdwg.mxu0
    %v3159 = vadd.f32 %v3019, %v3155
    %v3160 = vadd.f32 %v3020, %v3157
    %v3162 = vrot.slane %v624, 2
    %v3164 = vld [vmem:[#allocation2 + $0x400] sm:$0xff]
    %v3165 = vld [vmem:[#allocation2 + $0x408] sm:$0xff]
    %v3166 = vld [vmem:[#allocation2 + $0x410] sm:$0xff]
    %v3167 = vld [vmem:[#allocation2 + $0x418] sm:$0xff]
    %v3168 = vld [vmem:[#allocation2 + $0x420] sm:$0xff]
    %v3169 = vld [vmem:[#allocation2 + $0x428] sm:$0xff]
    %v3170 = vld [vmem:[#allocation2 + $0x430] sm:$0xff]
    %v3171 = vld [vmem:[#allocation2 + $0x438] sm:$0xff]
    %v3172 = vld [vmem:[#allocation2 + $0x440] sm:$0xff]
    %v3173 = vld [vmem:[#allocation2 + $0x448] sm:$0xff]
    %v3174 = vld [vmem:[#allocation2 + $0x450] sm:$0xff]
    %v3175 = vld [vmem:[#allocation2 + $0x458] sm:$0xff]
    %v3176 = vld [vmem:[#allocation2 + $0x460] sm:$0xff]
    %v3177 = vld [vmem:[#allocation2 + $0x468] sm:$0xff]
    %v3178 = vld [vmem:[#allocation2 + $0x470] sm:$0xff]
    %v3179 = vld [vmem:[#allocation2 + $0x478] sm:$0xff]
    %v3180 = vld [vmem:[#allocation2 + $0x480] sm:$0xff]
    %v3181 = vld [vmem:[#allocation2 + $0x488] sm:$0xff]
    %v3182 = vld [vmem:[#allocation2 + $0x490] sm:$0xff]
    %v3183 = vld [vmem:[#allocation2 + $0x498] sm:$0xff]
    %v3184 = vld [vmem:[#allocation2 + $0x4a0] sm:$0xff]
    %v3185 = vld [vmem:[#allocation2 + $0x4a8] sm:$0xff]
    %v3186 = vld [vmem:[#allocation2 + $0x4b0] sm:$0xff]
    %v3187 = vld [vmem:[#allocation2 + $0x4b8] sm:$0xff]
    %v3188 = vld [vmem:[#allocation2 + $0x4c0] sm:$0xff]
    %v3189 = vld [vmem:[#allocation2 + $0x4c8] sm:$0xff]
    %v3190 = vld [vmem:[#allocation2 + $0x4d0] sm:$0xff]
    %v3191 = vld [vmem:[#allocation2 + $0x4d8] sm:$0xff]
    %v3192 = vld [vmem:[#allocation2 + $0x4e0] sm:$0xff]
    %v3193 = vld [vmem:[#allocation2 + $0x4e8] sm:$0xff]
    %v3194 = vld [vmem:[#allocation2 + $0x4f0] sm:$0xff]
    %v3195 = vld [vmem:[#allocation2 + $0x4f8] sm:$0xff]
    %v3196 = vld [vmem:[#allocation2 + $0x500] sm:$0xff]
    %v3197 = vld [vmem:[#allocation2 + $0x508] sm:$0xff]
    %v3198 = vld [vmem:[#allocation2 + $0x510] sm:$0xff]
    %v3199 = vld [vmem:[#allocation2 + $0x518] sm:$0xff]
    %v3200 = vld [vmem:[#allocation2 + $0x520] sm:$0xff]
    %v3201 = vld [vmem:[#allocation2 + $0x528] sm:$0xff]
    %v3202 = vld [vmem:[#allocation2 + $0x530] sm:$0xff]
    %v3203 = vld [vmem:[#allocation2 + $0x538] sm:$0xff]
    %v3204 = vld [vmem:[#allocation2 + $0x540] sm:$0xff]
    %v3205 = vld [vmem:[#allocation2 + $0x548] sm:$0xff]
    %v3206 = vld [vmem:[#allocation2 + $0x550] sm:$0xff]
    %v3207 = vld [vmem:[#allocation2 + $0x558] sm:$0xff]
    %v3208 = vld [vmem:[#allocation2 + $0x560] sm:$0xff]
    %v3209 = vld [vmem:[#allocation2 + $0x568] sm:$0xff]
    %v3210 = vld [vmem:[#allocation2 + $0x570] sm:$0xff]
    %v3211 = vld [vmem:[#allocation2 + $0x578] sm:$0xff]
    %v3212 = vld [vmem:[#allocation2 + $0x580] sm:$0xff]
    %v3213 = vld [vmem:[#allocation2 + $0x588] sm:$0xff]
    %v3214 = vld [vmem:[#allocation2 + $0x590] sm:$0xff]
    %v3215 = vld [vmem:[#allocation2 + $0x598] sm:$0xff]
    %v3216 = vld [vmem:[#allocation2 + $0x5a0] sm:$0xff]
    %v3217 = vld [vmem:[#allocation2 + $0x5a8] sm:$0xff]
    %v3218 = vld [vmem:[#allocation2 + $0x5b0] sm:$0xff]
    %v3219 = vld [vmem:[#allocation2 + $0x5b8] sm:$0xff]
    %v3220 = vld [vmem:[#allocation2 + $0x5c0] sm:$0xff]
    %v3221 = vld [vmem:[#allocation2 + $0x5c8] sm:$0xff]
    %v3222 = vld [vmem:[#allocation2 + $0x5d0] sm:$0xff]
    %v3223 = vld [vmem:[#allocation2 + $0x5d8] sm:$0xff]
    %v3224 = vld [vmem:[#allocation2 + $0x5e0] sm:$0xff]
    %v3225 = vld [vmem:[#allocation2 + $0x5e8] sm:$0xff]
    %v3226 = vld [vmem:[#allocation2 + $0x5f0] sm:$0xff]
    %v3227 = vld [vmem:[#allocation2 + $0x5f8] sm:$0xff]
    %3228 = vmatprep.subr.mxu0 %v3165
    %3229 = vmatpush1.msra.mxu0 %v3164
    %3230 = vmatprep.subr.mxu0 %v3167
    %3231 = vmatpush1.msra.mxu0 %v3166
    %3232 = vmatprep.subr.mxu0 %v3169
    %3233 = vmatpush1.msra.mxu0 %v3168
    %3234 = vmatprep.subr.mxu0 %v3171
    %3235 = vmatpush1.msra.mxu0 %v3170
    %3236 = vmatprep.subr.mxu0 %v3173
    %3237 = vmatpush1.msra.mxu0 %v3172
    %3238 = vmatprep.subr.mxu0 %v3175
    %3239 = vmatpush1.msra.mxu0 %v3174
    %3240 = vmatprep.subr.mxu0 %v3177
    %3241 = vmatpush1.msra.mxu0 %v3176
    %3242 = vmatprep.subr.mxu0 %v3179
    %3243 = vmatpush1.msra.mxu0 %v3178
    %3244 = vmatprep.subr.mxu0 %v3181
    %3245 = vmatpush1.msra.mxu0 %v3180
    %3246 = vmatprep.subr.mxu0 %v3183
    %3247 = vmatpush1.msra.mxu0 %v3182
    %3248 = vmatprep.subr.mxu0 %v3185
    %3249 = vmatpush1.msra.mxu0 %v3184
    %3250 = vmatprep.subr.mxu0 %v3187
    %3251 = vmatpush1.msra.mxu0 %v3186
    %3252 = vmatprep.subr.mxu0 %v3189
    %3253 = vmatpush1.msra.mxu0 %v3188
    %3254 = vmatprep.subr.mxu0 %v3191
    %3255 = vmatpush1.msra.mxu0 %v3190
    %3256 = vmatprep.subr.mxu0 %v3193
    %3257 = vmatpush1.msra.mxu0 %v3192
    %3258 = vmatprep.subr.mxu0 %v3195
    %3259 = vmatpush1.msra.mxu0 %v3194
    %3260 = vmatprep.subr.mxu0 %v3197
    %3261 = vmatpush1.msra.mxu0 %v3196
    %3262 = vmatprep.subr.mxu0 %v3199
    %3263 = vmatpush1.msra.mxu0 %v3198
    %3264 = vmatprep.subr.mxu0 %v3201
    %3265 = vmatpush1.msra.mxu0 %v3200
    %3266 = vmatprep.subr.mxu0 %v3203
    %3267 = vmatpush1.msra.mxu0 %v3202
    %3268 = vmatprep.subr.mxu0 %v3205
    %3269 = vmatpush1.msra.mxu0 %v3204
    %3270 = vmatprep.subr.mxu0 %v3207
    %3271 = vmatpush1.msra.mxu0 %v3206
    %3272 = vmatprep.subr.mxu0 %v3209
    %3273 = vmatpush1.msra.mxu0 %v3208
    %3274 = vmatprep.subr.mxu0 %v3211
    %3275 = vmatpush1.msra.mxu0 %v3210
    %3276 = vmatprep.subr.mxu0 %v3213
    %3277 = vmatpush1.msra.mxu0 %v3212
    %3278 = vmatprep.subr.mxu0 %v3215
    %3279 = vmatpush1.msra.mxu0 %v3214
    %3280 = vmatprep.subr.mxu0 %v3217
    %3281 = vmatpush1.msra.mxu0 %v3216
    %3282 = vmatprep.subr.mxu0 %v3219
    %3283 = vmatpush1.msra.mxu0 %v3218
    %3284 = vmatprep.subr.mxu0 %v3221
    %3285 = vmatpush1.msra.mxu0 %v3220
    %3286 = vmatprep.subr.mxu0 %v3223
    %3287 = vmatpush1.msra.mxu0 %v3222
    %3288 = vmatprep.subr.mxu0 %v3225
    %3289 = vmatpush1.msra.mxu0 %v3224
    %3290 = vmatprep.subr.mxu0 %v3227
    %3291 = vmatpush1.msra.mxu0 %v3226
    %3292 = vmatprep.mubr.f32.mxu0 %v3162
    %3293 = vmatmul.mubr.f32.gmra.mrb[0].mxu0 %v624
    %v3294 = vpop.f32.mrb[0].mxu0
    %v3295 = vadd.f32 0.0, %v3294
    %v3296 = vpop.f32.mrb[0].mxu0
    %v3297 = vadd.f32 0.0, %v3296
    %3298 = vdwg.mxu0
    %v3299 = vadd.f32 %v3159, %v3295
    %v3300 = vadd.f32 %v3160, %v3297
    %v3302 = vrot.slane %v698, 2
    %v3304 = vld [vmem:[#allocation2 + $0x600] sm:$0xff]
    %v3305 = vld [vmem:[#allocation2 + $0x608] sm:$0xff]
    %v3306 = vld [vmem:[#allocation2 + $0x610] sm:$0xff]
    %v3307 = vld [vmem:[#allocation2 + $0x618] sm:$0xff]
    %v3308 = vld [vmem:[#allocation2 + $0x620] sm:$0xff]
    %v3309 = vld [vmem:[#allocation2 + $0x628] sm:$0xff]
    %v3310 = vld [vmem:[#allocation2 + $0x630] sm:$0xff]
    %v3311 = vld [vmem:[#allocation2 + $0x638] sm:$0xff]
    %v3312 = vld [vmem:[#allocation2 + $0x640] sm:$0xff]
    %v3313 = vld [vmem:[#allocation2 + $0x648] sm:$0xff]
    %v3314 = vld [vmem:[#allocation2 + $0x650] sm:$0xff]
    %v3315 = vld [vmem:[#allocation2 + $0x658] sm:$0xff]
    %v3316 = vld [vmem:[#allocation2 + $0x660] sm:$0xff]
    %v3317 = vld [vmem:[#allocation2 + $0x668] sm:$0xff]
    %v3318 = vld [vmem:[#allocation2 + $0x670] sm:$0xff]
    %v3319 = vld [vmem:[#allocation2 + $0x678] sm:$0xff]
    %v3320 = vld [vmem:[#allocation2 + $0x680] sm:$0xff]
    %v3321 = vld [vmem:[#allocation2 + $0x688] sm:$0xff]
    %v3322 = vld [vmem:[#allocation2 + $0x690] sm:$0xff]
    %v3323 = vld [vmem:[#allocation2 + $0x698] sm:$0xff]
    %v3324 = vld [vmem:[#allocation2 + $0x6a0] sm:$0xff]
    %v3325 = vld [vmem:[#allocation2 + $0x6a8] sm:$0xff]
    %v3326 = vld [vmem:[#allocation2 + $0x6b0] sm:$0xff]
    %v3327 = vld [vmem:[#allocation2 + $0x6b8] sm:$0xff]
    %v3328 = vld [vmem:[#allocation2 + $0x6c0] sm:$0xff]
    %v3329 = vld [vmem:[#allocation2 + $0x6c8] sm:$0xff]
    %v3330 = vld [vmem:[#allocation2 + $0x6d0] sm:$0xff]
    %v3331 = vld [vmem:[#allocation2 + $0x6d8] sm:$0xff]
    %v3332 = vld [vmem:[#allocation2 + $0x6e0] sm:$0xff]
    %v3333 = vld [vmem:[#allocation2 + $0x6e8] sm:$0xff]
    %v3334 = vld [vmem:[#allocation2 + $0x6f0] sm:$0xff]
    %v3335 = vld [vmem:[#allocation2 + $0x6f8] sm:$0xff]
    %v3336 = vld [vmem:[#allocation2 + $0x700] sm:$0xff]
    %v3337 = vld [vmem:[#allocation2 + $0x708] sm:$0xff]
    %v3338 = vld [vmem:[#allocation2 + $0x710] sm:$0xff]
    %v3339 = vld [vmem:[#allocation2 + $0x718] sm:$0xff]
    %v3340 = vld [vmem:[#allocation2 + $0x720] sm:$0xff]
    %v3341 = vld [vmem:[#allocation2 + $0x728] sm:$0xff]
    %v3342 = vld [vmem:[#allocation2 + $0x730] sm:$0xff]
    %v3343 = vld [vmem:[#allocation2 + $0x738] sm:$0xff]
    %v3344 = vld [vmem:[#allocation2 + $0x740] sm:$0xff]
    %v3345 = vld [vmem:[#allocation2 + $0x748] sm:$0xff]
    %v3346 = vld [vmem:[#allocation2 + $0x750] sm:$0xff]
    %v3347 = vld [vmem:[#allocation2 + $0x758] sm:$0xff]
    %v3348 = vld [vmem:[#allocation2 + $0x760] sm:$0xff]
    %v3349 = vld [vmem:[#allocation2 + $0x768] sm:$0xff]
    %v3350 = vld [vmem:[#allocation2 + $0x770] sm:$0xff]
    %v3351 = vld [vmem:[#allocation2 + $0x778] sm:$0xff]
    %v3352 = vld [vmem:[#allocation2 + $0x780] sm:$0xff]
    %v3353 = vld [vmem:[#allocation2 + $0x788] sm:$0xff]
    %v3354 = vld [vmem:[#allocation2 + $0x790] sm:$0xff]
    %v3355 = vld [vmem:[#allocation2 + $0x798] sm:$0xff]
    %v3356 = vld [vmem:[#allocation2 + $0x7a0] sm:$0xff]
    %v3357 = vld [vmem:[#allocation2 + $0x7a8] sm:$0xff]
    %v3358 = vld [vmem:[#allocation2 + $0x7b0] sm:$0xff]
    %v3359 = vld [vmem:[#allocation2 + $0x7b8] sm:$0xff]
    %v3360 = vld [vmem:[#allocation2 + $0x7c0] sm:$0xff]
    %v3361 = vld [vmem:[#allocation2 + $0x7c8] sm:$0xff]
    %v3362 = vld [vmem:[#allocation2 + $0x7d0] sm:$0xff]
    %v3363 = vld [vmem:[#allocation2 + $0x7d8] sm:$0xff]
    %v3364 = vld [vmem:[#allocation2 + $0x7e0] sm:$0xff]
    %v3365 = vld [vmem:[#allocation2 + $0x7e8] sm:$0xff]
    %v3366 = vld [vmem:[#allocation2 + $0x7f0] sm:$0xff]
    %v3367 = vld [vmem:[#allocation2 + $0x7f8] sm:$0xff]
    %3368 = vmatprep.subr.mxu0 %v3305
    %3369 = vmatpush1.msra.mxu0 %v3304
    %3370 = vmatprep.subr.mxu0 %v3307
    %3371 = vmatpush1.msra.mxu0 %v3306
    %3372 = vmatprep.subr.mxu0 %v3309
    %3373 = vmatpush1.msra.mxu0 %v3308
    %3374 = vmatprep.subr.mxu0 %v3311
    %3375 = vmatpush1.msra.mxu0 %v3310
    %3376 = vmatprep.subr.mxu0 %v3313
    %3377 = vmatpush1.msra.mxu0 %v3312
    %3378 = vmatprep.subr.mxu0 %v3315
    %3379 = vmatpush1.msra.mxu0 %v3314
    %3380 = vmatprep.subr.mxu0 %v3317
    %3381 = vmatpush1.msra.mxu0 %v3316
    %3382 = vmatprep.subr.mxu0 %v3319
    %3383 = vmatpush1.msra.mxu0 %v3318
    %3384 = vmatprep.subr.mxu0 %v3321
    %3385 = vmatpush1.msra.mxu0 %v3320
    %3386 = vmatprep.subr.mxu0 %v3323
    %3387 = vmatpush1.msra.mxu0 %v3322
    %3388 = vmatprep.subr.mxu0 %v3325
    %3389 = vmatpush1.msra.mxu0 %v3324
    %3390 = vmatprep.subr.mxu0 %v3327
    %3391 = vmatpush1.msra.mxu0 %v3326
    %3392 = vmatprep.subr.mxu0 %v3329
    %3393 = vmatpush1.msra.mxu0 %v3328
    %3394 = vmatprep.subr.mxu0 %v3331
    %3395 = vmatpush1.msra.mxu0 %v3330
    %3396 = vmatprep.subr.mxu0 %v3333
    %3397 = vmatpush1.msra.mxu0 %v3332
    %3398 = vmatprep.subr.mxu0 %v3335
    %3399 = vmatpush1.msra.mxu0 %v3334
    %3400 = vmatprep.subr.mxu0 %v3337
    %3401 = vmatpush1.msra.mxu0 %v3336
    %3402 = vmatprep.subr.mxu0 %v3339
    %3403 = vmatpush1.msra.mxu0 %v3338
    %3404 = vmatprep.subr.mxu0 %v3341
    %3405 = vmatpush1.msra.mxu0 %v3340
    %3406 = vmatprep.subr.mxu0 %v3343
    %3407 = vmatpush1.msra.mxu0 %v3342
    %3408 = vmatprep.subr.mxu0 %v3345
    %3409 = vmatpush1.msra.mxu0 %v3344
    %3410 = vmatprep.subr.mxu0 %v3347
    %3411 = vmatpush1.msra.mxu0 %v3346
    %3412 = vmatprep.subr.mxu0 %v3349
    %3413 = vmatpush1.msra.mxu0 %v3348
    %3414 = vmatprep.subr.mxu0 %v3351
    %3415 = vmatpush1.msra.mxu0 %v3350
    %3416 = vmatprep.subr.mxu0 %v3353
    %3417 = vmatpush1.msra.mxu0 %v3352
    %3418 = vmatprep.subr.mxu0 %v3355
    %3419 = vmatpush1.msra.mxu0 %v3354
    %3420 = vmatprep.subr.mxu0 %v3357
    %3421 = vmatpush1.msra.mxu0 %v3356
    %3422 = vmatprep.subr.mxu0 %v3359
    %3423 = vmatpush1.msra.mxu0 %v3358
    %3424 = vmatprep.subr.mxu0 %v3361
    %3425 = vmatpush1.msra.mxu0 %v3360
    %3426 = vmatprep.subr.mxu0 %v3363
    %3427 = vmatpush1.msra.mxu0 %v3362
    %3428 = vmatprep.subr.mxu0 %v3365
    %3429 = vmatpush1.msra.mxu0 %v3364
    %3430 = vmatprep.subr.mxu0 %v3367
    %3431 = vmatpush1.msra.mxu0 %v3366
    %3432 = vmatprep.mubr.f32.mxu0 %v3302
    %3433 = vmatmul.mubr.f32.gmra.mrb[0].mxu0 %v698
    %v3434 = vpop.f32.mrb[0].mxu0
    %v3435 = vadd.f32 0.0, %v3434
    %v3436 = vpop.f32.mrb[0].mxu0
    %v3437 = vadd.f32 0.0, %v3436
    %3438 = vdwg.mxu0
    %v3439 = vadd.f32 %v3299, %v3435
    %v3440 = vadd.f32 %v3300, %v3437
    %s3441 = scalar_lea.hbm %s6, 167936
    // Predicated region
    $region78: #{dqn_forward.1} parent=1 // pred_check
      _
    $region79: #{dqn_forward.1} parent=1 // pred_check_branch
      %3443 = sbr.rel target = $region81
    $region80: #{dqn_forward.1} parent=1 // pred_region
      %3444 = sst [smem:[#allocation18]] [#allocation27]
      %3445 = sst [smem:[#allocation19]] [#allocation26]
    $region81: #{dqn_forward.1} parent=1 // pred_fallthru
      _
    %3447 = shalt.err (0)
    %s3449 = sshll.u32 [#allocation2], 4
    %s3450 = int_to_ptr.vmem [resolvable:$true] %s3449
    %3452 = dma.hbm_to_vmem [thread:$0]  %s3441, 36864, %s3450, [#allocation3]
    %s3453 = smul.u32 8, 144
    %s3454 = smul.u32 %s3453, 2
    %s3455 = sshll.u32 %s3454, 4
    %3456 = dma.done %s125, %s3455
    %v3458 = vrot.slane %v824, 2
    %v3460 = vrot.slane %v824, 4
    %v3462 = vrot.slane %v824, 6
    %v3465 = vrot.slane %v825, 2
    %v3467 = vrot.slane %v825, 4
    %v3469 = vrot.slane %v825, 6
    %v3471 = vld [vmem:[%s124] sm:$0xff]
    %v3472 = vld [vmem:[%s124 + $0x8] sm:$0xff]
    %v3473 = vld [vmem:[%s124 + $0x10] sm:$0xff]
    %v3474 = vld [vmem:[%s124 + $0x18] sm:$0xff]
    %v3475 = vld [vmem:[%s124 + $0x20] sm:$0xff]
    %v3476 = vld [vmem:[%s124 + $0x28] sm:$0xff]
    %v3477 = vld [vmem:[%s124 + $0x30] sm:$0xff]
    %v3478 = vld [vmem:[%s124 + $0x38] sm:$0xff]
    %v3479 = vld [vmem:[%s124 + $0x40] sm:$0xff]
    %v3480 = vld [vmem:[%s124 + $0x48] sm:$0xff]
    %v3481 = vld [vmem:[%s124 + $0x50] sm:$0xff]
    %v3482 = vld [vmem:[%s124 + $0x58] sm:$0xff]
    %v3483 = vld [vmem:[%s124 + $0x60] sm:$0xff]
    %v3484 = vld [vmem:[%s124 + $0x68] sm:$0xff]
    %v3485 = vld [vmem:[%s124 + $0x70] sm:$0xff]
    %v3486 = vld [vmem:[%s124 + $0x78] sm:$0xff]
    %v3487 = vld [vmem:[%s124 + $0x80] sm:$0xff]
    %v3488 = vld [vmem:[%s124 + $0x88] sm:$0xff]
    %v3489 = vld [vmem:[%s124 + $0x90] sm:$0xff]
    %v3490 = vld [vmem:[%s124 + $0x98] sm:$0xff]
    %v3491 = vld [vmem:[%s124 + $0xa0] sm:$0xff]
    %v3492 = vld [vmem:[%s124 + $0xa8] sm:$0xff]
    %v3493 = vld [vmem:[%s124 + $0xb0] sm:$0xff]
    %v3494 = vld [vmem:[%s124 + $0xb8] sm:$0xff]
    %v3495 = vld [vmem:[%s124 + $0xc0] sm:$0xff]
    %v3496 = vld [vmem:[%s124 + $0xc8] sm:$0xff]
    %v3497 = vld [vmem:[%s124 + $0xd0] sm:$0xff]
    %v3498 = vld [vmem:[%s124 + $0xd8] sm:$0xff]
    %v3499 = vld [vmem:[%s124 + $0xe0] sm:$0xff]
    %v3500 = vld [vmem:[%s124 + $0xe8] sm:$0xff]
    %v3501 = vld [vmem:[%s124 + $0xf0] sm:$0xff]
    %v3502 = vld [vmem:[%s124 + $0xf8] sm:$0xff]
    %v3503 = vld [vmem:[%s124 + $0x100] sm:$0xff]
    %v3504 = vld [vmem:[%s124 + $0x108] sm:$0xff]
    %v3505 = vld [vmem:[%s124 + $0x110] sm:$0xff]
    %v3506 = vld [vmem:[%s124 + $0x118] sm:$0xff]
    %v3507 = vld [vmem:[%s124 + $0x120] sm:$0xff]
    %v3508 = vld [vmem:[%s124 + $0x128] sm:$0xff]
    %v3509 = vld [vmem:[%s124 + $0x130] sm:$0xff]
    %v3510 = vld [vmem:[%s124 + $0x138] sm:$0xff]
    %v3511 = vld [vmem:[%s124 + $0x140] sm:$0xff]
    %v3512 = vld [vmem:[%s124 + $0x148] sm:$0xff]
    %v3513 = vld [vmem:[%s124 + $0x150] sm:$0xff]
    %v3514 = vld [vmem:[%s124 + $0x158] sm:$0xff]
    %v3515 = vld [vmem:[%s124 + $0x160] sm:$0xff]
    %v3516 = vld [vmem:[%s124 + $0x168] sm:$0xff]
    %v3517 = vld [vmem:[%s124 + $0x170] sm:$0xff]
    %v3518 = vld [vmem:[%s124 + $0x178] sm:$0xff]
    %v3519 = vld [vmem:[%s124 + $0x180] sm:$0xff]
    %v3520 = vld [vmem:[%s124 + $0x188] sm:$0xff]
    %v3521 = vld [vmem:[%s124 + $0x190] sm:$0xff]
    %v3522 = vld [vmem:[%s124 + $0x198] sm:$0xff]
    %v3523 = vld [vmem:[%s124 + $0x1a0] sm:$0xff]
    %v3524 = vld [vmem:[%s124 + $0x1a8] sm:$0xff]
    %v3525 = vld [vmem:[%s124 + $0x1b0] sm:$0xff]
    %v3526 = vld [vmem:[%s124 + $0x1b8] sm:$0xff]
    %v3527 = vld [vmem:[%s124 + $0x1c0] sm:$0xff]
    %v3528 = vld [vmem:[%s124 + $0x1c8] sm:$0xff]
    %v3529 = vld [vmem:[%s124 + $0x1d0] sm:$0xff]
    %v3530 = vld [vmem:[%s124 + $0x1d8] sm:$0xff]
    %v3531 = vld [vmem:[%s124 + $0x1e0] sm:$0xff]
    %v3532 = vld [vmem:[%s124 + $0x1e8] sm:$0xff]
    %v3533 = vld [vmem:[%s124 + $0x1f0] sm:$0xff]
    %v3534 = vld [vmem:[%s124 + $0x1f8] sm:$0xff]
    %v3535 = vld [vmem:[%s124 + $0x200] sm:$0xff]
    %v3536 = vld [vmem:[%s124 + $0x208] sm:$0xff]
    %v3537 = vld [vmem:[%s124 + $0x210] sm:$0xff]
    %v3538 = vld [vmem:[%s124 + $0x218] sm:$0xff]
    %v3539 = vld [vmem:[%s124 + $0x220] sm:$0xff]
    %v3540 = vld [vmem:[%s124 + $0x228] sm:$0xff]
    %v3541 = vld [vmem:[%s124 + $0x230] sm:$0xff]
    %v3542 = vld [vmem:[%s124 + $0x238] sm:$0xff]
    %v3543 = vld [vmem:[%s124 + $0x240] sm:$0xff]
    %v3544 = vld [vmem:[%s124 + $0x248] sm:$0xff]
    %v3545 = vld [vmem:[%s124 + $0x250] sm:$0xff]
    %v3546 = vld [vmem:[%s124 + $0x258] sm:$0xff]
    %v3547 = vld [vmem:[%s124 + $0x260] sm:$0xff]
    %v3548 = vld [vmem:[%s124 + $0x268] sm:$0xff]
    %v3549 = vld [vmem:[%s124 + $0x270] sm:$0xff]
    %v3550 = vld [vmem:[%s124 + $0x278] sm:$0xff]
    %v3551 = vld [vmem:[%s124 + $0x280] sm:$0xff]
    %v3552 = vld [vmem:[%s124 + $0x288] sm:$0xff]
    %v3553 = vld [vmem:[%s124 + $0x290] sm:$0xff]
    %v3554 = vld [vmem:[%s124 + $0x298] sm:$0xff]
    %v3555 = vld [vmem:[%s124 + $0x2a0] sm:$0xff]
    %v3556 = vld [vmem:[%s124 + $0x2a8] sm:$0xff]
    %v3557 = vld [vmem:[%s124 + $0x2b0] sm:$0xff]
    %v3558 = vld [vmem:[%s124 + $0x2b8] sm:$0xff]
    %v3559 = vld [vmem:[%s124 + $0x2c0] sm:$0xff]
    %v3560 = vld [vmem:[%s124 + $0x2c8] sm:$0xff]
    %v3561 = vld [vmem:[%s124 + $0x2d0] sm:$0xff]
    %v3562 = vld [vmem:[%s124 + $0x2d8] sm:$0xff]
    %v3563 = vld [vmem:[%s124 + $0x2e0] sm:$0xff]
    %v3564 = vld [vmem:[%s124 + $0x2e8] sm:$0xff]
    %v3565 = vld [vmem:[%s124 + $0x2f0] sm:$0xff]
    %v3566 = vld [vmem:[%s124 + $0x2f8] sm:$0xff]
    %v3567 = vld [vmem:[%s124 + $0x300] sm:$0xff]
    %v3568 = vld [vmem:[%s124 + $0x308] sm:$0xff]
    %v3569 = vld [vmem:[%s124 + $0x310] sm:$0xff]
    %v3570 = vld [vmem:[%s124 + $0x318] sm:$0xff]
    %v3571 = vld [vmem:[%s124 + $0x320] sm:$0xff]
    %v3572 = vld [vmem:[%s124 + $0x328] sm:$0xff]
    %v3573 = vld [vmem:[%s124 + $0x330] sm:$0xff]
    %v3574 = vld [vmem:[%s124 + $0x338] sm:$0xff]
    %v3575 = vld [vmem:[%s124 + $0x340] sm:$0xff]
    %v3576 = vld [vmem:[%s124 + $0x348] sm:$0xff]
    %v3577 = vld [vmem:[%s124 + $0x350] sm:$0xff]
    %v3578 = vld [vmem:[%s124 + $0x358] sm:$0xff]
    %v3579 = vld [vmem:[%s124 + $0x360] sm:$0xff]
    %v3580 = vld [vmem:[%s124 + $0x368] sm:$0xff]
    %v3581 = vld [vmem:[%s124 + $0x370] sm:$0xff]
    %v3582 = vld [vmem:[%s124 + $0x378] sm:$0xff]
    %v3583 = vld [vmem:[%s124 + $0x380] sm:$0xff]
    %v3584 = vld [vmem:[%s124 + $0x388] sm:$0xff]
    %v3585 = vld [vmem:[%s124 + $0x390] sm:$0xff]
    %v3586 = vld [vmem:[%s124 + $0x398] sm:$0xff]
    %v3587 = vld [vmem:[%s124 + $0x3a0] sm:$0xff]
    %v3588 = vld [vmem:[%s124 + $0x3a8] sm:$0xff]
    %v3589 = vld [vmem:[%s124 + $0x3b0] sm:$0xff]
    %v3590 = vld [vmem:[%s124 + $0x3b8] sm:$0xff]
    %v3591 = vld [vmem:[%s124 + $0x3c0] sm:$0xff]
    %v3592 = vld [vmem:[%s124 + $0x3c8] sm:$0xff]
    %v3593 = vld [vmem:[%s124 + $0x3d0] sm:$0xff]
    %v3594 = vld [vmem:[%s124 + $0x3d8] sm:$0xff]
    %v3595 = vld [vmem:[%s124 + $0x3e0] sm:$0xff]
    %v3596 = vld [vmem:[%s124 + $0x3e8] sm:$0xff]
    %v3597 = vld [vmem:[%s124 + $0x3f0] sm:$0xff]
    %v3598 = vld [vmem:[%s124 + $0x3f8] sm:$0xff]
    %v3599 = vld [vmem:[%s124 + $0x400] sm:$0xff]
    %v3600 = vld [vmem:[%s124 + $0x408] sm:$0xff]
    %v3601 = vld [vmem:[%s124 + $0x410] sm:$0xff]
    %v3602 = vld [vmem:[%s124 + $0x418] sm:$0xff]
    %v3603 = vld [vmem:[%s124 + $0x420] sm:$0xff]
    %v3604 = vld [vmem:[%s124 + $0x428] sm:$0xff]
    %v3605 = vld [vmem:[%s124 + $0x430] sm:$0xff]
    %v3606 = vld [vmem:[%s124 + $0x438] sm:$0xff]
    %v3607 = vld [vmem:[%s124 + $0x440] sm:$0xff]
    %v3608 = vld [vmem:[%s124 + $0x448] sm:$0xff]
    %v3609 = vld [vmem:[%s124 + $0x450] sm:$0xff]
    %v3610 = vld [vmem:[%s124 + $0x458] sm:$0xff]
    %v3611 = vld [vmem:[%s124 + $0x460] sm:$0xff]
    %v3612 = vld [vmem:[%s124 + $0x468] sm:$0xff]
    %v3613 = vld [vmem:[%s124 + $0x470] sm:$0xff]
    %v3614 = vld [vmem:[%s124 + $0x478] sm:$0xff]
    %v3615 = vld [vmem:[%s124 + $0x480] sm:$0xff]
    %v3616 = vld [vmem:[%s124 + $0x488] sm:$0xff]
    %v3617 = vld [vmem:[%s124 + $0x490] sm:$0xff]
    %v3618 = vld [vmem:[%s124 + $0x498] sm:$0xff]
    %v3619 = vld [vmem:[%s124 + $0x4a0] sm:$0xff]
    %v3620 = vld [vmem:[%s124 + $0x4a8] sm:$0xff]
    %v3621 = vld [vmem:[%s124 + $0x4b0] sm:$0xff]
    %v3622 = vld [vmem:[%s124 + $0x4b8] sm:$0xff]
    %v3623 = vld [vmem:[%s124 + $0x4c0] sm:$0xff]
    %v3624 = vld [vmem:[%s124 + $0x4c8] sm:$0xff]
    %v3625 = vld [vmem:[%s124 + $0x4d0] sm:$0xff]
    %v3626 = vld [vmem:[%s124 + $0x4d8] sm:$0xff]
    %v3627 = vld [vmem:[%s124 + $0x4e0] sm:$0xff]
    %v3628 = vld [vmem:[%s124 + $0x4e8] sm:$0xff]
    %v3629 = vld [vmem:[%s124 + $0x4f0] sm:$0xff]
    %v3630 = vld [vmem:[%s124 + $0x4f8] sm:$0xff]
    %v3631 = vld [vmem:[%s124 + $0x500] sm:$0xff]
    %v3632 = vld [vmem:[%s124 + $0x508] sm:$0xff]
    %v3633 = vld [vmem:[%s124 + $0x510] sm:$0xff]
    %v3634 = vld [vmem:[%s124 + $0x518] sm:$0xff]
    %v3635 = vld [vmem:[%s124 + $0x520] sm:$0xff]
    %v3636 = vld [vmem:[%s124 + $0x528] sm:$0xff]
    %v3637 = vld [vmem:[%s124 + $0x530] sm:$0xff]
    %v3638 = vld [vmem:[%s124 + $0x538] sm:$0xff]
    %v3639 = vld [vmem:[%s124 + $0x540] sm:$0xff]
    %v3640 = vld [vmem:[%s124 + $0x548] sm:$0xff]
    %v3641 = vld [vmem:[%s124 + $0x550] sm:$0xff]
    %v3642 = vld [vmem:[%s124 + $0x558] sm:$0xff]
    %v3643 = vld [vmem:[%s124 + $0x560] sm:$0xff]
    %v3644 = vld [vmem:[%s124 + $0x568] sm:$0xff]
    %v3645 = vld [vmem:[%s124 + $0x570] sm:$0xff]
    %v3646 = vld [vmem:[%s124 + $0x578] sm:$0xff]
    %v3647 = vld [vmem:[%s124 + $0x580] sm:$0xff]
    %v3648 = vld [vmem:[%s124 + $0x588] sm:$0xff]
    %v3649 = vld [vmem:[%s124 + $0x590] sm:$0xff]
    %v3650 = vld [vmem:[%s124 + $0x598] sm:$0xff]
    %v3651 = vld [vmem:[%s124 + $0x5a0] sm:$0xff]
    %v3652 = vld [vmem:[%s124 + $0x5a8] sm:$0xff]
    %v3653 = vld [vmem:[%s124 + $0x5b0] sm:$0xff]
    %v3654 = vld [vmem:[%s124 + $0x5b8] sm:$0xff]
    %v3655 = vld [vmem:[%s124 + $0x5c0] sm:$0xff]
    %v3656 = vld [vmem:[%s124 + $0x5c8] sm:$0xff]
    %v3657 = vld [vmem:[%s124 + $0x5d0] sm:$0xff]
    %v3658 = vld [vmem:[%s124 + $0x5d8] sm:$0xff]
    %v3659 = vld [vmem:[%s124 + $0x5e0] sm:$0xff]
    %v3660 = vld [vmem:[%s124 + $0x5e8] sm:$0xff]
    %v3661 = vld [vmem:[%s124 + $0x5f0] sm:$0xff]
    %v3662 = vld [vmem:[%s124 + $0x5f8] sm:$0xff]
    %v3663 = vld [vmem:[%s124 + $0x600] sm:$0xff]
    %v3664 = vld [vmem:[%s124 + $0x608] sm:$0xff]
    %v3665 = vld [vmem:[%s124 + $0x610] sm:$0xff]
    %v3666 = vld [vmem:[%s124 + $0x618] sm:$0xff]
    %v3667 = vld [vmem:[%s124 + $0x620] sm:$0xff]
    %v3668 = vld [vmem:[%s124 + $0x628] sm:$0xff]
    %v3669 = vld [vmem:[%s124 + $0x630] sm:$0xff]
    %v3670 = vld [vmem:[%s124 + $0x638] sm:$0xff]
    %v3671 = vld [vmem:[%s124 + $0x640] sm:$0xff]
    %v3672 = vld [vmem:[%s124 + $0x648] sm:$0xff]
    %v3673 = vld [vmem:[%s124 + $0x650] sm:$0xff]
    %v3674 = vld [vmem:[%s124 + $0x658] sm:$0xff]
    %v3675 = vld [vmem:[%s124 + $0x660] sm:$0xff]
    %v3676 = vld [vmem:[%s124 + $0x668] sm:$0xff]
    %v3677 = vld [vmem:[%s124 + $0x670] sm:$0xff]
    %v3678 = vld [vmem:[%s124 + $0x678] sm:$0xff]
    %v3679 = vld [vmem:[%s124 + $0x680] sm:$0xff]
    %v3680 = vld [vmem:[%s124 + $0x688] sm:$0xff]
    %v3681 = vld [vmem:[%s124 + $0x690] sm:$0xff]
    %v3682 = vld [vmem:[%s124 + $0x698] sm:$0xff]
    %v3683 = vld [vmem:[%s124 + $0x6a0] sm:$0xff]
    %v3684 = vld [vmem:[%s124 + $0x6a8] sm:$0xff]
    %v3685 = vld [vmem:[%s124 + $0x6b0] sm:$0xff]
    %v3686 = vld [vmem:[%s124 + $0x6b8] sm:$0xff]
    %v3687 = vld [vmem:[%s124 + $0x6c0] sm:$0xff]
    %v3688 = vld [vmem:[%s124 + $0x6c8] sm:$0xff]
    %v3689 = vld [vmem:[%s124 + $0x6d0] sm:$0xff]
    %v3690 = vld [vmem:[%s124 + $0x6d8] sm:$0xff]
    %v3691 = vld [vmem:[%s124 + $0x6e0] sm:$0xff]
    %v3692 = vld [vmem:[%s124 + $0x6e8] sm:$0xff]
    %v3693 = vld [vmem:[%s124 + $0x6f0] sm:$0xff]
    %v3694 = vld [vmem:[%s124 + $0x6f8] sm:$0xff]
    %v3695 = vld [vmem:[%s124 + $0x700] sm:$0xff]
    %v3696 = vld [vmem:[%s124 + $0x708] sm:$0xff]
    %v3697 = vld [vmem:[%s124 + $0x710] sm:$0xff]
    %v3698 = vld [vmem:[%s124 + $0x718] sm:$0xff]
    %v3699 = vld [vmem:[%s124 + $0x720] sm:$0xff]
    %v3700 = vld [vmem:[%s124 + $0x728] sm:$0xff]
    %v3701 = vld [vmem:[%s124 + $0x730] sm:$0xff]
    %v3702 = vld [vmem:[%s124 + $0x738] sm:$0xff]
    %v3703 = vld [vmem:[%s124 + $0x740] sm:$0xff]
    %v3704 = vld [vmem:[%s124 + $0x748] sm:$0xff]
    %v3705 = vld [vmem:[%s124 + $0x750] sm:$0xff]
    %v3706 = vld [vmem:[%s124 + $0x758] sm:$0xff]
    %v3707 = vld [vmem:[%s124 + $0x760] sm:$0xff]
    %v3708 = vld [vmem:[%s124 + $0x768] sm:$0xff]
    %v3709 = vld [vmem:[%s124 + $0x770] sm:$0xff]
    %v3710 = vld [vmem:[%s124 + $0x778] sm:$0xff]
    %v3711 = vld [vmem:[%s124 + $0x780] sm:$0xff]
    %v3712 = vld [vmem:[%s124 + $0x788] sm:$0xff]
    %v3713 = vld [vmem:[%s124 + $0x790] sm:$0xff]
    %v3714 = vld [vmem:[%s124 + $0x798] sm:$0xff]
    %v3715 = vld [vmem:[%s124 + $0x7a0] sm:$0xff]
    %v3716 = vld [vmem:[%s124 + $0x7a8] sm:$0xff]
    %v3717 = vld [vmem:[%s124 + $0x7b0] sm:$0xff]
    %v3718 = vld [vmem:[%s124 + $0x7b8] sm:$0xff]
    %v3719 = vld [vmem:[%s124 + $0x7c0] sm:$0xff]
    %v3720 = vld [vmem:[%s124 + $0x7c8] sm:$0xff]
    %v3721 = vld [vmem:[%s124 + $0x7d0] sm:$0xff]
    %v3722 = vld [vmem:[%s124 + $0x7d8] sm:$0xff]
    %v3723 = vld [vmem:[%s124 + $0x7e0] sm:$0xff]
    %v3724 = vld [vmem:[%s124 + $0x7e8] sm:$0xff]
    %v3725 = vld [vmem:[%s124 + $0x7f0] sm:$0xff]
    %v3726 = vld [vmem:[%s124 + $0x7f8] sm:$0xff]
    %v3727 = vld [vmem:[%s124 + $0x800] sm:$0xff]
    %v3728 = vld [vmem:[%s124 + $0x808] sm:$0xff]
    %v3729 = vld [vmem:[%s124 + $0x810] sm:$0xff]
    %v3730 = vld [vmem:[%s124 + $0x818] sm:$0xff]
    %v3731 = vld [vmem:[%s124 + $0x820] sm:$0xff]
    %v3732 = vld [vmem:[%s124 + $0x828] sm:$0xff]
    %v3733 = vld [vmem:[%s124 + $0x830] sm:$0xff]
    %v3734 = vld [vmem:[%s124 + $0x838] sm:$0xff]
    %v3735 = vld [vmem:[%s124 + $0x840] sm:$0xff]
    %v3736 = vld [vmem:[%s124 + $0x848] sm:$0xff]
    %v3737 = vld [vmem:[%s124 + $0x850] sm:$0xff]
    %v3738 = vld [vmem:[%s124 + $0x858] sm:$0xff]
    %v3739 = vld [vmem:[%s124 + $0x860] sm:$0xff]
    %v3740 = vld [vmem:[%s124 + $0x868] sm:$0xff]
    %v3741 = vld [vmem:[%s124 + $0x870] sm:$0xff]
    %v3742 = vld [vmem:[%s124 + $0x878] sm:$0xff]
    %v3743 = vld [vmem:[%s124 + $0x880] sm:$0xff]
    %v3744 = vld [vmem:[%s124 + $0x888] sm:$0xff]
    %v3745 = vld [vmem:[%s124 + $0x890] sm:$0xff]
    %v3746 = vld [vmem:[%s124 + $0x898] sm:$0xff]
    %v3747 = vld [vmem:[%s124 + $0x8a0] sm:$0xff]
    %v3748 = vld [vmem:[%s124 + $0x8a8] sm:$0xff]
    %v3749 = vld [vmem:[%s124 + $0x8b0] sm:$0xff]
    %v3750 = vld [vmem:[%s124 + $0x8b8] sm:$0xff]
    %v3751 = vld [vmem:[%s124 + $0x8c0] sm:$0xff]
    %v3752 = vld [vmem:[%s124 + $0x8c8] sm:$0xff]
    %v3753 = vld [vmem:[%s124 + $0x8d0] sm:$0xff]
    %v3754 = vld [vmem:[%s124 + $0x8d8] sm:$0xff]
    %v3755 = vld [vmem:[%s124 + $0x8e0] sm:$0xff]
    %v3756 = vld [vmem:[%s124 + $0x8e8] sm:$0xff]
    %v3757 = vld [vmem:[%s124 + $0x8f0] sm:$0xff]
    %v3758 = vld [vmem:[%s124 + $0x8f8] sm:$0xff]
    %3759 = vmatprep.subr.mxu0 %v3472
    %3760 = vmatpush1.msra.mxu0 %v3471
    %3761 = vmatprep.subr.mxu0 %v3474
    %3762 = vmatpush1.msra.mxu0 %v3473
    %3763 = vmatprep.subr.mxu0 %v3476
    %3764 = vmatpush1.msra.mxu0 %v3475
    %3765 = vmatprep.subr.mxu0 %v3478
    %3766 = vmatpush1.msra.mxu0 %v3477
    %3767 = vmatprep.subr.mxu0 %v3480
    %3768 = vmatpush1.msra.mxu0 %v3479
    %3769 = vmatprep.subr.mxu0 %v3482
    %3770 = vmatpush1.msra.mxu0 %v3481
    %3771 = vmatprep.subr.mxu0 %v3484
    %3772 = vmatpush1.msra.mxu0 %v3483
    %3773 = vmatprep.subr.mxu0 %v3486
    %3774 = vmatpush1.msra.mxu0 %v3485
    %3775 = vmatprep.subr.mxu0 %v3488
    %3776 = vmatpush1.msra.mxu0 %v3487
    %3777 = vmatprep.subr.mxu0 %v3490
    %3778 = vmatpush1.msra.mxu0 %v3489
    %3779 = vmatprep.subr.mxu0 %v3492
    %3780 = vmatpush1.msra.mxu0 %v3491
    %3781 = vmatprep.subr.mxu0 %v3494
    %3782 = vmatpush1.msra.mxu0 %v3493
    %3783 = vmatprep.subr.mxu0 %v3496
    %3784 = vmatpush1.msra.mxu0 %v3495
    %3785 = vmatprep.subr.mxu0 %v3498
    %3786 = vmatpush1.msra.mxu0 %v3497
    %3787 = vmatprep.subr.mxu0 %v3500
    %3788 = vmatpush1.msra.mxu0 %v3499
    %3789 = vmatprep.subr.mxu0 %v3502
    %3790 = vmatpush1.msra.mxu0 %v3501
    %3791 = vmatprep.subr.mxu0 %v3504
    %3792 = vmatpush1.msra.mxu0 %v3503
    %3793 = vmatprep.subr.mxu0 %v3506
    %3794 = vmatpush1.msra.mxu0 %v3505
    %3795 = vmatprep.subr.mxu0 %v3508
    %3796 = vmatpush1.msra.mxu0 %v3507
    %3797 = vmatprep.subr.mxu0 %v3510
    %3798 = vmatpush1.msra.mxu0 %v3509
    %3799 = vmatprep.subr.mxu0 %v3512
    %3800 = vmatpush1.msra.mxu0 %v3511
    %3801 = vmatprep.subr.mxu0 %v3514
    %3802 = vmatpush1.msra.mxu0 %v3513
    %3803 = vmatprep.subr.mxu0 %v3516
    %3804 = vmatpush1.msra.mxu0 %v3515
    %3805 = vmatprep.subr.mxu0 %v3518
    %3806 = vmatpush1.msra.mxu0 %v3517
    %3807 = vmatprep.subr.mxu0 %v3520
    %3808 = vmatpush1.msra.mxu0 %v3519
    %3809 = vmatprep.subr.mxu0 %v3522
    %3810 = vmatpush1.msra.mxu0 %v3521
    %3811 = vmatprep.subr.mxu0 %v3524
    %3812 = vmatpush1.msra.mxu0 %v3523
    %3813 = vmatprep.subr.mxu0 %v3526
    %3814 = vmatpush1.msra.mxu0 %v3525
    %3815 = vmatprep.subr.mxu0 %v3528
    %3816 = vmatpush1.msra.mxu0 %v3527
    %3817 = vmatprep.subr.mxu0 %v3530
    %3818 = vmatpush1.msra.mxu0 %v3529
    %3819 = vmatprep.subr.mxu0 %v3532
    %3820 = vmatpush1.msra.mxu0 %v3531
    %3821 = vmatprep.subr.mxu0 %v3534
    %3822 = vmatpush1.msra.mxu0 %v3533
    %3823 = vmatprep.mubr.f32.mxu0 %v3458
    %3824 = vmatmul.mubr.f32.gmra.mrb[0].mxu0 %v824
    %v3825 = vpop.f32.mrb[0].mxu0
    %v3826 = vadd.f32 0.0, %v3825
    %v3827 = vpop.f32.mrb[0].mxu0
    %v3828 = vadd.f32 0.0, %v3827
    %3829 = vdwg.mxu0
    %3830 = vmatprep.subr.mxu0 %v3536
    %3831 = vmatpush1.msra.mxu0 %v3535
    %3832 = vmatprep.subr.mxu0 %v3538
    %3833 = vmatpush1.msra.mxu0 %v3537
    %3834 = vmatprep.subr.mxu0 %v3540
    %3835 = vmatpush1.msra.mxu0 %v3539
    %3836 = vmatprep.subr.mxu0 %v3542
    %3837 = vmatpush1.msra.mxu0 %v3541
    %3838 = vmatprep.subr.mxu0 %v3544
    %3839 = vmatpush1.msra.mxu0 %v3543
    %3840 = vmatprep.subr.mxu0 %v3546
    %3841 = vmatpush1.msra.mxu0 %v3545
    %3842 = vmatprep.subr.mxu0 %v3548
    %3843 = vmatpush1.msra.mxu0 %v3547
    %3844 = vmatprep.subr.mxu0 %v3550
    %3845 = vmatpush1.msra.mxu0 %v3549
    %3846 = vmatprep.subr.mxu0 %v3552
    %3847 = vmatpush1.msra.mxu0 %v3551
    %3848 = vmatprep.subr.mxu0 %v3554
    %3849 = vmatpush1.msra.mxu0 %v3553
    %3850 = vmatprep.subr.mxu0 %v3556
    %3851 = vmatpush1.msra.mxu0 %v3555
    %3852 = vmatprep.subr.mxu0 %v3558
    %3853 = vmatpush1.msra.mxu0 %v3557
    %3854 = vmatprep.subr.mxu0 %v3560
    %3855 = vmatpush1.msra.mxu0 %v3559
    %3856 = vmatprep.subr.mxu0 %v3562
    %3857 = vmatpush1.msra.mxu0 %v3561
    %3858 = vmatprep.subr.mxu0 %v3564
    %3859 = vmatpush1.msra.mxu0 %v3563
    %3860 = vmatprep.subr.mxu0 %v3566
    %3861 = vmatpush1.msra.mxu0 %v3565
    %3862 = vmatprep.subr.mxu0 %v3568
    %3863 = vmatpush1.msra.mxu0 %v3567
    %3864 = vmatprep.subr.mxu0 %v3570
    %3865 = vmatpush1.msra.mxu0 %v3569
    %3866 = vmatprep.subr.mxu0 %v3572
    %3867 = vmatpush1.msra.mxu0 %v3571
    %3868 = vmatprep.subr.mxu0 %v3574
    %3869 = vmatpush1.msra.mxu0 %v3573
    %3870 = vmatprep.subr.mxu0 %v3576
    %3871 = vmatpush1.msra.mxu0 %v3575
    %3872 = vmatprep.subr.mxu0 %v3578
    %3873 = vmatpush1.msra.mxu0 %v3577
    %3874 = vmatprep.subr.mxu0 %v3580
    %3875 = vmatpush1.msra.mxu0 %v3579
    %3876 = vmatprep.subr.mxu0 %v3582
    %3877 = vmatpush1.msra.mxu0 %v3581
    %3878 = vmatprep.subr.mxu0 %v3584
    %3879 = vmatpush1.msra.mxu0 %v3583
    %3880 = vmatprep.subr.mxu0 %v3586
    %3881 = vmatpush1.msra.mxu0 %v3585
    %3882 = vmatprep.subr.mxu0 %v3588
    %3883 = vmatpush1.msra.mxu0 %v3587
    %3884 = vmatprep.subr.mxu0 %v3590
    %3885 = vmatpush1.msra.mxu0 %v3589
    %3886 = vmatprep.subr.mxu0 %v3592
    %3887 = vmatpush1.msra.mxu0 %v3591
    %3888 = vmatprep.subr.mxu0 %v3594
    %3889 = vmatpush1.msra.mxu0 %v3593
    %3890 = vmatprep.subr.mxu0 %v3596
    %3891 = vmatpush1.msra.mxu0 %v3595
    %3892 = vmatprep.subr.mxu0 %v3598
    %3893 = vmatpush1.msra.mxu0 %v3597
    %3894 = vmatprep.mubr.f32.mxu0 %v3462
    %3895 = vmatmul.mubr.f32.gmra.mrb[0].mxu0 %v3460
    %v3896 = vpop.f32.mrb[0].mxu0
    %v3897 = vadd.f32 %v3826, %v3896
    %v3898 = vpop.f32.mrb[0].mxu0
    %v3899 = vadd.f32 %v3828, %v3898
    %3900 = vdwg.mxu0
    %3901 = vmatprep.subr.mxu0 %v3600
    %3902 = vmatpush1.msra.mxu0 %v3599
    %3903 = vmatprep.subr.mxu0 %v3602
    %3904 = vmatpush1.msra.mxu0 %v3601
    %3905 = vmatprep.subr.mxu0 %v3604
    %3906 = vmatpush1.msra.mxu0 %v3603
    %3907 = vmatprep.subr.mxu0 %v3606
    %3908 = vmatpush1.msra.mxu0 %v3605
    %3909 = vmatprep.subr.mxu0 %v3608
    %3910 = vmatpush1.msra.mxu0 %v3607
    %3911 = vmatprep.subr.mxu0 %v3610
    %3912 = vmatpush1.msra.mxu0 %v3609
    %3913 = vmatprep.subr.mxu0 %v3612
    %3914 = vmatpush1.msra.mxu0 %v3611
    %3915 = vmatprep.subr.mxu0 %v3614
    %3916 = vmatpush1.msra.mxu0 %v3613
    %3917 = vmatprep.subr.mxu0 %v3616
    %3918 = vmatpush1.msra.mxu0 %v3615
    %3919 = vmatprep.subr.mxu0 %v3618
    %3920 = vmatpush1.msra.mxu0 %v3617
    %3921 = vmatprep.subr.mxu0 %v3620
    %3922 = vmatpush1.msra.mxu0 %v3619
    %3923 = vmatprep.subr.mxu0 %v3622
    %3924 = vmatpush1.msra.mxu0 %v3621
    %3925 = vmatprep.subr.mxu0 %v3624
    %3926 = vmatpush1.msra.mxu0 %v3623
    %3927 = vmatprep.subr.mxu0 %v3626
    %3928 = vmatpush1.msra.mxu0 %v3625
    %3929 = vmatprep.subr.mxu0 %v3628
    %3930 = vmatpush1.msra.mxu0 %v3627
    %3931 = vmatprep.subr.mxu0 %v3630
    %3932 = vmatpush1.msra.mxu0 %v3629
    %3933 = vmatprep.subr.mxu0 %v3632
    %3934 = vmatpush1.msra.mxu0 %v3631
    %3935 = vmatprep.subr.mxu0 %v3634
    %3936 = vmatpush1.msra.mxu0 %v3633
    %3937 = vmatprep.subr.mxu0 %v3636
    %3938 = vmatpush1.msra.mxu0 %v3635
    %3939 = vmatprep.subr.mxu0 %v3638
    %3940 = vmatpush1.msra.mxu0 %v3637
    %3941 = vmatprep.subr.mxu0 %v3640
    %3942 = vmatpush1.msra.mxu0 %v3639
    %3943 = vmatprep.subr.mxu0 %v3642
    %3944 = vmatpush1.msra.mxu0 %v3641
    %3945 = vmatprep.subr.mxu0 %v3644
    %3946 = vmatpush1.msra.mxu0 %v3643
    %3947 = vmatprep.subr.mxu0 %v3646
    %3948 = vmatpush1.msra.mxu0 %v3645
    %3949 = vmatprep.subr.mxu0 %v3648
    %3950 = vmatpush1.msra.mxu0 %v3647
    %3951 = vmatprep.subr.mxu0 %v3650
    %3952 = vmatpush1.msra.mxu0 %v3649
    %3953 = vmatprep.subr.mxu0 %v3652
    %3954 = vmatpush1.msra.mxu0 %v3651
    %3955 = vmatprep.subr.mxu0 %v3654
    %3956 = vmatpush1.msra.mxu0 %v3653
    %3957 = vmatprep.subr.mxu0 %v3656
    %3958 = vmatpush1.msra.mxu0 %v3655
    %3959 = vmatprep.subr.mxu0 %v3658
    %3960 = vmatpush1.msra.mxu0 %v3657
    %3961 = vmatprep.subr.mxu0 %v3660
    %3962 = vmatpush1.msra.mxu0 %v3659
    %3963 = vmatprep.subr.mxu0 %v3662
    %3964 = vmatpush1.msra.mxu0 %v3661
    %3965 = vmatprep.mubr.f32.mxu0 %v3465
    %3966 = vmatmul.mubr.f32.gmra.mrb[0].mxu0 %v825
    %v3967 = vpop.f32.mrb[0].mxu0
    %v3968 = vadd.f32 %v3897, %v3967
    %v3969 = vpop.f32.mrb[0].mxu0
    %v3970 = vadd.f32 %v3899, %v3969
    %3971 = vdwg.mxu0
    %3972 = vmatprep.subr.mxu0 %v3664
    %3973 = vmatpush1.msra.mxu0 %v3663
    %3974 = vmatprep.subr.mxu0 %v3666
    %3975 = vmatpush1.msra.mxu0 %v3665
    %3976 = vmatprep.subr.mxu0 %v3668
    %3977 = vmatpush1.msra.mxu0 %v3667
    %3978 = vmatprep.subr.mxu0 %v3670
    %3979 = vmatpush1.msra.mxu0 %v3669
    %3980 = vmatprep.subr.mxu0 %v3672
    %3981 = vmatpush1.msra.mxu0 %v3671
    %3982 = vmatprep.subr.mxu0 %v3674
    %3983 = vmatpush1.msra.mxu0 %v3673
    %3984 = vmatprep.subr.mxu0 %v3676
    %3985 = vmatpush1.msra.mxu0 %v3675
    %3986 = vmatprep.subr.mxu0 %v3678
    %3987 = vmatpush1.msra.mxu0 %v3677
    %3988 = vmatprep.subr.mxu0 %v3680
    %3989 = vmatpush1.msra.mxu0 %v3679
    %3990 = vmatprep.subr.mxu0 %v3682
    %3991 = vmatpush1.msra.mxu0 %v3681
    %3992 = vmatprep.subr.mxu0 %v3684
    %3993 = vmatpush1.msra.mxu0 %v3683
    %3994 = vmatprep.subr.mxu0 %v3686
    %3995 = vmatpush1.msra.mxu0 %v3685
    %3996 = vmatprep.subr.mxu0 %v3688
    %3997 = vmatpush1.msra.mxu0 %v3687
    %3998 = vmatprep.subr.mxu0 %v3690
    %3999 = vmatpush1.msra.mxu0 %v3689
    %4000 = vmatprep.subr.mxu0 %v3692
    %4001 = vmatpush1.msra.mxu0 %v3691
    %4002 = vmatprep.subr.mxu0 %v3694
    %4003 = vmatpush1.msra.mxu0 %v3693
    %4004 = vmatprep.subr.mxu0 %v3696
    %4005 = vmatpush1.msra.mxu0 %v3695
    %4006 = vmatprep.subr.mxu0 %v3698
    %4007 = vmatpush1.msra.mxu0 %v3697
    %4008 = vmatprep.subr.mxu0 %v3700
    %4009 = vmatpush1.msra.mxu0 %v3699
    %4010 = vmatprep.subr.mxu0 %v3702
    %4011 = vmatpush1.msra.mxu0 %v3701
    %4012 = vmatprep.subr.mxu0 %v3704
    %4013 = vmatpush1.msra.mxu0 %v3703
    %4014 = vmatprep.subr.mxu0 %v3706
    %4015 = vmatpush1.msra.mxu0 %v3705
    %4016 = vmatprep.subr.mxu0 %v3708
    %4017 = vmatpush1.msra.mxu0 %v3707
    %4018 = vmatprep.subr.mxu0 %v3710
    %4019 = vmatpush1.msra.mxu0 %v3709
    %4020 = vmatprep.subr.mxu0 %v3712
    %4021 = vmatpush1.msra.mxu0 %v3711
    %4022 = vmatprep.subr.mxu0 %v3714
    %4023 = vmatpush1.msra.mxu0 %v3713
    %4024 = vmatprep.subr.mxu0 %v3716
    %4025 = vmatpush1.msra.mxu0 %v3715
    %4026 = vmatprep.subr.mxu0 %v3718
    %4027 = vmatpush1.msra.mxu0 %v3717
    %4028 = vmatprep.subr.mxu0 %v3720
    %4029 = vmatpush1.msra.mxu0 %v3719
    %4030 = vmatprep.subr.mxu0 %v3722
    %4031 = vmatpush1.msra.mxu0 %v3721
    %4032 = vmatprep.subr.mxu0 %v3724
    %4033 = vmatpush1.msra.mxu0 %v3723
    %4034 = vmatprep.subr.mxu0 %v3726
    %4035 = vmatpush1.msra.mxu0 %v3725
    %4036 = vmatprep.mubr.f32.mxu0 %v3469
    %4037 = vmatmul.mubr.f32.gmra.mrb[0].mxu0 %v3467
    %v4038 = vpop.f32.mrb[0].mxu0
    %v4039 = vadd.f32 %v3968, %v4038
    %v4040 = vpop.f32.mrb[0].mxu0
    %v4041 = vadd.f32 %v3970, %v4040
    %4042 = vdwg.mxu0
    %4043 = vmatprep.subr.mxu0 %v3728
    %4044 = vmatpush1.msra.mxu0 %v3727
    %4045 = vmatprep.subr.mxu0 %v3730
    %4046 = vmatpush1.msra.mxu0 %v3729
    %4047 = vmatprep.subr.mxu0 %v3732
    %4048 = vmatpush1.msra.mxu0 %v3731
    %4049 = vmatprep.subr.mxu0 %v3734
    %4050 = vmatpush1.msra.mxu0 %v3733
    %4051 = vmatprep.subr.mxu0 %v3736
    %4052 = vmatpush1.msra.mxu0 %v3735
    %4053 = vmatprep.subr.mxu0 %v3738
    %4054 = vmatpush1.msra.mxu0 %v3737
    %4055 = vmatprep.subr.mxu0 %v3740
    %4056 = vmatpush1.msra.mxu0 %v3739
    %4057 = vmatprep.subr.mxu0 %v3742
    %4058 = vmatpush1.msra.mxu0 %v3741
    %4059 = vmatprep.subr.mxu0 %v3744
    %4060 = vmatpush1.msra.mxu0 %v3743
    %4061 = vmatprep.subr.mxu0 %v3746
    %4062 = vmatpush1.msra.mxu0 %v3745
    %4063 = vmatprep.subr.mxu0 %v3748
    %4064 = vmatpush1.msra.mxu0 %v3747
    %4065 = vmatprep.subr.mxu0 %v3750
    %4066 = vmatpush1.msra.mxu0 %v3749
    %4067 = vmatprep.subr.mxu0 %v3752
    %4068 = vmatpush1.msra.mxu0 %v3751
    %4069 = vmatprep.subr.mxu0 %v3754
    %4070 = vmatpush1.msra.mxu0 %v3753
    %4071 = vmatprep.subr.mxu0 %v3756
    %4072 = vmatpush1.msra.mxu0 %v3755
    %4073 = vmatprep.subr.mxu0 %v3758
    %4074 = vmatpush1.msra.mxu0 %v3757
    %4075 = vmatprep.subr.mxu0 0.0
    %4076 = vmatpush1.msra.mxu0 0.0
    %4077 = vmatprep.subr.mxu0 0.0
    %4078 = vmatpush1.msra.mxu0 0.0
    %4079 = vmatprep.subr.mxu0 0.0
    %4080 = vmatpush1.msra.mxu0 0.0
    %4081 = vmatprep.subr.mxu0 0.0
    %4082 = vmatpush1.msra.mxu0 0.0
    %4083 = vmatprep.subr.mxu0 0.0
    %4084 = vmatpush1.msra.mxu0 0.0
    %4085 = vmatprep.subr.mxu0 0.0
    %4086 = vmatpush1.msra.mxu0 0.0
    %4087 = vmatprep.subr.mxu0 0.0
    %4088 = vmatpush1.msra.mxu0 0.0
    %4089 = vmatprep.subr.mxu0 0.0
    %4090 = vmatpush1.msra.mxu0 0.0
    %4091 = vmatprep.subr.mxu0 0.0
    %4092 = vmatpush1.msra.mxu0 0.0
    %4093 = vmatprep.subr.mxu0 0.0
    %4094 = vmatpush1.msra.mxu0 0.0
    %4095 = vmatprep.subr.mxu0 0.0
    %4096 = vmatpush1.msra.mxu0 0.0
    %4097 = vmatprep.subr.mxu0 0.0
    %4098 = vmatpush1.msra.mxu0 0.0
    %4099 = vmatprep.subr.mxu0 0.0
    %4100 = vmatpush1.msra.mxu0 0.0
    %4101 = vmatprep.subr.mxu0 0.0
    %4102 = vmatpush1.msra.mxu0 0.0
    %4103 = vmatprep.subr.mxu0 0.0
    %4104 = vmatpush1.msra.mxu0 0.0
    %4105 = vmatprep.subr.mxu0 0.0
    %4106 = vmatpush1.msra.mxu0 0.0
    %4107 = vmatprep.mubr.f32.mxu0 0.0
    %4108 = vmatmul.mubr.f32.gmra.mrb[0].mxu0 %v826
    %v4109 = vpop.f32.mrb[0].mxu0
    %v4110 = vadd.f32 %v4039, %v4109
    %v4111 = vpop.f32.mrb[0].mxu0
    %v4112 = vadd.f32 %v4041, %v4111
    %4113 = vdwg.mxu0
    %v4114 = vadd.f32 %v3439, %v4110
    %v4115 = vadd.f32 %v3440, %v4112
    %s4116 = scalar_lea.hbm %s6, 204800
    // Predicated region
    $region82: #{dqn_forward.1} parent=1 // pred_check
      _
    $region83: #{dqn_forward.1} parent=1 // pred_check_branch
      %4118 = sbr.rel target = $region85
    $region84: #{dqn_forward.1} parent=1 // pred_region
      %4119 = sst [smem:[#allocation18]] [#allocation29]
      %4120 = sst [smem:[#allocation19]] [#allocation28]
    $region85: #{dqn_forward.1} parent=1 // pred_fallthru
      _
    %4122 = shalt.err (0)
    %s4124 = sshll.u32 %s124, 4
    %s4125 = int_to_ptr.vmem [resolvable:$true] %s4124
    %4127 = dma.hbm_to_vmem [thread:$0]  %s4116, 32768, %s4125, %s125
    %s4128 = sshll.u32 %s3454, 4
    %4129 = dma.done [#allocation3], %s4128
    %v4131 = vrot.slane %v941, 2
    %v4133 = vrot.slane %v941, 4
    %v4135 = vld [vmem:[#allocation2] sm:$0xff]
    %v4136 = vld [vmem:[#allocation2 + $0x8] sm:$0xff]
    %v4137 = vld [vmem:[#allocation2 + $0x10] sm:$0xff]
    %v4138 = vld [vmem:[#allocation2 + $0x18] sm:$0xff]
    %v4139 = vld [vmem:[#allocation2 + $0x20] sm:$0xff]
    %v4140 = vld [vmem:[#allocation2 + $0x28] sm:$0xff]
    %v4141 = vld [vmem:[#allocation2 + $0x30] sm:$0xff]
    %v4142 = vld [vmem:[#allocation2 + $0x38] sm:$0xff]
    %v4143 = vld [vmem:[#allocation2 + $0x40] sm:$0xff]
    %v4144 = vld [vmem:[#allocation2 + $0x48] sm:$0xff]
    %v4145 = vld [vmem:[#allocation2 + $0x50] sm:$0xff]
    %v4146 = vld [vmem:[#allocation2 + $0x58] sm:$0xff]
    %v4147 = vld [vmem:[#allocation2 + $0x60] sm:$0xff]
    %v4148 = vld [vmem:[#allocation2 + $0x68] sm:$0xff]
    %v4149 = vld [vmem:[#allocation2 + $0x70] sm:$0xff]
    %v4150 = vld [vmem:[#allocation2 + $0x78] sm:$0xff]
    %v4151 = vld [vmem:[#allocation2 + $0x80] sm:$0xff]
    %v4152 = vld [vmem:[#allocation2 + $0x88] sm:$0xff]
    %v4153 = vld [vmem:[#allocation2 + $0x90] sm:$0xff]
    %v4154 = vld [vmem:[#allocation2 + $0x98] sm:$0xff]
    %v4155 = vld [vmem:[#allocation2 + $0xa0] sm:$0xff]
    %v4156 = vld [vmem:[#allocation2 + $0xa8] sm:$0xff]
    %v4157 = vld [vmem:[#allocation2 + $0xb0] sm:$0xff]
    %v4158 = vld [vmem:[#allocation2 + $0xb8] sm:$0xff]
    %v4159 = vld [vmem:[#allocation2 + $0xc0] sm:$0xff]
    %v4160 = vld [vmem:[#allocation2 + $0xc8] sm:$0xff]
    %v4161 = vld [vmem:[#allocation2 + $0xd0] sm:$0xff]
    %v4162 = vld [vmem:[#allocation2 + $0xd8] sm:$0xff]
    %v4163 = vld [vmem:[#allocation2 + $0xe0] sm:$0xff]
    %v4164 = vld [vmem:[#allocation2 + $0xe8] sm:$0xff]
    %v4165 = vld [vmem:[#allocation2 + $0xf0] sm:$0xff]
    %v4166 = vld [vmem:[#allocation2 + $0xf8] sm:$0xff]
    %v4167 = vld [vmem:[#allocation2 + $0x100] sm:$0xff]
    %v4168 = vld [vmem:[#allocation2 + $0x108] sm:$0xff]
    %v4169 = vld [vmem:[#allocation2 + $0x110] sm:$0xff]
    %v4170 = vld [vmem:[#allocation2 + $0x118] sm:$0xff]
    %v4171 = vld [vmem:[#allocation2 + $0x120] sm:$0xff]
    %v4172 = vld [vmem:[#allocation2 + $0x128] sm:$0xff]
    %v4173 = vld [vmem:[#allocation2 + $0x130] sm:$0xff]
    %v4174 = vld [vmem:[#allocation2 + $0x138] sm:$0xff]
    %v4175 = vld [vmem:[#allocation2 + $0x140] sm:$0xff]
    %v4176 = vld [vmem:[#allocation2 + $0x148] sm:$0xff]
    %v4177 = vld [vmem:[#allocation2 + $0x150] sm:$0xff]
    %v4178 = vld [vmem:[#allocation2 + $0x158] sm:$0xff]
    %v4179 = vld [vmem:[#allocation2 + $0x160] sm:$0xff]
    %v4180 = vld [vmem:[#allocation2 + $0x168] sm:$0xff]
    %v4181 = vld [vmem:[#allocation2 + $0x170] sm:$0xff]
    %v4182 = vld [vmem:[#allocation2 + $0x178] sm:$0xff]
    %v4183 = vld [vmem:[#allocation2 + $0x180] sm:$0xff]
    %v4184 = vld [vmem:[#allocation2 + $0x188] sm:$0xff]
    %v4185 = vld [vmem:[#allocation2 + $0x190] sm:$0xff]
    %v4186 = vld [vmem:[#allocation2 + $0x198] sm:$0xff]
    %v4187 = vld [vmem:[#allocation2 + $0x1a0] sm:$0xff]
    %v4188 = vld [vmem:[#allocation2 + $0x1a8] sm:$0xff]
    %v4189 = vld [vmem:[#allocation2 + $0x1b0] sm:$0xff]
    %v4190 = vld [vmem:[#allocation2 + $0x1b8] sm:$0xff]
    %v4191 = vld [vmem:[#allocation2 + $0x1c0] sm:$0xff]
    %v4192 = vld [vmem:[#allocation2 + $0x1c8] sm:$0xff]
    %v4193 = vld [vmem:[#allocation2 + $0x1d0] sm:$0xff]
    %v4194 = vld [vmem:[#allocation2 + $0x1d8] sm:$0xff]
    %v4195 = vld [vmem:[#allocation2 + $0x1e0] sm:$0xff]
    %v4196 = vld [vmem:[#allocation2 + $0x1e8] sm:$0xff]
    %v4197 = vld [vmem:[#allocation2 + $0x1f0] sm:$0xff]
    %v4198 = vld [vmem:[#allocation2 + $0x1f8] sm:$0xff]
    %v4199 = vld [vmem:[#allocation2 + $0x200] sm:$0xff]
    %v4200 = vld [vmem:[#allocation2 + $0x208] sm:$0xff]
    %v4201 = vld [vmem:[#allocation2 + $0x210] sm:$0xff]
    %v4202 = vld [vmem:[#allocation2 + $0x218] sm:$0xff]
    %v4203 = vld [vmem:[#allocation2 + $0x220] sm:$0xff]
    %v4204 = vld [vmem:[#allocation2 + $0x228] sm:$0xff]
    %v4205 = vld [vmem:[#allocation2 + $0x230] sm:$0xff]
    %v4206 = vld [vmem:[#allocation2 + $0x238] sm:$0xff]
    %v4207 = vld [vmem:[#allocation2 + $0x240] sm:$0xff]
    %v4208 = vld [vmem:[#allocation2 + $0x248] sm:$0xff]
    %v4209 = vld [vmem:[#allocation2 + $0x250] sm:$0xff]
    %v4210 = vld [vmem:[#allocation2 + $0x258] sm:$0xff]
    %v4211 = vld [vmem:[#allocation2 + $0x260] sm:$0xff]
    %v4212 = vld [vmem:[#allocation2 + $0x268] sm:$0xff]
    %v4213 = vld [vmem:[#allocation2 + $0x270] sm:$0xff]
    %v4214 = vld [vmem:[#allocation2 + $0x278] sm:$0xff]
    %v4215 = vld [vmem:[#allocation2 + $0x280] sm:$0xff]
    %v4216 = vld [vmem:[#allocation2 + $0x288] sm:$0xff]
    %v4217 = vld [vmem:[#allocation2 + $0x290] sm:$0xff]
    %v4218 = vld [vmem:[#allocation2 + $0x298] sm:$0xff]
    %v4219 = vld [vmem:[#allocation2 + $0x2a0] sm:$0xff]
    %v4220 = vld [vmem:[#allocation2 + $0x2a8] sm:$0xff]
    %v4221 = vld [vmem:[#allocation2 + $0x2b0] sm:$0xff]
    %v4222 = vld [vmem:[#allocation2 + $0x2b8] sm:$0xff]
    %v4223 = vld [vmem:[#allocation2 + $0x2c0] sm:$0xff]
    %v4224 = vld [vmem:[#allocation2 + $0x2c8] sm:$0xff]
    %v4225 = vld [vmem:[#allocation2 + $0x2d0] sm:$0xff]
    %v4226 = vld [vmem:[#allocation2 + $0x2d8] sm:$0xff]
    %v4227 = vld [vmem:[#allocation2 + $0x2e0] sm:$0xff]
    %v4228 = vld [vmem:[#allocation2 + $0x2e8] sm:$0xff]
    %v4229 = vld [vmem:[#allocation2 + $0x2f0] sm:$0xff]
    %v4230 = vld [vmem:[#allocation2 + $0x2f8] sm:$0xff]
    %4231 = vmatprep.subr.mxu0 %v4136
    %4232 = vmatpush1.msra.mxu0 %v4135
    %4233 = vmatprep.subr.mxu0 %v4138
    %4234 = vmatpush1.msra.mxu0 %v4137
    %4235 = vmatprep.subr.mxu0 %v4140
    %4236 = vmatpush1.msra.mxu0 %v4139
    %4237 = vmatprep.subr.mxu0 %v4142
    %4238 = vmatpush1.msra.mxu0 %v4141
    %4239 = vmatprep.subr.mxu0 %v4144
    %4240 = vmatpush1.msra.mxu0 %v4143
    %4241 = vmatprep.subr.mxu0 %v4146
    %4242 = vmatpush1.msra.mxu0 %v4145
    %4243 = vmatprep.subr.mxu0 %v4148
    %4244 = vmatpush1.msra.mxu0 %v4147
    %4245 = vmatprep.subr.mxu0 %v4150
    %4246 = vmatpush1.msra.mxu0 %v4149
    %4247 = vmatprep.subr.mxu0 %v4152
    %4248 = vmatpush1.msra.mxu0 %v4151
    %4249 = vmatprep.subr.mxu0 %v4154
    %4250 = vmatpush1.msra.mxu0 %v4153
    %4251 = vmatprep.subr.mxu0 %v4156
    %4252 = vmatpush1.msra.mxu0 %v4155
    %4253 = vmatprep.subr.mxu0 %v4158
    %4254 = vmatpush1.msra.mxu0 %v4157
    %4255 = vmatprep.subr.mxu0 %v4160
    %4256 = vmatpush1.msra.mxu0 %v4159
    %4257 = vmatprep.subr.mxu0 %v4162
    %4258 = vmatpush1.msra.mxu0 %v4161
    %4259 = vmatprep.subr.mxu0 %v4164
    %4260 = vmatpush1.msra.mxu0 %v4163
    %4261 = vmatprep.subr.mxu0 %v4166
    %4262 = vmatpush1.msra.mxu0 %v4165
    %4263 = vmatprep.subr.mxu0 %v4168
    %4264 = vmatpush1.msra.mxu0 %v4167
    %4265 = vmatprep.subr.mxu0 %v4170
    %4266 = vmatpush1.msra.mxu0 %v4169
    %4267 = vmatprep.subr.mxu0 %v4172
    %4268 = vmatpush1.msra.mxu0 %v4171
    %4269 = vmatprep.subr.mxu0 %v4174
    %4270 = vmatpush1.msra.mxu0 %v4173
    %4271 = vmatprep.subr.mxu0 %v4176
    %4272 = vmatpush1.msra.mxu0 %v4175
    %4273 = vmatprep.subr.mxu0 %v4178
    %4274 = vmatpush1.msra.mxu0 %v4177
    %4275 = vmatprep.subr.mxu0 %v4180
    %4276 = vmatpush1.msra.mxu0 %v4179
    %4277 = vmatprep.subr.mxu0 %v4182
    %4278 = vmatpush1.msra.mxu0 %v4181
    %4279 = vmatprep.subr.mxu0 %v4184
    %4280 = vmatpush1.msra.mxu0 %v4183
    %4281 = vmatprep.subr.mxu0 %v4186
    %4282 = vmatpush1.msra.mxu0 %v4185
    %4283 = vmatprep.subr.mxu0 %v4188
    %4284 = vmatpush1.msra.mxu0 %v4187
    %4285 = vmatprep.subr.mxu0 %v4190
    %4286 = vmatpush1.msra.mxu0 %v4189
    %4287 = vmatprep.subr.mxu0 %v4192
    %4288 = vmatpush1.msra.mxu0 %v4191
    %4289 = vmatprep.subr.mxu0 %v4194
    %4290 = vmatpush1.msra.mxu0 %v4193
    %4291 = vmatprep.subr.mxu0 %v4196
    %4292 = vmatpush1.msra.mxu0 %v4195
    %4293 = vmatprep.subr.mxu0 %v4198
    %4294 = vmatpush1.msra.mxu0 %v4197
    %4295 = vmatprep.mubr.f32.mxu0 %v4131
    %4296 = vmatmul.mubr.f32.gmra.mrb[0].mxu0 %v941
    %v4297 = vpop.f32.mrb[0].mxu0
    %v4298 = vadd.f32 0.0, %v4297
    %v4299 = vpop.f32.mrb[0].mxu0
    %v4300 = vadd.f32 0.0, %v4299
    %4301 = vdwg.mxu0
    %4302 = vmatprep.subr.mxu0 %v4200
    %4303 = vmatpush1.msra.mxu0 %v4199
    %4304 = vmatprep.subr.mxu0 %v4202
    %4305 = vmatpush1.msra.mxu0 %v4201
    %4306 = vmatprep.subr.mxu0 %v4204
    %4307 = vmatpush1.msra.mxu0 %v4203
    %4308 = vmatprep.subr.mxu0 %v4206
    %4309 = vmatpush1.msra.mxu0 %v4205
    %4310 = vmatprep.subr.mxu0 %v4208
    %4311 = vmatpush1.msra.mxu0 %v4207
    %4312 = vmatprep.subr.mxu0 %v4210
    %4313 = vmatpush1.msra.mxu0 %v4209
    %4314 = vmatprep.subr.mxu0 %v4212
    %4315 = vmatpush1.msra.mxu0 %v4211
    %4316 = vmatprep.subr.mxu0 %v4214
    %4317 = vmatpush1.msra.mxu0 %v4213
    %4318 = vmatprep.subr.mxu0 %v4216
    %4319 = vmatpush1.msra.mxu0 %v4215
    %4320 = vmatprep.subr.mxu0 %v4218
    %4321 = vmatpush1.msra.mxu0 %v4217
    %4322 = vmatprep.subr.mxu0 %v4220
    %4323 = vmatpush1.msra.mxu0 %v4219
    %4324 = vmatprep.subr.mxu0 %v4222
    %4325 = vmatpush1.msra.mxu0 %v4221
    %4326 = vmatprep.subr.mxu0 %v4224
    %4327 = vmatpush1.msra.mxu0 %v4223
    %4328 = vmatprep.subr.mxu0 %v4226
    %4329 = vmatpush1.msra.mxu0 %v4225
    %4330 = vmatprep.subr.mxu0 %v4228
    %4331 = vmatpush1.msra.mxu0 %v4227
    %4332 = vmatprep.subr.mxu0 %v4230
    %4333 = vmatpush1.msra.mxu0 %v4229
    %4334 = vmatprep.subr.mxu0 0.0
    %4335 = vmatpush1.msra.mxu0 0.0
    %4336 = vmatprep.subr.mxu0 0.0
    %4337 = vmatpush1.msra.mxu0 0.0
    %4338 = vmatprep.subr.mxu0 0.0
    %4339 = vmatpush1.msra.mxu0 0.0
    %4340 = vmatprep.subr.mxu0 0.0
    %4341 = vmatpush1.msra.mxu0 0.0
    %4342 = vmatprep.subr.mxu0 0.0
    %4343 = vmatpush1.msra.mxu0 0.0
    %4344 = vmatprep.subr.mxu0 0.0
    %4345 = vmatpush1.msra.mxu0 0.0
    %4346 = vmatprep.subr.mxu0 0.0
    %4347 = vmatpush1.msra.mxu0 0.0
    %4348 = vmatprep.subr.mxu0 0.0
    %4349 = vmatpush1.msra.mxu0 0.0
    %4350 = vmatprep.subr.mxu0 0.0
    %4351 = vmatpush1.msra.mxu0 0.0
    %4352 = vmatprep.subr.mxu0 0.0
    %4353 = vmatpush1.msra.mxu0 0.0
    %4354 = vmatprep.subr.mxu0 0.0
    %4355 = vmatpush1.msra.mxu0 0.0
    %4356 = vmatprep.subr.mxu0 0.0
    %4357 = vmatpush1.msra.mxu0 0.0
    %4358 = vmatprep.subr.mxu0 0.0
    %4359 = vmatpush1.msra.mxu0 0.0
    %4360 = vmatprep.subr.mxu0 0.0
    %4361 = vmatpush1.msra.mxu0 0.0
    %4362 = vmatprep.subr.mxu0 0.0
    %4363 = vmatpush1.msra.mxu0 0.0
    %4364 = vmatprep.subr.mxu0 0.0
    %4365 = vmatpush1.msra.mxu0 0.0
    %4366 = vmatprep.mubr.f32.mxu0 0.0
    %4367 = vmatmul.mubr.f32.gmra.mrb[0].mxu0 %v4133
    %v4368 = vpop.f32.mrb[0].mxu0
    %v4369 = vadd.f32 %v4298, %v4368
    %v4370 = vpop.f32.mrb[0].mxu0
    %v4371 = vadd.f32 %v4300, %v4370
    %4372 = vdwg.mxu0
    %v4373 = vadd.f32 %v4114, %v4369
    %v4374 = vadd.f32 %v4115, %v4371
    %v4376 = vrot.slane %v1015, 2
    %v4378 = vrot.slane %v1015, 4
    %v4380 = vld [vmem:[#allocation2 + $0x300] sm:$0xff]
    %v4381 = vld [vmem:[#allocation2 + $0x308] sm:$0xff]
    %v4382 = vld [vmem:[#allocation2 + $0x310] sm:$0xff]
    %v4383 = vld [vmem:[#allocation2 + $0x318] sm:$0xff]
    %v4384 = vld [vmem:[#allocation2 + $0x320] sm:$0xff]
    %v4385 = vld [vmem:[#allocation2 + $0x328] sm:$0xff]
    %v4386 = vld [vmem:[#allocation2 + $0x330] sm:$0xff]
    %v4387 = vld [vmem:[#allocation2 + $0x338] sm:$0xff]
    %v4388 = vld [vmem:[#allocation2 + $0x340] sm:$0xff]
    %v4389 = vld [vmem:[#allocation2 + $0x348] sm:$0xff]
    %v4390 = vld [vmem:[#allocation2 + $0x350] sm:$0xff]
    %v4391 = vld [vmem:[#allocation2 + $0x358] sm:$0xff]
    %v4392 = vld [vmem:[#allocation2 + $0x360] sm:$0xff]
    %v4393 = vld [vmem:[#allocation2 + $0x368] sm:$0xff]
    %v4394 = vld [vmem:[#allocation2 + $0x370] sm:$0xff]
    %v4395 = vld [vmem:[#allocation2 + $0x378] sm:$0xff]
    %v4396 = vld [vmem:[#allocation2 + $0x380] sm:$0xff]
    %v4397 = vld [vmem:[#allocation2 + $0x388] sm:$0xff]
    %v4398 = vld [vmem:[#allocation2 + $0x390] sm:$0xff]
    %v4399 = vld [vmem:[#allocation2 + $0x398] sm:$0xff]
    %v4400 = vld [vmem:[#allocation2 + $0x3a0] sm:$0xff]
    %v4401 = vld [vmem:[#allocation2 + $0x3a8] sm:$0xff]
    %v4402 = vld [vmem:[#allocation2 + $0x3b0] sm:$0xff]
    %v4403 = vld [vmem:[#allocation2 + $0x3b8] sm:$0xff]
    %v4404 = vld [vmem:[#allocation2 + $0x3c0] sm:$0xff]
    %v4405 = vld [vmem:[#allocation2 + $0x3c8] sm:$0xff]
    %v4406 = vld [vmem:[#allocation2 + $0x3d0] sm:$0xff]
    %v4407 = vld [vmem:[#allocation2 + $0x3d8] sm:$0xff]
    %v4408 = vld [vmem:[#allocation2 + $0x3e0] sm:$0xff]
    %v4409 = vld [vmem:[#allocation2 + $0x3e8] sm:$0xff]
    %v4410 = vld [vmem:[#allocation2 + $0x3f0] sm:$0xff]
    %v4411 = vld [vmem:[#allocation2 + $0x3f8] sm:$0xff]
    %v4412 = vld [vmem:[#allocation2 + $0x400] sm:$0xff]
    %v4413 = vld [vmem:[#allocation2 + $0x408] sm:$0xff]
    %v4414 = vld [vmem:[#allocation2 + $0x410] sm:$0xff]
    %v4415 = vld [vmem:[#allocation2 + $0x418] sm:$0xff]
    %v4416 = vld [vmem:[#allocation2 + $0x420] sm:$0xff]
    %v4417 = vld [vmem:[#allocation2 + $0x428] sm:$0xff]
    %v4418 = vld [vmem:[#allocation2 + $0x430] sm:$0xff]
    %v4419 = vld [vmem:[#allocation2 + $0x438] sm:$0xff]
    %v4420 = vld [vmem:[#allocation2 + $0x440] sm:$0xff]
    %v4421 = vld [vmem:[#allocation2 + $0x448] sm:$0xff]
    %v4422 = vld [vmem:[#allocation2 + $0x450] sm:$0xff]
    %v4423 = vld [vmem:[#allocation2 + $0x458] sm:$0xff]
    %v4424 = vld [vmem:[#allocation2 + $0x460] sm:$0xff]
    %v4425 = vld [vmem:[#allocation2 + $0x468] sm:$0xff]
    %v4426 = vld [vmem:[#allocation2 + $0x470] sm:$0xff]
    %v4427 = vld [vmem:[#allocation2 + $0x478] sm:$0xff]
    %v4428 = vld [vmem:[#allocation2 + $0x480] sm:$0xff]
    %v4429 = vld [vmem:[#allocation2 + $0x488] sm:$0xff]
    %v4430 = vld [vmem:[#allocation2 + $0x490] sm:$0xff]
    %v4431 = vld [vmem:[#allocation2 + $0x498] sm:$0xff]
    %v4432 = vld [vmem:[#allocation2 + $0x4a0] sm:$0xff]
    %v4433 = vld [vmem:[#allocation2 + $0x4a8] sm:$0xff]
    %v4434 = vld [vmem:[#allocation2 + $0x4b0] sm:$0xff]
    %v4435 = vld [vmem:[#allocation2 + $0x4b8] sm:$0xff]
    %v4436 = vld [vmem:[#allocation2 + $0x4c0] sm:$0xff]
    %v4437 = vld [vmem:[#allocation2 + $0x4c8] sm:$0xff]
    %v4438 = vld [vmem:[#allocation2 + $0x4d0] sm:$0xff]
    %v4439 = vld [vmem:[#allocation2 + $0x4d8] sm:$0xff]
    %v4440 = vld [vmem:[#allocation2 + $0x4e0] sm:$0xff]
    %v4441 = vld [vmem:[#allocation2 + $0x4e8] sm:$0xff]
    %v4442 = vld [vmem:[#allocation2 + $0x4f0] sm:$0xff]
    %v4443 = vld [vmem:[#allocation2 + $0x4f8] sm:$0xff]
    %v4444 = vld [vmem:[#allocation2 + $0x500] sm:$0xff]
    %v4445 = vld [vmem:[#allocation2 + $0x508] sm:$0xff]
    %v4446 = vld [vmem:[#allocation2 + $0x510] sm:$0xff]
    %v4447 = vld [vmem:[#allocation2 + $0x518] sm:$0xff]
    %v4448 = vld [vmem:[#allocation2 + $0x520] sm:$0xff]
    %v4449 = vld [vmem:[#allocation2 + $0x528] sm:$0xff]
    %v4450 = vld [vmem:[#allocation2 + $0x530] sm:$0xff]
    %v4451 = vld [vmem:[#allocation2 + $0x538] sm:$0xff]
    %v4452 = vld [vmem:[#allocation2 + $0x540] sm:$0xff]
    %v4453 = vld [vmem:[#allocation2 + $0x548] sm:$0xff]
    %v4454 = vld [vmem:[#allocation2 + $0x550] sm:$0xff]
    %v4455 = vld [vmem:[#allocation2 + $0x558] sm:$0xff]
    %v4456 = vld [vmem:[#allocation2 + $0x560] sm:$0xff]
    %v4457 = vld [vmem:[#allocation2 + $0x568] sm:$0xff]
    %v4458 = vld [vmem:[#allocation2 + $0x570] sm:$0xff]
    %v4459 = vld [vmem:[#allocation2 + $0x578] sm:$0xff]
    %v4460 = vld [vmem:[#allocation2 + $0x580] sm:$0xff]
    %v4461 = vld [vmem:[#allocation2 + $0x588] sm:$0xff]
    %v4462 = vld [vmem:[#allocation2 + $0x590] sm:$0xff]
    %v4463 = vld [vmem:[#allocation2 + $0x598] sm:$0xff]
    %v4464 = vld [vmem:[#allocation2 + $0x5a0] sm:$0xff]
    %v4465 = vld [vmem:[#allocation2 + $0x5a8] sm:$0xff]
    %v4466 = vld [vmem:[#allocation2 + $0x5b0] sm:$0xff]
    %v4467 = vld [vmem:[#allocation2 + $0x5b8] sm:$0xff]
    %v4468 = vld [vmem:[#allocation2 + $0x5c0] sm:$0xff]
    %v4469 = vld [vmem:[#allocation2 + $0x5c8] sm:$0xff]
    %v4470 = vld [vmem:[#allocation2 + $0x5d0] sm:$0xff]
    %v4471 = vld [vmem:[#allocation2 + $0x5d8] sm:$0xff]
    %v4472 = vld [vmem:[#allocation2 + $0x5e0] sm:$0xff]
    %v4473 = vld [vmem:[#allocation2 + $0x5e8] sm:$0xff]
    %v4474 = vld [vmem:[#allocation2 + $0x5f0] sm:$0xff]
    %v4475 = vld [vmem:[#allocation2 + $0x5f8] sm:$0xff]
    %4476 = vmatprep.subr.mxu0 %v4381
    %4477 = vmatpush1.msra.mxu0 %v4380
    %4478 = vmatprep.subr.mxu0 %v4383
    %4479 = vmatpush1.msra.mxu0 %v4382
    %4480 = vmatprep.subr.mxu0 %v4385
    %4481 = vmatpush1.msra.mxu0 %v4384
    %4482 = vmatprep.subr.mxu0 %v4387
    %4483 = vmatpush1.msra.mxu0 %v4386
    %4484 = vmatprep.subr.mxu0 %v4389
    %4485 = vmatpush1.msra.mxu0 %v4388
    %4486 = vmatprep.subr.mxu0 %v4391
    %4487 = vmatpush1.msra.mxu0 %v4390
    %4488 = vmatprep.subr.mxu0 %v4393
    %4489 = vmatpush1.msra.mxu0 %v4392
    %4490 = vmatprep.subr.mxu0 %v4395
    %4491 = vmatpush1.msra.mxu0 %v4394
    %4492 = vmatprep.subr.mxu0 %v4397
    %4493 = vmatpush1.msra.mxu0 %v4396
    %4494 = vmatprep.subr.mxu0 %v4399
    %4495 = vmatpush1.msra.mxu0 %v4398
    %4496 = vmatprep.subr.mxu0 %v4401
    %4497 = vmatpush1.msra.mxu0 %v4400
    %4498 = vmatprep.subr.mxu0 %v4403
    %4499 = vmatpush1.msra.mxu0 %v4402
    %4500 = vmatprep.subr.mxu0 %v4405
    %4501 = vmatpush1.msra.mxu0 %v4404
    %4502 = vmatprep.subr.mxu0 %v4407
    %4503 = vmatpush1.msra.mxu0 %v4406
    %4504 = vmatprep.subr.mxu0 %v4409
    %4505 = vmatpush1.msra.mxu0 %v4408
    %4506 = vmatprep.subr.mxu0 %v4411
    %4507 = vmatpush1.msra.mxu0 %v4410
    %4508 = vmatprep.subr.mxu0 %v4413
    %4509 = vmatpush1.msra.mxu0 %v4412
    %4510 = vmatprep.subr.mxu0 %v4415
    %4511 = vmatpush1.msra.mxu0 %v4414
    %4512 = vmatprep.subr.mxu0 %v4417
    %4513 = vmatpush1.msra.mxu0 %v4416
    %4514 = vmatprep.subr.mxu0 %v4419
    %4515 = vmatpush1.msra.mxu0 %v4418
    %4516 = vmatprep.subr.mxu0 %v4421
    %4517 = vmatpush1.msra.mxu0 %v4420
    %4518 = vmatprep.subr.mxu0 %v4423
    %4519 = vmatpush1.msra.mxu0 %v4422
    %4520 = vmatprep.subr.mxu0 %v4425
    %4521 = vmatpush1.msra.mxu0 %v4424
    %4522 = vmatprep.subr.mxu0 %v4427
    %4523 = vmatpush1.msra.mxu0 %v4426
    %4524 = vmatprep.subr.mxu0 %v4429
    %4525 = vmatpush1.msra.mxu0 %v4428
    %4526 = vmatprep.subr.mxu0 %v4431
    %4527 = vmatpush1.msra.mxu0 %v4430
    %4528 = vmatprep.subr.mxu0 %v4433
    %4529 = vmatpush1.msra.mxu0 %v4432
    %4530 = vmatprep.subr.mxu0 %v4435
    %4531 = vmatpush1.msra.mxu0 %v4434
    %4532 = vmatprep.subr.mxu0 %v4437
    %4533 = vmatpush1.msra.mxu0 %v4436
    %4534 = vmatprep.subr.mxu0 %v4439
    %4535 = vmatpush1.msra.mxu0 %v4438
    %4536 = vmatprep.subr.mxu0 %v4441
    %4537 = vmatpush1.msra.mxu0 %v4440
    %4538 = vmatprep.subr.mxu0 %v4443
    %4539 = vmatpush1.msra.mxu0 %v4442
    %4540 = vmatprep.mubr.f32.mxu0 %v4376
    %4541 = vmatmul.mubr.f32.gmra.mrb[0].mxu0 %v1015
    %v4542 = vpop.f32.mrb[0].mxu0
    %v4543 = vadd.f32 0.0, %v4542
    %v4544 = vpop.f32.mrb[0].mxu0
    %v4545 = vadd.f32 0.0, %v4544
    %4546 = vdwg.mxu0
    %4547 = vmatprep.subr.mxu0 %v4445
    %4548 = vmatpush1.msra.mxu0 %v4444
    %4549 = vmatprep.subr.mxu0 %v4447
    %4550 = vmatpush1.msra.mxu0 %v4446
    %4551 = vmatprep.subr.mxu0 %v4449
    %4552 = vmatpush1.msra.mxu0 %v4448
    %4553 = vmatprep.subr.mxu0 %v4451
    %4554 = vmatpush1.msra.mxu0 %v4450
    %4555 = vmatprep.subr.mxu0 %v4453
    %4556 = vmatpush1.msra.mxu0 %v4452
    %4557 = vmatprep.subr.mxu0 %v4455
    %4558 = vmatpush1.msra.mxu0 %v4454
    %4559 = vmatprep.subr.mxu0 %v4457
    %4560 = vmatpush1.msra.mxu0 %v4456
    %4561 = vmatprep.subr.mxu0 %v4459
    %4562 = vmatpush1.msra.mxu0 %v4458
    %4563 = vmatprep.subr.mxu0 %v4461
    %4564 = vmatpush1.msra.mxu0 %v4460
    %4565 = vmatprep.subr.mxu0 %v4463
    %4566 = vmatpush1.msra.mxu0 %v4462
    %4567 = vmatprep.subr.mxu0 %v4465
    %4568 = vmatpush1.msra.mxu0 %v4464
    %4569 = vmatprep.subr.mxu0 %v4467
    %4570 = vmatpush1.msra.mxu0 %v4466
    %4571 = vmatprep.subr.mxu0 %v4469
    %4572 = vmatpush1.msra.mxu0 %v4468
    %4573 = vmatprep.subr.mxu0 %v4471
    %4574 = vmatpush1.msra.mxu0 %v4470
    %4575 = vmatprep.subr.mxu0 %v4473
    %4576 = vmatpush1.msra.mxu0 %v4472
    %4577 = vmatprep.subr.mxu0 %v4475
    %4578 = vmatpush1.msra.mxu0 %v4474
    %4579 = vmatprep.subr.mxu0 0.0
    %4580 = vmatpush1.msra.mxu0 0.0
    %4581 = vmatprep.subr.mxu0 0.0
    %4582 = vmatpush1.msra.mxu0 0.0
    %4583 = vmatprep.subr.mxu0 0.0
    %4584 = vmatpush1.msra.mxu0 0.0
    %4585 = vmatprep.subr.mxu0 0.0
    %4586 = vmatpush1.msra.mxu0 0.0
    %4587 = vmatprep.subr.mxu0 0.0
    %4588 = vmatpush1.msra.mxu0 0.0
    %4589 = vmatprep.subr.mxu0 0.0
    %4590 = vmatpush1.msra.mxu0 0.0
    %4591 = vmatprep.subr.mxu0 0.0
    %4592 = vmatpush1.msra.mxu0 0.0
    %4593 = vmatprep.subr.mxu0 0.0
    %4594 = vmatpush1.msra.mxu0 0.0
    %4595 = vmatprep.subr.mxu0 0.0
    %4596 = vmatpush1.msra.mxu0 0.0
    %4597 = vmatprep.subr.mxu0 0.0
    %4598 = vmatpush1.msra.mxu0 0.0
    %4599 = vmatprep.subr.mxu0 0.0
    %4600 = vmatpush1.msra.mxu0 0.0
    %4601 = vmatprep.subr.mxu0 0.0
    %4602 = vmatpush1.msra.mxu0 0.0
    %4603 = vmatprep.subr.mxu0 0.0
    %4604 = vmatpush1.msra.mxu0 0.0
    %4605 = vmatprep.subr.mxu0 0.0
    %4606 = vmatpush1.msra.mxu0 0.0
    %4607 = vmatprep.subr.mxu0 0.0
    %4608 = vmatpush1.msra.mxu0 0.0
    %4609 = vmatprep.subr.mxu0 0.0
    %4610 = vmatpush1.msra.mxu0 0.0
    %4611 = vmatprep.mubr.f32.mxu0 0.0
    %4612 = vmatmul.mubr.f32.gmra.mrb[0].mxu0 %v4378
    %v4613 = vpop.f32.mrb[0].mxu0
    %v4614 = vadd.f32 %v4543, %v4613
    %v4615 = vpop.f32.mrb[0].mxu0
    %v4616 = vadd.f32 %v4545, %v4615
    %4617 = vdwg.mxu0
    %v4618 = vadd.f32 %v4373, %v4614
    %v4619 = vadd.f32 %v4374, %v4616
    %v4621 = vrot.slane %v1089, 2
    %v4623 = vrot.slane %v1089, 4
    %v4625 = vld [vmem:[#allocation2 + $0x600] sm:$0xff]
    %v4626 = vld [vmem:[#allocation2 + $0x608] sm:$0xff]
    %v4627 = vld [vmem:[#allocation2 + $0x610] sm:$0xff]
    %v4628 = vld [vmem:[#allocation2 + $0x618] sm:$0xff]
    %v4629 = vld [vmem:[#allocation2 + $0x620] sm:$0xff]
    %v4630 = vld [vmem:[#allocation2 + $0x628] sm:$0xff]
    %v4631 = vld [vmem:[#allocation2 + $0x630] sm:$0xff]
    %v4632 = vld [vmem:[#allocation2 + $0x638] sm:$0xff]
    %v4633 = vld [vmem:[#allocation2 + $0x640] sm:$0xff]
    %v4634 = vld [vmem:[#allocation2 + $0x648] sm:$0xff]
    %v4635 = vld [vmem:[#allocation2 + $0x650] sm:$0xff]
    %v4636 = vld [vmem:[#allocation2 + $0x658] sm:$0xff]
    %v4637 = vld [vmem:[#allocation2 + $0x660] sm:$0xff]
    %v4638 = vld [vmem:[#allocation2 + $0x668] sm:$0xff]
    %v4639 = vld [vmem:[#allocation2 + $0x670] sm:$0xff]
    %v4640 = vld [vmem:[#allocation2 + $0x678] sm:$0xff]
    %v4641 = vld [vmem:[#allocation2 + $0x680] sm:$0xff]
    %v4642 = vld [vmem:[#allocation2 + $0x688] sm:$0xff]
    %v4643 = vld [vmem:[#allocation2 + $0x690] sm:$0xff]
    %v4644 = vld [vmem:[#allocation2 + $0x698] sm:$0xff]
    %v4645 = vld [vmem:[#allocation2 + $0x6a0] sm:$0xff]
    %v4646 = vld [vmem:[#allocation2 + $0x6a8] sm:$0xff]
    %v4647 = vld [vmem:[#allocation2 + $0x6b0] sm:$0xff]
    %v4648 = vld [vmem:[#allocation2 + $0x6b8] sm:$0xff]
    %v4649 = vld [vmem:[#allocation2 + $0x6c0] sm:$0xff]
    %v4650 = vld [vmem:[#allocation2 + $0x6c8] sm:$0xff]
    %v4651 = vld [vmem:[#allocation2 + $0x6d0] sm:$0xff]
    %v4652 = vld [vmem:[#allocation2 + $0x6d8] sm:$0xff]
    %v4653 = vld [vmem:[#allocation2 + $0x6e0] sm:$0xff]
    %v4654 = vld [vmem:[#allocation2 + $0x6e8] sm:$0xff]
    %v4655 = vld [vmem:[#allocation2 + $0x6f0] sm:$0xff]
    %v4656 = vld [vmem:[#allocation2 + $0x6f8] sm:$0xff]
    %v4657 = vld [vmem:[#allocation2 + $0x700] sm:$0xff]
    %v4658 = vld [vmem:[#allocation2 + $0x708] sm:$0xff]
    %v4659 = vld [vmem:[#allocation2 + $0x710] sm:$0xff]
    %v4660 = vld [vmem:[#allocation2 + $0x718] sm:$0xff]
    %v4661 = vld [vmem:[#allocation2 + $0x720] sm:$0xff]
    %v4662 = vld [vmem:[#allocation2 + $0x728] sm:$0xff]
    %v4663 = vld [vmem:[#allocation2 + $0x730] sm:$0xff]
    %v4664 = vld [vmem:[#allocation2 + $0x738] sm:$0xff]
    %v4665 = vld [vmem:[#allocation2 + $0x740] sm:$0xff]
    %v4666 = vld [vmem:[#allocation2 + $0x748] sm:$0xff]
    %v4667 = vld [vmem:[#allocation2 + $0x750] sm:$0xff]
    %v4668 = vld [vmem:[#allocation2 + $0x758] sm:$0xff]
    %v4669 = vld [vmem:[#allocation2 + $0x760] sm:$0xff]
    %v4670 = vld [vmem:[#allocation2 + $0x768] sm:$0xff]
    %v4671 = vld [vmem:[#allocation2 + $0x770] sm:$0xff]
    %v4672 = vld [vmem:[#allocation2 + $0x778] sm:$0xff]
    %v4673 = vld [vmem:[#allocation2 + $0x780] sm:$0xff]
    %v4674 = vld [vmem:[#allocation2 + $0x788] sm:$0xff]
    %v4675 = vld [vmem:[#allocation2 + $0x790] sm:$0xff]
    %v4676 = vld [vmem:[#allocation2 + $0x798] sm:$0xff]
    %v4677 = vld [vmem:[#allocation2 + $0x7a0] sm:$0xff]
    %v4678 = vld [vmem:[#allocation2 + $0x7a8] sm:$0xff]
    %v4679 = vld [vmem:[#allocation2 + $0x7b0] sm:$0xff]
    %v4680 = vld [vmem:[#allocation2 + $0x7b8] sm:$0xff]
    %v4681 = vld [vmem:[#allocation2 + $0x7c0] sm:$0xff]
    %v4682 = vld [vmem:[#allocation2 + $0x7c8] sm:$0xff]
    %v4683 = vld [vmem:[#allocation2 + $0x7d0] sm:$0xff]
    %v4684 = vld [vmem:[#allocation2 + $0x7d8] sm:$0xff]
    %v4685 = vld [vmem:[#allocation2 + $0x7e0] sm:$0xff]
    %v4686 = vld [vmem:[#allocation2 + $0x7e8] sm:$0xff]
    %v4687 = vld [vmem:[#allocation2 + $0x7f0] sm:$0xff]
    %v4688 = vld [vmem:[#allocation2 + $0x7f8] sm:$0xff]
    %v4689 = vld [vmem:[#allocation2 + $0x800] sm:$0xff]
    %v4690 = vld [vmem:[#allocation2 + $0x808] sm:$0xff]
    %v4691 = vld [vmem:[#allocation2 + $0x810] sm:$0xff]
    %v4692 = vld [vmem:[#allocation2 + $0x818] sm:$0xff]
    %v4693 = vld [vmem:[#allocation2 + $0x820] sm:$0xff]
    %v4694 = vld [vmem:[#allocation2 + $0x828] sm:$0xff]
    %v4695 = vld [vmem:[#allocation2 + $0x830] sm:$0xff]
    %v4696 = vld [vmem:[#allocation2 + $0x838] sm:$0xff]
    %v4697 = vld [vmem:[#allocation2 + $0x840] sm:$0xff]
    %v4698 = vld [vmem:[#allocation2 + $0x848] sm:$0xff]
    %v4699 = vld [vmem:[#allocation2 + $0x850] sm:$0xff]
    %v4700 = vld [vmem:[#allocation2 + $0x858] sm:$0xff]
    %v4701 = vld [vmem:[#allocation2 + $0x860] sm:$0xff]
    %v4702 = vld [vmem:[#allocation2 + $0x868] sm:$0xff]
    %v4703 = vld [vmem:[#allocation2 + $0x870] sm:$0xff]
    %v4704 = vld [vmem:[#allocation2 + $0x878] sm:$0xff]
    %v4705 = vld [vmem:[#allocation2 + $0x880] sm:$0xff]
    %v4706 = vld [vmem:[#allocation2 + $0x888] sm:$0xff]
    %v4707 = vld [vmem:[#allocation2 + $0x890] sm:$0xff]
    %v4708 = vld [vmem:[#allocation2 + $0x898] sm:$0xff]
    %v4709 = vld [vmem:[#allocation2 + $0x8a0] sm:$0xff]
    %v4710 = vld [vmem:[#allocation2 + $0x8a8] sm:$0xff]
    %v4711 = vld [vmem:[#allocation2 + $0x8b0] sm:$0xff]
    %v4712 = vld [vmem:[#allocation2 + $0x8b8] sm:$0xff]
    %v4713 = vld [vmem:[#allocation2 + $0x8c0] sm:$0xff]
    %v4714 = vld [vmem:[#allocation2 + $0x8c8] sm:$0xff]
    %v4715 = vld [vmem:[#allocation2 + $0x8d0] sm:$0xff]
    %v4716 = vld [vmem:[#allocation2 + $0x8d8] sm:$0xff]
    %v4717 = vld [vmem:[#allocation2 + $0x8e0] sm:$0xff]
    %v4718 = vld [vmem:[#allocation2 + $0x8e8] sm:$0xff]
    %v4719 = vld [vmem:[#allocation2 + $0x8f0] sm:$0xff]
    %v4720 = vld [vmem:[#allocation2 + $0x8f8] sm:$0xff]
    %4721 = vmatprep.subr.mxu0 %v4626
    %4722 = vmatpush1.msra.mxu0 %v4625
    %4723 = vmatprep.subr.mxu0 %v4628
    %4724 = vmatpush1.msra.mxu0 %v4627
    %4725 = vmatprep.subr.mxu0 %v4630
    %4726 = vmatpush1.msra.mxu0 %v4629
    %4727 = vmatprep.subr.mxu0 %v4632
    %4728 = vmatpush1.msra.mxu0 %v4631
    %4729 = vmatprep.subr.mxu0 %v4634
    %4730 = vmatpush1.msra.mxu0 %v4633
    %4731 = vmatprep.subr.mxu0 %v4636
    %4732 = vmatpush1.msra.mxu0 %v4635
    %4733 = vmatprep.subr.mxu0 %v4638
    %4734 = vmatpush1.msra.mxu0 %v4637
    %4735 = vmatprep.subr.mxu0 %v4640
    %4736 = vmatpush1.msra.mxu0 %v4639
    %4737 = vmatprep.subr.mxu0 %v4642
    %4738 = vmatpush1.msra.mxu0 %v4641
    %4739 = vmatprep.subr.mxu0 %v4644
    %4740 = vmatpush1.msra.mxu0 %v4643
    %4741 = vmatprep.subr.mxu0 %v4646
    %4742 = vmatpush1.msra.mxu0 %v4645
    %4743 = vmatprep.subr.mxu0 %v4648
    %4744 = vmatpush1.msra.mxu0 %v4647
    %4745 = vmatprep.subr.mxu0 %v4650
    %4746 = vmatpush1.msra.mxu0 %v4649
    %4747 = vmatprep.subr.mxu0 %v4652
    %4748 = vmatpush1.msra.mxu0 %v4651
    %4749 = vmatprep.subr.mxu0 %v4654
    %4750 = vmatpush1.msra.mxu0 %v4653
    %4751 = vmatprep.subr.mxu0 %v4656
    %4752 = vmatpush1.msra.mxu0 %v4655
    %4753 = vmatprep.subr.mxu0 %v4658
    %4754 = vmatpush1.msra.mxu0 %v4657
    %4755 = vmatprep.subr.mxu0 %v4660
    %4756 = vmatpush1.msra.mxu0 %v4659
    %4757 = vmatprep.subr.mxu0 %v4662
    %4758 = vmatpush1.msra.mxu0 %v4661
    %4759 = vmatprep.subr.mxu0 %v4664
    %4760 = vmatpush1.msra.mxu0 %v4663
    %4761 = vmatprep.subr.mxu0 %v4666
    %4762 = vmatpush1.msra.mxu0 %v4665
    %4763 = vmatprep.subr.mxu0 %v4668
    %4764 = vmatpush1.msra.mxu0 %v4667
    %4765 = vmatprep.subr.mxu0 %v4670
    %4766 = vmatpush1.msra.mxu0 %v4669
    %4767 = vmatprep.subr.mxu0 %v4672
    %4768 = vmatpush1.msra.mxu0 %v4671
    %4769 = vmatprep.subr.mxu0 %v4674
    %4770 = vmatpush1.msra.mxu0 %v4673
    %4771 = vmatprep.subr.mxu0 %v4676
    %4772 = vmatpush1.msra.mxu0 %v4675
    %4773 = vmatprep.subr.mxu0 %v4678
    %4774 = vmatpush1.msra.mxu0 %v4677
    %4775 = vmatprep.subr.mxu0 %v4680
    %4776 = vmatpush1.msra.mxu0 %v4679
    %4777 = vmatprep.subr.mxu0 %v4682
    %4778 = vmatpush1.msra.mxu0 %v4681
    %4779 = vmatprep.subr.mxu0 %v4684
    %4780 = vmatpush1.msra.mxu0 %v4683
    %4781 = vmatprep.subr.mxu0 %v4686
    %4782 = vmatpush1.msra.mxu0 %v4685
    %4783 = vmatprep.subr.mxu0 %v4688
    %4784 = vmatpush1.msra.mxu0 %v4687
    %4785 = vmatprep.mubr.f32.mxu0 %v4621
    %4786 = vmatmul.mubr.f32.gmra.mrb[0].mxu0 %v1089
    %v4787 = vpop.f32.mrb[0].mxu0
    %v4788 = vadd.f32 0.0, %v4787
    %v4789 = vpop.f32.mrb[0].mxu0
    %v4790 = vadd.f32 0.0, %v4789
    %4791 = vdwg.mxu0
    %4792 = vmatprep.subr.mxu0 %v4690
    %4793 = vmatpush1.msra.mxu0 %v4689
    %4794 = vmatprep.subr.mxu0 %v4692
    %4795 = vmatpush1.msra.mxu0 %v4691
    %4796 = vmatprep.subr.mxu0 %v4694
    %4797 = vmatpush1.msra.mxu0 %v4693
    %4798 = vmatprep.subr.mxu0 %v4696
    %4799 = vmatpush1.msra.mxu0 %v4695
    %4800 = vmatprep.subr.mxu0 %v4698
    %4801 = vmatpush1.msra.mxu0 %v4697
    %4802 = vmatprep.subr.mxu0 %v4700
    %4803 = vmatpush1.msra.mxu0 %v4699
    %4804 = vmatprep.subr.mxu0 %v4702
    %4805 = vmatpush1.msra.mxu0 %v4701
    %4806 = vmatprep.subr.mxu0 %v4704
    %4807 = vmatpush1.msra.mxu0 %v4703
    %4808 = vmatprep.subr.mxu0 %v4706
    %4809 = vmatpush1.msra.mxu0 %v4705
    %4810 = vmatprep.subr.mxu0 %v4708
    %4811 = vmatpush1.msra.mxu0 %v4707
    %4812 = vmatprep.subr.mxu0 %v4710
    %4813 = vmatpush1.msra.mxu0 %v4709
    %4814 = vmatprep.subr.mxu0 %v4712
    %4815 = vmatpush1.msra.mxu0 %v4711
    %4816 = vmatprep.subr.mxu0 %v4714
    %4817 = vmatpush1.msra.mxu0 %v4713
    %4818 = vmatprep.subr.mxu0 %v4716
    %4819 = vmatpush1.msra.mxu0 %v4715
    %4820 = vmatprep.subr.mxu0 %v4718
    %4821 = vmatpush1.msra.mxu0 %v4717
    %4822 = vmatprep.subr.mxu0 %v4720
    %4823 = vmatpush1.msra.mxu0 %v4719
    %4824 = vmatprep.subr.mxu0 0.0
    %4825 = vmatpush1.msra.mxu0 0.0
    %4826 = vmatprep.subr.mxu0 0.0
    %4827 = vmatpush1.msra.mxu0 0.0
    %4828 = vmatprep.subr.mxu0 0.0
    %4829 = vmatpush1.msra.mxu0 0.0
    %4830 = vmatprep.subr.mxu0 0.0
    %4831 = vmatpush1.msra.mxu0 0.0
    %4832 = vmatprep.subr.mxu0 0.0
    %4833 = vmatpush1.msra.mxu0 0.0
    %4834 = vmatprep.subr.mxu0 0.0
    %4835 = vmatpush1.msra.mxu0 0.0
    %4836 = vmatprep.subr.mxu0 0.0
    %4837 = vmatpush1.msra.mxu0 0.0
    %4838 = vmatprep.subr.mxu0 0.0
    %4839 = vmatpush1.msra.mxu0 0.0
    %4840 = vmatprep.subr.mxu0 0.0
    %4841 = vmatpush1.msra.mxu0 0.0
    %4842 = vmatprep.subr.mxu0 0.0
    %4843 = vmatpush1.msra.mxu0 0.0
    %4844 = vmatprep.subr.mxu0 0.0
    %4845 = vmatpush1.msra.mxu0 0.0
    %4846 = vmatprep.subr.mxu0 0.0
    %4847 = vmatpush1.msra.mxu0 0.0
    %4848 = vmatprep.subr.mxu0 0.0
    %4849 = vmatpush1.msra.mxu0 0.0
    %4850 = vmatprep.subr.mxu0 0.0
    %4851 = vmatpush1.msra.mxu0 0.0
    %4852 = vmatprep.subr.mxu0 0.0
    %4853 = vmatpush1.msra.mxu0 0.0
    %4854 = vmatprep.subr.mxu0 0.0
    %4855 = vmatpush1.msra.mxu0 0.0
    %4856 = vmatprep.mubr.f32.mxu0 0.0
    %4857 = vmatmul.mubr.f32.gmra.mrb[0].mxu0 %v4623
    %v4858 = vpop.f32.mrb[0].mxu0
    %v4859 = vadd.f32 %v4788, %v4858
    %v4860 = vpop.f32.mrb[0].mxu0
    %v4861 = vadd.f32 %v4790, %v4860
    %4862 = vdwg.mxu0
    %v4863 = vadd.f32 %v4618, %v4859
    %v4864 = vadd.f32 %v4619, %v4861
    %s4865 = sshll.u32 %s2878, 4
    %4866 = dma.done %s125, %s4865
    %v4868 = vrot.slane %v1206, 2
    %v4870 = vrot.slane %v1206, 4
    %v4872 = vrot.slane %v1206, 6
    %v4875 = vrot.slane %v1207, 2
    %v4877 = vrot.slane %v1207, 4
    %v4879 = vrot.slane %v1207, 6
    %v4881 = vld [vmem:[%s124] sm:$0xff]
    %v4882 = vld [vmem:[%s124 + $0x8] sm:$0xff]
    %v4883 = vld [vmem:[%s124 + $0x10] sm:$0xff]
    %v4884 = vld [vmem:[%s124 + $0x18] sm:$0xff]
    %v4885 = vld [vmem:[%s124 + $0x20] sm:$0xff]
    %v4886 = vld [vmem:[%s124 + $0x28] sm:$0xff]
    %v4887 = vld [vmem:[%s124 + $0x30] sm:$0xff]
    %v4888 = vld [vmem:[%s124 + $0x38] sm:$0xff]
    %v4889 = vld [vmem:[%s124 + $0x40] sm:$0xff]
    %v4890 = vld [vmem:[%s124 + $0x48] sm:$0xff]
    %v4891 = vld [vmem:[%s124 + $0x50] sm:$0xff]
    %v4892 = vld [vmem:[%s124 + $0x58] sm:$0xff]
    %v4893 = vld [vmem:[%s124 + $0x60] sm:$0xff]
    %v4894 = vld [vmem:[%s124 + $0x68] sm:$0xff]
    %v4895 = vld [vmem:[%s124 + $0x70] sm:$0xff]
    %v4896 = vld [vmem:[%s124 + $0x78] sm:$0xff]
    %v4897 = vld [vmem:[%s124 + $0x80] sm:$0xff]
    %v4898 = vld [vmem:[%s124 + $0x88] sm:$0xff]
    %v4899 = vld [vmem:[%s124 + $0x90] sm:$0xff]
    %v4900 = vld [vmem:[%s124 + $0x98] sm:$0xff]
    %v4901 = vld [vmem:[%s124 + $0xa0] sm:$0xff]
    %v4902 = vld [vmem:[%s124 + $0xa8] sm:$0xff]
    %v4903 = vld [vmem:[%s124 + $0xb0] sm:$0xff]
    %v4904 = vld [vmem:[%s124 + $0xb8] sm:$0xff]
    %v4905 = vld [vmem:[%s124 + $0xc0] sm:$0xff]
    %v4906 = vld [vmem:[%s124 + $0xc8] sm:$0xff]
    %v4907 = vld [vmem:[%s124 + $0xd0] sm:$0xff]
    %v4908 = vld [vmem:[%s124 + $0xd8] sm:$0xff]
    %v4909 = vld [vmem:[%s124 + $0xe0] sm:$0xff]
    %v4910 = vld [vmem:[%s124 + $0xe8] sm:$0xff]
    %v4911 = vld [vmem:[%s124 + $0xf0] sm:$0xff]
    %v4912 = vld [vmem:[%s124 + $0xf8] sm:$0xff]
    %v4913 = vld [vmem:[%s124 + $0x100] sm:$0xff]
    %v4914 = vld [vmem:[%s124 + $0x108] sm:$0xff]
    %v4915 = vld [vmem:[%s124 + $0x110] sm:$0xff]
    %v4916 = vld [vmem:[%s124 + $0x118] sm:$0xff]
    %v4917 = vld [vmem:[%s124 + $0x120] sm:$0xff]
    %v4918 = vld [vmem:[%s124 + $0x128] sm:$0xff]
    %v4919 = vld [vmem:[%s124 + $0x130] sm:$0xff]
    %v4920 = vld [vmem:[%s124 + $0x138] sm:$0xff]
    %v4921 = vld [vmem:[%s124 + $0x140] sm:$0xff]
    %v4922 = vld [vmem:[%s124 + $0x148] sm:$0xff]
    %v4923 = vld [vmem:[%s124 + $0x150] sm:$0xff]
    %v4924 = vld [vmem:[%s124 + $0x158] sm:$0xff]
    %v4925 = vld [vmem:[%s124 + $0x160] sm:$0xff]
    %v4926 = vld [vmem:[%s124 + $0x168] sm:$0xff]
    %v4927 = vld [vmem:[%s124 + $0x170] sm:$0xff]
    %v4928 = vld [vmem:[%s124 + $0x178] sm:$0xff]
    %v4929 = vld [vmem:[%s124 + $0x180] sm:$0xff]
    %v4930 = vld [vmem:[%s124 + $0x188] sm:$0xff]
    %v4931 = vld [vmem:[%s124 + $0x190] sm:$0xff]
    %v4932 = vld [vmem:[%s124 + $0x198] sm:$0xff]
    %v4933 = vld [vmem:[%s124 + $0x1a0] sm:$0xff]
    %v4934 = vld [vmem:[%s124 + $0x1a8] sm:$0xff]
    %v4935 = vld [vmem:[%s124 + $0x1b0] sm:$0xff]
    %v4936 = vld [vmem:[%s124 + $0x1b8] sm:$0xff]
    %v4937 = vld [vmem:[%s124 + $0x1c0] sm:$0xff]
    %v4938 = vld [vmem:[%s124 + $0x1c8] sm:$0xff]
    %v4939 = vld [vmem:[%s124 + $0x1d0] sm:$0xff]
    %v4940 = vld [vmem:[%s124 + $0x1d8] sm:$0xff]
    %v4941 = vld [vmem:[%s124 + $0x1e0] sm:$0xff]
    %v4942 = vld [vmem:[%s124 + $0x1e8] sm:$0xff]
    %v4943 = vld [vmem:[%s124 + $0x1f0] sm:$0xff]
    %v4944 = vld [vmem:[%s124 + $0x1f8] sm:$0xff]
    %v4945 = vld [vmem:[%s124 + $0x200] sm:$0xff]
    %v4946 = vld [vmem:[%s124 + $0x208] sm:$0xff]
    %v4947 = vld [vmem:[%s124 + $0x210] sm:$0xff]
    %v4948 = vld [vmem:[%s124 + $0x218] sm:$0xff]
    %v4949 = vld [vmem:[%s124 + $0x220] sm:$0xff]
    %v4950 = vld [vmem:[%s124 + $0x228] sm:$0xff]
    %v4951 = vld [vmem:[%s124 + $0x230] sm:$0xff]
    %v4952 = vld [vmem:[%s124 + $0x238] sm:$0xff]
    %v4953 = vld [vmem:[%s124 + $0x240] sm:$0xff]
    %v4954 = vld [vmem:[%s124 + $0x248] sm:$0xff]
    %v4955 = vld [vmem:[%s124 + $0x250] sm:$0xff]
    %v4956 = vld [vmem:[%s124 + $0x258] sm:$0xff]
    %v4957 = vld [vmem:[%s124 + $0x260] sm:$0xff]
    %v4958 = vld [vmem:[%s124 + $0x268] sm:$0xff]
    %v4959 = vld [vmem:[%s124 + $0x270] sm:$0xff]
    %v4960 = vld [vmem:[%s124 + $0x278] sm:$0xff]
    %v4961 = vld [vmem:[%s124 + $0x280] sm:$0xff]
    %v4962 = vld [vmem:[%s124 + $0x288] sm:$0xff]
    %v4963 = vld [vmem:[%s124 + $0x290] sm:$0xff]
    %v4964 = vld [vmem:[%s124 + $0x298] sm:$0xff]
    %v4965 = vld [vmem:[%s124 + $0x2a0] sm:$0xff]
    %v4966 = vld [vmem:[%s124 + $0x2a8] sm:$0xff]
    %v4967 = vld [vmem:[%s124 + $0x2b0] sm:$0xff]
    %v4968 = vld [vmem:[%s124 + $0x2b8] sm:$0xff]
    %v4969 = vld [vmem:[%s124 + $0x2c0] sm:$0xff]
    %v4970 = vld [vmem:[%s124 + $0x2c8] sm:$0xff]
    %v4971 = vld [vmem:[%s124 + $0x2d0] sm:$0xff]
    %v4972 = vld [vmem:[%s124 + $0x2d8] sm:$0xff]
    %v4973 = vld [vmem:[%s124 + $0x2e0] sm:$0xff]
    %v4974 = vld [vmem:[%s124 + $0x2e8] sm:$0xff]
    %v4975 = vld [vmem:[%s124 + $0x2f0] sm:$0xff]
    %v4976 = vld [vmem:[%s124 + $0x2f8] sm:$0xff]
    %v4977 = vld [vmem:[%s124 + $0x300] sm:$0xff]
    %v4978 = vld [vmem:[%s124 + $0x308] sm:$0xff]
    %v4979 = vld [vmem:[%s124 + $0x310] sm:$0xff]
    %v4980 = vld [vmem:[%s124 + $0x318] sm:$0xff]
    %v4981 = vld [vmem:[%s124 + $0x320] sm:$0xff]
    %v4982 = vld [vmem:[%s124 + $0x328] sm:$0xff]
    %v4983 = vld [vmem:[%s124 + $0x330] sm:$0xff]
    %v4984 = vld [vmem:[%s124 + $0x338] sm:$0xff]
    %v4985 = vld [vmem:[%s124 + $0x340] sm:$0xff]
    %v4986 = vld [vmem:[%s124 + $0x348] sm:$0xff]
    %v4987 = vld [vmem:[%s124 + $0x350] sm:$0xff]
    %v4988 = vld [vmem:[%s124 + $0x358] sm:$0xff]
    %v4989 = vld [vmem:[%s124 + $0x360] sm:$0xff]
    %v4990 = vld [vmem:[%s124 + $0x368] sm:$0xff]
    %v4991 = vld [vmem:[%s124 + $0x370] sm:$0xff]
    %v4992 = vld [vmem:[%s124 + $0x378] sm:$0xff]
    %v4993 = vld [vmem:[%s124 + $0x380] sm:$0xff]
    %v4994 = vld [vmem:[%s124 + $0x388] sm:$0xff]
    %v4995 = vld [vmem:[%s124 + $0x390] sm:$0xff]
    %v4996 = vld [vmem:[%s124 + $0x398] sm:$0xff]
    %v4997 = vld [vmem:[%s124 + $0x3a0] sm:$0xff]
    %v4998 = vld [vmem:[%s124 + $0x3a8] sm:$0xff]
    %v4999 = vld [vmem:[%s124 + $0x3b0] sm:$0xff]
    %v5000 = vld [vmem:[%s124 + $0x3b8] sm:$0xff]
    %v5001 = vld [vmem:[%s124 + $0x3c0] sm:$0xff]
    %v5002 = vld [vmem:[%s124 + $0x3c8] sm:$0xff]
    %v5003 = vld [vmem:[%s124 + $0x3d0] sm:$0xff]
    %v5004 = vld [vmem:[%s124 + $0x3d8] sm:$0xff]
    %v5005 = vld [vmem:[%s124 + $0x3e0] sm:$0xff]
    %v5006 = vld [vmem:[%s124 + $0x3e8] sm:$0xff]
    %v5007 = vld [vmem:[%s124 + $0x3f0] sm:$0xff]
    %v5008 = vld [vmem:[%s124 + $0x3f8] sm:$0xff]
    %v5009 = vld [vmem:[%s124 + $0x400] sm:$0xff]
    %v5010 = vld [vmem:[%s124 + $0x408] sm:$0xff]
    %v5011 = vld [vmem:[%s124 + $0x410] sm:$0xff]
    %v5012 = vld [vmem:[%s124 + $0x418] sm:$0xff]
    %v5013 = vld [vmem:[%s124 + $0x420] sm:$0xff]
    %v5014 = vld [vmem:[%s124 + $0x428] sm:$0xff]
    %v5015 = vld [vmem:[%s124 + $0x430] sm:$0xff]
    %v5016 = vld [vmem:[%s124 + $0x438] sm:$0xff]
    %v5017 = vld [vmem:[%s124 + $0x440] sm:$0xff]
    %v5018 = vld [vmem:[%s124 + $0x448] sm:$0xff]
    %v5019 = vld [vmem:[%s124 + $0x450] sm:$0xff]
    %v5020 = vld [vmem:[%s124 + $0x458] sm:$0xff]
    %v5021 = vld [vmem:[%s124 + $0x460] sm:$0xff]
    %v5022 = vld [vmem:[%s124 + $0x468] sm:$0xff]
    %v5023 = vld [vmem:[%s124 + $0x470] sm:$0xff]
    %v5024 = vld [vmem:[%s124 + $0x478] sm:$0xff]
    %v5025 = vld [vmem:[%s124 + $0x480] sm:$0xff]
    %v5026 = vld [vmem:[%s124 + $0x488] sm:$0xff]
    %v5027 = vld [vmem:[%s124 + $0x490] sm:$0xff]
    %v5028 = vld [vmem:[%s124 + $0x498] sm:$0xff]
    %v5029 = vld [vmem:[%s124 + $0x4a0] sm:$0xff]
    %v5030 = vld [vmem:[%s124 + $0x4a8] sm:$0xff]
    %v5031 = vld [vmem:[%s124 + $0x4b0] sm:$0xff]
    %v5032 = vld [vmem:[%s124 + $0x4b8] sm:$0xff]
    %v5033 = vld [vmem:[%s124 + $0x4c0] sm:$0xff]
    %v5034 = vld [vmem:[%s124 + $0x4c8] sm:$0xff]
    %v5035 = vld [vmem:[%s124 + $0x4d0] sm:$0xff]
    %v5036 = vld [vmem:[%s124 + $0x4d8] sm:$0xff]
    %v5037 = vld [vmem:[%s124 + $0x4e0] sm:$0xff]
    %v5038 = vld [vmem:[%s124 + $0x4e8] sm:$0xff]
    %v5039 = vld [vmem:[%s124 + $0x4f0] sm:$0xff]
    %v5040 = vld [vmem:[%s124 + $0x4f8] sm:$0xff]
    %v5041 = vld [vmem:[%s124 + $0x500] sm:$0xff]
    %v5042 = vld [vmem:[%s124 + $0x508] sm:$0xff]
    %v5043 = vld [vmem:[%s124 + $0x510] sm:$0xff]
    %v5044 = vld [vmem:[%s124 + $0x518] sm:$0xff]
    %v5045 = vld [vmem:[%s124 + $0x520] sm:$0xff]
    %v5046 = vld [vmem:[%s124 + $0x528] sm:$0xff]
    %v5047 = vld [vmem:[%s124 + $0x530] sm:$0xff]
    %v5048 = vld [vmem:[%s124 + $0x538] sm:$0xff]
    %v5049 = vld [vmem:[%s124 + $0x540] sm:$0xff]
    %v5050 = vld [vmem:[%s124 + $0x548] sm:$0xff]
    %v5051 = vld [vmem:[%s124 + $0x550] sm:$0xff]
    %v5052 = vld [vmem:[%s124 + $0x558] sm:$0xff]
    %v5053 = vld [vmem:[%s124 + $0x560] sm:$0xff]
    %v5054 = vld [vmem:[%s124 + $0x568] sm:$0xff]
    %v5055 = vld [vmem:[%s124 + $0x570] sm:$0xff]
    %v5056 = vld [vmem:[%s124 + $0x578] sm:$0xff]
    %v5057 = vld [vmem:[%s124 + $0x580] sm:$0xff]
    %v5058 = vld [vmem:[%s124 + $0x588] sm:$0xff]
    %v5059 = vld [vmem:[%s124 + $0x590] sm:$0xff]
    %v5060 = vld [vmem:[%s124 + $0x598] sm:$0xff]
    %v5061 = vld [vmem:[%s124 + $0x5a0] sm:$0xff]
    %v5062 = vld [vmem:[%s124 + $0x5a8] sm:$0xff]
    %v5063 = vld [vmem:[%s124 + $0x5b0] sm:$0xff]
    %v5064 = vld [vmem:[%s124 + $0x5b8] sm:$0xff]
    %v5065 = vld [vmem:[%s124 + $0x5c0] sm:$0xff]
    %v5066 = vld [vmem:[%s124 + $0x5c8] sm:$0xff]
    %v5067 = vld [vmem:[%s124 + $0x5d0] sm:$0xff]
    %v5068 = vld [vmem:[%s124 + $0x5d8] sm:$0xff]
    %v5069 = vld [vmem:[%s124 + $0x5e0] sm:$0xff]
    %v5070 = vld [vmem:[%s124 + $0x5e8] sm:$0xff]
    %v5071 = vld [vmem:[%s124 + $0x5f0] sm:$0xff]
    %v5072 = vld [vmem:[%s124 + $0x5f8] sm:$0xff]
    %v5073 = vld [vmem:[%s124 + $0x600] sm:$0xff]
    %v5074 = vld [vmem:[%s124 + $0x608] sm:$0xff]
    %v5075 = vld [vmem:[%s124 + $0x610] sm:$0xff]
    %v5076 = vld [vmem:[%s124 + $0x618] sm:$0xff]
    %v5077 = vld [vmem:[%s124 + $0x620] sm:$0xff]
    %v5078 = vld [vmem:[%s124 + $0x628] sm:$0xff]
    %v5079 = vld [vmem:[%s124 + $0x630] sm:$0xff]
    %v5080 = vld [vmem:[%s124 + $0x638] sm:$0xff]
    %v5081 = vld [vmem:[%s124 + $0x640] sm:$0xff]
    %v5082 = vld [vmem:[%s124 + $0x648] sm:$0xff]
    %v5083 = vld [vmem:[%s124 + $0x650] sm:$0xff]
    %v5084 = vld [vmem:[%s124 + $0x658] sm:$0xff]
    %v5085 = vld [vmem:[%s124 + $0x660] sm:$0xff]
    %v5086 = vld [vmem:[%s124 + $0x668] sm:$0xff]
    %v5087 = vld [vmem:[%s124 + $0x670] sm:$0xff]
    %v5088 = vld [vmem:[%s124 + $0x678] sm:$0xff]
    %v5089 = vld [vmem:[%s124 + $0x680] sm:$0xff]
    %v5090 = vld [vmem:[%s124 + $0x688] sm:$0xff]
    %v5091 = vld [vmem:[%s124 + $0x690] sm:$0xff]
    %v5092 = vld [vmem:[%s124 + $0x698] sm:$0xff]
    %v5093 = vld [vmem:[%s124 + $0x6a0] sm:$0xff]
    %v5094 = vld [vmem:[%s124 + $0x6a8] sm:$0xff]
    %v5095 = vld [vmem:[%s124 + $0x6b0] sm:$0xff]
    %v5096 = vld [vmem:[%s124 + $0x6b8] sm:$0xff]
    %v5097 = vld [vmem:[%s124 + $0x6c0] sm:$0xff]
    %v5098 = vld [vmem:[%s124 + $0x6c8] sm:$0xff]
    %v5099 = vld [vmem:[%s124 + $0x6d0] sm:$0xff]
    %v5100 = vld [vmem:[%s124 + $0x6d8] sm:$0xff]
    %v5101 = vld [vmem:[%s124 + $0x6e0] sm:$0xff]
    %v5102 = vld [vmem:[%s124 + $0x6e8] sm:$0xff]
    %v5103 = vld [vmem:[%s124 + $0x6f0] sm:$0xff]
    %v5104 = vld [vmem:[%s124 + $0x6f8] sm:$0xff]
    %v5105 = vld [vmem:[%s124 + $0x700] sm:$0xff]
    %v5106 = vld [vmem:[%s124 + $0x708] sm:$0xff]
    %v5107 = vld [vmem:[%s124 + $0x710] sm:$0xff]
    %v5108 = vld [vmem:[%s124 + $0x718] sm:$0xff]
    %v5109 = vld [vmem:[%s124 + $0x720] sm:$0xff]
    %v5110 = vld [vmem:[%s124 + $0x728] sm:$0xff]
    %v5111 = vld [vmem:[%s124 + $0x730] sm:$0xff]
    %v5112 = vld [vmem:[%s124 + $0x738] sm:$0xff]
    %v5113 = vld [vmem:[%s124 + $0x740] sm:$0xff]
    %v5114 = vld [vmem:[%s124 + $0x748] sm:$0xff]
    %v5115 = vld [vmem:[%s124 + $0x750] sm:$0xff]
    %v5116 = vld [vmem:[%s124 + $0x758] sm:$0xff]
    %v5117 = vld [vmem:[%s124 + $0x760] sm:$0xff]
    %v5118 = vld [vmem:[%s124 + $0x768] sm:$0xff]
    %v5119 = vld [vmem:[%s124 + $0x770] sm:$0xff]
    %v5120 = vld [vmem:[%s124 + $0x778] sm:$0xff]
    %v5121 = vld [vmem:[%s124 + $0x780] sm:$0xff]
    %v5122 = vld [vmem:[%s124 + $0x788] sm:$0xff]
    %v5123 = vld [vmem:[%s124 + $0x790] sm:$0xff]
    %v5124 = vld [vmem:[%s124 + $0x798] sm:$0xff]
    %v5125 = vld [vmem:[%s124 + $0x7a0] sm:$0xff]
    %v5126 = vld [vmem:[%s124 + $0x7a8] sm:$0xff]
    %v5127 = vld [vmem:[%s124 + $0x7b0] sm:$0xff]
    %v5128 = vld [vmem:[%s124 + $0x7b8] sm:$0xff]
    %v5129 = vld [vmem:[%s124 + $0x7c0] sm:$0xff]
    %v5130 = vld [vmem:[%s124 + $0x7c8] sm:$0xff]
    %v5131 = vld [vmem:[%s124 + $0x7d0] sm:$0xff]
    %v5132 = vld [vmem:[%s124 + $0x7d8] sm:$0xff]
    %v5133 = vld [vmem:[%s124 + $0x7e0] sm:$0xff]
    %v5134 = vld [vmem:[%s124 + $0x7e8] sm:$0xff]
    %v5135 = vld [vmem:[%s124 + $0x7f0] sm:$0xff]
    %v5136 = vld [vmem:[%s124 + $0x7f8] sm:$0xff]
    %5137 = vmatprep.subr.mxu0 %v4882
    %5138 = vmatpush1.msra.mxu0 %v4881
    %5139 = vmatprep.subr.mxu0 %v4884
    %5140 = vmatpush1.msra.mxu0 %v4883
    %5141 = vmatprep.subr.mxu0 %v4886
    %5142 = vmatpush1.msra.mxu0 %v4885
    %5143 = vmatprep.subr.mxu0 %v4888
    %5144 = vmatpush1.msra.mxu0 %v4887
    %5145 = vmatprep.subr.mxu0 %v4890
    %5146 = vmatpush1.msra.mxu0 %v4889
    %5147 = vmatprep.subr.mxu0 %v4892
    %5148 = vmatpush1.msra.mxu0 %v4891
    %5149 = vmatprep.subr.mxu0 %v4894
    %5150 = vmatpush1.msra.mxu0 %v4893
    %5151 = vmatprep.subr.mxu0 %v4896
    %5152 = vmatpush1.msra.mxu0 %v4895
    %5153 = vmatprep.subr.mxu0 %v4898
    %5154 = vmatpush1.msra.mxu0 %v4897
    %5155 = vmatprep.subr.mxu0 %v4900
    %5156 = vmatpush1.msra.mxu0 %v4899
    %5157 = vmatprep.subr.mxu0 %v4902
    %5158 = vmatpush1.msra.mxu0 %v4901
    %5159 = vmatprep.subr.mxu0 %v4904
    %5160 = vmatpush1.msra.mxu0 %v4903
    %5161 = vmatprep.subr.mxu0 %v4906
    %5162 = vmatpush1.msra.mxu0 %v4905
    %5163 = vmatprep.subr.mxu0 %v4908
    %5164 = vmatpush1.msra.mxu0 %v4907
    %5165 = vmatprep.subr.mxu0 %v4910
    %5166 = vmatpush1.msra.mxu0 %v4909
    %5167 = vmatprep.subr.mxu0 %v4912
    %5168 = vmatpush1.msra.mxu0 %v4911
    %5169 = vmatprep.subr.mxu0 %v4914
    %5170 = vmatpush1.msra.mxu0 %v4913
    %5171 = vmatprep.subr.mxu0 %v4916
    %5172 = vmatpush1.msra.mxu0 %v4915
    %5173 = vmatprep.subr.mxu0 %v4918
    %5174 = vmatpush1.msra.mxu0 %v4917
    %5175 = vmatprep.subr.mxu0 %v4920
    %5176 = vmatpush1.msra.mxu0 %v4919
    %5177 = vmatprep.subr.mxu0 %v4922
    %5178 = vmatpush1.msra.mxu0 %v4921
    %5179 = vmatprep.subr.mxu0 %v4924
    %5180 = vmatpush1.msra.mxu0 %v4923
    %5181 = vmatprep.subr.mxu0 %v4926
    %5182 = vmatpush1.msra.mxu0 %v4925
    %5183 = vmatprep.subr.mxu0 %v4928
    %5184 = vmatpush1.msra.mxu0 %v4927
    %5185 = vmatprep.subr.mxu0 %v4930
    %5186 = vmatpush1.msra.mxu0 %v4929
    %5187 = vmatprep.subr.mxu0 %v4932
    %5188 = vmatpush1.msra.mxu0 %v4931
    %5189 = vmatprep.subr.mxu0 %v4934
    %5190 = vmatpush1.msra.mxu0 %v4933
    %5191 = vmatprep.subr.mxu0 %v4936
    %5192 = vmatpush1.msra.mxu0 %v4935
    %5193 = vmatprep.subr.mxu0 %v4938
    %5194 = vmatpush1.msra.mxu0 %v4937
    %5195 = vmatprep.subr.mxu0 %v4940
    %5196 = vmatpush1.msra.mxu0 %v4939
    %5197 = vmatprep.subr.mxu0 %v4942
    %5198 = vmatpush1.msra.mxu0 %v4941
    %5199 = vmatprep.subr.mxu0 %v4944
    %5200 = vmatpush1.msra.mxu0 %v4943
    %5201 = vmatprep.mubr.f32.mxu0 %v4868
    %5202 = vmatmul.mubr.f32.gmra.mrb[0].mxu0 %v1206
    %v5203 = vpop.f32.mrb[0].mxu0
    %v5204 = vadd.f32 0.0, %v5203
    %v5205 = vpop.f32.mrb[0].mxu0
    %v5206 = vadd.f32 0.0, %v5205
    %5207 = vdwg.mxu0
    %5208 = vmatprep.subr.mxu0 %v4946
    %5209 = vmatpush1.msra.mxu0 %v4945
    %5210 = vmatprep.subr.mxu0 %v4948
    %5211 = vmatpush1.msra.mxu0 %v4947
    %5212 = vmatprep.subr.mxu0 %v4950
    %5213 = vmatpush1.msra.mxu0 %v4949
    %5214 = vmatprep.subr.mxu0 %v4952
    %5215 = vmatpush1.msra.mxu0 %v4951
    %5216 = vmatprep.subr.mxu0 %v4954
    %5217 = vmatpush1.msra.mxu0 %v4953
    %5218 = vmatprep.subr.mxu0 %v4956
    %5219 = vmatpush1.msra.mxu0 %v4955
    %5220 = vmatprep.subr.mxu0 %v4958
    %5221 = vmatpush1.msra.mxu0 %v4957
    %5222 = vmatprep.subr.mxu0 %v4960
    %5223 = vmatpush1.msra.mxu0 %v4959
    %5224 = vmatprep.subr.mxu0 %v4962
    %5225 = vmatpush1.msra.mxu0 %v4961
    %5226 = vmatprep.subr.mxu0 %v4964
    %5227 = vmatpush1.msra.mxu0 %v4963
    %5228 = vmatprep.subr.mxu0 %v4966
    %5229 = vmatpush1.msra.mxu0 %v4965
    %5230 = vmatprep.subr.mxu0 %v4968
    %5231 = vmatpush1.msra.mxu0 %v4967
    %5232 = vmatprep.subr.mxu0 %v4970
    %5233 = vmatpush1.msra.mxu0 %v4969
    %5234 = vmatprep.subr.mxu0 %v4972
    %5235 = vmatpush1.msra.mxu0 %v4971
    %5236 = vmatprep.subr.mxu0 %v4974
    %5237 = vmatpush1.msra.mxu0 %v4973
    %5238 = vmatprep.subr.mxu0 %v4976
    %5239 = vmatpush1.msra.mxu0 %v4975
    %5240 = vmatprep.subr.mxu0 %v4978
    %5241 = vmatpush1.msra.mxu0 %v4977
    %5242 = vmatprep.subr.mxu0 %v4980
    %5243 = vmatpush1.msra.mxu0 %v4979
    %5244 = vmatprep.subr.mxu0 %v4982
    %5245 = vmatpush1.msra.mxu0 %v4981
    %5246 = vmatprep.subr.mxu0 %v4984
    %5247 = vmatpush1.msra.mxu0 %v4983
    %5248 = vmatprep.subr.mxu0 %v4986
    %5249 = vmatpush1.msra.mxu0 %v4985
    %5250 = vmatprep.subr.mxu0 %v4988
    %5251 = vmatpush1.msra.mxu0 %v4987
    %5252 = vmatprep.subr.mxu0 %v4990
    %5253 = vmatpush1.msra.mxu0 %v4989
    %5254 = vmatprep.subr.mxu0 %v4992
    %5255 = vmatpush1.msra.mxu0 %v4991
    %5256 = vmatprep.subr.mxu0 %v4994
    %5257 = vmatpush1.msra.mxu0 %v4993
    %5258 = vmatprep.subr.mxu0 %v4996
    %5259 = vmatpush1.msra.mxu0 %v4995
    %5260 = vmatprep.subr.mxu0 %v4998
    %5261 = vmatpush1.msra.mxu0 %v4997
    %5262 = vmatprep.subr.mxu0 %v5000
    %5263 = vmatpush1.msra.mxu0 %v4999
    %5264 = vmatprep.subr.mxu0 %v5002
    %5265 = vmatpush1.msra.mxu0 %v5001
    %5266 = vmatprep.subr.mxu0 %v5004
    %5267 = vmatpush1.msra.mxu0 %v5003
    %5268 = vmatprep.subr.mxu0 %v5006
    %5269 = vmatpush1.msra.mxu0 %v5005
    %5270 = vmatprep.subr.mxu0 %v5008
    %5271 = vmatpush1.msra.mxu0 %v5007
    %5272 = vmatprep.mubr.f32.mxu0 %v4872
    %5273 = vmatmul.mubr.f32.gmra.mrb[0].mxu0 %v4870
    %v5274 = vpop.f32.mrb[0].mxu0
    %v5275 = vadd.f32 %v5204, %v5274
    %v5276 = vpop.f32.mrb[0].mxu0
    %v5277 = vadd.f32 %v5206, %v5276
    %5278 = vdwg.mxu0
    %5279 = vmatprep.subr.mxu0 %v5010
    %5280 = vmatpush1.msra.mxu0 %v5009
    %5281 = vmatprep.subr.mxu0 %v5012
    %5282 = vmatpush1.msra.mxu0 %v5011
    %5283 = vmatprep.subr.mxu0 %v5014
    %5284 = vmatpush1.msra.mxu0 %v5013
    %5285 = vmatprep.subr.mxu0 %v5016
    %5286 = vmatpush1.msra.mxu0 %v5015
    %5287 = vmatprep.subr.mxu0 %v5018
    %5288 = vmatpush1.msra.mxu0 %v5017
    %5289 = vmatprep.subr.mxu0 %v5020
    %5290 = vmatpush1.msra.mxu0 %v5019
    %5291 = vmatprep.subr.mxu0 %v5022
    %5292 = vmatpush1.msra.mxu0 %v5021
    %5293 = vmatprep.subr.mxu0 %v5024
    %5294 = vmatpush1.msra.mxu0 %v5023
    %5295 = vmatprep.subr.mxu0 %v5026
    %5296 = vmatpush1.msra.mxu0 %v5025
    %5297 = vmatprep.subr.mxu0 %v5028
    %5298 = vmatpush1.msra.mxu0 %v5027
    %5299 = vmatprep.subr.mxu0 %v5030
    %5300 = vmatpush1.msra.mxu0 %v5029
    %5301 = vmatprep.subr.mxu0 %v5032
    %5302 = vmatpush1.msra.mxu0 %v5031
    %5303 = vmatprep.subr.mxu0 %v5034
    %5304 = vmatpush1.msra.mxu0 %v5033
    %5305 = vmatprep.subr.mxu0 %v5036
    %5306 = vmatpush1.msra.mxu0 %v5035
    %5307 = vmatprep.subr.mxu0 %v5038
    %5308 = vmatpush1.msra.mxu0 %v5037
    %5309 = vmatprep.subr.mxu0 %v5040
    %5310 = vmatpush1.msra.mxu0 %v5039
    %5311 = vmatprep.subr.mxu0 %v5042
    %5312 = vmatpush1.msra.mxu0 %v5041
    %5313 = vmatprep.subr.mxu0 %v5044
    %5314 = vmatpush1.msra.mxu0 %v5043
    %5315 = vmatprep.subr.mxu0 %v5046
    %5316 = vmatpush1.msra.mxu0 %v5045
    %5317 = vmatprep.subr.mxu0 %v5048
    %5318 = vmatpush1.msra.mxu0 %v5047
    %5319 = vmatprep.subr.mxu0 %v5050
    %5320 = vmatpush1.msra.mxu0 %v5049
    %5321 = vmatprep.subr.mxu0 %v5052
    %5322 = vmatpush1.msra.mxu0 %v5051
    %5323 = vmatprep.subr.mxu0 %v5054
    %5324 = vmatpush1.msra.mxu0 %v5053
    %5325 = vmatprep.subr.mxu0 %v5056
    %5326 = vmatpush1.msra.mxu0 %v5055
    %5327 = vmatprep.subr.mxu0 %v5058
    %5328 = vmatpush1.msra.mxu0 %v5057
    %5329 = vmatprep.subr.mxu0 %v5060
    %5330 = vmatpush1.msra.mxu0 %v5059
    %5331 = vmatprep.subr.mxu0 %v5062
    %5332 = vmatpush1.msra.mxu0 %v5061
    %5333 = vmatprep.subr.mxu0 %v5064
    %5334 = vmatpush1.msra.mxu0 %v5063
    %5335 = vmatprep.subr.mxu0 %v5066
    %5336 = vmatpush1.msra.mxu0 %v5065
    %5337 = vmatprep.subr.mxu0 %v5068
    %5338 = vmatpush1.msra.mxu0 %v5067
    %5339 = vmatprep.subr.mxu0 %v5070
    %5340 = vmatpush1.msra.mxu0 %v5069
    %5341 = vmatprep.subr.mxu0 %v5072
    %5342 = vmatpush1.msra.mxu0 %v5071
    %5343 = vmatprep.mubr.f32.mxu0 %v4875
    %5344 = vmatmul.mubr.f32.gmra.mrb[0].mxu0 %v1207
    %v5345 = vpop.f32.mrb[0].mxu0
    %v5346 = vadd.f32 %v5275, %v5345
    %v5347 = vpop.f32.mrb[0].mxu0
    %v5348 = vadd.f32 %v5277, %v5347
    %5349 = vdwg.mxu0
    %5350 = vmatprep.subr.mxu0 %v5074
    %5351 = vmatpush1.msra.mxu0 %v5073
    %5352 = vmatprep.subr.mxu0 %v5076
    %5353 = vmatpush1.msra.mxu0 %v5075
    %5354 = vmatprep.subr.mxu0 %v5078
    %5355 = vmatpush1.msra.mxu0 %v5077
    %5356 = vmatprep.subr.mxu0 %v5080
    %5357 = vmatpush1.msra.mxu0 %v5079
    %5358 = vmatprep.subr.mxu0 %v5082
    %5359 = vmatpush1.msra.mxu0 %v5081
    %5360 = vmatprep.subr.mxu0 %v5084
    %5361 = vmatpush1.msra.mxu0 %v5083
    %5362 = vmatprep.subr.mxu0 %v5086
    %5363 = vmatpush1.msra.mxu0 %v5085
    %5364 = vmatprep.subr.mxu0 %v5088
    %5365 = vmatpush1.msra.mxu0 %v5087
    %5366 = vmatprep.subr.mxu0 %v5090
    %5367 = vmatpush1.msra.mxu0 %v5089
    %5368 = vmatprep.subr.mxu0 %v5092
    %5369 = vmatpush1.msra.mxu0 %v5091
    %5370 = vmatprep.subr.mxu0 %v5094
    %5371 = vmatpush1.msra.mxu0 %v5093
    %5372 = vmatprep.subr.mxu0 %v5096
    %5373 = vmatpush1.msra.mxu0 %v5095
    %5374 = vmatprep.subr.mxu0 %v5098
    %5375 = vmatpush1.msra.mxu0 %v5097
    %5376 = vmatprep.subr.mxu0 %v5100
    %5377 = vmatpush1.msra.mxu0 %v5099
    %5378 = vmatprep.subr.mxu0 %v5102
    %5379 = vmatpush1.msra.mxu0 %v5101
    %5380 = vmatprep.subr.mxu0 %v5104
    %5381 = vmatpush1.msra.mxu0 %v5103
    %5382 = vmatprep.subr.mxu0 %v5106
    %5383 = vmatpush1.msra.mxu0 %v5105
    %5384 = vmatprep.subr.mxu0 %v5108
    %5385 = vmatpush1.msra.mxu0 %v5107
    %5386 = vmatprep.subr.mxu0 %v5110
    %5387 = vmatpush1.msra.mxu0 %v5109
    %5388 = vmatprep.subr.mxu0 %v5112
    %5389 = vmatpush1.msra.mxu0 %v5111
    %5390 = vmatprep.subr.mxu0 %v5114
    %5391 = vmatpush1.msra.mxu0 %v5113
    %5392 = vmatprep.subr.mxu0 %v5116
    %5393 = vmatpush1.msra.mxu0 %v5115
    %5394 = vmatprep.subr.mxu0 %v5118
    %5395 = vmatpush1.msra.mxu0 %v5117
    %5396 = vmatprep.subr.mxu0 %v5120
    %5397 = vmatpush1.msra.mxu0 %v5119
    %5398 = vmatprep.subr.mxu0 %v5122
    %5399 = vmatpush1.msra.mxu0 %v5121
    %5400 = vmatprep.subr.mxu0 %v5124
    %5401 = vmatpush1.msra.mxu0 %v5123
    %5402 = vmatprep.subr.mxu0 %v5126
    %5403 = vmatpush1.msra.mxu0 %v5125
    %5404 = vmatprep.subr.mxu0 %v5128
    %5405 = vmatpush1.msra.mxu0 %v5127
    %5406 = vmatprep.subr.mxu0 %v5130
    %5407 = vmatpush1.msra.mxu0 %v5129
    %5408 = vmatprep.subr.mxu0 %v5132
    %5409 = vmatpush1.msra.mxu0 %v5131
    %5410 = vmatprep.subr.mxu0 %v5134
    %5411 = vmatpush1.msra.mxu0 %v5133
    %5412 = vmatprep.subr.mxu0 %v5136
    %5413 = vmatpush1.msra.mxu0 %v5135
    %5414 = vmatprep.mubr.f32.mxu0 %v4879
    %5415 = vmatmul.mubr.f32.gmra.mrb[0].mxu0 %v4877
    %v5416 = vpop.f32.mrb[0].mxu0
    %v5417 = vadd.f32 %v5346, %v5416
    %v5418 = vpop.f32.mrb[0].mxu0
    %v5419 = vadd.f32 %v5348, %v5418
    %5420 = vdwg.mxu0
    %v5421 = vadd.f32 %v4863, %v5417
    %v5422 = vadd.f32 %v4864, %v5419
    %v5423 = vld [vmem:[#allocation12] sm:$0x3]
    %v5425 = vlaneseq
    %v5426 = vshrl.u32 %v5425, 7
    %v5427 = vsub.s32 0, %v5426
    %v5428 = vrot.slane %v5423, %v5427
    %v5429 = vlaneseq
    %v5430 = vshrl.u32 %v5429, 7
    %v5431 = vsub.s32 1, %v5430
    %v5432 = vrot.slane %v5423, %v5431
    %v5435 = vadd.f32 %v5421, %v5428
    %v5436 = vadd.f32 %v5422, %v5432
    %v5437 = vmax.f32 %v5435, 0.0
    %v5438 = vmax.f32 %v5436, 0.0
    %v5439 = vld [vmem:[%s8] sm:$0xff]
    %v5440 = vld [vmem:[%s8 + $0x8] sm:$0xff]
    %v5441 = vld [vmem:[%s8 + $0x10] sm:$0xff]
    %v5442 = vld [vmem:[%s8 + $0x18] sm:$0xff]
    %v5443 = vld [vmem:[%s8 + $0x20] sm:$0xff]
    %v5444 = vld [vmem:[%s8 + $0x28] sm:$0xff]
    %v5445 = vld [vmem:[%s8 + $0x30] sm:$0xff]
    %v5446 = vld [vmem:[%s8 + $0x38] sm:$0xff]
    %v5447 = vld [vmem:[%s8 + $0x40] sm:$0xff]
    %v5448 = vld [vmem:[%s8 + $0x48] sm:$0xff]
    %v5449 = vld [vmem:[%s8 + $0x50] sm:$0xff]
    %v5450 = vld [vmem:[%s8 + $0x58] sm:$0xff]
    %v5451 = vld [vmem:[%s8 + $0x60] sm:$0xff]
    %v5452 = vld [vmem:[%s8 + $0x68] sm:$0xff]
    %v5453 = vld [vmem:[%s8 + $0x70] sm:$0xff]
    %v5454 = vld [vmem:[%s8 + $0x78] sm:$0xff]
    %v5455 = vld [vmem:[%s8 + $0x80] sm:$0xff]
    %v5456 = vld [vmem:[%s8 + $0x88] sm:$0xff]
    %v5457 = vld [vmem:[%s8 + $0x90] sm:$0xff]
    %v5458 = vld [vmem:[%s8 + $0x98] sm:$0xff]
    %v5459 = vld [vmem:[%s8 + $0xa0] sm:$0xff]
    %v5460 = vld [vmem:[%s8 + $0xa8] sm:$0xff]
    %v5461 = vld [vmem:[%s8 + $0xb0] sm:$0xff]
    %v5462 = vld [vmem:[%s8 + $0xb8] sm:$0xff]
    %v5463 = vld [vmem:[%s8 + $0xc0] sm:$0xff]
    %v5464 = vld [vmem:[%s8 + $0xc8] sm:$0xff]
    %v5465 = vld [vmem:[%s8 + $0xd0] sm:$0xff]
    %v5466 = vld [vmem:[%s8 + $0xd8] sm:$0xff]
    %v5467 = vld [vmem:[%s8 + $0xe0] sm:$0xff]
    %v5468 = vld [vmem:[%s8 + $0xe8] sm:$0xff]
    %v5469 = vld [vmem:[%s8 + $0xf0] sm:$0xff]
    %v5470 = vld [vmem:[%s8 + $0xf8] sm:$0xff]
    %v5471 = vld [vmem:[#allocation13] sm:$0x1]
    %v5473 = vlaneseq
    %v5474 = vshrl.u32 %v5473, 7
    %v5475 = vsub.s32 0, %v5474
    %v5476 = vrot.slane %v5471, %v5475
    %5478 = vmatprep.subr.mxu0 0.0
    %5479 = vmatpush1.msra.mxu0 %v5439
    %5480 = vmatprep.subr.mxu0 0.0
    %5481 = vmatpush1.msra.mxu0 %v5440
    %5482 = vmatprep.subr.mxu0 0.0
    %5483 = vmatpush1.msra.mxu0 %v5441
    %5484 = vmatprep.subr.mxu0 0.0
    %5485 = vmatpush1.msra.mxu0 %v5442
    %5486 = vmatprep.subr.mxu0 0.0
    %5487 = vmatpush1.msra.mxu0 %v5443
    %5488 = vmatprep.subr.mxu0 0.0
    %5489 = vmatpush1.msra.mxu0 %v5444
    %5490 = vmatprep.subr.mxu0 0.0
    %5491 = vmatpush1.msra.mxu0 %v5445
    %5492 = vmatprep.subr.mxu0 0.0
    %5493 = vmatpush1.msra.mxu0 %v5446
    %5494 = vmatprep.subr.mxu0 0.0
    %5495 = vmatpush1.msra.mxu0 %v5447
    %5496 = vmatprep.subr.mxu0 0.0
    %5497 = vmatpush1.msra.mxu0 %v5448
    %5498 = vmatprep.subr.mxu0 0.0
    %5499 = vmatpush1.msra.mxu0 %v5449
    %5500 = vmatprep.subr.mxu0 0.0
    %5501 = vmatpush1.msra.mxu0 %v5450
    %5502 = vmatprep.subr.mxu0 0.0
    %5503 = vmatpush1.msra.mxu0 %v5451
    %5504 = vmatprep.subr.mxu0 0.0
    %5505 = vmatpush1.msra.mxu0 %v5452
    %5506 = vmatprep.subr.mxu0 0.0
    %5507 = vmatpush1.msra.mxu0 %v5453
    %5508 = vmatprep.subr.mxu0 0.0
    %5509 = vmatpush1.msra.mxu0 %v5454
    %5510 = vmatprep.subr.mxu0 0.0
    %5511 = vmatpush1.msra.mxu0 %v5455
    %5512 = vmatprep.subr.mxu0 0.0
    %5513 = vmatpush1.msra.mxu0 %v5456
    %5514 = vmatprep.subr.mxu0 0.0
    %5515 = vmatpush1.msra.mxu0 %v5457
    %5516 = vmatprep.subr.mxu0 0.0
    %5517 = vmatpush1.msra.mxu0 %v5458
    %5518 = vmatprep.subr.mxu0 0.0
    %5519 = vmatpush1.msra.mxu0 %v5459
    %5520 = vmatprep.subr.mxu0 0.0
    %5521 = vmatpush1.msra.mxu0 %v5460
    %5522 = vmatprep.subr.mxu0 0.0
    %5523 = vmatpush1.msra.mxu0 %v5461
    %5524 = vmatprep.subr.mxu0 0.0
    %5525 = vmatpush1.msra.mxu0 %v5462
    %5526 = vmatprep.subr.mxu0 0.0
    %5527 = vmatpush1.msra.mxu0 %v5463
    %5528 = vmatprep.subr.mxu0 0.0
    %5529 = vmatpush1.msra.mxu0 %v5464
    %5530 = vmatprep.subr.mxu0 0.0
    %5531 = vmatpush1.msra.mxu0 %v5465
    %5532 = vmatprep.subr.mxu0 0.0
    %5533 = vmatpush1.msra.mxu0 %v5466
    %5534 = vmatprep.subr.mxu0 0.0
    %5535 = vmatpush1.msra.mxu0 %v5467
    %5536 = vmatprep.subr.mxu0 0.0
    %5537 = vmatpush1.msra.mxu0 %v5468
    %5538 = vmatprep.subr.mxu0 0.0
    %5539 = vmatpush1.msra.mxu0 %v5469
    %5540 = vmatprep.subr.mxu0 0.0
    %5541 = vmatpush1.msra.mxu0 %v5470
    %5542 = vmatprep.mubr.f32.mxu0 %v5438
    %5543 = vmatmul.mubr.f32.gmra.mrb[0].mxu0 %v5437
    %v5544 = vpop.f32.mrb[0].mxu0
    %v5545 = vadd.f32 %v5476, %v5544
    %v5546 = vpop.f32.mrb[0].mxu0
    %5547 = vdwg.mxu0
    %vm5548 = vcmask 25600
    %5549 = vst.msk [vmem:[#allocation15] sm:$0x3] %vm5548, %v5545
    // Predicated region
    $region86: #{dqn_forward.1} parent=1 // pred_check
      _
    $region87: #{dqn_forward.1} parent=1 // pred_check_branch
      %5551 = sbr.rel (0) target = $region89
    $region88: #{dqn_forward.1} parent=1 // pred_region
      %s5553 = ssub.s32 32, 32
      %5554 = vsyncadd [#allocation6], %s5553
      %s5556 = sshll.u32 [#allocation15], 4
      %s5557 = int_to_ptr.vmem [resolvable:$true] %s5556
      %5559 = dma.vmem_to_hbm [thread:$0]  %s5557, 32, %s10, [#allocation6]
    $region89: #{dqn_forward.1} parent=1 // pred_fallthru
      _
    // Predicated region
    $region90: #{dqn_forward.1} parent=1 // pred_check
      _
    $region91: #{dqn_forward.1} parent=1 // pred_check_branch
      %5561 = sbr.rel (0) target = $region93
    $region92: #{dqn_forward.1} parent=1 // pred_region
      %5562 = dma.done [#allocation6], 32
    $region93: #{dqn_forward.1} parent=1 // pred_fallthru
      _
    %5563 = vsyncpa [#allocation5], 1
    %5564 = vsyncpa [#allocation8], 1
    %5565 = vsyncpa [#allocation11], 1
    %5566 = vsyncpa [#allocation14], 1
    %5567 = vsyncpa [#allocation6], 1
  %5568 = vsyncmov [#allocation3]
  %s5569 = vpop.sfrf %5568
  %p5570 = scmp.eq.s32.totalorder %s5569, 0
  %p5571 = pneg %p5570
  %5573 = shalt.err (%p5571)
  %s5574 = scalar_lea.sflag [#allocation3], 1
  %5575 = vsyncmov %s5574
  %s5576 = vpop.sfrf %5575
  %p5577 = scmp.eq.s32.totalorder %s5576, 0
  %p5578 = pneg %p5577
  %5580 = shalt.err (%p5578)

</llo_original>
